<compile_context>
chip_gen: v7x
topology: tpu7x:2x2x1
jax: 0.10.0
libtpu: 0.0.40
codegen_flags: <defaults>
</compile_context>

<pallas_src>
import functools
import math

import jax
import jax.numpy as jnp
from jax.experimental import pallas as pl
from jax.experimental.pallas import tpu as pltpu


def _gelu_tanh(x):
    # tanh-approximate GELU (BERT's erf GELU to ~1e-3); tanh runs on the EUP.
    c = 0.7978845608028654  # sqrt(2/pi)
    return 0.5 * x * (1.0 + jnp.tanh(c * (x + 0.044715 * x * x * x)))


def _layer_norm(x, gamma, beta, eps=1e-12):
    mean = jnp.mean(x, axis=-1, keepdims=True)
    var = jnp.mean(jnp.square(x - mean), axis=-1, keepdims=True)
    inv = jax.lax.rsqrt(var + eps)
    return (x - mean) * inv * gamma + beta


def bert_layer_kernel(
    xq_ref, xfull_ref, mask_ref,
    wq_ref, bq_ref, wk_ref, bk_ref, wv_ref, bv_ref,
    wo_ref, bo_ref, ln1g_ref, ln1b_ref,
    wi_ref, bi_ref, w2_ref, b2_ref, ln2g_ref, ln2b_ref,
    out_ref,
    *, num_heads: int,
):
    f32 = jnp.float32
    bf16 = jnp.bfloat16

    x_q = xq_ref[0].astype(f32)          # (TQ, H) query tile (residual path, f32)
    x_full = xfull_ref[0]                # (S, H)  full sequence for K/V
    mask = mask_ref[0, 0].astype(f32)    # (1, S)  additive bias

    TQ, H = x_q.shape
    S = x_full.shape[0]
    d = H // num_heads
    scale = 1.0 / math.sqrt(d)

    xq_b = x_q.astype(bf16)
    xf_b = x_full.astype(bf16)

    # Projections: bf16 MXU inputs, f32 accumulation; biases added in f32.
    # Fold the 1/sqrt(head_dim) scale into q once (cheaper than scaling scores).
    q = (jnp.dot(xq_b, wq_ref[...], preferred_element_type=f32) + bq_ref[...]) * scale
    k = jnp.dot(xf_b, wk_ref[...], preferred_element_type=f32) + bk_ref[...]
    v = jnp.dot(xf_b, wv_ref[...], preferred_element_type=f32) + bv_ref[...]

    # Batched-head attention: one relayout to (heads, seq, d), then batched matmuls.
    qh = jnp.transpose(q.reshape(TQ, num_heads, d), (1, 0, 2)).astype(bf16)  # (h, TQ, d)
    kh = jnp.transpose(k.reshape(S, num_heads, d), (1, 0, 2)).astype(bf16)   # (h, S, d)
    vh = jnp.transpose(v.reshape(S, num_heads, d), (1, 0, 2)).astype(bf16)   # (h, S, d)

    scores = jnp.einsum('hqd,hkd->hqk', qh, kh,
                        preferred_element_type=f32)                          # (h, TQ, S)
    scores = scores + mask[None, :, :]                                       # broadcast once

    # Softmax in f32; reciprocal on the EUP.
    scores = scores - jnp.max(scores, axis=-1, keepdims=True)
    probs = jnp.exp(scores)
    denom = jnp.sum(probs, axis=-1, keepdims=True)
    probs = probs * pl.reciprocal(denom, approx=True)

    ctx = jnp.einsum('hqk,hkd->hqd', probs.astype(bf16), vh,
                     preferred_element_type=f32)                             # (h, TQ, d)
    ctx = jnp.transpose(ctx, (1, 0, 2)).reshape(TQ, H)                       # (TQ, H)

    # Attention output projection + residual + LayerNorm (f32).
    attn_out = jnp.dot(ctx.astype(bf16), wo_ref[...],
                       preferred_element_type=f32) + bo_ref[...]
    h1 = _layer_norm(x_q + attn_out, ln1g_ref[...], ln1b_ref[...])

    # Feed-forward (intermediate + output) + residual + LayerNorm.
    inter = jnp.dot(h1.astype(bf16), wi_ref[...],
                    preferred_element_type=f32) + bi_ref[...]
    inter = _gelu_tanh(inter)
    ffn_out = jnp.dot(inter.astype(bf16), w2_ref[...],
                      preferred_element_type=f32) + b2_ref[...]
    h2 = _layer_norm(h1 + ffn_out, ln2g_ref[...], ln2b_ref[...])

    out_ref[0] = h2.astype(out_ref.dtype)


def _choose_q_tile(S):
    # Largest "nice" divisor of S for the query-tile axis (multiples of 128),
    # else fall back to the full sequence (BlockSpec full-dim exception).
    for cand in (512, 256, 128):
        if S % cand == 0:
            return cand
    return S


def _vmem_limit_bytes(S, TQ, H, I, num_heads):
    BF16, F32 = 2, 4
    weight_bytes = (4 * H * H + 2 * H * I) * BF16
    small_bytes = (6 * H + I + 4 * H) * F32            # biases + LN params
    io_blocks = (TQ * H + S * H + S + TQ * H) * F32    # xq + xfull + mask + out
    pipeline = 2 * (weight_bytes + small_bytes + io_blocks)   # double-buffered DMA
    temps = (3 * S * H                                  # q/k/v (f32 accumulators)
             + 2 * num_heads * TQ * S                   # scores + probs
             + num_heads * TQ * (H // num_heads)        # context
             + 2 * TQ * I                               # FFN intermediate
             + 4 * TQ * H) * F32                        # residual / LN temporaries
    est = pipeline + temps + (4 << 20)                  # headroom
    return int(min(max(est, 32 << 20), 64 << 20))


def bert_layer(x, attention_mask, params, *, num_heads):
    B, S, H = x.shape
    I = params["wi"].shape[1]
    TQ = _choose_q_tile(S)
    num_q_tiles = S // TQ

    # Weight / parameter blocks are grid-invariant (constant block index).
    full2d = lambda r, c: pl.BlockSpec((r, c), lambda b, t: (0, 0))

    return pl.pallas_call(
        functools.partial(bert_layer_kernel, num_heads=num_heads),
        out_shape=jax.ShapeDtypeStruct((B, S, H), x.dtype),
        grid_spec=pltpu.PrefetchScalarGridSpec(
            num_scalar_prefetch=0,
            grid=(B, num_q_tiles),
            in_specs=[
                pl.BlockSpec((1, TQ, H), lambda b, t: (b, t, 0)),       # query tile
                pl.BlockSpec((1, S, H), lambda b, t: (b, 0, 0)),        # full seq for K/V
                pl.BlockSpec((1, 1, 1, S), lambda b, t: (b, 0, 0, 0)),  # extended attn mask
                full2d(H, H), full2d(1, H),                             # Wq, bq
                full2d(H, H), full2d(1, H),                             # Wk, bk
                full2d(H, H), full2d(1, H),                             # Wv, bv
                full2d(H, H), full2d(1, H),                             # Wo, bo
                full2d(1, H), full2d(1, H),                             # LN1 gamma, beta
                full2d(H, I), full2d(1, I),                             # Wi, bi
                full2d(I, H), full2d(1, H),                             # W2, b2
                full2d(1, H), full2d(1, H),                             # LN2 gamma, beta
            ],
            out_specs=pl.BlockSpec((1, TQ, H), lambda b, t: (b, t, 0)),
        ),
        compiler_params=pltpu.CompilerParams(
            dimension_semantics=("parallel", "parallel"),
            vmem_limit_bytes=_vmem_limit_bytes(S, TQ, H, I, num_heads),
        ),
    )(
        x, x, attention_mask,
        params["wq"], params["bq"], params["wk"], params["bk"],
        params["wv"], params["bv"], params["wo"], params["bo"],
        params["ln1_g"], params["ln1_b"],
        params["wi"], params["bi"], params["w2"], params["b2"],
        params["ln2_g"], params["ln2_b"],
    )


def bert_encoder_forward(hidden_states, attention_mask, scc_params, *, num_heads):
    # Eval mode of BertEncoder: inference_layers = self.scc_layer, applied in order.
    # output_hidden_states / output_attentions are False -> outputs = (hidden_states,)
    for params in scc_params:
        hidden_states = bert_layer(hidden_states, attention_mask, params, num_heads=num_heads)
    return (hidden_states,)


def init_layer_params(key, H, I):
    # Weights stored in bf16 (halves HBM traffic / VMEM residency; MXU-native).
    # Biases and LayerNorm params stay f32 (added to f32 accumulators).
    ks = jax.random.split(key, 6)
    w = lambda k, shape: (jax.random.normal(k, shape, jnp.float32) * 0.02).astype(jnp.bfloat16)
    zeros = lambda n: jnp.zeros((1, n), jnp.float32)
    ones = lambda n: jnp.ones((1, n), jnp.float32)
    return dict(
        wq=w(ks[0], (H, H)), bq=zeros(H),
        wk=w(ks[1], (H, H)), bk=zeros(H),
        wv=w(ks[2], (H, H)), bv=zeros(H),
        wo=w(ks[3], (H, H)), bo=zeros(H),
        ln1_g=ones(H), ln1_b=zeros(H),
        wi=w(ks[4], (H, I)), bi=zeros(I),
        w2=w(ks[5], (I, H)), b2=zeros(H),
        ln2_g=ones(H), ln2_b=zeros(H),
    )


if __name__ == "__main__":
    # Small synthetic config (config.num_hidden_layers=12, scc_n_layer=6,
    # compress_ratio=2; only scc layers execute in eval mode).
    # NOTE: these toy shapes (H=32, S=8) cannot exercise the MXU / pipeline;
    # benchmark with realistic BERT-base shapes (S>=128, H=768, I=3072).
    B, S, H, NUM_HEADS, INTER = 2, 8, 32, 4, 64
    SCC_N_LAYER = 6

    key = jax.random.PRNGKey(0)
    k_x, k_p = jax.random.split(key)

    hidden_states = jax.random.normal(k_x, (B, S, H), jnp.float32)

    # Extended additive attention mask [B,1,1,S]: batch 0 fully visible,
    # batch 1 has its last 2 positions masked with -10000 (HF convention).
    lengths = jnp.array([S, S - 2])
    visible = (jnp.arange(S)[None, :] < lengths[:, None]).astype(jnp.float32)
    attention_mask = ((1.0 - visible) * -10000.0).reshape(B, 1, 1, S)

    layer_keys = jax.random.split(k_p, SCC_N_LAYER)
    scc_params = [init_layer_params(k, H, INTER) for k in layer_keys]

    fwd = jax.jit(
        lambda x, m, p: bert_encoder_forward(x, m, p, num_heads=NUM_HEADS)
    )
    outputs = fwd(hidden_states, attention_mask, scc_params)
    jax.block_until_ready(outputs)

    assert outputs[0].shape == (B, S, H)
    assert bool(jnp.all(jnp.isfinite(outputs[0])))
    print("KERNEL_OK")
</pallas_src>

<mosaic_0001>
module attributes {stable_mosaic.version = 11 : i64} {
  func.func @bert_layer_kernel(%arg0: i32, %arg1: i32, %arg2: memref<1x8x32xf32, #tpu.memory_space<vmem>>, %arg3: memref<1x8x32xf32, #tpu.memory_space<vmem>>, %arg4: memref<1x1x1x8xf32, #tpu.memory_space<vmem>>, %arg5: memref<32x32xbf16, #tpu.memory_space<vmem>>, %arg6: memref<1x32xf32, #tpu.memory_space<vmem>>, %arg7: memref<32x32xbf16, #tpu.memory_space<vmem>>, %arg8: memref<1x32xf32, #tpu.memory_space<vmem>>, %arg9: memref<32x32xbf16, #tpu.memory_space<vmem>>, %arg10: memref<1x32xf32, #tpu.memory_space<vmem>>, %arg11: memref<32x32xbf16, #tpu.memory_space<vmem>>, %arg12: memref<1x32xf32, #tpu.memory_space<vmem>>, %arg13: memref<1x32xf32, #tpu.memory_space<vmem>>, %arg14: memref<1x32xf32, #tpu.memory_space<vmem>>, %arg15: memref<32x64xbf16, #tpu.memory_space<vmem>>, %arg16: memref<1x64xf32, #tpu.memory_space<vmem>>, %arg17: memref<64x32xbf16, #tpu.memory_space<vmem>>, %arg18: memref<1x32xf32, #tpu.memory_space<vmem>>, %arg19: memref<1x32xf32, #tpu.memory_space<vmem>>, %arg20: memref<1x32xf32, #tpu.memory_space<vmem>>, %arg21: memref<1x8x32xf32, #tpu.memory_space<vmem>>) attributes {dimension_semantics = [#tpu.dimension_semantics<parallel>, #tpu.dimension_semantics<parallel>], iteration_bounds = array<i64: 2, 1>, scalar_prefetch = 0 : i64, scratch_operands = 0 : i64, tpu.core_type = #tpu.core_type<tc>, window_params = [{transform_indices = @transform_0, window_bounds = array<i64: 1, 8, 32>}, {transform_indices = @transform_1, window_bounds = array<i64: 1, 8, 32>}, {transform_indices = @transform_2, window_bounds = array<i64: 1, 1, 1, 8>}, {pipeline_mode = #tpu.pipeline_mode<synchronous>, transform_indices = @transform_3, window_bounds = array<i64: 32, 32>}, {pipeline_mode = #tpu.pipeline_mode<synchronous>, transform_indices = @transform_4, window_bounds = array<i64: 1, 32>}, {pipeline_mode = #tpu.pipeline_mode<synchronous>, transform_indices = @transform_5, window_bounds = array<i64: 32, 32>}, {pipeline_mode = #tpu.pipeline_mode<synchronous>, transform_indices = @transform_6, window_bounds = array<i64: 1, 32>}, {pipeline_mode = #tpu.pipeline_mode<synchronous>, transform_indices = @transform_7, window_bounds = array<i64: 32, 32>}, {pipeline_mode = #tpu.pipeline_mode<synchronous>, transform_indices = @transform_8, window_bounds = array<i64: 1, 32>}, {pipeline_mode = #tpu.pipeline_mode<synchronous>, transform_indices = @transform_9, window_bounds = array<i64: 32, 32>}, {pipeline_mode = #tpu.pipeline_mode<synchronous>, transform_indices = @transform_10, window_bounds = array<i64: 1, 32>}, {pipeline_mode = #tpu.pipeline_mode<synchronous>, transform_indices = @transform_11, window_bounds = array<i64: 1, 32>}, {pipeline_mode = #tpu.pipeline_mode<synchronous>, transform_indices = @transform_12, window_bounds = array<i64: 1, 32>}, {pipeline_mode = #tpu.pipeline_mode<synchronous>, transform_indices = @transform_13, window_bounds = array<i64: 32, 64>}, {pipeline_mode = #tpu.pipeline_mode<synchronous>, transform_indices = @transform_14, window_bounds = array<i64: 1, 64>}, {pipeline_mode = #tpu.pipeline_mode<synchronous>, transform_indices = @transform_15, window_bounds = array<i64: 64, 32>}, {pipeline_mode = #tpu.pipeline_mode<synchronous>, transform_indices = @transform_16, window_bounds = array<i64: 1, 32>}, {pipeline_mode = #tpu.pipeline_mode<synchronous>, transform_indices = @transform_17, window_bounds = array<i64: 1, 32>}, {pipeline_mode = #tpu.pipeline_mode<synchronous>, transform_indices = @transform_18, window_bounds = array<i64: 1, 32>}, {transform_indices = @transform_19, window_bounds = array<i64: 1, 8, 32>}]} {
    %c0 = arith.constant 0 : index
    %c0_0 = arith.constant 0 : index
    %c0_1 = arith.constant 0 : index
    %0 = vector.load %arg2[%c0, %c0_0, %c0_1] : memref<1x8x32xf32, #tpu.memory_space<vmem>>, vector<1x8x32xf32>
    %1 = vector.shape_cast %0 : vector<1x8x32xf32> to vector<8x32xf32>
    %c0_2 = arith.constant 0 : index
    %c0_3 = arith.constant 0 : index
    %c0_4 = arith.constant 0 : index
    %2 = vector.load %arg3[%c0_2, %c0_3, %c0_4] : memref<1x8x32xf32, #tpu.memory_space<vmem>>, vector<1x8x32xf32>
    %3 = vector.shape_cast %2 : vector<1x8x32xf32> to vector<8x32xf32>
    %c0_5 = arith.constant 0 : index
    %c0_6 = arith.constant 0 : index
    %c0_7 = arith.constant 0 : index
    %c0_8 = arith.constant 0 : index
    %4 = vector.load %arg4[%c0_5, %c0_6, %c0_7, %c0_8] : memref<1x1x1x8xf32, #tpu.memory_space<vmem>>, vector<1x1x1x8xf32>
    %5 = vector.shape_cast %4 : vector<1x1x1x8xf32> to vector<1x8xf32>
    %6 = arith.truncf %1 : vector<8x32xf32> to vector<8x32xbf16>
    %7 = arith.truncf %3 : vector<8x32xf32> to vector<8x32xbf16>
    %c0_9 = arith.constant 0 : index
    %c0_10 = arith.constant 0 : index
    %8 = vector.load %arg5[%c0_9, %c0_10] : memref<32x32xbf16, #tpu.memory_space<vmem>>, vector<32x32xbf16>
    %cst = arith.constant dense<0.000000e+00> : vector<8x32xf32>
    %9 = tpu.matmul %6, %8, %cst {dimension_numbers = #tpu.dot_dimension_numbers<[1], [0], [0], [1], [0, 0, 1, 1], [], []>} : vector<8x32xbf16>, vector<32x32xbf16>, vector<8x32xf32> -> vector<8x32xf32>
    %c0_11 = arith.constant 0 : index
    %c0_12 = arith.constant 0 : index
    %10 = vector.load %arg6[%c0_11, %c0_12] : memref<1x32xf32, #tpu.memory_space<vmem>>, vector<1x32xf32>
    %11 = vector.broadcast %10 : vector<1x32xf32> to vector<8x32xf32>
    %12 = arith.addf %9, %11 : vector<8x32xf32>
    %cst_13 = arith.constant 0.353553385 : f32
    %13 = vector.broadcast %cst_13 : f32 to vector<8x32xf32>
    %14 = arith.mulf %12, %13 : vector<8x32xf32>
    %c0_14 = arith.constant 0 : index
    %c0_15 = arith.constant 0 : index
    %15 = vector.load %arg7[%c0_14, %c0_15] : memref<32x32xbf16, #tpu.memory_space<vmem>>, vector<32x32xbf16>
    %cst_16 = arith.constant dense<0.000000e+00> : vector<8x32xf32>
    %16 = tpu.matmul %7, %15, %cst_16 {dimension_numbers = #tpu.dot_dimension_numbers<[1], [0], [0], [1], [0, 0, 1, 1], [], []>} : vector<8x32xbf16>, vector<32x32xbf16>, vector<8x32xf32> -> vector<8x32xf32>
    %c0_17 = arith.constant 0 : index
    %c0_18 = arith.constant 0 : index
    %17 = vector.load %arg8[%c0_17, %c0_18] : memref<1x32xf32, #tpu.memory_space<vmem>>, vector<1x32xf32>
    %18 = vector.broadcast %17 : vector<1x32xf32> to vector<8x32xf32>
    %19 = arith.addf %16, %18 : vector<8x32xf32>
    %c0_19 = arith.constant 0 : index
    %c0_20 = arith.constant 0 : index
    %20 = vector.load %arg9[%c0_19, %c0_20] : memref<32x32xbf16, #tpu.memory_space<vmem>>, vector<32x32xbf16>
    %cst_21 = arith.constant dense<0.000000e+00> : vector<8x32xf32>
    %21 = tpu.matmul %7, %20, %cst_21 {dimension_numbers = #tpu.dot_dimension_numbers<[1], [0], [0], [1], [0, 0, 1, 1], [], []>} : vector<8x32xbf16>, vector<32x32xbf16>, vector<8x32xf32> -> vector<8x32xf32>
    %c0_22 = arith.constant 0 : index
    %c0_23 = arith.constant 0 : index
    %22 = vector.load %arg10[%c0_22, %c0_23] : memref<1x32xf32, #tpu.memory_space<vmem>>, vector<1x32xf32>
    %23 = vector.broadcast %22 : vector<1x32xf32> to vector<8x32xf32>
    %24 = arith.addf %21, %23 : vector<8x32xf32>
    %25 = vector.shape_cast %14 : vector<8x32xf32> to vector<8x4x8xf32>
    %26 = tpu.transpose %25, [1, 0, 2] : vector<8x4x8xf32> -> vector<4x8x8xf32>
    %27 = arith.truncf %26 : vector<4x8x8xf32> to vector<4x8x8xbf16>
    %28 = vector.shape_cast %19 : vector<8x32xf32> to vector<8x4x8xf32>
    %29 = tpu.transpose %28, [1, 0, 2] : vector<8x4x8xf32> -> vector<4x8x8xf32>
    %30 = arith.truncf %29 : vector<4x8x8xf32> to vector<4x8x8xbf16>
    %31 = vector.shape_cast %24 : vector<8x32xf32> to vector<8x4x8xf32>
    %32 = tpu.transpose %31, [1, 0, 2] : vector<8x4x8xf32> -> vector<4x8x8xf32>
    %33 = arith.truncf %32 : vector<4x8x8xf32> to vector<4x8x8xbf16>
    "tpu.trace_start"() <{level = 10 : i32, message = "hqd,hkd->hqk"}> : () -> ()
    %cst_24 = arith.constant dense<0.000000e+00> : vector<4x8x8xf32>
    %34 = tpu.matmul %27, %30, %cst_24 {dimension_numbers = #tpu.dot_dimension_numbers<[2], [2], [1], [1], [0, 0, 0, 1, 1, 1], [0], [0]>} : vector<4x8x8xbf16>, vector<4x8x8xbf16>, vector<4x8x8xf32> -> vector<4x8x8xf32>
    "tpu.trace_stop"() : () -> ()
    %35 = vector.shape_cast %5 : vector<1x8xf32> to vector<1x1x8xf32>
    %36 = vector.broadcast %35 : vector<1x1x8xf32> to vector<4x8x8xf32>
    %37 = arith.addf %34, %36 : vector<4x8x8xf32>
    %cst_25 = arith.constant dense<0xFF800000> : vector<4x8xf32>
    %38 = vector.multi_reduction <maximumf>, %37, %cst_25 [2] : vector<4x8x8xf32> to vector<4x8xf32>
    %39 = vector.shape_cast %38 : vector<4x8xf32> to vector<4x8x1xf32>
    %40 = vector.broadcast %39 : vector<4x8x1xf32> to vector<4x8x8xf32>
    %41 = arith.subf %37, %40 : vector<4x8x8xf32>
    %42 = math.exp %41 : vector<4x8x8xf32>
    %cst_26 = arith.constant dense<0.000000e+00> : vector<4x8xf32>
    %43 = vector.multi_reduction <add>, %42, %cst_26 [2] : vector<4x8x8xf32> to vector<4x8xf32>
    %44 = vector.shape_cast %43 : vector<4x8xf32> to vector<4x8x1xf32>
    %45 = tpu.reciprocal %44 {approx = true} : vector<4x8x1xf32> -> vector<4x8x1xf32>
    %46 = vector.broadcast %45 : vector<4x8x1xf32> to vector<4x8x8xf32>
    %47 = arith.mulf %42, %46 : vector<4x8x8xf32>
    %48 = arith.truncf %47 : vector<4x8x8xf32> to vector<4x8x8xbf16>
    "tpu.trace_start"() <{level = 10 : i32, message = "hqk,hkd->hqd"}> : () -> ()
    %cst_27 = arith.constant dense<0.000000e+00> : vector<4x8x8xf32>
    %49 = tpu.matmul %48, %33, %cst_27 {dimension_numbers = #tpu.dot_dimension_numbers<[2], [1], [1], [2], [0, 0, 0, 1, 1, 2], [0], [0]>} : vector<4x8x8xbf16>, vector<4x8x8xbf16>, vector<4x8x8xf32> -> vector<4x8x8xf32>
    "tpu.trace_stop"() : () -> ()
    %50 = tpu.transpose %49, [1, 0, 2] : vector<4x8x8xf32> -> vector<8x4x8xf32>
    %51 = vector.shape_cast %50 : vector<8x4x8xf32> to vector<8x32xf32>
    %52 = arith.truncf %51 : vector<8x32xf32> to vector<8x32xbf16>
    %c0_28 = arith.constant 0 : index
    %c0_29 = arith.constant 0 : index
    %53 = vector.load %arg11[%c0_28, %c0_29] : memref<32x32xbf16, #tpu.memory_space<vmem>>, vector<32x32xbf16>
    %cst_30 = arith.constant dense<0.000000e+00> : vector<8x32xf32>
    %54 = tpu.matmul %52, %53, %cst_30 {dimension_numbers = #tpu.dot_dimension_numbers<[1], [0], [0], [1], [0, 0, 1, 1], [], []>} : vector<8x32xbf16>, vector<32x32xbf16>, vector<8x32xf32> -> vector<8x32xf32>
    %c0_31 = arith.constant 0 : index
    %c0_32 = arith.constant 0 : index
    %55 = vector.load %arg12[%c0_31, %c0_32] : memref<1x32xf32, #tpu.memory_space<vmem>>, vector<1x32xf32>
    %56 = vector.broadcast %55 : vector<1x32xf32> to vector<8x32xf32>
    %57 = arith.addf %54, %56 : vector<8x32xf32>
    %58 = arith.addf %1, %57 : vector<8x32xf32>
    %c0_33 = arith.constant 0 : index
    %c0_34 = arith.constant 0 : index
    %59 = vector.load %arg13[%c0_33, %c0_34] : memref<1x32xf32, #tpu.memory_space<vmem>>, vector<1x32xf32>
    %c0_35 = arith.constant 0 : index
    %c0_36 = arith.constant 0 : index
    %60 = vector.load %arg14[%c0_35, %c0_36] : memref<1x32xf32, #tpu.memory_space<vmem>>, vector<1x32xf32>
    %cst_37 = arith.constant dense<0.000000e+00> : vector<8xf32>
    %61 = vector.multi_reduction <add>, %58, %cst_37 [1] : vector<8x32xf32> to vector<8xf32>
    %62 = vector.shape_cast %61 : vector<8xf32> to vector<8x1xf32>
    %cst_38 = arith.constant 3.200000e+01 : f32
    %63 = vector.broadcast %cst_38 : f32 to vector<8x1xf32>
    %64 = arith.divf %62, %63 : vector<8x1xf32>
    %65 = vector.broadcast %64 : vector<8x1xf32> to vector<8x32xf32>
    %66 = arith.subf %58, %65 : vector<8x32xf32>
    %67 = arith.mulf %66, %66 : vector<8x32xf32>
    %cst_39 = arith.constant dense<0.000000e+00> : vector<8xf32>
    %68 = vector.multi_reduction <add>, %67, %cst_39 [1] : vector<8x32xf32> to vector<8xf32>
    %69 = vector.shape_cast %68 : vector<8xf32> to vector<8x1xf32>
    %cst_40 = arith.constant 3.200000e+01 : f32
    %70 = vector.broadcast %cst_40 : f32 to vector<8x1xf32>
    %71 = arith.divf %69, %70 : vector<8x1xf32>
    %cst_41 = arith.constant 9.99999996E-13 : f32
    %72 = vector.broadcast %cst_41 : f32 to vector<8x1xf32>
    %73 = arith.addf %71, %72 : vector<8x1xf32>
    %74 = math.rsqrt %73 : vector<8x1xf32>
    %75 = vector.broadcast %64 : vector<8x1xf32> to vector<8x32xf32>
    %76 = arith.subf %58, %75 : vector<8x32xf32>
    %77 = vector.broadcast %74 : vector<8x1xf32> to vector<8x32xf32>
    %78 = arith.mulf %76, %77 : vector<8x32xf32>
    %79 = vector.broadcast %59 : vector<1x32xf32> to vector<8x32xf32>
    %80 = arith.mulf %78, %79 : vector<8x32xf32>
    %81 = vector.broadcast %60 : vector<1x32xf32> to vector<8x32xf32>
    %82 = arith.addf %80, %81 : vector<8x32xf32>
    %83 = arith.truncf %82 : vector<8x32xf32> to vector<8x32xbf16>
    %c0_42 = arith.constant 0 : index
    %c0_43 = arith.constant 0 : index
    %84 = vector.load %arg15[%c0_42, %c0_43] : memref<32x64xbf16, #tpu.memory_space<vmem>>, vector<32x64xbf16>
    %cst_44 = arith.constant dense<0.000000e+00> : vector<8x64xf32>
    %85 = tpu.matmul %83, %84, %cst_44 {dimension_numbers = #tpu.dot_dimension_numbers<[1], [0], [0], [1], [0, 0, 1, 1], [], []>} : vector<8x32xbf16>, vector<32x64xbf16>, vector<8x64xf32> -> vector<8x64xf32>
    %c0_45 = arith.constant 0 : index
    %c0_46 = arith.constant 0 : index
    %86 = vector.load %arg16[%c0_45, %c0_46] : memref<1x64xf32, #tpu.memory_space<vmem>>, vector<1x64xf32>
    %87 = vector.broadcast %86 : vector<1x64xf32> to vector<8x64xf32>
    %88 = arith.addf %85, %87 : vector<8x64xf32>
    %cst_47 = arith.constant 5.000000e-01 : f32
    %89 = vector.broadcast %cst_47 : f32 to vector<8x64xf32>
    %90 = arith.mulf %89, %88 : vector<8x64xf32>
    %cst_48 = arith.constant 4.471500e-02 : f32
    %91 = vector.broadcast %cst_48 : f32 to vector<8x64xf32>
    %92 = arith.mulf %91, %88 : vector<8x64xf32>
    %93 = arith.mulf %92, %88 : vector<8x64xf32>
    %94 = arith.mulf %93, %88 : vector<8x64xf32>
    %95 = arith.addf %88, %94 : vector<8x64xf32>
    %cst_49 = arith.constant 0.797884583 : f32
    %96 = vector.broadcast %cst_49 : f32 to vector<8x64xf32>
    %97 = arith.mulf %96, %95 : vector<8x64xf32>
    %98 = math.tanh %97 : vector<8x64xf32>
    %cst_50 = arith.constant 1.000000e+00 : f32
    %99 = vector.broadcast %cst_50 : f32 to vector<8x64xf32>
    %100 = arith.addf %99, %98 : vector<8x64xf32>
    %101 = arith.mulf %90, %100 : vector<8x64xf32>
    %102 = arith.truncf %101 : vector<8x64xf32> to vector<8x64xbf16>
    %c0_51 = arith.constant 0 : index
    %c0_52 = arith.constant 0 : index
    %103 = vector.load %arg17[%c0_51, %c0_52] : memref<64x32xbf16, #tpu.memory_space<vmem>>, vector<64x32xbf16>
    %cst_53 = arith.constant dense<0.000000e+00> : vector<8x32xf32>
    %104 = tpu.matmul %102, %103, %cst_53 {dimension_numbers = #tpu.dot_dimension_numbers<[1], [0], [0], [1], [0, 0, 1, 1], [], []>} : vector<8x64xbf16>, vector<64x32xbf16>, vector<8x32xf32> -> vector<8x32xf32>
    %c0_54 = arith.constant 0 : index
    %c0_55 = arith.constant 0 : index
    %105 = vector.load %arg18[%c0_54, %c0_55] : memref<1x32xf32, #tpu.memory_space<vmem>>, vector<1x32xf32>
    %106 = vector.broadcast %105 : vector<1x32xf32> to vector<8x32xf32>
    %107 = arith.addf %104, %106 : vector<8x32xf32>
    %108 = arith.addf %82, %107 : vector<8x32xf32>
    %c0_56 = arith.constant 0 : index
    %c0_57 = arith.constant 0 : index
    %109 = vector.load %arg19[%c0_56, %c0_57] : memref<1x32xf32, #tpu.memory_space<vmem>>, vector<1x32xf32>
    %c0_58 = arith.constant 0 : index
    %c0_59 = arith.constant 0 : index
    %110 = vector.load %arg20[%c0_58, %c0_59] : memref<1x32xf32, #tpu.memory_space<vmem>>, vector<1x32xf32>
    %cst_60 = arith.constant dense<0.000000e+00> : vector<8xf32>
    %111 = vector.multi_reduction <add>, %108, %cst_60 [1] : vector<8x32xf32> to vector<8xf32>
    %112 = vector.shape_cast %111 : vector<8xf32> to vector<8x1xf32>
    %cst_61 = arith.constant 3.200000e+01 : f32
    %113 = vector.broadcast %cst_61 : f32 to vector<8x1xf32>
    %114 = arith.divf %112, %113 : vector<8x1xf32>
    %115 = vector.broadcast %114 : vector<8x1xf32> to vector<8x32xf32>
    %116 = arith.subf %108, %115 : vector<8x32xf32>
    %117 = arith.mulf %116, %116 : vector<8x32xf32>
    %cst_62 = arith.constant dense<0.000000e+00> : vector<8xf32>
    %118 = vector.multi_reduction <add>, %117, %cst_62 [1] : vector<8x32xf32> to vector<8xf32>
    %119 = vector.shape_cast %118 : vector<8xf32> to vector<8x1xf32>
    %cst_63 = arith.constant 3.200000e+01 : f32
    %120 = vector.broadcast %cst_63 : f32 to vector<8x1xf32>
    %121 = arith.divf %119, %120 : vector<8x1xf32>
    %cst_64 = arith.constant 9.99999996E-13 : f32
    %122 = vector.broadcast %cst_64 : f32 to vector<8x1xf32>
    %123 = arith.addf %121, %122 : vector<8x1xf32>
    %124 = math.rsqrt %123 : vector<8x1xf32>
    %125 = vector.broadcast %114 : vector<8x1xf32> to vector<8x32xf32>
    %126 = arith.subf %108, %125 : vector<8x32xf32>
    %127 = vector.broadcast %124 : vector<8x1xf32> to vector<8x32xf32>
    %128 = arith.mulf %126, %127 : vector<8x32xf32>
    %129 = vector.broadcast %109 : vector<1x32xf32> to vector<8x32xf32>
    %130 = arith.mulf %128, %129 : vector<8x32xf32>
    %131 = vector.broadcast %110 : vector<1x32xf32> to vector<8x32xf32>
    %132 = arith.addf %130, %131 : vector<8x32xf32>
    %c0_65 = arith.constant 0 : index
    %c0_66 = arith.constant 0 : index
    %c0_67 = arith.constant 0 : index
    %133 = vector.load %arg21[%c0_65, %c0_66, %c0_67] : memref<1x8x32xf32, #tpu.memory_space<vmem>>, vector<1x8x32xf32>
    %134 = vector.shape_cast %133 : vector<1x8x32xf32> to vector<8x32xf32>
    %135 = vector.shape_cast %132 : vector<8x32xf32> to vector<1x8x32xf32>
    tpu.vector_store %arg21[%c0_65, %c0_66, %c0_67], %135 {strides = array<i32>} : memref<1x8x32xf32, #tpu.memory_space<vmem>>, vector<1x8x32xf32>,
    return
  }
  func.func @transform_0(%arg0: i32, %arg1: i32) -> (i32, i32, i32) {
    %c0_i32 = arith.constant 0 : i32
    %c0_i32_0 = arith.constant 0 : i32
    return %arg0, %arg1, %c0_i32 : i32, i32, i32
  }
  func.func @transform_1(%arg0: i32, %arg1: i32) -> (i32, i32, i32) {
    %c0_i32 = arith.constant 0 : i32
    %c0_i32_0 = arith.constant 0 : i32
    %c0_i32_1 = arith.constant 0 : i32
    return %arg0, %c0_i32, %c0_i32_0 : i32, i32, i32
  }
  func.func @transform_2(%arg0: i32, %arg1: i32) -> (i32, i32, i32, i32) {
    %c0_i32 = arith.constant 0 : i32
    %c0_i32_0 = arith.constant 0 : i32
    %c0_i32_1 = arith.constant 0 : i32
    %c0_i32_2 = arith.constant 0 : i32
    return %arg0, %c0_i32, %c0_i32_0, %c0_i32_1 : i32, i32, i32, i32
  }
  func.func @transform_3(%arg0: i32, %arg1: i32) -> (i32, i32) {
    %c0_i32 = arith.constant 0 : i32
    %c0_i32_0 = arith.constant 0 : i32
    %c0_i32_1 = arith.constant 0 : i32
    return %c0_i32, %c0_i32_0 : i32, i32
  }
  func.func @transform_4(%arg0: i32, %arg1: i32) -> (i32, i32) {
    %c0_i32 = arith.constant 0 : i32
    %c0_i32_0 = arith.constant 0 : i32
    %c0_i32_1 = arith.constant 0 : i32
    return %c0_i32, %c0_i32_0 : i32, i32
  }
  func.func @transform_5(%arg0: i32, %arg1: i32) -> (i32, i32) {
    %c0_i32 = arith.constant 0 : i32
    %c0_i32_0 = arith.constant 0 : i32
    %c0_i32_1 = arith.constant 0 : i32
    return %c0_i32, %c0_i32_0 : i32, i32
  }
  func.func @transform_6(%arg0: i32, %arg1: i32) -> (i32, i32) {
    %c0_i32 = arith.constant 0 : i32
    %c0_i32_0 = arith.constant 0 : i32
    %c0_i32_1 = arith.constant 0 : i32
    return %c0_i32, %c0_i32_0 : i32, i32
  }
  func.func @transform_7(%arg0: i32, %arg1: i32) -> (i32, i32) {
    %c0_i32 = arith.constant 0 : i32
    %c0_i32_0 = arith.constant 0 : i32
    %c0_i32_1 = arith.constant 0 : i32
    return %c0_i32, %c0_i32_0 : i32, i32
  }
  func.func @transform_8(%arg0: i32, %arg1: i32) -> (i32, i32) {
    %c0_i32 = arith.constant 0 : i32
    %c0_i32_0 = arith.constant 0 : i32
    %c0_i32_1 = arith.constant 0 : i32
    return %c0_i32, %c0_i32_0 : i32, i32
  }
  func.func @transform_9(%arg0: i32, %arg1: i32) -> (i32, i32) {
    %c0_i32 = arith.constant 0 : i32
    %c0_i32_0 = arith.constant 0 : i32
    %c0_i32_1 = arith.constant 0 : i32
    return %c0_i32, %c0_i32_0 : i32, i32
  }
  func.func @transform_10(%arg0: i32, %arg1: i32) -> (i32, i32) {
    %c0_i32 = arith.constant 0 : i32
    %c0_i32_0 = arith.constant 0 : i32
    %c0_i32_1 = arith.constant 0 : i32
    return %c0_i32, %c0_i32_0 : i32, i32
  }
  func.func @transform_11(%arg0: i32, %arg1: i32) -> (i32, i32) {
    %c0_i32 = arith.constant 0 : i32
    %c0_i32_0 = arith.constant 0 : i32
    %c0_i32_1 = arith.constant 0 : i32
    return %c0_i32, %c0_i32_0 : i32, i32
  }
  func.func @transform_12(%arg0: i32, %arg1: i32) -> (i32, i32) {
    %c0_i32 = arith.constant 0 : i32
    %c0_i32_0 = arith.constant 0 : i32
    %c0_i32_1 = arith.constant 0 : i32
    return %c0_i32, %c0_i32_0 : i32, i32
  }
  func.func @transform_13(%arg0: i32, %arg1: i32) -> (i32, i32) {
    %c0_i32 = arith.constant 0 : i32
    %c0_i32_0 = arith.constant 0 : i32
    %c0_i32_1 = arith.constant 0 : i32
    return %c0_i32, %c0_i32_0 : i32, i32
  }
  func.func @transform_14(%arg0: i32, %arg1: i32) -> (i32, i32) {
    %c0_i32 = arith.constant 0 : i32
    %c0_i32_0 = arith.constant 0 : i32
    %c0_i32_1 = arith.constant 0 : i32
    return %c0_i32, %c0_i32_0 : i32, i32
  }
  func.func @transform_15(%arg0: i32, %arg1: i32) -> (i32, i32) {
    %c0_i32 = arith.constant 0 : i32
    %c0_i32_0 = arith.constant 0 : i32
    %c0_i32_1 = arith.constant 0 : i32
    return %c0_i32, %c0_i32_0 : i32, i32
  }
  func.func @transform_16(%arg0: i32, %arg1: i32) -> (i32, i32) {
    %c0_i32 = arith.constant 0 : i32
    %c0_i32_0 = arith.constant 0 : i32
    %c0_i32_1 = arith.constant 0 : i32
    return %c0_i32, %c0_i32_0 : i32, i32
  }
  func.func @transform_17(%arg0: i32, %arg1: i32) -> (i32, i32) {
    %c0_i32 = arith.constant 0 : i32
    %c0_i32_0 = arith.constant 0 : i32
    %c0_i32_1 = arith.constant 0 : i32
    return %c0_i32, %c0_i32_0 : i32, i32
  }
  func.func @transform_18(%arg0: i32, %arg1: i32) -> (i32, i32) {
    %c0_i32 = arith.constant 0 : i32
    %c0_i32_0 = arith.constant 0 : i32
    %c0_i32_1 = arith.constant 0 : i32
    return %c0_i32, %c0_i32_0 : i32, i32
  }
  func.func @transform_19(%arg0: i32, %arg1: i32) -> (i32, i32, i32) {
    %c0_i32 = arith.constant 0 : i32
    %c0_i32_0 = arith.constant 0 : i32
    return %arg0, %arg1, %c0_i32 : i32, i32, i32
  }
}

module attributes {stable_mosaic.version = 11 : i64} {
  func.func @bert_layer_kernel(%arg0: i32, %arg1: i32, %arg2: memref<1x8x32xf32, #tpu.memory_space<vmem>>, %arg3: memref<1x8x32xf32, #tpu.memory_space<vmem>>, %arg4: memref<1x1x1x8xf32, #tpu.memory_space<vmem>>, %arg5: memref<32x32xbf16, #tpu.memory_space<vmem>>, %arg6: memref<1x32xf32, #tpu.memory_space<vmem>>, %arg7: memref<32x32xbf16, #tpu.memory_space<vmem>>, %arg8: memref<1x32xf32, #tpu.memory_space<vmem>>, %arg9: memref<32x32xbf16, #tpu.memory_space<vmem>>, %arg10: memref<1x32xf32, #tpu.memory_space<vmem>>, %arg11: memref<32x32xbf16, #tpu.memory_space<vmem>>, %arg12: memref<1x32xf32, #tpu.memory_space<vmem>>, %arg13: memref<1x32xf32, #tpu.memory_space<vmem>>, %arg14: memref<1x32xf32, #tpu.memory_space<vmem>>, %arg15: memref<32x64xbf16, #tpu.memory_space<vmem>>, %arg16: memref<1x64xf32, #tpu.memory_space<vmem>>, %arg17: memref<64x32xbf16, #tpu.memory_space<vmem>>, %arg18: memref<1x32xf32, #tpu.memory_space<vmem>>, %arg19: memref<1x32xf32, #tpu.memory_space<vmem>>, %arg20: memref<1x32xf32, #tpu.memory_space<vmem>>, %arg21: memref<1x8x32xf32, #tpu.memory_space<vmem>>) attributes {dimension_semantics = [#tpu.dimension_semantics<parallel>, #tpu.dimension_semantics<parallel>], iteration_bounds = array<i64: 2, 1>, scalar_prefetch = 0 : i64, scratch_operands = 0 : i64, tpu.core_type = #tpu.core_type<tc>, window_params = [{transform_indices = @transform_0, window_bounds = array<i64: 1, 8, 32>}, {transform_indices = @transform_1, window_bounds = array<i64: 1, 8, 32>}, {transform_indices = @transform_2, window_bounds = array<i64: 1, 1, 1, 8>}, {pipeline_mode = #tpu.pipeline_mode<synchronous>, transform_indices = @transform_3, window_bounds = array<i64: 32, 32>}, {pipeline_mode = #tpu.pipeline_mode<synchronous>, transform_indices = @transform_4, window_bounds = array<i64: 1, 32>}, {pipeline_mode = #tpu.pipeline_mode<synchronous>, transform_indices = @transform_5, window_bounds = array<i64: 32, 32>}, {pipeline_mode = #tpu.pipeline_mode<synchronous>, transform_indices = @transform_6, window_bounds = array<i64: 1, 32>}, {pipeline_mode = #tpu.pipeline_mode<synchronous>, transform_indices = @transform_7, window_bounds = array<i64: 32, 32>}, {pipeline_mode = #tpu.pipeline_mode<synchronous>, transform_indices = @transform_8, window_bounds = array<i64: 1, 32>}, {pipeline_mode = #tpu.pipeline_mode<synchronous>, transform_indices = @transform_9, window_bounds = array<i64: 32, 32>}, {pipeline_mode = #tpu.pipeline_mode<synchronous>, transform_indices = @transform_10, window_bounds = array<i64: 1, 32>}, {pipeline_mode = #tpu.pipeline_mode<synchronous>, transform_indices = @transform_11, window_bounds = array<i64: 1, 32>}, {pipeline_mode = #tpu.pipeline_mode<synchronous>, transform_indices = @transform_12, window_bounds = array<i64: 1, 32>}, {pipeline_mode = #tpu.pipeline_mode<synchronous>, transform_indices = @transform_13, window_bounds = array<i64: 32, 64>}, {pipeline_mode = #tpu.pipeline_mode<synchronous>, transform_indices = @transform_14, window_bounds = array<i64: 1, 64>}, {pipeline_mode = #tpu.pipeline_mode<synchronous>, transform_indices = @transform_15, window_bounds = array<i64: 64, 32>}, {pipeline_mode = #tpu.pipeline_mode<synchronous>, transform_indices = @transform_16, window_bounds = array<i64: 1, 32>}, {pipeline_mode = #tpu.pipeline_mode<synchronous>, transform_indices = @transform_17, window_bounds = array<i64: 1, 32>}, {pipeline_mode = #tpu.pipeline_mode<synchronous>, transform_indices = @transform_18, window_bounds = array<i64: 1, 32>}, {transform_indices = @transform_19, window_bounds = array<i64: 1, 8, 32>}]} {
    %c0 = arith.constant 0 : index
    %c0_0 = arith.constant 0 : index
    %c0_1 = arith.constant 0 : index
    %0 = vector.load %arg2[%c0, %c0_0, %c0_1] : memref<1x8x32xf32, #tpu.memory_space<vmem>>, vector<1x8x32xf32>
    %1 = vector.shape_cast %0 : vector<1x8x32xf32> to vector<8x32xf32>
    %c0_2 = arith.constant 0 : index
    %c0_3 = arith.constant 0 : index
    %c0_4 = arith.constant 0 : index
    %2 = vector.load %arg3[%c0_2, %c0_3, %c0_4] : memref<1x8x32xf32, #tpu.memory_space<vmem>>, vector<1x8x32xf32>
    %3 = vector.shape_cast %2 : vector<1x8x32xf32> to vector<8x32xf32>
    %c0_5 = arith.constant 0 : index
    %c0_6 = arith.constant 0 : index
    %c0_7 = arith.constant 0 : index
    %c0_8 = arith.constant 0 : index
    %4 = vector.load %arg4[%c0_5, %c0_6, %c0_7, %c0_8] : memref<1x1x1x8xf32, #tpu.memory_space<vmem>>, vector<1x1x1x8xf32>
    %5 = vector.shape_cast %4 : vector<1x1x1x8xf32> to vector<1x8xf32>
    %6 = arith.truncf %1 : vector<8x32xf32> to vector<8x32xbf16>
    %7 = arith.truncf %3 : vector<8x32xf32> to vector<8x32xbf16>
    %c0_9 = arith.constant 0 : index
    %c0_10 = arith.constant 0 : index
    %8 = vector.load %arg5[%c0_9, %c0_10] : memref<32x32xbf16, #tpu.memory_space<vmem>>, vector<32x32xbf16>
    %cst = arith.constant dense<0.000000e+00> : vector<8x32xf32>
    %9 = tpu.matmul %6, %8, %cst {dimension_numbers = #tpu.dot_dimension_numbers<[1], [0], [0], [1], [0, 0, 1, 1], [], []>} : vector<8x32xbf16>, vector<32x32xbf16>, vector<8x32xf32> -> vector<8x32xf32>
    %c0_11 = arith.constant 0 : index
    %c0_12 = arith.constant 0 : index
    %10 = vector.load %arg6[%c0_11, %c0_12] : memref<1x32xf32, #tpu.memory_space<vmem>>, vector<1x32xf32>
    %11 = vector.broadcast %10 : vector<1x32xf32> to vector<8x32xf32>
    %12 = arith.addf %9, %11 : vector<8x32xf32>
    %cst_13 = arith.constant 0.353553385 : f32
    %13 = vector.broadcast %cst_13 : f32 to vector<8x32xf32>
    %14 = arith.mulf %12, %13 : vector<8x32xf32>
    %c0_14 = arith.constant 0 : index
    %c0_15 = arith.constant 0 : index
    %15 = vector.load %arg7[%c0_14, %c0_15] : memref<32x32xbf16, #tpu.memory_space<vmem>>, vector<32x32xbf16>
    %cst_16 = arith.constant dense<0.000000e+00> : vector<8x32xf32>
    %16 = tpu.matmul %7, %15, %cst_16 {dimension_numbers = #tpu.dot_dimension_numbers<[1], [0], [0], [1], [0, 0, 1, 1], [], []>} : vector<8x32xbf16>, vector<32x32xbf16>, vector<8x32xf32> -> vector<8x32xf32>
    %c0_17 = arith.constant 0 : index
    %c0_18 = arith.constant 0 : index
    %17 = vector.load %arg8[%c0_17, %c0_18] : memref<1x32xf32, #tpu.memory_space<vmem>>, vector<1x32xf32>
    %18 = vector.broadcast %17 : vector<1x32xf32> to vector<8x32xf32>
    %19 = arith.addf %16, %18 : vector<8x32xf32>
    %c0_19 = arith.constant 0 : index
    %c0_20 = arith.constant 0 : index
    %20 = vector.load %arg9[%c0_19, %c0_20] : memref<32x32xbf16, #tpu.memory_space<vmem>>, vector<32x32xbf16>
    %cst_21 = arith.constant dense<0.000000e+00> : vector<8x32xf32>
    %21 = tpu.matmul %7, %20, %cst_21 {dimension_numbers = #tpu.dot_dimension_numbers<[1], [0], [0], [1], [0, 0, 1, 1], [], []>} : vector<8x32xbf16>, vector<32x32xbf16>, vector<8x32xf32> -> vector<8x32xf32>
    %c0_22 = arith.constant 0 : index
    %c0_23 = arith.constant 0 : index
    %22 = vector.load %arg10[%c0_22, %c0_23] : memref<1x32xf32, #tpu.memory_space<vmem>>, vector<1x32xf32>
    %23 = vector.broadcast %22 : vector<1x32xf32> to vector<8x32xf32>
    %24 = arith.addf %21, %23 : vector<8x32xf32>
    %25 = vector.shape_cast %14 : vector<8x32xf32> to vector<8x4x8xf32>
    %26 = tpu.transpose %25, [1, 0, 2] : vector<8x4x8xf32> -> vector<4x8x8xf32>
    %27 = arith.truncf %26 : vector<4x8x8xf32> to vector<4x8x8xbf16>
    %28 = vector.shape_cast %19 : vector<8x32xf32> to vector<8x4x8xf32>
    %29 = tpu.transpose %28, [1, 0, 2] : vector<8x4x8xf32> -> vector<4x8x8xf32>
    %30 = arith.truncf %29 : vector<4x8x8xf32> to vector<4x8x8xbf16>
    %31 = vector.shape_cast %24 : vector<8x32xf32> to vector<8x4x8xf32>
    %32 = tpu.transpose %31, [1, 0, 2] : vector<8x4x8xf32> -> vector<4x8x8xf32>
    %33 = arith.truncf %32 : vector<4x8x8xf32> to vector<4x8x8xbf16>
    "tpu.trace_start"() <{level = 10 : i32, message = "hqd,hkd->hqk"}> : () -> ()
    %cst_24 = arith.constant dense<0.000000e+00> : vector<4x8x8xf32>
    %34 = tpu.matmul %27, %30, %cst_24 {dimension_numbers = #tpu.dot_dimension_numbers<[2], [2], [1], [1], [0, 0, 0, 1, 1, 1], [0], [0]>} : vector<4x8x8xbf16>, vector<4x8x8xbf16>, vector<4x8x8xf32> -> vector<4x8x8xf32>
    "tpu.trace_stop"() : () -> ()
    %35 = vector.shape_cast %5 : vector<1x8xf32> to vector<1x1x8xf32>
    %36 = vector.broadcast %35 : vector<1x1x8xf32> to vector<4x8x8xf32>
    %37 = arith.addf %34, %36 : vector<4x8x8xf32>
    %cst_25 = arith.constant dense<0xFF800000> : vector<4x8xf32>
    %38 = vector.multi_reduction <maximumf>, %37, %cst_25 [2] : vector<4x8x8xf32> to vector<4x8xf32>
    %39 = vector.shape_cast %38 : vector<4x8xf32> to vector<4x8x1xf32>
    %40 = vector.broadcast %39 : vector<4x8x1xf32> to vector<4x8x8xf32>
    %41 = arith.subf %37, %40 : vector<4x8x8xf32>
    %42 = math.exp %41 : vector<4x8x8xf32>
    %cst_26 = arith.constant dense<0.000000e+00> : vector<4x8xf32>
    %43 = vector.multi_reduction <add>, %42, %cst_26 [2] : vector<4x8x8xf32> to vector<4x8xf32>
    %44 = vector.shape_cast %43 : vector<4x8xf32> to vector<4x8x1xf32>
    %45 = tpu.reciprocal %44 {approx = true} : vector<4x8x1xf32> -> vector<4x8x1xf32>
    %46 = vector.broadcast %45 : vector<4x8x1xf32> to vector<4x8x8xf32>
    %47 = arith.mulf %42, %46 : vector<4x8x8xf32>
    %48 = arith.truncf %47 : vector<4x8x8xf32> to vector<4x8x8xbf16>
    "tpu.trace_start"() <{level = 10 : i32, message = "hqk,hkd->hqd"}> : () -> ()
    %cst_27 = arith.constant dense<0.000000e+00> : vector<4x8x8xf32>
    %49 = tpu.matmul %48, %33, %cst_27 {dimension_numbers = #tpu.dot_dimension_numbers<[2], [1], [1], [2], [0, 0, 0, 1, 1, 2], [0], [0]>} : vector<4x8x8xbf16>, vector<4x8x8xbf16>, vector<4x8x8xf32> -> vector<4x8x8xf32>
    "tpu.trace_stop"() : () -> ()
    %50 = tpu.transpose %49, [1, 0, 2] : vector<4x8x8xf32> -> vector<8x4x8xf32>
    %51 = vector.shape_cast %50 : vector<8x4x8xf32> to vector<8x32xf32>
    %52 = arith.truncf %51 : vector<8x32xf32> to vector<8x32xbf16>
    %c0_28 = arith.constant 0 : index
    %c0_29 = arith.constant 0 : index
    %53 = vector.load %arg11[%c0_28, %c0_29] : memref<32x32xbf16, #tpu.memory_space<vmem>>, vector<32x32xbf16>
    %cst_30 = arith.constant dense<0.000000e+00> : vector<8x32xf32>
    %54 = tpu.matmul %52, %53, %cst_30 {dimension_numbers = #tpu.dot_dimension_numbers<[1], [0], [0], [1], [0, 0, 1, 1], [], []>} : vector<8x32xbf16>, vector<32x32xbf16>, vector<8x32xf32> -> vector<8x32xf32>
    %c0_31 = arith.constant 0 : index
    %c0_32 = arith.constant 0 : index
    %55 = vector.load %arg12[%c0_31, %c0_32] : memref<1x32xf32, #tpu.memory_space<vmem>>, vector<1x32xf32>
    %56 = vector.broadcast %55 : vector<1x32xf32> to vector<8x32xf32>
    %57 = arith.addf %54, %56 : vector<8x32xf32>
    %58 = arith.addf %1, %57 : vector<8x32xf32>
    %c0_33 = arith.constant 0 : index
    %c0_34 = arith.constant 0 : index
    %59 = vector.load %arg13[%c0_33, %c0_34] : memref<1x32xf32, #tpu.memory_space<vmem>>, vector<1x32xf32>
    %c0_35 = arith.constant 0 : index
    %c0_36 = arith.constant 0 : index
    %60 = vector.load %arg14[%c0_35, %c0_36] : memref<1x32xf32, #tpu.memory_space<vmem>>, vector<1x32xf32>
    %cst_37 = arith.constant dense<0.000000e+00> : vector<8xf32>
    %61 = vector.multi_reduction <add>, %58, %cst_37 [1] : vector<8x32xf32> to vector<8xf32>
    %62 = vector.shape_cast %61 : vector<8xf32> to vector<8x1xf32>
    %cst_38 = arith.constant 3.200000e+01 : f32
    %63 = vector.broadcast %cst_38 : f32 to vector<8x1xf32>
    %64 = arith.divf %62, %63 : vector<8x1xf32>
    %65 = vector.broadcast %64 : vector<8x1xf32> to vector<8x32xf32>
    %66 = arith.subf %58, %65 : vector<8x32xf32>
    %67 = arith.mulf %66, %66 : vector<8x32xf32>
    %cst_39 = arith.constant dense<0.000000e+00> : vector<8xf32>
    %68 = vector.multi_reduction <add>, %67, %cst_39 [1] : vector<8x32xf32> to vector<8xf32>
    %69 = vector.shape_cast %68 : vector<8xf32> to vector<8x1xf32>
    %cst_40 = arith.constant 3.200000e+01 : f32
    %70 = vector.broadcast %cst_40 : f32 to vector<8x1xf32>
    %71 = arith.divf %69, %70 : vector<8x1xf32>
    %cst_41 = arith.constant 9.99999996E-13 : f32
    %72 = vector.broadcast %cst_41 : f32 to vector<8x1xf32>
    %73 = arith.addf %71, %72 : vector<8x1xf32>
    %74 = math.rsqrt %73 : vector<8x1xf32>
    %75 = vector.broadcast %64 : vector<8x1xf32> to vector<8x32xf32>
    %76 = arith.subf %58, %75 : vector<8x32xf32>
    %77 = vector.broadcast %74 : vector<8x1xf32> to vector<8x32xf32>
    %78 = arith.mulf %76, %77 : vector<8x32xf32>
    %79 = vector.broadcast %59 : vector<1x32xf32> to vector<8x32xf32>
    %80 = arith.mulf %78, %79 : vector<8x32xf32>
    %81 = vector.broadcast %60 : vector<1x32xf32> to vector<8x32xf32>
    %82 = arith.addf %80, %81 : vector<8x32xf32>
    %83 = arith.truncf %82 : vector<8x32xf32> to vector<8x32xbf16>
    %c0_42 = arith.constant 0 : index
    %c0_43 = arith.constant 0 : index
    %84 = vector.load %arg15[%c0_42, %c0_43] : memref<32x64xbf16, #tpu.memory_space<vmem>>, vector<32x64xbf16>
    %cst_44 = arith.constant dense<0.000000e+00> : vector<8x64xf32>
    %85 = tpu.matmul %83, %84, %cst_44 {dimension_numbers = #tpu.dot_dimension_numbers<[1], [0], [0], [1], [0, 0, 1, 1], [], []>} : vector<8x32xbf16>, vector<32x64xbf16>, vector<8x64xf32> -> vector<8x64xf32>
    %c0_45 = arith.constant 0 : index
    %c0_46 = arith.constant 0 : index
    %86 = vector.load %arg16[%c0_45, %c0_46] : memref<1x64xf32, #tpu.memory_space<vmem>>, vector<1x64xf32>
    %87 = vector.broadcast %86 : vector<1x64xf32> to vector<8x64xf32>
    %88 = arith.addf %85, %87 : vector<8x64xf32>
    %cst_47 = arith.constant 5.000000e-01 : f32
    %89 = vector.broadcast %cst_47 : f32 to vector<8x64xf32>
    %90 = arith.mulf %89, %88 : vector<8x64xf32>
    %cst_48 = arith.constant 4.471500e-02 : f32
    %91 = vector.broadcast %cst_48 : f32 to vector<8x64xf32>
    %92 = arith.mulf %91, %88 : vector<8x64xf32>
    %93 = arith.mulf %92, %88 : vector<8x64xf32>
    %94 = arith.mulf %93, %88 : vector<8x64xf32>
    %95 = arith.addf %88, %94 : vector<8x64xf32>
    %cst_49 = arith.constant 0.797884583 : f32
    %96 = vector.broadcast %cst_49 : f32 to vector<8x64xf32>
    %97 = arith.mulf %96, %95 : vector<8x64xf32>
    %98 = math.tanh %97 : vector<8x64xf32>
    %cst_50 = arith.constant 1.000000e+00 : f32
    %99 = vector.broadcast %cst_50 : f32 to vector<8x64xf32>
    %100 = arith.addf %99, %98 : vector<8x64xf32>
    %101 = arith.mulf %90, %100 : vector<8x64xf32>
    %102 = arith.truncf %101 : vector<8x64xf32> to vector<8x64xbf16>
    %c0_51 = arith.constant 0 : index
    %c0_52 = arith.constant 0 : index
    %103 = vector.load %arg17[%c0_51, %c0_52] : memref<64x32xbf16, #tpu.memory_space<vmem>>, vector<64x32xbf16>
    %cst_53 = arith.constant dense<0.000000e+00> : vector<8x32xf32>
    %104 = tpu.matmul %102, %103, %cst_53 {dimension_numbers = #tpu.dot_dimension_numbers<[1], [0], [0], [1], [0, 0, 1, 1], [], []>} : vector<8x64xbf16>, vector<64x32xbf16>, vector<8x32xf32> -> vector<8x32xf32>
    %c0_54 = arith.constant 0 : index
    %c0_55 = arith.constant 0 : index
    %105 = vector.load %arg18[%c0_54, %c0_55] : memref<1x32xf32, #tpu.memory_space<vmem>>, vector<1x32xf32>
    %106 = vector.broadcast %105 : vector<1x32xf32> to vector<8x32xf32>
    %107 = arith.addf %104, %106 : vector<8x32xf32>
    %108 = arith.addf %82, %107 : vector<8x32xf32>
    %c0_56 = arith.constant 0 : index
    %c0_57 = arith.constant 0 : index
    %109 = vector.load %arg19[%c0_56, %c0_57] : memref<1x32xf32, #tpu.memory_space<vmem>>, vector<1x32xf32>
    %c0_58 = arith.constant 0 : index
    %c0_59 = arith.constant 0 : index
    %110 = vector.load %arg20[%c0_58, %c0_59] : memref<1x32xf32, #tpu.memory_space<vmem>>, vector<1x32xf32>
    %cst_60 = arith.constant dense<0.000000e+00> : vector<8xf32>
    %111 = vector.multi_reduction <add>, %108, %cst_60 [1] : vector<8x32xf32> to vector<8xf32>
    %112 = vector.shape_cast %111 : vector<8xf32> to vector<8x1xf32>
    %cst_61 = arith.constant 3.200000e+01 : f32
    %113 = vector.broadcast %cst_61 : f32 to vector<8x1xf32>
    %114 = arith.divf %112, %113 : vector<8x1xf32>
    %115 = vector.broadcast %114 : vector<8x1xf32> to vector<8x32xf32>
    %116 = arith.subf %108, %115 : vector<8x32xf32>
    %117 = arith.mulf %116, %116 : vector<8x32xf32>
    %cst_62 = arith.constant dense<0.000000e+00> : vector<8xf32>
    %118 = vector.multi_reduction <add>, %117, %cst_62 [1] : vector<8x32xf32> to vector<8xf32>
    %119 = vector.shape_cast %118 : vector<8xf32> to vector<8x1xf32>
    %cst_63 = arith.constant 3.200000e+01 : f32
    %120 = vector.broadcast %cst_63 : f32 to vector<8x1xf32>
    %121 = arith.divf %119, %120 : vector<8x1xf32>
    %cst_64 = arith.constant 9.99999996E-13 : f32
    %122 = vector.broadcast %cst_64 : f32 to vector<8x1xf32>
    %123 = arith.addf %121, %122 : vector<8x1xf32>
    %124 = math.rsqrt %123 : vector<8x1xf32>
    %125 = vector.broadcast %114 : vector<8x1xf32> to vector<8x32xf32>
    %126 = arith.subf %108, %125 : vector<8x32xf32>
    %127 = vector.broadcast %124 : vector<8x1xf32> to vector<8x32xf32>
    %128 = arith.mulf %126, %127 : vector<8x32xf32>
    %129 = vector.broadcast %109 : vector<1x32xf32> to vector<8x32xf32>
    %130 = arith.mulf %128, %129 : vector<8x32xf32>
    %131 = vector.broadcast %110 : vector<1x32xf32> to vector<8x32xf32>
    %132 = arith.addf %130, %131 : vector<8x32xf32>
    %c0_65 = arith.constant 0 : index
    %c0_66 = arith.constant 0 : index
    %c0_67 = arith.constant 0 : index
    %133 = vector.load %arg21[%c0_65, %c0_66, %c0_67] : memref<1x8x32xf32, #tpu.memory_space<vmem>>, vector<1x8x32xf32>
    %134 = vector.shape_cast %133 : vector<1x8x32xf32> to vector<8x32xf32>
    %135 = vector.shape_cast %132 : vector<8x32xf32> to vector<1x8x32xf32>
    tpu.vector_store %arg21[%c0_65, %c0_66, %c0_67], %135 {strides = array<i32>} : memref<1x8x32xf32, #tpu.memory_space<vmem>>, vector<1x8x32xf32>,
    return
  }
  func.func @transform_0(%arg0: i32, %arg1: i32) -> (i32, i32, i32) {
    %c0_i32 = arith.constant 0 : i32
    %c0_i32_0 = arith.constant 0 : i32
    return %arg0, %arg1, %c0_i32 : i32, i32, i32
  }
  func.func @transform_1(%arg0: i32, %arg1: i32) -> (i32, i32, i32) {
    %c0_i32 = arith.constant 0 : i32
    %c0_i32_0 = arith.constant 0 : i32
    %c0_i32_1 = arith.constant 0 : i32
    return %arg0, %c0_i32, %c0_i32_0 : i32, i32, i32
  }
  func.func @transform_2(%arg0: i32, %arg1: i32) -> (i32, i32, i32, i32) {
    %c0_i32 = arith.constant 0 : i32
    %c0_i32_0 = arith.constant 0 : i32
    %c0_i32_1 = arith.constant 0 : i32
    %c0_i32_2 = arith.constant 0 : i32
    return %arg0, %c0_i32, %c0_i32_0, %c0_i32_1 : i32, i32, i32, i32
  }
  func.func @transform_3(%arg0: i32, %arg1: i32) -> (i32, i32) {
    %c0_i32 = arith.constant 0 : i32
    %c0_i32_0 = arith.constant 0 : i32
    %c0_i32_1 = arith.constant 0 : i32
    return %c0_i32, %c0_i32_0 : i32, i32
  }
  func.func @transform_4(%arg0: i32, %arg1: i32) -> (i32, i32) {
    %c0_i32 = arith.constant 0 : i32
    %c0_i32_0 = arith.constant 0 : i32
    %c0_i32_1 = arith.constant 0 : i32
    return %c0_i32, %c0_i32_0 : i32, i32
  }
  func.func @transform_5(%arg0: i32, %arg1: i32) -> (i32, i32) {
    %c0_i32 = arith.constant 0 : i32
    %c0_i32_0 = arith.constant 0 : i32
    %c0_i32_1 = arith.constant 0 : i32
    return %c0_i32, %c0_i32_0 : i32, i32
  }
  func.func @transform_6(%arg0: i32, %arg1: i32) -> (i32, i32) {
    %c0_i32 = arith.constant 0 : i32
    %c0_i32_0 = arith.constant 0 : i32
    %c0_i32_1 = arith.constant 0 : i32
    return %c0_i32, %c0_i32_0 : i32, i32
  }
  func.func @transform_7(%arg0: i32, %arg1: i32) -> (i32, i32) {
    %c0_i32 = arith.constant 0 : i32
    %c0_i32_0 = arith.constant 0 : i32
    %c0_i32_1 = arith.constant 0 : i32
    return %c0_i32, %c0_i32_0 : i32, i32
  }
  func.func @transform_8(%arg0: i32, %arg1: i32) -> (i32, i32) {
    %c0_i32 = arith.constant 0 : i32
    %c0_i32_0 = arith.constant 0 : i32
    %c0_i32_1 = arith.constant 0 : i32
    return %c0_i32, %c0_i32_0 : i32, i32
  }
  func.func @transform_9(%arg0: i32, %arg1: i32) -> (i32, i32) {
    %c0_i32 = arith.constant 0 : i32
    %c0_i32_0 = arith.constant 0 : i32
    %c0_i32_1 = arith.constant 0 : i32
    return %c0_i32, %c0_i32_0 : i32, i32
  }
  func.func @transform_10(%arg0: i32, %arg1: i32) -> (i32, i32) {
    %c0_i32 = arith.constant 0 : i32
    %c0_i32_0 = arith.constant 0 : i32
    %c0_i32_1 = arith.constant 0 : i32
    return %c0_i32, %c0_i32_0 : i32, i32
  }
  func.func @transform_11(%arg0: i32, %arg1: i32) -> (i32, i32) {
    %c0_i32 = arith.constant 0 : i32
    %c0_i32_0 = arith.constant 0 : i32
    %c0_i32_1 = arith.constant 0 : i32
    return %c0_i32, %c0_i32_0 : i32, i32
  }
  func.func @transform_12(%arg0: i32, %arg1: i32) -> (i32, i32) {
    %c0_i32 = arith.constant 0 : i32
    %c0_i32_0 = arith.constant 0 : i32
    %c0_i32_1 = arith.constant 0 : i32
    return %c0_i32, %c0_i32_0 : i32, i32
  }
  func.func @transform_13(%arg0: i32, %arg1: i32) -> (i32, i32) {
    %c0_i32 = arith.constant 0 : i32
    %c0_i32_0 = arith.constant 0 : i32
    %c0_i32_1 = arith.constant 0 : i32
    return %c0_i32, %c0_i32_0 : i32, i32
  }
  func.func @transform_14(%arg0: i32, %arg1: i32) -> (i32, i32) {
    %c0_i32 = arith.constant 0 : i32
    %c0_i32_0 = arith.constant 0 : i32
    %c0_i32_1 = arith.constant 0 : i32
    return %c0_i32, %c0_i32_0 : i32, i32
  }
  func.func @transform_15(%arg0: i32, %arg1: i32) -> (i32, i32) {
    %c0_i32 = arith.constant 0 : i32
    %c0_i32_0 = arith.constant 0 : i32
    %c0_i32_1 = arith.constant 0 : i32
    return %c0_i32, %c0_i32_0 : i32, i32
  }
  func.func @transform_16(%arg0: i32, %arg1: i32) -> (i32, i32) {
    %c0_i32 = arith.constant 0 : i32
    %c0_i32_0 = arith.constant 0 : i32
    %c0_i32_1 = arith.constant 0 : i32
    return %c0_i32, %c0_i32_0 : i32, i32
  }
  func.func @transform_17(%arg0: i32, %arg1: i32) -> (i32, i32) {
    %c0_i32 = arith.constant 0 : i32
    %c0_i32_0 = arith.constant 0 : i32
    %c0_i32_1 = arith.constant 0 : i32
    return %c0_i32, %c0_i32_0 : i32, i32
  }
  func.func @transform_18(%arg0: i32, %arg1: i32) -> (i32, i32) {
    %c0_i32 = arith.constant 0 : i32
    %c0_i32_0 = arith.constant 0 : i32
    %c0_i32_1 = arith.constant 0 : i32
    return %c0_i32, %c0_i32_0 : i32, i32
  }
  func.func @transform_19(%arg0: i32, %arg1: i32) -> (i32, i32, i32) {
    %c0_i32 = arith.constant 0 : i32
    %c0_i32_0 = arith.constant 0 : i32
    return %arg0, %arg1, %c0_i32 : i32, i32, i32
  }
}

module attributes {stable_mosaic.version = 11 : i64} {
  func.func @bert_layer_kernel(%arg0: i32, %arg1: i32, %arg2: memref<1x8x32xf32, #tpu.memory_space<vmem>>, %arg3: memref<1x8x32xf32, #tpu.memory_space<vmem>>, %arg4: memref<1x1x1x8xf32, #tpu.memory_space<vmem>>, %arg5: memref<32x32xbf16, #tpu.memory_space<vmem>>, %arg6: memref<1x32xf32, #tpu.memory_space<vmem>>, %arg7: memref<32x32xbf16, #tpu.memory_space<vmem>>, %arg8: memref<1x32xf32, #tpu.memory_space<vmem>>, %arg9: memref<32x32xbf16, #tpu.memory_space<vmem>>, %arg10: memref<1x32xf32, #tpu.memory_space<vmem>>, %arg11: memref<32x32xbf16, #tpu.memory_space<vmem>>, %arg12: memref<1x32xf32, #tpu.memory_space<vmem>>, %arg13: memref<1x32xf32, #tpu.memory_space<vmem>>, %arg14: memref<1x32xf32, #tpu.memory_space<vmem>>, %arg15: memref<32x64xbf16, #tpu.memory_space<vmem>>, %arg16: memref<1x64xf32, #tpu.memory_space<vmem>>, %arg17: memref<64x32xbf16, #tpu.memory_space<vmem>>, %arg18: memref<1x32xf32, #tpu.memory_space<vmem>>, %arg19: memref<1x32xf32, #tpu.memory_space<vmem>>, %arg20: memref<1x32xf32, #tpu.memory_space<vmem>>, %arg21: memref<1x8x32xf32, #tpu.memory_space<vmem>>) attributes {dimension_semantics = [#tpu.dimension_semantics<parallel>, #tpu.dimension_semantics<parallel>], iteration_bounds = array<i64: 2, 1>, scalar_prefetch = 0 : i64, scratch_operands = 0 : i64, tpu.core_type = #tpu.core_type<tc>, window_params = [{transform_indices = @transform_0, window_bounds = array<i64: 1, 8, 32>}, {transform_indices = @transform_1, window_bounds = array<i64: 1, 8, 32>}, {transform_indices = @transform_2, window_bounds = array<i64: 1, 1, 1, 8>}, {pipeline_mode = #tpu.pipeline_mode<synchronous>, transform_indices = @transform_3, window_bounds = array<i64: 32, 32>}, {pipeline_mode = #tpu.pipeline_mode<synchronous>, transform_indices = @transform_4, window_bounds = array<i64: 1, 32>}, {pipeline_mode = #tpu.pipeline_mode<synchronous>, transform_indices = @transform_5, window_bounds = array<i64: 32, 32>}, {pipeline_mode = #tpu.pipeline_mode<synchronous>, transform_indices = @transform_6, window_bounds = array<i64: 1, 32>}, {pipeline_mode = #tpu.pipeline_mode<synchronous>, transform_indices = @transform_7, window_bounds = array<i64: 32, 32>}, {pipeline_mode = #tpu.pipeline_mode<synchronous>, transform_indices = @transform_8, window_bounds = array<i64: 1, 32>}, {pipeline_mode = #tpu.pipeline_mode<synchronous>, transform_indices = @transform_9, window_bounds = array<i64: 32, 32>}, {pipeline_mode = #tpu.pipeline_mode<synchronous>, transform_indices = @transform_10, window_bounds = array<i64: 1, 32>}, {pipeline_mode = #tpu.pipeline_mode<synchronous>, transform_indices = @transform_11, window_bounds = array<i64: 1, 32>}, {pipeline_mode = #tpu.pipeline_mode<synchronous>, transform_indices = @transform_12, window_bounds = array<i64: 1, 32>}, {pipeline_mode = #tpu.pipeline_mode<synchronous>, transform_indices = @transform_13, window_bounds = array<i64: 32, 64>}, {pipeline_mode = #tpu.pipeline_mode<synchronous>, transform_indices = @transform_14, window_bounds = array<i64: 1, 64>}, {pipeline_mode = #tpu.pipeline_mode<synchronous>, transform_indices = @transform_15, window_bounds = array<i64: 64, 32>}, {pipeline_mode = #tpu.pipeline_mode<synchronous>, transform_indices = @transform_16, window_bounds = array<i64: 1, 32>}, {pipeline_mode = #tpu.pipeline_mode<synchronous>, transform_indices = @transform_17, window_bounds = array<i64: 1, 32>}, {pipeline_mode = #tpu.pipeline_mode<synchronous>, transform_indices = @transform_18, window_bounds = array<i64: 1, 32>}, {transform_indices = @transform_19, window_bounds = array<i64: 1, 8, 32>}]} {
    %c0 = arith.constant 0 : index
    %c0_0 = arith.constant 0 : index
    %c0_1 = arith.constant 0 : index
    %0 = vector.load %arg2[%c0, %c0_0, %c0_1] : memref<1x8x32xf32, #tpu.memory_space<vmem>>, vector<1x8x32xf32>
    %1 = vector.shape_cast %0 : vector<1x8x32xf32> to vector<8x32xf32>
    %c0_2 = arith.constant 0 : index
    %c0_3 = arith.constant 0 : index
    %c0_4 = arith.constant 0 : index
    %2 = vector.load %arg3[%c0_2, %c0_3, %c0_4] : memref<1x8x32xf32, #tpu.memory_space<vmem>>, vector<1x8x32xf32>
    %3 = vector.shape_cast %2 : vector<1x8x32xf32> to vector<8x32xf32>
    %c0_5 = arith.constant 0 : index
    %c0_6 = arith.constant 0 : index
    %c0_7 = arith.constant 0 : index
    %c0_8 = arith.constant 0 : index
    %4 = vector.load %arg4[%c0_5, %c0_6, %c0_7, %c0_8] : memref<1x1x1x8xf32, #tpu.memory_space<vmem>>, vector<1x1x1x8xf32>
    %5 = vector.shape_cast %4 : vector<1x1x1x8xf32> to vector<1x8xf32>
    %6 = arith.truncf %1 : vector<8x32xf32> to vector<8x32xbf16>
    %7 = arith.truncf %3 : vector<8x32xf32> to vector<8x32xbf16>
    %c0_9 = arith.constant 0 : index
    %c0_10 = arith.constant 0 : index
    %8 = vector.load %arg5[%c0_9, %c0_10] : memref<32x32xbf16, #tpu.memory_space<vmem>>, vector<32x32xbf16>
    %cst = arith.constant dense<0.000000e+00> : vector<8x32xf32>
    %9 = tpu.matmul %6, %8, %cst {dimension_numbers = #tpu.dot_dimension_numbers<[1], [0], [0], [1], [0, 0, 1, 1], [], []>} : vector<8x32xbf16>, vector<32x32xbf16>, vector<8x32xf32> -> vector<8x32xf32>
    %c0_11 = arith.constant 0 : index
    %c0_12 = arith.constant 0 : index
    %10 = vector.load %arg6[%c0_11, %c0_12] : memref<1x32xf32, #tpu.memory_space<vmem>>, vector<1x32xf32>
    %11 = vector.broadcast %10 : vector<1x32xf32> to vector<8x32xf32>
    %12 = arith.addf %9, %11 : vector<8x32xf32>
    %cst_13 = arith.constant 0.353553385 : f32
    %13 = vector.broadcast %cst_13 : f32 to vector<8x32xf32>
    %14 = arith.mulf %12, %13 : vector<8x32xf32>
    %c0_14 = arith.constant 0 : index
    %c0_15 = arith.constant 0 : index
    %15 = vector.load %arg7[%c0_14, %c0_15] : memref<32x32xbf16, #tpu.memory_space<vmem>>, vector<32x32xbf16>
    %cst_16 = arith.constant dense<0.000000e+00> : vector<8x32xf32>
    %16 = tpu.matmul %7, %15, %cst_16 {dimension_numbers = #tpu.dot_dimension_numbers<[1], [0], [0], [1], [0, 0, 1, 1], [], []>} : vector<8x32xbf16>, vector<32x32xbf16>, vector<8x32xf32> -> vector<8x32xf32>
    %c0_17 = arith.constant 0 : index
    %c0_18 = arith.constant 0 : index
    %17 = vector.load %arg8[%c0_17, %c0_18] : memref<1x32xf32, #tpu.memory_space<vmem>>, vector<1x32xf32>
    %18 = vector.broadcast %17 : vector<1x32xf32> to vector<8x32xf32>
    %19 = arith.addf %16, %18 : vector<8x32xf32>
    %c0_19 = arith.constant 0 : index
    %c0_20 = arith.constant 0 : index
    %20 = vector.load %arg9[%c0_19, %c0_20] : memref<32x32xbf16, #tpu.memory_space<vmem>>, vector<32x32xbf16>
    %cst_21 = arith.constant dense<0.000000e+00> : vector<8x32xf32>
    %21 = tpu.matmul %7, %20, %cst_21 {dimension_numbers = #tpu.dot_dimension_numbers<[1], [0], [0], [1], [0, 0, 1, 1], [], []>} : vector<8x32xbf16>, vector<32x32xbf16>, vector<8x32xf32> -> vector<8x32xf32>
    %c0_22 = arith.constant 0 : index
    %c0_23 = arith.constant 0 : index
    %22 = vector.load %arg10[%c0_22, %c0_23] : memref<1x32xf32, #tpu.memory_space<vmem>>, vector<1x32xf32>
    %23 = vector.broadcast %22 : vector<1x32xf32> to vector<8x32xf32>
    %24 = arith.addf %21, %23 : vector<8x32xf32>
    %25 = vector.shape_cast %14 : vector<8x32xf32> to vector<8x4x8xf32>
    %26 = tpu.transpose %25, [1, 0, 2] : vector<8x4x8xf32> -> vector<4x8x8xf32>
    %27 = arith.truncf %26 : vector<4x8x8xf32> to vector<4x8x8xbf16>
    %28 = vector.shape_cast %19 : vector<8x32xf32> to vector<8x4x8xf32>
    %29 = tpu.transpose %28, [1, 0, 2] : vector<8x4x8xf32> -> vector<4x8x8xf32>
    %30 = arith.truncf %29 : vector<4x8x8xf32> to vector<4x8x8xbf16>
    %31 = vector.shape_cast %24 : vector<8x32xf32> to vector<8x4x8xf32>
    %32 = tpu.transpose %31, [1, 0, 2] : vector<8x4x8xf32> -> vector<4x8x8xf32>
    %33 = arith.truncf %32 : vector<4x8x8xf32> to vector<4x8x8xbf16>
    "tpu.trace_start"() <{level = 10 : i32, message = "hqd,hkd->hqk"}> : () -> ()
    %cst_24 = arith.constant dense<0.000000e+00> : vector<4x8x8xf32>
    %34 = tpu.matmul %27, %30, %cst_24 {dimension_numbers = #tpu.dot_dimension_numbers<[2], [2], [1], [1], [0, 0, 0, 1, 1, 1], [0], [0]>} : vector<4x8x8xbf16>, vector<4x8x8xbf16>, vector<4x8x8xf32> -> vector<4x8x8xf32>
    "tpu.trace_stop"() : () -> ()
    %35 = vector.shape_cast %5 : vector<1x8xf32> to vector<1x1x8xf32>
    %36 = vector.broadcast %35 : vector<1x1x8xf32> to vector<4x8x8xf32>
    %37 = arith.addf %34, %36 : vector<4x8x8xf32>
    %cst_25 = arith.constant dense<0xFF800000> : vector<4x8xf32>
    %38 = vector.multi_reduction <maximumf>, %37, %cst_25 [2] : vector<4x8x8xf32> to vector<4x8xf32>
    %39 = vector.shape_cast %38 : vector<4x8xf32> to vector<4x8x1xf32>
    %40 = vector.broadcast %39 : vector<4x8x1xf32> to vector<4x8x8xf32>
    %41 = arith.subf %37, %40 : vector<4x8x8xf32>
    %42 = math.exp %41 : vector<4x8x8xf32>
    %cst_26 = arith.constant dense<0.000000e+00> : vector<4x8xf32>
    %43 = vector.multi_reduction <add>, %42, %cst_26 [2] : vector<4x8x8xf32> to vector<4x8xf32>
    %44 = vector.shape_cast %43 : vector<4x8xf32> to vector<4x8x1xf32>
    %45 = tpu.reciprocal %44 {approx = true} : vector<4x8x1xf32> -> vector<4x8x1xf32>
    %46 = vector.broadcast %45 : vector<4x8x1xf32> to vector<4x8x8xf32>
    %47 = arith.mulf %42, %46 : vector<4x8x8xf32>
    %48 = arith.truncf %47 : vector<4x8x8xf32> to vector<4x8x8xbf16>
    "tpu.trace_start"() <{level = 10 : i32, message = "hqk,hkd->hqd"}> : () -> ()
    %cst_27 = arith.constant dense<0.000000e+00> : vector<4x8x8xf32>
    %49 = tpu.matmul %48, %33, %cst_27 {dimension_numbers = #tpu.dot_dimension_numbers<[2], [1], [1], [2], [0, 0, 0, 1, 1, 2], [0], [0]>} : vector<4x8x8xbf16>, vector<4x8x8xbf16>, vector<4x8x8xf32> -> vector<4x8x8xf32>
    "tpu.trace_stop"() : () -> ()
    %50 = tpu.transpose %49, [1, 0, 2] : vector<4x8x8xf32> -> vector<8x4x8xf32>
    %51 = vector.shape_cast %50 : vector<8x4x8xf32> to vector<8x32xf32>
    %52 = arith.truncf %51 : vector<8x32xf32> to vector<8x32xbf16>
    %c0_28 = arith.constant 0 : index
    %c0_29 = arith.constant 0 : index
    %53 = vector.load %arg11[%c0_28, %c0_29] : memref<32x32xbf16, #tpu.memory_space<vmem>>, vector<32x32xbf16>
    %cst_30 = arith.constant dense<0.000000e+00> : vector<8x32xf32>
    %54 = tpu.matmul %52, %53, %cst_30 {dimension_numbers = #tpu.dot_dimension_numbers<[1], [0], [0], [1], [0, 0, 1, 1], [], []>} : vector<8x32xbf16>, vector<32x32xbf16>, vector<8x32xf32> -> vector<8x32xf32>
    %c0_31 = arith.constant 0 : index
    %c0_32 = arith.constant 0 : index
    %55 = vector.load %arg12[%c0_31, %c0_32] : memref<1x32xf32, #tpu.memory_space<vmem>>, vector<1x32xf32>
    %56 = vector.broadcast %55 : vector<1x32xf32> to vector<8x32xf32>
    %57 = arith.addf %54, %56 : vector<8x32xf32>
    %58 = arith.addf %1, %57 : vector<8x32xf32>
    %c0_33 = arith.constant 0 : index
    %c0_34 = arith.constant 0 : index
    %59 = vector.load %arg13[%c0_33, %c0_34] : memref<1x32xf32, #tpu.memory_space<vmem>>, vector<1x32xf32>
    %c0_35 = arith.constant 0 : index
    %c0_36 = arith.constant 0 : index
    %60 = vector.load %arg14[%c0_35, %c0_36] : memref<1x32xf32, #tpu.memory_space<vmem>>, vector<1x32xf32>
    %cst_37 = arith.constant dense<0.000000e+00> : vector<8xf32>
    %61 = vector.multi_reduction <add>, %58, %cst_37 [1] : vector<8x32xf32> to vector<8xf32>
    %62 = vector.shape_cast %61 : vector<8xf32> to vector<8x1xf32>
    %cst_38 = arith.constant 3.200000e+01 : f32
    %63 = vector.broadcast %cst_38 : f32 to vector<8x1xf32>
    %64 = arith.divf %62, %63 : vector<8x1xf32>
    %65 = vector.broadcast %64 : vector<8x1xf32> to vector<8x32xf32>
    %66 = arith.subf %58, %65 : vector<8x32xf32>
    %67 = arith.mulf %66, %66 : vector<8x32xf32>
    %cst_39 = arith.constant dense<0.000000e+00> : vector<8xf32>
    %68 = vector.multi_reduction <add>, %67, %cst_39 [1] : vector<8x32xf32> to vector<8xf32>
    %69 = vector.shape_cast %68 : vector<8xf32> to vector<8x1xf32>
    %cst_40 = arith.constant 3.200000e+01 : f32
    %70 = vector.broadcast %cst_40 : f32 to vector<8x1xf32>
    %71 = arith.divf %69, %70 : vector<8x1xf32>
    %cst_41 = arith.constant 9.99999996E-13 : f32
    %72 = vector.broadcast %cst_41 : f32 to vector<8x1xf32>
    %73 = arith.addf %71, %72 : vector<8x1xf32>
    %74 = math.rsqrt %73 : vector<8x1xf32>
    %75 = vector.broadcast %64 : vector<8x1xf32> to vector<8x32xf32>
    %76 = arith.subf %58, %75 : vector<8x32xf32>
    %77 = vector.broadcast %74 : vector<8x1xf32> to vector<8x32xf32>
    %78 = arith.mulf %76, %77 : vector<8x32xf32>
    %79 = vector.broadcast %59 : vector<1x32xf32> to vector<8x32xf32>
    %80 = arith.mulf %78, %79 : vector<8x32xf32>
    %81 = vector.broadcast %60 : vector<1x32xf32> to vector<8x32xf32>
    %82 = arith.addf %80, %81 : vector<8x32xf32>
    %83 = arith.truncf %82 : vector<8x32xf32> to vector<8x32xbf16>
    %c0_42 = arith.constant 0 : index
    %c0_43 = arith.constant 0 : index
    %84 = vector.load %arg15[%c0_42, %c0_43] : memref<32x64xbf16, #tpu.memory_space<vmem>>, vector<32x64xbf16>
    %cst_44 = arith.constant dense<0.000000e+00> : vector<8x64xf32>
    %85 = tpu.matmul %83, %84, %cst_44 {dimension_numbers = #tpu.dot_dimension_numbers<[1], [0], [0], [1], [0, 0, 1, 1], [], []>} : vector<8x32xbf16>, vector<32x64xbf16>, vector<8x64xf32> -> vector<8x64xf32>
    %c0_45 = arith.constant 0 : index
    %c0_46 = arith.constant 0 : index
    %86 = vector.load %arg16[%c0_45, %c0_46] : memref<1x64xf32, #tpu.memory_space<vmem>>, vector<1x64xf32>
    %87 = vector.broadcast %86 : vector<1x64xf32> to vector<8x64xf32>
    %88 = arith.addf %85, %87 : vector<8x64xf32>
    %cst_47 = arith.constant 5.000000e-01 : f32
    %89 = vector.broadcast %cst_47 : f32 to vector<8x64xf32>
    %90 = arith.mulf %89, %88 : vector<8x64xf32>
    %cst_48 = arith.constant 4.471500e-02 : f32
    %91 = vector.broadcast %cst_48 : f32 to vector<8x64xf32>
    %92 = arith.mulf %91, %88 : vector<8x64xf32>
    %93 = arith.mulf %92, %88 : vector<8x64xf32>
    %94 = arith.mulf %93, %88 : vector<8x64xf32>
    %95 = arith.addf %88, %94 : vector<8x64xf32>
    %cst_49 = arith.constant 0.797884583 : f32
    %96 = vector.broadcast %cst_49 : f32 to vector<8x64xf32>
    %97 = arith.mulf %96, %95 : vector<8x64xf32>
    %98 = math.tanh %97 : vector<8x64xf32>
    %cst_50 = arith.constant 1.000000e+00 : f32
    %99 = vector.broadcast %cst_50 : f32 to vector<8x64xf32>
    %100 = arith.addf %99, %98 : vector<8x64xf32>
    %101 = arith.mulf %90, %100 : vector<8x64xf32>
    %102 = arith.truncf %101 : vector<8x64xf32> to vector<8x64xbf16>
    %c0_51 = arith.constant 0 : index
    %c0_52 = arith.constant 0 : index
    %103 = vector.load %arg17[%c0_51, %c0_52] : memref<64x32xbf16, #tpu.memory_space<vmem>>, vector<64x32xbf16>
    %cst_53 = arith.constant dense<0.000000e+00> : vector<8x32xf32>
    %104 = tpu.matmul %102, %103, %cst_53 {dimension_numbers = #tpu.dot_dimension_numbers<[1], [0], [0], [1], [0, 0, 1, 1], [], []>} : vector<8x64xbf16>, vector<64x32xbf16>, vector<8x32xf32> -> vector<8x32xf32>
    %c0_54 = arith.constant 0 : index
    %c0_55 = arith.constant 0 : index
    %105 = vector.load %arg18[%c0_54, %c0_55] : memref<1x32xf32, #tpu.memory_space<vmem>>, vector<1x32xf32>
    %106 = vector.broadcast %105 : vector<1x32xf32> to vector<8x32xf32>
    %107 = arith.addf %104, %106 : vector<8x32xf32>
    %108 = arith.addf %82, %107 : vector<8x32xf32>
    %c0_56 = arith.constant 0 : index
    %c0_57 = arith.constant 0 : index
    %109 = vector.load %arg19[%c0_56, %c0_57] : memref<1x32xf32, #tpu.memory_space<vmem>>, vector<1x32xf32>
    %c0_58 = arith.constant 0 : index
    %c0_59 = arith.constant 0 : index
    %110 = vector.load %arg20[%c0_58, %c0_59] : memref<1x32xf32, #tpu.memory_space<vmem>>, vector<1x32xf32>
    %cst_60 = arith.constant dense<0.000000e+00> : vector<8xf32>
    %111 = vector.multi_reduction <add>, %108, %cst_60 [1] : vector<8x32xf32> to vector<8xf32>
    %112 = vector.shape_cast %111 : vector<8xf32> to vector<8x1xf32>
    %cst_61 = arith.constant 3.200000e+01 : f32
    %113 = vector.broadcast %cst_61 : f32 to vector<8x1xf32>
    %114 = arith.divf %112, %113 : vector<8x1xf32>
    %115 = vector.broadcast %114 : vector<8x1xf32> to vector<8x32xf32>
    %116 = arith.subf %108, %115 : vector<8x32xf32>
    %117 = arith.mulf %116, %116 : vector<8x32xf32>
    %cst_62 = arith.constant dense<0.000000e+00> : vector<8xf32>
    %118 = vector.multi_reduction <add>, %117, %cst_62 [1] : vector<8x32xf32> to vector<8xf32>
    %119 = vector.shape_cast %118 : vector<8xf32> to vector<8x1xf32>
    %cst_63 = arith.constant 3.200000e+01 : f32
    %120 = vector.broadcast %cst_63 : f32 to vector<8x1xf32>
    %121 = arith.divf %119, %120 : vector<8x1xf32>
    %cst_64 = arith.constant 9.99999996E-13 : f32
    %122 = vector.broadcast %cst_64 : f32 to vector<8x1xf32>
    %123 = arith.addf %121, %122 : vector<8x1xf32>
    %124 = math.rsqrt %123 : vector<8x1xf32>
    %125 = vector.broadcast %114 : vector<8x1xf32> to vector<8x32xf32>
    %126 = arith.subf %108, %125 : vector<8x32xf32>
    %127 = vector.broadcast %124 : vector<8x1xf32> to vector<8x32xf32>
    %128 = arith.mulf %126, %127 : vector<8x32xf32>
    %129 = vector.broadcast %109 : vector<1x32xf32> to vector<8x32xf32>
    %130 = arith.mulf %128, %129 : vector<8x32xf32>
    %131 = vector.broadcast %110 : vector<1x32xf32> to vector<8x32xf32>
    %132 = arith.addf %130, %131 : vector<8x32xf32>
    %c0_65 = arith.constant 0 : index
    %c0_66 = arith.constant 0 : index
    %c0_67 = arith.constant 0 : index
    %133 = vector.load %arg21[%c0_65, %c0_66, %c0_67] : memref<1x8x32xf32, #tpu.memory_space<vmem>>, vector<1x8x32xf32>
    %134 = vector.shape_cast %133 : vector<1x8x32xf32> to vector<8x32xf32>
    %135 = vector.shape_cast %132 : vector<8x32xf32> to vector<1x8x32xf32>
    tpu.vector_store %arg21[%c0_65, %c0_66, %c0_67], %135 {strides = array<i32>} : memref<1x8x32xf32, #tpu.memory_space<vmem>>, vector<1x8x32xf32>,
    return
  }
  func.func @transform_0(%arg0: i32, %arg1: i32) -> (i32, i32, i32) {
    %c0_i32 = arith.constant 0 : i32
    %c0_i32_0 = arith.constant 0 : i32
    return %arg0, %arg1, %c0_i32 : i32, i32, i32
  }
  func.func @transform_1(%arg0: i32, %arg1: i32) -> (i32, i32, i32) {
    %c0_i32 = arith.constant 0 : i32
    %c0_i32_0 = arith.constant 0 : i32
    %c0_i32_1 = arith.constant 0 : i32
    return %arg0, %c0_i32, %c0_i32_0 : i32, i32, i32
  }
  func.func @transform_2(%arg0: i32, %arg1: i32) -> (i32, i32, i32, i32) {
    %c0_i32 = arith.constant 0 : i32
    %c0_i32_0 = arith.constant 0 : i32
    %c0_i32_1 = arith.constant 0 : i32
    %c0_i32_2 = arith.constant 0 : i32
    return %arg0, %c0_i32, %c0_i32_0, %c0_i32_1 : i32, i32, i32, i32
  }
  func.func @transform_3(%arg0: i32, %arg1: i32) -> (i32, i32) {
    %c0_i32 = arith.constant 0 : i32
    %c0_i32_0 = arith.constant 0 : i32
    %c0_i32_1 = arith.constant 0 : i32
    return %c0_i32, %c0_i32_0 : i32, i32
  }
  func.func @transform_4(%arg0: i32, %arg1: i32) -> (i32, i32) {
    %c0_i32 = arith.constant 0 : i32
    %c0_i32_0 = arith.constant 0 : i32
    %c0_i32_1 = arith.constant 0 : i32
    return %c0_i32, %c0_i32_0 : i32, i32
  }
  func.func @transform_5(%arg0: i32, %arg1: i32) -> (i32, i32) {
    %c0_i32 = arith.constant 0 : i32
    %c0_i32_0 = arith.constant 0 : i32
    %c0_i32_1 = arith.constant 0 : i32
    return %c0_i32, %c0_i32_0 : i32, i32
  }
  func.func @transform_6(%arg0: i32, %arg1: i32) -> (i32, i32) {
    %c0_i32 = arith.constant 0 : i32
    %c0_i32_0 = arith.constant 0 : i32
    %c0_i32_1 = arith.constant 0 : i32
    return %c0_i32, %c0_i32_0 : i32, i32
  }
  func.func @transform_7(%arg0: i32, %arg1: i32) -> (i32, i32) {
    %c0_i32 = arith.constant 0 : i32
    %c0_i32_0 = arith.constant 0 : i32
    %c0_i32_1 = arith.constant 0 : i32
    return %c0_i32, %c0_i32_0 : i32, i32
  }
  func.func @transform_8(%arg0: i32, %arg1: i32) -> (i32, i32) {
    %c0_i32 = arith.constant 0 : i32
    %c0_i32_0 = arith.constant 0 : i32
    %c0_i32_1 = arith.constant 0 : i32
    return %c0_i32, %c0_i32_0 : i32, i32
  }
  func.func @transform_9(%arg0: i32, %arg1: i32) -> (i32, i32) {
    %c0_i32 = arith.constant 0 : i32
    %c0_i32_0 = arith.constant 0 : i32
    %c0_i32_1 = arith.constant 0 : i32
    return %c0_i32, %c0_i32_0 : i32, i32
  }
  func.func @transform_10(%arg0: i32, %arg1: i32) -> (i32, i32) {
    %c0_i32 = arith.constant 0 : i32
    %c0_i32_0 = arith.constant 0 : i32
    %c0_i32_1 = arith.constant 0 : i32
    return %c0_i32, %c0_i32_0 : i32, i32
  }
  func.func @transform_11(%arg0: i32, %arg1: i32) -> (i32, i32) {
    %c0_i32 = arith.constant 0 : i32
    %c0_i32_0 = arith.constant 0 : i32
    %c0_i32_1 = arith.constant 0 : i32
    return %c0_i32, %c0_i32_0 : i32, i32
  }
  func.func @transform_12(%arg0: i32, %arg1: i32) -> (i32, i32) {
    %c0_i32 = arith.constant 0 : i32
    %c0_i32_0 = arith.constant 0 : i32
    %c0_i32_1 = arith.constant 0 : i32
    return %c0_i32, %c0_i32_0 : i32, i32
  }
  func.func @transform_13(%arg0: i32, %arg1: i32) -> (i32, i32) {
    %c0_i32 = arith.constant 0 : i32
    %c0_i32_0 = arith.constant 0 : i32
    %c0_i32_1 = arith.constant 0 : i32
    return %c0_i32, %c0_i32_0 : i32, i32
  }
  func.func @transform_14(%arg0: i32, %arg1: i32) -> (i32, i32) {
    %c0_i32 = arith.constant 0 : i32
    %c0_i32_0 = arith.constant 0 : i32
    %c0_i32_1 = arith.constant 0 : i32
    return %c0_i32, %c0_i32_0 : i32, i32
  }
  func.func @transform_15(%arg0: i32, %arg1: i32) -> (i32, i32) {
    %c0_i32 = arith.constant 0 : i32
    %c0_i32_0 = arith.constant 0 : i32
    %c0_i32_1 = arith.constant 0 : i32
    return %c0_i32, %c0_i32_0 : i32, i32
  }
  func.func @transform_16(%arg0: i32, %arg1: i32) -> (i32, i32) {
    %c0_i32 = arith.constant 0 : i32
    %c0_i32_0 = arith.constant 0 : i32
    %c0_i32_1 = arith.constant 0 : i32
    return %c0_i32, %c0_i32_0 : i32, i32
  }
  func.func @transform_17(%arg0: i32, %arg1: i32) -> (i32, i32) {
    %c0_i32 = arith.constant 0 : i32
    %c0_i32_0 = arith.constant 0 : i32
    %c0_i32_1 = arith.constant 0 : i32
    return %c0_i32, %c0_i32_0 : i32, i32
  }
  func.func @transform_18(%arg0: i32, %arg1: i32) -> (i32, i32) {
    %c0_i32 = arith.constant 0 : i32
    %c0_i32_0 = arith.constant 0 : i32
    %c0_i32_1 = arith.constant 0 : i32
    return %c0_i32, %c0_i32_0 : i32, i32
  }
  func.func @transform_19(%arg0: i32, %arg1: i32) -> (i32, i32, i32) {
    %c0_i32 = arith.constant 0 : i32
    %c0_i32_0 = arith.constant 0 : i32
    return %arg0, %arg1, %c0_i32 : i32, i32, i32
  }
}

</mosaic_0001>

<llo_original>
// kernel: _lambda_.6
$region0: #{_lambda_.6}
  #allocation0 [shape = 'u32[]', space=smem, size = 0x4, offset = 0x4, fixed_abs, tag = 'smem constant byte address 0x4 - core index']
  #allocation1 [shape = 'u32[144,128]{1,0:T(1,128)}', space=vmem, size = 0x12000, scoped, tag = 'internal scratch']
  %s0 = inlined_call_operand.vmem [shape: f32[2,8,32], index: 0, kind: input, shape index: {}, may-alias: {0,1}]
  %s1 = inlined_call_operand.vmem [shape: f32[2,8,32], index: 1, kind: input, shape index: {}, may-alias: {0,1}]
  %s2 = inlined_call_operand.vmem [shape: f32[2,1,1,8], index: 2, kind: input, shape index: {}]
  %s3 = inlined_call_operand.vmem [shape: bf16[32,32], index: 3, kind: input, shape index: {}]
  %s4 = inlined_call_operand.hbm [shape: f32[1,32], index: 4, kind: input, shape index: {}]
  %s5 = inlined_call_operand.vmem [shape: bf16[32,32], index: 5, kind: input, shape index: {}]
  %s6 = inlined_call_operand.hbm [shape: f32[1,32], index: 6, kind: input, shape index: {}]
  %s7 = inlined_call_operand.vmem [shape: bf16[32,32], index: 7, kind: input, shape index: {}]
  %s8 = inlined_call_operand.hbm [shape: f32[1,32], index: 8, kind: input, shape index: {}]
  %s9 = inlined_call_operand.vmem [shape: bf16[32,32], index: 9, kind: input, shape index: {}]
  %s10 = inlined_call_operand.hbm [shape: f32[1,32], index: 10, kind: input, shape index: {}]
  %s11 = inlined_call_operand.hbm [shape: f32[1,32], index: 11, kind: input, shape index: {}]
  %s12 = inlined_call_operand.hbm [shape: f32[1,32], index: 12, kind: input, shape index: {}]
  %s13 = inlined_call_operand.hbm [shape: bf16[32,64], index: 13, kind: input, shape index: {}]
  %s14 = inlined_call_operand.hbm [shape: f32[1,64], index: 14, kind: input, shape index: {}]
  %s15 = inlined_call_operand.vmem [shape: bf16[64,32], index: 15, kind: input, shape index: {}]
  %s16 = inlined_call_operand.hbm [shape: f32[1,32], index: 16, kind: input, shape index: {}]
  %s17 = inlined_call_operand.vmem [shape: f32[1,32], index: 17, kind: input, shape index: {}]
  %s18 = inlined_call_operand.hbm [shape: f32[1,32], index: 18, kind: input, shape index: {}]
  %s19 = inlined_call_operand.vmem [shape: f32[2,8,32], index: 19, kind: output, shape index: {}]
  %s20 = sld [smem:[#allocation0]]
  $region149: #{_lambda_.6} parent=0
    _
  %s22 = ssub.s32 1, %s20
  %s23 = scalar_select 0, %s22, %s20
  $region1: #{_lambda_.6} parent=0
    #allocation2 [shape = 'u8[512]{0}', space=vmem, size = 0x400, scoped, tag = 'input window, operand 4, single buffered']
    #allocation3 [shape = 's32[2]{0}', space=sflag, size = 0x8, scoped, tag = 'scoped memory for _lambda_.6']
    #allocation4 [shape = 'u8[512]{0}', space=vmem, size = 0x400, scoped, tag = 'input window, operand 6, single buffered']
    #allocation5 [shape = 's32[1]{0}', space=sflag, size = 0x4, scoped, tag = 'scoped memory for _lambda_.6']
    #allocation6 [shape = 'u8[512]{0}', space=vmem, size = 0x400, scoped, tag = 'input window, operand 8, single buffered']
    #allocation7 [shape = 'u8[512]{0}', space=vmem, size = 0x400, scoped, tag = 'input window, operand 10, single buffered']
    #allocation8 [shape = 's32[1]{0}', space=sflag, size = 0x4, scoped, tag = 'scoped memory for _lambda_.6']
    #allocation9 [shape = 'u8[512]{0}', space=vmem, size = 0x400, scoped, tag = 'input window, operand 11, single buffered']
    #allocation10 [shape = 'u8[512]{0}', space=vmem, size = 0x400, scoped, tag = 'input window, operand 12, single buffered']
    #allocation11 [shape = 's32[1]{0}', space=sflag, size = 0x4, scoped, tag = 'scoped memory for _lambda_.6']
    #allocation12 [shape = 'u8[8192]{0}', space=vmem, size = 0x2000, scoped, tag = 'input window, operand 13, single buffered']
    #allocation13 [shape = 'u8[512]{0}', space=vmem, size = 0x400, scoped, tag = 'input window, operand 14, single buffered']
    #allocation14 [shape = 's32[1]{0}', space=sflag, size = 0x4, scoped, tag = 'scoped memory for _lambda_.6']
    #allocation15 [shape = 'u8[512]{0}', space=vmem, size = 0x400, scoped, tag = 'input window, operand 16, single buffered']
    #allocation16 [shape = 'u8[512]{0}', space=vmem, size = 0x400, scoped, tag = 'input window, operand 18, single buffered']
    #allocation17 [shape = 's32[1]{0}', space=sflag, size = 0x4, scoped, tag = 'scoped memory for _lambda_.6']
    %24 = vsyncpa [#allocation3], 0
    %25 = vsyncpa [#allocation5], 0
    %26 = vsyncpa [#allocation8], 0
    %27 = vsyncpa [#allocation11], 0
    %28 = vsyncpa [#allocation14], 0
    %29 = vsyncpa [#allocation17], 0
    loop: start=0, step=1, limit=4
    $region2: #{_lambda_.6} parent=1 // loop_pre_header
      _
    $region3: #{_lambda_.6} parent=1 // loop_header
      %s31 = sphi 0, %s35
      %p32 = scmp.ge.s32.totalorder %s31, 4
      %s38 = sphi 0, %s50
      %s39 = sphi 0, %s46
      %s40 = sphi 0, %s38
      %s41 = sphi 0, %s39
      %s42 = sphi 0, %s40
      %s43 = sphi 0, %s41
      %s55 = sphi 0, %s57
      %s58 = sphi 0, %s55
      %s59 = sphi 0, %s58
      %s75 = sphi 0, %s59
      %s81 = sphi 0, %s83
      %s84 = sphi 0, %s81
      %s85 = sphi 0, %s84
      %s101 = sphi 0, %s85
      %s107 = sphi 0, %s109
      %s110 = sphi 0, %s107
      %s111 = sphi 0, %s110
      %s127 = sphi 0, %s111
      %s131 = sphi 0, %s131
      %s133 = sphi 0, %s131
      %s134 = sphi 0, %s133
      %s148 = sphi 0, %s134
      %s152 = sphi 0, %s152
      %s154 = sphi 0, %s152
      %s155 = sphi 0, %s154
      %s169 = sphi 0, %s155
      %s173 = sphi 0, %s173
      %s175 = sphi 0, %s173
      %s176 = sphi 0, %s175
      %s190 = sphi 0, %s176
      %s194 = sphi 0, %s194
      %s196 = sphi 0, %s194
      %s197 = sphi 0, %s196
      %s211 = sphi 0, %s197
      %s215 = sphi 0, %s215
      %s217 = sphi 0, %s215
      %s218 = sphi 0, %s217
      %s232 = sphi 0, %s218
      %s236 = sphi 0, %s236
      %s238 = sphi 0, %s236
      %s239 = sphi 0, %s238
      %s253 = sphi 0, %s239
      %s257 = sphi 0, %s257
      %s259 = sphi 0, %s257
      %s260 = sphi 0, %s259
      %s274 = sphi 0, %s260
      %s278 = sphi 0, %s278
      %s280 = sphi 0, %s278
      %s281 = sphi 0, %s280
      %s295 = sphi 0, %s281
      %s299 = sphi 0, %s299
      %s301 = sphi 0, %s299
      %s302 = sphi 0, %s301
      %s316 = sphi 0, %s302
      %s320 = sphi 0, %s320
      %s322 = sphi 0, %s320
      %s323 = sphi 0, %s322
      %s337 = sphi 0, %s323
      %s341 = sphi 0, %s341
      %s343 = sphi 0, %s341
      %s344 = sphi 0, %s343
      %s358 = sphi 0, %s344
      %s362 = sphi 0, %s362
      %s364 = sphi 0, %s362
      %s365 = sphi 0, %s364
      %s379 = sphi 0, %s365
      %s383 = sphi 0, %s383
      %s385 = sphi 0, %s383
      %s386 = sphi 0, %s385
      %s400 = sphi 0, %s386
      %s404 = sphi 0, %s404
      %s406 = sphi 0, %s404
      %s407 = sphi 0, %s406
      %s421 = sphi 0, %s407
      %s425 = sphi 0, %s425
      %s427 = sphi 0, %s425
      %s428 = sphi 0, %s427
      %s442 = sphi 0, %s428
      %s446 = sphi 0, %s446
      %s448 = sphi 0, %s446
      %s449 = sphi 0, %s448
      %s463 = sphi 0, %s449
      %s471 = sphi 0, %s473
      %s474 = sphi 0, %s471
      %s475 = sphi 0, %s474
      %s491 = sphi 0, %s475
    $region4: #{_lambda_.6} parent=1 // loop_header_branch
      %34 = sbr.rel (%p32) target = $region8
    $region5: #{_lambda_.6} parent=1 // loop_body
      %s36 = ssub.s32 %s31, 1
      %s37 = ssub.s32 %s31, 2
      %s44 = sadd.s32 1, %s39
      %p45 = scmp.ge.s32.totalorder %s44, 1
      %s46 = scalar_select %p45, 0, %s44
      %s47 = sadd.s32 1, %s38
      %s48 = scalar_select %p45, %s47, %s38
      %p49 = scmp.ge.s32.totalorder %s48, 2
      %s50 = scalar_select %p49, 0, %s48
      %s51 = ssub.s32 %s38, %s50
      %s52 = ssub.s32 %s39, %s46
      %s53 = sor.u32 %s51, %s52
      %p54 = scmp.eq.s32.totalorder %s53, 0
      %s56 = sadd.s32 %s55, 1
      %s57 = scalar_select %p54, %s55, %s56
      %p60 = pneg %p54
      %p61 = scmp.eq.s32.totalorder %s31, 1
      %p62 = por %p60, %p61
      %p63 = scmp.ne.s32.totalorder %s55, %s58
      %p64 = scmp.eq.s32.totalorder %s31, 0
      %p65 = por %p63, %p64
      %p66 = scmp.ne.s32.totalorder %s55, %s58
      %p67 = scmp.eq.s32.totalorder %s36, 1
      %p68 = por %p66, %p67
      %p69 = scmp.ne.s32.totalorder %s58, %s59
      %p70 = scmp.eq.s32.totalorder %s36, 0
      %p71 = por %p69, %p70
      %p72 = scmp.ne.s32.totalorder %s58, %s59
      %p73 = scmp.eq.s32.totalorder %s37, 1
      %p74 = por %p72, %p73
      %p76 = scmp.ne.s32.totalorder %s59, %s75
      %p77 = scmp.eq.s32.totalorder %s37, 0
      %p78 = por %p76, %p77
      %s79 = ssub.s32 %s38, %s50
      %p80 = scmp.eq.s32.totalorder %s79, 0
      %s82 = sadd.s32 %s81, 1
      %s83 = scalar_select %p80, %s81, %s82
      %p86 = pneg %p80
      %p87 = scmp.eq.s32.totalorder %s31, 1
      %p88 = por %p86, %p87
      %p89 = scmp.ne.s32.totalorder %s81, %s84
      %p90 = scmp.eq.s32.totalorder %s31, 0
      %p91 = por %p89, %p90
      %p92 = scmp.ne.s32.totalorder %s81, %s84
      %p93 = scmp.eq.s32.totalorder %s36, 1
      %p94 = por %p92, %p93
      %p95 = scmp.ne.s32.totalorder %s84, %s85
      %p96 = scmp.eq.s32.totalorder %s36, 0
      %p97 = por %p95, %p96
      %p98 = scmp.ne.s32.totalorder %s84, %s85
      %p99 = scmp.eq.s32.totalorder %s37, 1
      %p100 = por %p98, %p99
      %p102 = scmp.ne.s32.totalorder %s85, %s101
      %p103 = scmp.eq.s32.totalorder %s37, 0
      %p104 = por %p102, %p103
      %s105 = ssub.s32 %s38, %s50
      %p106 = scmp.eq.s32.totalorder %s105, 0
      %s108 = sadd.s32 %s107, 1
      %s109 = scalar_select %p106, %s107, %s108
      %p112 = pneg %p106
      %p113 = scmp.eq.s32.totalorder %s31, 1
      %p114 = por %p112, %p113
      %p115 = scmp.ne.s32.totalorder %s107, %s110
      %p116 = scmp.eq.s32.totalorder %s31, 0
      %p117 = por %p115, %p116
      %p118 = scmp.ne.s32.totalorder %s107, %s110
      %p119 = scmp.eq.s32.totalorder %s36, 1
      %p120 = por %p118, %p119
      %p121 = scmp.ne.s32.totalorder %s110, %s111
      %p122 = scmp.eq.s32.totalorder %s36, 0
      %p123 = por %p121, %p122
      %p124 = scmp.ne.s32.totalorder %s110, %s111
      %p125 = scmp.eq.s32.totalorder %s37, 1
      %p126 = por %p124, %p125
      %p128 = scmp.ne.s32.totalorder %s111, %s127
      %p129 = scmp.eq.s32.totalorder %s37, 0
      %p130 = por %p128, %p129
      %s132 = sadd.s32 %s131, 1
      %p135 = scmp.eq.s32.totalorder %s31, 1
      %p136 = scmp.ne.s32.totalorder %s131, %s133
      %p137 = scmp.eq.s32.totalorder %s31, 0
      %p138 = por %p136, %p137
      %p139 = scmp.ne.s32.totalorder %s131, %s133
      %p140 = scmp.eq.s32.totalorder %s36, 1
      %p141 = por %p139, %p140
      %p142 = scmp.ne.s32.totalorder %s133, %s134
      %p143 = scmp.eq.s32.totalorder %s36, 0
      %p144 = por %p142, %p143
      %p145 = scmp.ne.s32.totalorder %s133, %s134
      %p146 = scmp.eq.s32.totalorder %s37, 1
      %p147 = por %p145, %p146
      %p149 = scmp.ne.s32.totalorder %s134, %s148
      %p150 = scmp.eq.s32.totalorder %s37, 0
      %p151 = por %p149, %p150
      %s153 = sadd.s32 %s152, 1
      %p156 = scmp.eq.s32.totalorder %s31, 1
      %p157 = scmp.ne.s32.totalorder %s152, %s154
      %p158 = scmp.eq.s32.totalorder %s31, 0
      %p159 = por %p157, %p158
      %p160 = scmp.ne.s32.totalorder %s152, %s154
      %p161 = scmp.eq.s32.totalorder %s36, 1
      %p162 = por %p160, %p161
      %p163 = scmp.ne.s32.totalorder %s154, %s155
      %p164 = scmp.eq.s32.totalorder %s36, 0
      %p165 = por %p163, %p164
      %p166 = scmp.ne.s32.totalorder %s154, %s155
      %p167 = scmp.eq.s32.totalorder %s37, 1
      %p168 = por %p166, %p167
      %p170 = scmp.ne.s32.totalorder %s155, %s169
      %p171 = scmp.eq.s32.totalorder %s37, 0
      %p172 = por %p170, %p171
      %s174 = sadd.s32 %s173, 1
      %p177 = scmp.eq.s32.totalorder %s31, 1
      %p178 = scmp.ne.s32.totalorder %s173, %s175
      %p179 = scmp.eq.s32.totalorder %s31, 0
      %p180 = por %p178, %p179
      %p181 = scmp.ne.s32.totalorder %s173, %s175
      %p182 = scmp.eq.s32.totalorder %s36, 1
      %p183 = por %p181, %p182
      %p184 = scmp.ne.s32.totalorder %s175, %s176
      %p185 = scmp.eq.s32.totalorder %s36, 0
      %p186 = por %p184, %p185
      %p187 = scmp.ne.s32.totalorder %s175, %s176
      %p188 = scmp.eq.s32.totalorder %s37, 1
      %p189 = por %p187, %p188
      %p191 = scmp.ne.s32.totalorder %s176, %s190
      %p192 = scmp.eq.s32.totalorder %s37, 0
      %p193 = por %p191, %p192
      %s195 = sadd.s32 %s194, 1
      %p198 = scmp.eq.s32.totalorder %s31, 1
      %p199 = scmp.ne.s32.totalorder %s194, %s196
      %p200 = scmp.eq.s32.totalorder %s31, 0
      %p201 = por %p199, %p200
      %p202 = scmp.ne.s32.totalorder %s194, %s196
      %p203 = scmp.eq.s32.totalorder %s36, 1
      %p204 = por %p202, %p203
      %p205 = scmp.ne.s32.totalorder %s196, %s197
      %p206 = scmp.eq.s32.totalorder %s36, 0
      %p207 = por %p205, %p206
      %p208 = scmp.ne.s32.totalorder %s196, %s197
      %p209 = scmp.eq.s32.totalorder %s37, 1
      %p210 = por %p208, %p209
      %p212 = scmp.ne.s32.totalorder %s197, %s211
      %p213 = scmp.eq.s32.totalorder %s37, 0
      %p214 = por %p212, %p213
      %s216 = sadd.s32 %s215, 1
      %p219 = scmp.eq.s32.totalorder %s31, 1
      %p220 = scmp.ne.s32.totalorder %s215, %s217
      %p221 = scmp.eq.s32.totalorder %s31, 0
      %p222 = por %p220, %p221
      %p223 = scmp.ne.s32.totalorder %s215, %s217
      %p224 = scmp.eq.s32.totalorder %s36, 1
      %p225 = por %p223, %p224
      %p226 = scmp.ne.s32.totalorder %s217, %s218
      %p227 = scmp.eq.s32.totalorder %s36, 0
      %p228 = por %p226, %p227
      %p229 = scmp.ne.s32.totalorder %s217, %s218
      %p230 = scmp.eq.s32.totalorder %s37, 1
      %p231 = por %p229, %p230
      %p233 = scmp.ne.s32.totalorder %s218, %s232
      %p234 = scmp.eq.s32.totalorder %s37, 0
      %p235 = por %p233, %p234
      %s237 = sadd.s32 %s236, 1
      %p240 = scmp.eq.s32.totalorder %s31, 1
      %p241 = scmp.ne.s32.totalorder %s236, %s238
      %p242 = scmp.eq.s32.totalorder %s31, 0
      %p243 = por %p241, %p242
      %p244 = scmp.ne.s32.totalorder %s236, %s238
      %p245 = scmp.eq.s32.totalorder %s36, 1
      %p246 = por %p244, %p245
      %p247 = scmp.ne.s32.totalorder %s238, %s239
      %p248 = scmp.eq.s32.totalorder %s36, 0
      %p249 = por %p247, %p248
      %p250 = scmp.ne.s32.totalorder %s238, %s239
      %p251 = scmp.eq.s32.totalorder %s37, 1
      %p252 = por %p250, %p251
      %p254 = scmp.ne.s32.totalorder %s239, %s253
      %p255 = scmp.eq.s32.totalorder %s37, 0
      %p256 = por %p254, %p255
      %s258 = sadd.s32 %s257, 1
      %p261 = scmp.eq.s32.totalorder %s31, 1
      %p262 = scmp.ne.s32.totalorder %s257, %s259
      %p263 = scmp.eq.s32.totalorder %s31, 0
      %p264 = por %p262, %p263
      %p265 = scmp.ne.s32.totalorder %s257, %s259
      %p266 = scmp.eq.s32.totalorder %s36, 1
      %p267 = por %p265, %p266
      %p268 = scmp.ne.s32.totalorder %s259, %s260
      %p269 = scmp.eq.s32.totalorder %s36, 0
      %p270 = por %p268, %p269
      %p271 = scmp.ne.s32.totalorder %s259, %s260
      %p272 = scmp.eq.s32.totalorder %s37, 1
      %p273 = por %p271, %p272
      %p275 = scmp.ne.s32.totalorder %s260, %s274
      %p276 = scmp.eq.s32.totalorder %s37, 0
      %p277 = por %p275, %p276
      %s279 = sadd.s32 %s278, 1
      %p282 = scmp.eq.s32.totalorder %s31, 1
      %p283 = scmp.ne.s32.totalorder %s278, %s280
      %p284 = scmp.eq.s32.totalorder %s31, 0
      %p285 = por %p283, %p284
      %p286 = scmp.ne.s32.totalorder %s278, %s280
      %p287 = scmp.eq.s32.totalorder %s36, 1
      %p288 = por %p286, %p287
      %p289 = scmp.ne.s32.totalorder %s280, %s281
      %p290 = scmp.eq.s32.totalorder %s36, 0
      %p291 = por %p289, %p290
      %p292 = scmp.ne.s32.totalorder %s280, %s281
      %p293 = scmp.eq.s32.totalorder %s37, 1
      %p294 = por %p292, %p293
      %p296 = scmp.ne.s32.totalorder %s281, %s295
      %p297 = scmp.eq.s32.totalorder %s37, 0
      %p298 = por %p296, %p297
      %s300 = sadd.s32 %s299, 1
      %p303 = scmp.eq.s32.totalorder %s31, 1
      %p304 = scmp.ne.s32.totalorder %s299, %s301
      %p305 = scmp.eq.s32.totalorder %s31, 0
      %p306 = por %p304, %p305
      %p307 = scmp.ne.s32.totalorder %s299, %s301
      %p308 = scmp.eq.s32.totalorder %s36, 1
      %p309 = por %p307, %p308
      %p310 = scmp.ne.s32.totalorder %s301, %s302
      %p311 = scmp.eq.s32.totalorder %s36, 0
      %p312 = por %p310, %p311
      %p313 = scmp.ne.s32.totalorder %s301, %s302
      %p314 = scmp.eq.s32.totalorder %s37, 1
      %p315 = por %p313, %p314
      %p317 = scmp.ne.s32.totalorder %s302, %s316
      %p318 = scmp.eq.s32.totalorder %s37, 0
      %p319 = por %p317, %p318
      %s321 = sadd.s32 %s320, 1
      %p324 = scmp.eq.s32.totalorder %s31, 1
      %p325 = scmp.ne.s32.totalorder %s320, %s322
      %p326 = scmp.eq.s32.totalorder %s31, 0
      %p327 = por %p325, %p326
      %p328 = scmp.ne.s32.totalorder %s320, %s322
      %p329 = scmp.eq.s32.totalorder %s36, 1
      %p330 = por %p328, %p329
      %p331 = scmp.ne.s32.totalorder %s322, %s323
      %p332 = scmp.eq.s32.totalorder %s36, 0
      %p333 = por %p331, %p332
      %p334 = scmp.ne.s32.totalorder %s322, %s323
      %p335 = scmp.eq.s32.totalorder %s37, 1
      %p336 = por %p334, %p335
      %p338 = scmp.ne.s32.totalorder %s323, %s337
      %p339 = scmp.eq.s32.totalorder %s37, 0
      %p340 = por %p338, %p339
      %s342 = sadd.s32 %s341, 1
      %p345 = scmp.eq.s32.totalorder %s31, 1
      %p346 = scmp.ne.s32.totalorder %s341, %s343
      %p347 = scmp.eq.s32.totalorder %s31, 0
      %p348 = por %p346, %p347
      %p349 = scmp.ne.s32.totalorder %s341, %s343
      %p350 = scmp.eq.s32.totalorder %s36, 1
      %p351 = por %p349, %p350
      %p352 = scmp.ne.s32.totalorder %s343, %s344
      %p353 = scmp.eq.s32.totalorder %s36, 0
      %p354 = por %p352, %p353
      %p355 = scmp.ne.s32.totalorder %s343, %s344
      %p356 = scmp.eq.s32.totalorder %s37, 1
      %p357 = por %p355, %p356
      %p359 = scmp.ne.s32.totalorder %s344, %s358
      %p360 = scmp.eq.s32.totalorder %s37, 0
      %p361 = por %p359, %p360
      %s363 = sadd.s32 %s362, 1
      %p366 = scmp.eq.s32.totalorder %s31, 1
      %p367 = scmp.ne.s32.totalorder %s362, %s364
      %p368 = scmp.eq.s32.totalorder %s31, 0
      %p369 = por %p367, %p368
      %p370 = scmp.ne.s32.totalorder %s362, %s364
      %p371 = scmp.eq.s32.totalorder %s36, 1
      %p372 = por %p370, %p371
      %p373 = scmp.ne.s32.totalorder %s364, %s365
      %p374 = scmp.eq.s32.totalorder %s36, 0
      %p375 = por %p373, %p374
      %p376 = scmp.ne.s32.totalorder %s364, %s365
      %p377 = scmp.eq.s32.totalorder %s37, 1
      %p378 = por %p376, %p377
      %p380 = scmp.ne.s32.totalorder %s365, %s379
      %p381 = scmp.eq.s32.totalorder %s37, 0
      %p382 = por %p380, %p381
      %s384 = sadd.s32 %s383, 1
      %p387 = scmp.eq.s32.totalorder %s31, 1
      %p388 = scmp.ne.s32.totalorder %s383, %s385
      %p389 = scmp.eq.s32.totalorder %s31, 0
      %p390 = por %p388, %p389
      %p391 = scmp.ne.s32.totalorder %s383, %s385
      %p392 = scmp.eq.s32.totalorder %s36, 1
      %p393 = por %p391, %p392
      %p394 = scmp.ne.s32.totalorder %s385, %s386
      %p395 = scmp.eq.s32.totalorder %s36, 0
      %p396 = por %p394, %p395
      %p397 = scmp.ne.s32.totalorder %s385, %s386
      %p398 = scmp.eq.s32.totalorder %s37, 1
      %p399 = por %p397, %p398
      %p401 = scmp.ne.s32.totalorder %s386, %s400
      %p402 = scmp.eq.s32.totalorder %s37, 0
      %p403 = por %p401, %p402
      %s405 = sadd.s32 %s404, 1
      %p408 = scmp.eq.s32.totalorder %s31, 1
      %p409 = scmp.ne.s32.totalorder %s404, %s406
      %p410 = scmp.eq.s32.totalorder %s31, 0
      %p411 = por %p409, %p410
      %p412 = scmp.ne.s32.totalorder %s404, %s406
      %p413 = scmp.eq.s32.totalorder %s36, 1
      %p414 = por %p412, %p413
      %p415 = scmp.ne.s32.totalorder %s406, %s407
      %p416 = scmp.eq.s32.totalorder %s36, 0
      %p417 = por %p415, %p416
      %p418 = scmp.ne.s32.totalorder %s406, %s407
      %p419 = scmp.eq.s32.totalorder %s37, 1
      %p420 = por %p418, %p419
      %p422 = scmp.ne.s32.totalorder %s407, %s421
      %p423 = scmp.eq.s32.totalorder %s37, 0
      %p424 = por %p422, %p423
      %s426 = sadd.s32 %s425, 1
      %p429 = scmp.eq.s32.totalorder %s31, 1
      %p430 = scmp.ne.s32.totalorder %s425, %s427
      %p431 = scmp.eq.s32.totalorder %s31, 0
      %p432 = por %p430, %p431
      %p433 = scmp.ne.s32.totalorder %s425, %s427
      %p434 = scmp.eq.s32.totalorder %s36, 1
      %p435 = por %p433, %p434
      %p436 = scmp.ne.s32.totalorder %s427, %s428
      %p437 = scmp.eq.s32.totalorder %s36, 0
      %p438 = por %p436, %p437
      %p439 = scmp.ne.s32.totalorder %s427, %s428
      %p440 = scmp.eq.s32.totalorder %s37, 1
      %p441 = por %p439, %p440
      %p443 = scmp.ne.s32.totalorder %s428, %s442
      %p444 = scmp.eq.s32.totalorder %s37, 0
      %p445 = por %p443, %p444
      %s447 = sadd.s32 %s446, 1
      %p450 = scmp.eq.s32.totalorder %s31, 1
      %p451 = scmp.ne.s32.totalorder %s446, %s448
      %p452 = scmp.eq.s32.totalorder %s31, 0
      %p453 = por %p451, %p452
      %p454 = scmp.ne.s32.totalorder %s446, %s448
      %p455 = scmp.eq.s32.totalorder %s36, 1
      %p456 = por %p454, %p455
      %p457 = scmp.ne.s32.totalorder %s448, %s449
      %p458 = scmp.eq.s32.totalorder %s36, 0
      %p459 = por %p457, %p458
      %p460 = scmp.ne.s32.totalorder %s448, %s449
      %p461 = scmp.eq.s32.totalorder %s37, 1
      %p462 = por %p460, %p461
      %p464 = scmp.ne.s32.totalorder %s449, %s463
      %p465 = scmp.eq.s32.totalorder %s37, 0
      %p466 = por %p464, %p465
      %s467 = ssub.s32 %s38, %s50
      %s468 = ssub.s32 %s39, %s46
      %s469 = sor.u32 %s467, %s468
      %p470 = scmp.eq.s32.totalorder %s469, 0
      %s472 = sadd.s32 %s471, 1
      %s473 = scalar_select %p470, %s471, %s472
      %p476 = pneg %p470
      %p477 = scmp.eq.s32.totalorder %s31, 1
      %p478 = por %p476, %p477
      %p479 = scmp.ne.s32.totalorder %s471, %s474
      %p480 = scmp.eq.s32.totalorder %s31, 0
      %p481 = por %p479, %p480
      %p482 = scmp.ne.s32.totalorder %s471, %s474
      %p483 = scmp.eq.s32.totalorder %s36, 1
      %p484 = por %p482, %p483
      %p485 = scmp.ne.s32.totalorder %s474, %s475
      %p486 = scmp.eq.s32.totalorder %s36, 0
      %p487 = por %p485, %p486
      %p488 = scmp.ne.s32.totalorder %s474, %s475
      %p489 = scmp.eq.s32.totalorder %s37, 1
      %p490 = por %p488, %p489
      %p492 = scmp.ne.s32.totalorder %s475, %s491
      %p493 = scmp.eq.s32.totalorder %s37, 0
      %p494 = por %p492, %p493
      %p495 = scmp.le.s32.totalorder 1, %s31
      %p496 = scmp.lt.s32.totalorder %s31, 3
      %p497 = pnand %p495, %p496
      %p498 = pneg %p497
      // Predicated region
      $region9: #{_lambda_.6} parent=5 // pred_check
        _
      $region10: #{_lambda_.6} parent=5 // pred_check_branch
        %500 = sbr.rel (%p497) target = $region12
      $region11: #{_lambda_.6} parent=5 // pred_region
        %s501 = ssub.s32 %s31, 1
        // Predicated region
        $region13: #{_lambda_.6} parent=11 // pred_check
          %p502 = pneg %p144
        $region14: #{_lambda_.6} parent=11 // pred_check_branch
          %504 = sbr.rel (%p502) target = $region16
        $region15: #{_lambda_.6} parent=11 // pred_region
          _
        $region16: #{_lambda_.6} parent=11 // pred_fallthru
          _
        // Predicated region
        $region17: #{_lambda_.6} parent=11 // pred_check
          %p505 = pneg %p165
        $region18: #{_lambda_.6} parent=11 // pred_check_branch
          %507 = sbr.rel (%p505) target = $region20
        $region19: #{_lambda_.6} parent=11 // pred_region
          %s509 = ssub.s32 16, 16
          %510 = vsyncadd [#allocation3], %s509
          %s512 = sshll.u32 [#allocation2], 4
          %s513 = int_to_ptr.vmem [resolvable:$true] %s512
          %515 = dma.hbm_to_vmem [thread:$0]  %s4, 16, %s513, [#allocation3]
        $region20: #{_lambda_.6} parent=11 // pred_fallthru
          _
        // Predicated region
        $region21: #{_lambda_.6} parent=11 // pred_check
          %p516 = pneg %p186
        $region22: #{_lambda_.6} parent=11 // pred_check_branch
          %518 = sbr.rel (%p516) target = $region24
        $region23: #{_lambda_.6} parent=11 // pred_region
          _
        $region24: #{_lambda_.6} parent=11 // pred_fallthru
          _
        // Predicated region
        $region25: #{_lambda_.6} parent=11 // pred_check
          %p519 = pneg %p207
        $region26: #{_lambda_.6} parent=11 // pred_check_branch
          %521 = sbr.rel (%p519) target = $region28
        $region27: #{_lambda_.6} parent=11 // pred_region
          %s523 = ssub.s32 16, 16
          %524 = vsyncadd [#allocation5], %s523
          %s526 = sshll.u32 [#allocation4], 4
          %s527 = int_to_ptr.vmem [resolvable:$true] %s526
          %529 = dma.hbm_to_vmem [thread:$0]  %s6, 16, %s527, [#allocation5]
        $region28: #{_lambda_.6} parent=11 // pred_fallthru
          _
        // Predicated region
        $region29: #{_lambda_.6} parent=11 // pred_check
          %p530 = pneg %p228
        $region30: #{_lambda_.6} parent=11 // pred_check_branch
          %532 = sbr.rel (%p530) target = $region32
        $region31: #{_lambda_.6} parent=11 // pred_region
          _
        $region32: #{_lambda_.6} parent=11 // pred_fallthru
          _
        // Predicated region
        $region33: #{_lambda_.6} parent=11 // pred_check
          %p533 = pneg %p249
        $region34: #{_lambda_.6} parent=11 // pred_check_branch
          %535 = sbr.rel (%p533) target = $region36
        $region35: #{_lambda_.6} parent=11 // pred_region
          %s537 = ssub.s32 16, 16
          %538 = vsyncadd [#allocation5], %s537
          %s540 = sshll.u32 [#allocation6], 4
          %s541 = int_to_ptr.vmem [resolvable:$true] %s540
          %543 = dma.hbm_to_vmem [thread:$0]  %s8, 16, %s541, [#allocation5]
        $region36: #{_lambda_.6} parent=11 // pred_fallthru
          _
        // Predicated region
        $region37: #{_lambda_.6} parent=11 // pred_check
          %p544 = pneg %p270
        $region38: #{_lambda_.6} parent=11 // pred_check_branch
          %546 = sbr.rel (%p544) target = $region40
        $region39: #{_lambda_.6} parent=11 // pred_region
          _
        $region40: #{_lambda_.6} parent=11 // pred_fallthru
          _
        // Predicated region
        $region41: #{_lambda_.6} parent=11 // pred_check
          %p547 = pneg %p291
        $region42: #{_lambda_.6} parent=11 // pred_check_branch
          %549 = sbr.rel (%p547) target = $region44
        $region43: #{_lambda_.6} parent=11 // pred_region
          %s551 = ssub.s32 16, 16
          %552 = vsyncadd [#allocation8], %s551
          %s554 = sshll.u32 [#allocation7], 4
          %s555 = int_to_ptr.vmem [resolvable:$true] %s554
          %557 = dma.hbm_to_vmem [thread:$0]  %s10, 16, %s555, [#allocation8]
        $region44: #{_lambda_.6} parent=11 // pred_fallthru
          _
        // Predicated region
        $region45: #{_lambda_.6} parent=11 // pred_check
          %p558 = pneg %p312
        $region46: #{_lambda_.6} parent=11 // pred_check_branch
          %560 = sbr.rel (%p558) target = $region48
        $region47: #{_lambda_.6} parent=11 // pred_region
          %s562 = ssub.s32 16, 16
          %563 = vsyncadd [#allocation8], %s562
          %s565 = sshll.u32 [#allocation9], 4
          %s566 = int_to_ptr.vmem [resolvable:$true] %s565
          %568 = dma.hbm_to_vmem [thread:$0]  %s11, 16, %s566, [#allocation8]
        $region48: #{_lambda_.6} parent=11 // pred_fallthru
          _
        // Predicated region
        $region49: #{_lambda_.6} parent=11 // pred_check
          %p569 = pneg %p333
        $region50: #{_lambda_.6} parent=11 // pred_check_branch
          %571 = sbr.rel (%p569) target = $region52
        $region51: #{_lambda_.6} parent=11 // pred_region
          %s573 = ssub.s32 16, 16
          %574 = vsyncadd [#allocation11], %s573
          %s576 = sshll.u32 [#allocation10], 4
          %s577 = int_to_ptr.vmem [resolvable:$true] %s576
          %579 = dma.hbm_to_vmem [thread:$0]  %s12, 16, %s577, [#allocation11]
        $region52: #{_lambda_.6} parent=11 // pred_fallthru
          _
        // Predicated region
        $region53: #{_lambda_.6} parent=11 // pred_check
          %p580 = pneg %p354
        $region54: #{_lambda_.6} parent=11 // pred_check_branch
          %582 = sbr.rel (%p580) target = $region56
        $region55: #{_lambda_.6} parent=11 // pred_region
          %s584 = ssub.s32 256, 256
          %585 = vsyncadd [#allocation11], %s584
          %s586 = sshll.u32 [#allocation12], 4
          %s587 = int_to_ptr.vmem [resolvable:$true] %s586
          %592 = dma.hbm_to_vmem [thread:$0]  %s13, 256, %s587, [#allocation11], 64, 64, 4
        $region56: #{_lambda_.6} parent=11 // pred_fallthru
          _
        // Predicated region
        $region57: #{_lambda_.6} parent=11 // pred_check
          %p593 = pneg %p375
        $region58: #{_lambda_.6} parent=11 // pred_check_branch
          %595 = sbr.rel (%p593) target = $region60
        $region59: #{_lambda_.6} parent=11 // pred_region
          %s597 = ssub.s32 16, 16
          %598 = vsyncadd [#allocation14], %s597
          %s600 = sshll.u32 [#allocation13], 4
          %s601 = int_to_ptr.vmem [resolvable:$true] %s600
          %603 = dma.hbm_to_vmem [thread:$0]  %s14, 16, %s601, [#allocation14]
        $region60: #{_lambda_.6} parent=11 // pred_fallthru
          _
        // Predicated region
        $region61: #{_lambda_.6} parent=11 // pred_check
          %p604 = pneg %p396
        $region62: #{_lambda_.6} parent=11 // pred_check_branch
          %606 = sbr.rel (%p604) target = $region64
        $region63: #{_lambda_.6} parent=11 // pred_region
          _
        $region64: #{_lambda_.6} parent=11 // pred_fallthru
          _
        // Predicated region
        $region65: #{_lambda_.6} parent=11 // pred_check
          %p607 = pneg %p417
        $region66: #{_lambda_.6} parent=11 // pred_check_branch
          %609 = sbr.rel (%p607) target = $region68
        $region67: #{_lambda_.6} parent=11 // pred_region
          %s611 = ssub.s32 16, 16
          %612 = vsyncadd [#allocation14], %s611
          %s614 = sshll.u32 [#allocation15], 4
          %s615 = int_to_ptr.vmem [resolvable:$true] %s614
          %617 = dma.hbm_to_vmem [thread:$0]  %s16, 16, %s615, [#allocation14]
        $region68: #{_lambda_.6} parent=11 // pred_fallthru
          _
        // Predicated region
        $region69: #{_lambda_.6} parent=11 // pred_check
          %p618 = pneg %p438
        $region70: #{_lambda_.6} parent=11 // pred_check_branch
          %620 = sbr.rel (%p618) target = $region72
        $region71: #{_lambda_.6} parent=11 // pred_region
          _
        $region72: #{_lambda_.6} parent=11 // pred_fallthru
          _
        // Predicated region
        $region73: #{_lambda_.6} parent=11 // pred_check
          %p621 = pneg %p459
        $region74: #{_lambda_.6} parent=11 // pred_check_branch
          %623 = sbr.rel (%p621) target = $region76
        $region75: #{_lambda_.6} parent=11 // pred_region
          %s625 = ssub.s32 16, 16
          %626 = vsyncadd [#allocation17], %s625
          %s628 = sshll.u32 [#allocation16], 4
          %s629 = int_to_ptr.vmem [resolvable:$true] %s628
          %631 = dma.hbm_to_vmem [thread:$0]  %s18, 16, %s629, [#allocation17]
        $region76: #{_lambda_.6} parent=11 // pred_fallthru
          _
      $region12: #{_lambda_.6} parent=5 // pred_fallthru
        _
      %p632 = scmp.lt.s32.totalorder %s31, 2
      // Predicated region
      $region77: #{_lambda_.6} parent=5 // pred_check
        %p633 = pneg %p632
      $region78: #{_lambda_.6} parent=5 // pred_check_branch
        %635 = sbr.rel (%p633) target = $region80
      $region79: #{_lambda_.6} parent=5 // pred_region
        // Predicated region
        $region81: #{_lambda_.6} parent=79 // pred_check
          %p636 = pneg %p65
        $region82: #{_lambda_.6} parent=79 // pred_check_branch
          %638 = sbr.rel (%p636) target = $region84
        $region83: #{_lambda_.6} parent=79 // pred_region
          %p639 = scmp.lt.s32.totalorder %s38, 1
          %s640 = scalar_select %p639, %s38, 1
          %p641 = scmp.lt.s32.totalorder %s39, 0
          %s642 = scalar_select %p641, %s39, 0
          %s643 = sadd.s32 %s642, %s640
          %s644 = smul.addr %s643, 8
          %s645 = scalar_lea.vmem %s0, %s644
        $region84: #{_lambda_.6} parent=79 // pred_fallthru
          _
        // Predicated region
        $region85: #{_lambda_.6} parent=79 // pred_check
          %p646 = pneg %p91
        $region86: #{_lambda_.6} parent=79 // pred_check_branch
          %648 = sbr.rel (%p646) target = $region88
        $region87: #{_lambda_.6} parent=79 // pred_region
          %p649 = scmp.lt.s32.totalorder %s38, 1
          %s650 = scalar_select %p649, %s38, 1
          %s651 = smul.addr %s650, 8
          %s652 = scalar_lea.vmem %s1, %s651
        $region88: #{_lambda_.6} parent=79 // pred_fallthru
          _
        // Predicated region
        $region89: #{_lambda_.6} parent=79 // pred_check
          %p653 = pneg %p117
        $region90: #{_lambda_.6} parent=79 // pred_check_branch
          %655 = sbr.rel (%p653) target = $region92
        $region91: #{_lambda_.6} parent=79 // pred_region
          %p656 = scmp.lt.s32.totalorder %s38, 1
          %s657 = scalar_select %p656, %s38, 1
          %s658 = scalar_lea.vmem %s2, %s657
        $region92: #{_lambda_.6} parent=79 // pred_fallthru
          _
      $region80: #{_lambda_.6} parent=5 // pred_fallthru
        _
      %p659 = scmp.le.s32.totalorder 1, %s31
      %p660 = scmp.lt.s32.totalorder %s31, 3
      %p661 = pnand %p659, %p660
      %p662 = pneg %p661
      // Predicated region
      $region93: #{_lambda_.6} parent=5 // pred_check
        _
      $region94: #{_lambda_.6} parent=5 // pred_check_branch
        %664 = sbr.rel (%p661) target = $region96
      $region95: #{_lambda_.6} parent=5 // pred_region
        %s665 = ssub.s32 %s31, 1
        // Predicated region
        $region97: #{_lambda_.6} parent=95 // pred_check
          %p666 = pneg %p165
        $region98: #{_lambda_.6} parent=95 // pred_check_branch
          %668 = sbr.rel (%p666) target = $region100
        $region99: #{_lambda_.6} parent=95 // pred_region
          %669 = dma.done [#allocation3], 16
        $region100: #{_lambda_.6} parent=95 // pred_fallthru
          _
        // Predicated region
        $region101: #{_lambda_.6} parent=95 // pred_check
          %p670 = pneg %p207
        $region102: #{_lambda_.6} parent=95 // pred_check_branch
          %672 = sbr.rel (%p670) target = $region104
        $region103: #{_lambda_.6} parent=95 // pred_region
          %673 = dma.done [#allocation5], 16
        $region104: #{_lambda_.6} parent=95 // pred_fallthru
          _
        // Predicated region
        $region105: #{_lambda_.6} parent=95 // pred_check
          %p674 = pneg %p249
        $region106: #{_lambda_.6} parent=95 // pred_check_branch
          %676 = sbr.rel (%p674) target = $region108
        $region107: #{_lambda_.6} parent=95 // pred_region
          %677 = dma.done [#allocation5], 16
        $region108: #{_lambda_.6} parent=95 // pred_fallthru
          _
        // Predicated region
        $region109: #{_lambda_.6} parent=95 // pred_check
          %p678 = pneg %p291
        $region110: #{_lambda_.6} parent=95 // pred_check_branch
          %680 = sbr.rel (%p678) target = $region112
        $region111: #{_lambda_.6} parent=95 // pred_region
          %681 = dma.done [#allocation8], 16
        $region112: #{_lambda_.6} parent=95 // pred_fallthru
          _
        // Predicated region
        $region113: #{_lambda_.6} parent=95 // pred_check
          %p682 = pneg %p312
        $region114: #{_lambda_.6} parent=95 // pred_check_branch
          %684 = sbr.rel (%p682) target = $region116
        $region115: #{_lambda_.6} parent=95 // pred_region
          %685 = dma.done [#allocation8], 16
        $region116: #{_lambda_.6} parent=95 // pred_fallthru
          _
        // Predicated region
        $region117: #{_lambda_.6} parent=95 // pred_check
          %p686 = pneg %p333
        $region118: #{_lambda_.6} parent=95 // pred_check_branch
          %688 = sbr.rel (%p686) target = $region120
        $region119: #{_lambda_.6} parent=95 // pred_region
          %689 = dma.done [#allocation11], 16
        $region120: #{_lambda_.6} parent=95 // pred_fallthru
          _
        // Predicated region
        $region121: #{_lambda_.6} parent=95 // pred_check
          %p690 = pneg %p354
        $region122: #{_lambda_.6} parent=95 // pred_check_branch
          %692 = sbr.rel (%p690) target = $region124
        $region123: #{_lambda_.6} parent=95 // pred_region
          %693 = dma.done [#allocation11], 256
        $region124: #{_lambda_.6} parent=95 // pred_fallthru
          _
        // Predicated region
        $region125: #{_lambda_.6} parent=95 // pred_check
          %p694 = pneg %p375
        $region126: #{_lambda_.6} parent=95 // pred_check_branch
          %696 = sbr.rel (%p694) target = $region128
        $region127: #{_lambda_.6} parent=95 // pred_region
          %697 = dma.done [#allocation14], 16
        $region128: #{_lambda_.6} parent=95 // pred_fallthru
          _
        // Predicated region
        $region129: #{_lambda_.6} parent=95 // pred_check
          %p698 = pneg %p417
        $region130: #{_lambda_.6} parent=95 // pred_check_branch
          %700 = sbr.rel (%p698) target = $region132
        $region131: #{_lambda_.6} parent=95 // pred_region
          %701 = dma.done [#allocation14], 16
        $region132: #{_lambda_.6} parent=95 // pred_fallthru
          _
        // Predicated region
        $region133: #{_lambda_.6} parent=95 // pred_check
          %p702 = pneg %p459
        $region134: #{_lambda_.6} parent=95 // pred_check_branch
          %704 = sbr.rel (%p702) target = $region136
        $region135: #{_lambda_.6} parent=95 // pred_region
          %705 = dma.done [#allocation17], 16
        $region136: #{_lambda_.6} parent=95 // pred_fallthru
          _
        %p706 = scmp.lt.s32.totalorder %s40, 1
        %s707 = scalar_select %p706, %s40, 1
        %p708 = scmp.lt.s32.totalorder %s41, 0
        %s709 = scalar_select %p708, %s41, 0
        %s710 = sadd.s32 %s709, %s707
        %s711 = smul.addr %s710, 8
        %s712 = scalar_lea.vmem %s0, %s711
        %p713 = pneg %p71
        %p714 = pneg %p68
        %p715 = scmp.lt.s32.totalorder %s40, 1
        %s716 = scalar_select %p715, %s40, 1
        %s717 = smul.addr %s716, 8
        %s718 = scalar_lea.vmem %s1, %s717
        %p719 = pneg %p97
        %p720 = pneg %p94
        %p721 = scmp.lt.s32.totalorder %s40, 1
        %s722 = scalar_select %p721, %s40, 1
        %s723 = scalar_lea.vmem %s2, %s722
        %p724 = pneg %p123
        %p725 = pneg %p120
        %p726 = pneg %p144
        %p727 = pneg %p141
        %p728 = pneg %p165
        %p729 = pneg %p162
        %p730 = pneg %p186
        %p731 = pneg %p183
        %p732 = pneg %p207
        %p733 = pneg %p204
        %p734 = pneg %p228
        %p735 = pneg %p225
        %p736 = pneg %p249
        %p737 = pneg %p246
        %p738 = pneg %p270
        %p739 = pneg %p267
        %p740 = pneg %p291
        %p741 = pneg %p288
        %p742 = pneg %p312
        %p743 = pneg %p309
        %p744 = pneg %p333
        %p745 = pneg %p330
        %p746 = pneg %p354
        %p747 = pneg %p351
        %p748 = pneg %p375
        %p749 = pneg %p372
        %p750 = pneg %p396
        %p751 = pneg %p393
        %p752 = pneg %p417
        %p753 = pneg %p414
        %p754 = pneg %p438
        %p755 = pneg %p435
        %p756 = pneg %p459
        %p757 = pneg %p456
        %p758 = pneg %p487
        %p759 = pneg %p484
        %p760 = scmp.lt.s32.totalorder %s40, 1
        %s761 = scalar_select %p760, %s40, 1
        %p762 = scmp.lt.s32.totalorder %s41, 0
        %s763 = scalar_select %p762, %s41, 0
        %s764 = sadd.s32 %s763, %s761
        %s765 = smul.addr %s764, 8
        %s766 = scalar_lea.vmem %s19, %s765
        %p767 = scmp.lt.s32.totalorder %s40, 1
        %s768 = scalar_select %p767, %s40, 1
        %p769 = scmp.lt.s32.totalorder %s41, 0
        %s770 = scalar_select %p769, %s41, 0
        %s771 = sadd.s32 %s770, %s768
        %s772 = smul.addr %s771, 8
        %s773 = scalar_lea.vmem %s0, %s772
        %p774 = scmp.lt.s32.totalorder %s40, 1
        %s775 = scalar_select %p774, %s40, 1
        %s776 = smul.addr %s775, 8
        %s777 = scalar_lea.vmem %s1, %s776
        %p778 = scmp.lt.s32.totalorder %s40, 1
        %s779 = scalar_select %p778, %s40, 1
        %s780 = scalar_lea.vmem %s2, %s779
        %p781 = scmp.lt.s32.totalorder %s40, 1
        %s782 = scalar_select %p781, %s40, 1
        %p783 = scmp.lt.s32.totalorder %s41, 0
        %s784 = scalar_select %p783, %s41, 0
        %s785 = sadd.s32 %s784, %s782
        %s786 = smul.addr %s785, 8
        %s787 = scalar_lea.vmem %s19, %s786
        %v789 = vld [vmem:[%s773] sm:$0xff]
        %v790 = vld [vmem:[%s777] sm:$0xff]
        %v791 = vld [vmem:[%s780] sm:$0x1]
        %v792 = vpack.c.bf16 %v789, %v789
        %v793 = vpack.c.bf16 %v790, %v790
        %v794 = vld [vmem:[%s3] sm:$0xf]
        %v795 = vld [vmem:[%s3 + $0x4] sm:$0xf]
        %v796 = vld [vmem:[%s3 + $0x8] sm:$0xf]
        %v797 = vld [vmem:[%s3 + $0xc] sm:$0xf]
        %v798 = vld [vmem:[#allocation2] sm:$0x1]
        %v800 = vlaneseq
        %v801 = vshrl.u32 %v800, 7
        %v802 = vsub.s32 0, %v801
        %v803 = vrot.slane %v798, %v802
        %v809 = vunpack.c.l.b16 %v794
        %v810 = vunpack.c.l.b16 %v795
        %v811 = vunpack.c.l.b16 %v796
        %v812 = vunpack.c.l.b16 %v797
        %v813 = vpack.c.b16 %v810, %v809
        %v814 = vpack.c.b16 %v812, %v811
        %vm817 = vcmask 261120
        %v819 = vsel %vm817, %v792, 0
        %821 = vmatprep.subr.bf16.mxu0 0
        %822 = vmatpush1.bf16.msra.mxu0 %v813
        %823 = vmatprep.subr.bf16.mxu0 0
        %824 = vmatpush1.bf16.msra.mxu0 %v814
        %825 = vmatprep.subr.bf16.mxu0 0
        %826 = vmatpush1.bf16.msra.mxu0 0
        %827 = vmatprep.subr.bf16.mxu0 0
        %828 = vmatpush1.bf16.msra.mxu0 0
        %829 = vmatprep.subr.bf16.mxu0 0
        %830 = vmatpush1.bf16.msra.mxu0 0
        %831 = vmatprep.subr.bf16.mxu0 0
        %832 = vmatpush1.bf16.msra.mxu0 0
        %833 = vmatprep.subr.bf16.mxu0 0
        %834 = vmatpush1.bf16.msra.mxu0 0
        %835 = vmatprep.subr.bf16.mxu0 0
        %836 = vmatpush1.bf16.msra.mxu0 0
        %837 = vmatprep.subr.bf16.mxu0 0
        %838 = vmatpush1.bf16.msra.mxu0 0
        %839 = vmatprep.subr.bf16.mxu0 0
        %840 = vmatpush1.bf16.msra.mxu0 0
        %841 = vmatprep.subr.bf16.mxu0 0
        %842 = vmatpush1.bf16.msra.mxu0 0
        %843 = vmatprep.subr.bf16.mxu0 0
        %844 = vmatpush1.bf16.msra.mxu0 0
        %845 = vmatprep.subr.bf16.mxu0 0
        %846 = vmatpush1.bf16.msra.mxu0 0
        %847 = vmatprep.subr.bf16.mxu0 0
        %848 = vmatpush1.bf16.msra.mxu0 0
        %849 = vmatprep.subr.bf16.mxu0 0
        %850 = vmatpush1.bf16.msra.mxu0 0
        %851 = vmatprep.subr.bf16.mxu0 0
        %852 = vmatpush1.bf16.msra.mxu0 0
        %853 = vmatprep.mubr.bf16.mxu0 0
        %854 = vmatmul.mubr.bf16.gmra.mrb[0].mxu0 %v819
        %v855 = vpop.f32.mrb[0].mxu0
        %v856 = vadd.f32 %v803, %v855
        %v857 = vpop.f32.mrb[0].mxu0
        %v858 = vpop.f32.mrb[0].mxu0
        %v859 = vpop.f32.mrb[0].mxu0
        %860 = vdwg.mxu0
        %v861 = vmul.f32 %v856, 0.35355338
        %v862 = vld [vmem:[%s5] sm:$0xf]
        %v863 = vld [vmem:[%s5 + $0x4] sm:$0xf]
        %v864 = vld [vmem:[%s5 + $0x8] sm:$0xf]
        %v865 = vld [vmem:[%s5 + $0xc] sm:$0xf]
        %v866 = vld [vmem:[#allocation4] sm:$0x1]
        %v868 = vlaneseq
        %v869 = vshrl.u32 %v868, 7
        %v870 = vsub.s32 0, %v869
        %v871 = vrot.slane %v866, %v870
        %v877 = vunpack.c.l.b16 %v862
        %v878 = vunpack.c.l.b16 %v863
        %v879 = vunpack.c.l.b16 %v864
        %v880 = vunpack.c.l.b16 %v865
        %v881 = vpack.c.b16 %v878, %v877
        %v882 = vpack.c.b16 %v880, %v879
        %v886 = vsel %vm817, %v793, 0
        %888 = vmatprep.subr.bf16.mxu0 0
        %889 = vmatpush1.bf16.msra.mxu0 %v881
        %890 = vmatprep.subr.bf16.mxu0 0
        %891 = vmatpush1.bf16.msra.mxu0 %v882
        %892 = vmatprep.subr.bf16.mxu0 0
        %893 = vmatpush1.bf16.msra.mxu0 0
        %894 = vmatprep.subr.bf16.mxu0 0
        %895 = vmatpush1.bf16.msra.mxu0 0
        %896 = vmatprep.subr.bf16.mxu0 0
        %897 = vmatpush1.bf16.msra.mxu0 0
        %898 = vmatprep.subr.bf16.mxu0 0
        %899 = vmatpush1.bf16.msra.mxu0 0
        %900 = vmatprep.subr.bf16.mxu0 0
        %901 = vmatpush1.bf16.msra.mxu0 0
        %902 = vmatprep.subr.bf16.mxu0 0
        %903 = vmatpush1.bf16.msra.mxu0 0
        %904 = vmatprep.subr.bf16.mxu0 0
        %905 = vmatpush1.bf16.msra.mxu0 0
        %906 = vmatprep.subr.bf16.mxu0 0
        %907 = vmatpush1.bf16.msra.mxu0 0
        %908 = vmatprep.subr.bf16.mxu0 0
        %909 = vmatpush1.bf16.msra.mxu0 0
        %910 = vmatprep.subr.bf16.mxu0 0
        %911 = vmatpush1.bf16.msra.mxu0 0
        %912 = vmatprep.subr.bf16.mxu0 0
        %913 = vmatpush1.bf16.msra.mxu0 0
        %914 = vmatprep.subr.bf16.mxu0 0
        %915 = vmatpush1.bf16.msra.mxu0 0
        %916 = vmatprep.subr.bf16.mxu0 0
        %917 = vmatpush1.bf16.msra.mxu0 0
        %918 = vmatprep.subr.bf16.mxu0 0
        %919 = vmatpush1.bf16.msra.mxu0 0
        %920 = vmatprep.mubr.bf16.mxu0 0
        %921 = vmatmul.mubr.bf16.gmra.mrb[0].mxu0 %v886
        %v922 = vpop.f32.mrb[0].mxu0
        %v923 = vadd.f32 %v871, %v922
        %v924 = vpop.f32.mrb[0].mxu0
        %v925 = vpop.f32.mrb[0].mxu0
        %v926 = vpop.f32.mrb[0].mxu0
        %927 = vdwg.mxu0
        %v928 = vld [vmem:[%s7] sm:$0xf]
        %v929 = vld [vmem:[%s7 + $0x4] sm:$0xf]
        %v930 = vld [vmem:[%s7 + $0x8] sm:$0xf]
        %v931 = vld [vmem:[%s7 + $0xc] sm:$0xf]
        %v932 = vld [vmem:[#allocation6] sm:$0x1]
        %v934 = vlaneseq
        %v935 = vshrl.u32 %v934, 7
        %v936 = vsub.s32 0, %v935
        %v937 = vrot.slane %v932, %v936
        %v943 = vunpack.c.l.b16 %v928
        %v944 = vunpack.c.l.b16 %v929
        %v945 = vunpack.c.l.b16 %v930
        %v946 = vunpack.c.l.b16 %v931
        %v947 = vpack.c.b16 %v944, %v943
        %v948 = vpack.c.b16 %v946, %v945
        %951 = vmatprep.subr.bf16.mxu0 0
        %952 = vmatpush1.bf16.msra.mxu0 %v947
        %953 = vmatprep.subr.bf16.mxu0 0
        %954 = vmatpush1.bf16.msra.mxu0 %v948
        %955 = vmatprep.subr.bf16.mxu0 0
        %956 = vmatpush1.bf16.msra.mxu0 0
        %957 = vmatprep.subr.bf16.mxu0 0
        %958 = vmatpush1.bf16.msra.mxu0 0
        %959 = vmatprep.subr.bf16.mxu0 0
        %960 = vmatpush1.bf16.msra.mxu0 0
        %961 = vmatprep.subr.bf16.mxu0 0
        %962 = vmatpush1.bf16.msra.mxu0 0
        %963 = vmatprep.subr.bf16.mxu0 0
        %964 = vmatpush1.bf16.msra.mxu0 0
        %965 = vmatprep.subr.bf16.mxu0 0
        %966 = vmatpush1.bf16.msra.mxu0 0
        %967 = vmatprep.subr.bf16.mxu0 0
        %968 = vmatpush1.bf16.msra.mxu0 0
        %969 = vmatprep.subr.bf16.mxu0 0
        %970 = vmatpush1.bf16.msra.mxu0 0
        %971 = vmatprep.subr.bf16.mxu0 0
        %972 = vmatpush1.bf16.msra.mxu0 0
        %973 = vmatprep.subr.bf16.mxu0 0
        %974 = vmatpush1.bf16.msra.mxu0 0
        %975 = vmatprep.subr.bf16.mxu0 0
        %976 = vmatpush1.bf16.msra.mxu0 0
        %977 = vmatprep.subr.bf16.mxu0 0
        %978 = vmatpush1.bf16.msra.mxu0 0
        %979 = vmatprep.subr.bf16.mxu0 0
        %980 = vmatpush1.bf16.msra.mxu0 0
        %981 = vmatprep.subr.bf16.mxu0 0
        %982 = vmatpush1.bf16.msra.mxu0 0
        %983 = vmatprep.mubr.bf16.mxu0 0
        %984 = vmatmul.mubr.bf16.gmra.mrb[0].mxu0 %v886
        %v985 = vpop.f32.mrb[0].mxu0
        %v986 = vadd.f32 %v937, %v985
        %v987 = vpop.f32.mrb[0].mxu0
        %v988 = vpop.f32.mrb[0].mxu0
        %v989 = vpop.f32.mrb[0].mxu0
        %990 = vdwg.mxu0
        %992 = vrot.lane.b32.xlu0 %v861, 120
        %v993 = vpop.permute.xlu0 %992
        %995 = vrot.lane.b32.xlu0 %v861, 112
        %v996 = vpop.permute.xlu0 %995
        %998 = vrot.lane.b32.xlu0 %v861, 104
        %v999 = vpop.permute.xlu0 %998
        %v1001 = vcombine.low %v861, %v996
        %v1002 = vcombine.high %v861, %v996
        %v1004 = vunpack.c.l.s4 1983009808
        %v1005 = vunpack.c.0.s8 %v1004
        %v1006 = vlaneseq
        %v1007 = vshrl.u32 %v1006, 7
        %v1008 = vsub.s32 %v1005, %v1007
        %v1009 = vrot.slane %v1001, %v1008
        %v1011 = vunpack.c.l.s4 1983009808
        %v1012 = vunpack.c.0.s8 %v1011
        %v1013 = vlaneseq
        %v1014 = vshrl.u32 %v1013, 7
        %v1015 = vsub.s32 %v1012, %v1014
        %v1016 = vrot.slane %v1002, %v1015
        %v1017 = vcombine.low %v993, %v999
        %v1018 = vcombine.high %v993, %v999
        %v1020 = vunpack.c.l.s4 1983009808
        %v1021 = vunpack.c.0.s8 %v1020
        %v1022 = vlaneseq
        %v1023 = vshrl.u32 %v1022, 7
        %v1024 = vsub.s32 %v1021, %v1023
        %v1025 = vrot.slane %v1017, %v1024
        %v1027 = vunpack.c.l.s4 1983009808
        %v1028 = vunpack.c.0.s8 %v1027
        %v1029 = vlaneseq
        %v1030 = vshrl.u32 %v1029, 7
        %v1031 = vsub.s32 %v1028, %v1030
        %v1032 = vrot.slane %v1018, %v1031
        %v1033 = vcombine.low %v1009, %v1025
        %v1034 = vcombine.high %v1009, %v1025
        %v1036 = vunpack.c.l.s4 1934713408
        %v1037 = vunpack.c.0.s8 %v1036
        %v1038 = vlaneseq
        %v1039 = vshrl.u32 %v1038, 7
        %v1040 = vsub.s32 %v1037, %v1039
        %v1041 = vrot.slane %v1033, %v1040
        %v1043 = vunpack.c.l.s4 1934713408
        %v1044 = vunpack.c.0.s8 %v1043
        %v1045 = vlaneseq
        %v1046 = vshrl.u32 %v1045, 7
        %v1047 = vsub.s32 %v1044, %v1046
        %v1048 = vrot.slane %v1034, %v1047
        %v1049 = vcombine.low %v1016, %v1032
        %v1050 = vcombine.high %v1016, %v1032
        %v1052 = vunpack.c.l.s4 1934713408
        %v1053 = vunpack.c.0.s8 %v1052
        %v1054 = vlaneseq
        %v1055 = vshrl.u32 %v1054, 7
        %v1056 = vsub.s32 %v1053, %v1055
        %v1057 = vrot.slane %v1049, %v1056
        %v1059 = vunpack.c.l.s4 1934713408
        %v1060 = vunpack.c.0.s8 %v1059
        %v1061 = vlaneseq
        %v1062 = vshrl.u32 %v1061, 7
        %v1063 = vsub.s32 %v1060, %v1062
        %v1064 = vrot.slane %v1050, %v1063
        %v1065 = vcombine.high %v1041, 0.0
        %v1066 = vcombine.high %v1048, 0.0
        %v1067 = vcombine.high %v1057, 0.0
        %v1068 = vcombine.high %v1064, 0.0
        %v1069 = vcombine.low %v1041, %v1048
        %v1071 = vunpack.c.l.s4 1983009808
        %v1072 = vunpack.c.0.s8 %v1071
        %v1073 = vlaneseq
        %v1074 = vshrl.u32 %v1073, 7
        %v1075 = vsub.s32 %v1072, %v1074
        %v1076 = vrot.slane %v1069, %v1075
        %v1077 = vcombine.low %v1065, %v1066
        %v1079 = vunpack.c.l.s4 1983009808
        %v1080 = vunpack.c.0.s8 %v1079
        %v1081 = vlaneseq
        %v1082 = vshrl.u32 %v1081, 7
        %v1083 = vsub.s32 %v1080, %v1082
        %v1084 = vrot.slane %v1077, %v1083
        %v1085 = vcombine.low %v1057, %v1064
        %v1087 = vunpack.c.l.s4 1983009808
        %v1088 = vunpack.c.0.s8 %v1087
        %v1089 = vlaneseq
        %v1090 = vshrl.u32 %v1089, 7
        %v1091 = vsub.s32 %v1088, %v1090
        %v1092 = vrot.slane %v1085, %v1091
        %v1093 = vcombine.low %v1067, %v1068
        %v1095 = vunpack.c.l.s4 1983009808
        %v1096 = vunpack.c.0.s8 %v1095
        %v1097 = vlaneseq
        %v1098 = vshrl.u32 %v1097, 7
        %v1099 = vsub.s32 %v1096, %v1098
        %v1100 = vrot.slane %v1093, %v1099
        %v1101 = vcombine.low %v1076, %v1084
        %v1102 = vcombine.high %v1076, %v1084
        %v1104 = vunpack.c.l.s4 1934713408
        %v1105 = vunpack.c.0.s8 %v1104
        %v1106 = vlaneseq
        %v1107 = vshrl.u32 %v1106, 7
        %v1108 = vsub.s32 %v1105, %v1107
        %v1109 = vrot.slane %v1101, %v1108
        %v1111 = vunpack.c.l.s4 1934713408
        %v1112 = vunpack.c.0.s8 %v1111
        %v1113 = vlaneseq
        %v1114 = vshrl.u32 %v1113, 7
        %v1115 = vsub.s32 %v1112, %v1114
        %v1116 = vrot.slane %v1102, %v1115
        %v1117 = vcombine.low %v1092, %v1100
        %v1118 = vcombine.high %v1092, %v1100
        %v1120 = vunpack.c.l.s4 1934713408
        %v1121 = vunpack.c.0.s8 %v1120
        %v1122 = vlaneseq
        %v1123 = vshrl.u32 %v1122, 7
        %v1124 = vsub.s32 %v1121, %v1123
        %v1125 = vrot.slane %v1117, %v1124
        %v1127 = vunpack.c.l.s4 1934713408
        %v1128 = vunpack.c.0.s8 %v1127
        %v1129 = vlaneseq
        %v1130 = vshrl.u32 %v1129, 7
        %v1131 = vsub.s32 %v1128, %v1130
        %v1132 = vrot.slane %v1118, %v1131
        %v1133 = vcombine.low %v1109, %v1125
        %v1134 = vcombine.high %v1109, %v1125
        %v1135 = vcombine.low %v1116, %v1132
        %v1136 = vcombine.high %v1116, %v1132
        %v1137 = vpack.c.bf16 %v1133, %v1133
        %v1138 = vpack.c.bf16 %v1134, %v1134
        %v1139 = vpack.c.bf16 %v1135, %v1135
        %v1140 = vpack.c.bf16 %v1136, %v1136
        %1142 = vrot.lane.b32.xlu0 %v923, 120
        %v1143 = vpop.permute.xlu0 %1142
        %1145 = vrot.lane.b32.xlu0 %v923, 112
        %v1146 = vpop.permute.xlu0 %1145
        %1148 = vrot.lane.b32.xlu0 %v923, 104
        %v1149 = vpop.permute.xlu0 %1148
        %v1151 = vcombine.low %v923, %v1146
        %v1152 = vcombine.high %v923, %v1146
        %v1154 = vunpack.c.l.s4 1983009808
        %v1155 = vunpack.c.0.s8 %v1154
        %v1156 = vlaneseq
        %v1157 = vshrl.u32 %v1156, 7
        %v1158 = vsub.s32 %v1155, %v1157
        %v1159 = vrot.slane %v1151, %v1158
        %v1161 = vunpack.c.l.s4 1983009808
        %v1162 = vunpack.c.0.s8 %v1161
        %v1163 = vlaneseq
        %v1164 = vshrl.u32 %v1163, 7
        %v1165 = vsub.s32 %v1162, %v1164
        %v1166 = vrot.slane %v1152, %v1165
        %v1167 = vcombine.low %v1143, %v1149
        %v1168 = vcombine.high %v1143, %v1149
        %v1170 = vunpack.c.l.s4 1983009808
        %v1171 = vunpack.c.0.s8 %v1170
        %v1172 = vlaneseq
        %v1173 = vshrl.u32 %v1172, 7
        %v1174 = vsub.s32 %v1171, %v1173
        %v1175 = vrot.slane %v1167, %v1174
        %v1177 = vunpack.c.l.s4 1983009808
        %v1178 = vunpack.c.0.s8 %v1177
        %v1179 = vlaneseq
        %v1180 = vshrl.u32 %v1179, 7
        %v1181 = vsub.s32 %v1178, %v1180
        %v1182 = vrot.slane %v1168, %v1181
        %v1183 = vcombine.low %v1159, %v1175
        %v1184 = vcombine.high %v1159, %v1175
        %v1186 = vunpack.c.l.s4 1934713408
        %v1187 = vunpack.c.0.s8 %v1186
        %v1188 = vlaneseq
        %v1189 = vshrl.u32 %v1188, 7
        %v1190 = vsub.s32 %v1187, %v1189
        %v1191 = vrot.slane %v1183, %v1190
        %v1193 = vunpack.c.l.s4 1934713408
        %v1194 = vunpack.c.0.s8 %v1193
        %v1195 = vlaneseq
        %v1196 = vshrl.u32 %v1195, 7
        %v1197 = vsub.s32 %v1194, %v1196
        %v1198 = vrot.slane %v1184, %v1197
        %v1199 = vcombine.low %v1166, %v1182
        %v1200 = vcombine.high %v1166, %v1182
        %v1202 = vunpack.c.l.s4 1934713408
        %v1203 = vunpack.c.0.s8 %v1202
        %v1204 = vlaneseq
        %v1205 = vshrl.u32 %v1204, 7
        %v1206 = vsub.s32 %v1203, %v1205
        %v1207 = vrot.slane %v1199, %v1206
        %v1209 = vunpack.c.l.s4 1934713408
        %v1210 = vunpack.c.0.s8 %v1209
        %v1211 = vlaneseq
        %v1212 = vshrl.u32 %v1211, 7
        %v1213 = vsub.s32 %v1210, %v1212
        %v1214 = vrot.slane %v1200, %v1213
        %v1215 = vcombine.high %v1191, 0.0
        %v1216 = vcombine.high %v1198, 0.0
        %v1217 = vcombine.high %v1207, 0.0
        %v1218 = vcombine.high %v1214, 0.0
        %v1219 = vcombine.low %v1191, %v1198
        %v1221 = vunpack.c.l.s4 1983009808
        %v1222 = vunpack.c.0.s8 %v1221
        %v1223 = vlaneseq
        %v1224 = vshrl.u32 %v1223, 7
        %v1225 = vsub.s32 %v1222, %v1224
        %v1226 = vrot.slane %v1219, %v1225
        %v1227 = vcombine.low %v1215, %v1216
        %v1229 = vunpack.c.l.s4 1983009808
        %v1230 = vunpack.c.0.s8 %v1229
        %v1231 = vlaneseq
        %v1232 = vshrl.u32 %v1231, 7
        %v1233 = vsub.s32 %v1230, %v1232
        %v1234 = vrot.slane %v1227, %v1233
        %v1235 = vcombine.low %v1207, %v1214
        %v1237 = vunpack.c.l.s4 1983009808
        %v1238 = vunpack.c.0.s8 %v1237
        %v1239 = vlaneseq
        %v1240 = vshrl.u32 %v1239, 7
        %v1241 = vsub.s32 %v1238, %v1240
        %v1242 = vrot.slane %v1235, %v1241
        %v1243 = vcombine.low %v1217, %v1218
        %v1245 = vunpack.c.l.s4 1983009808
        %v1246 = vunpack.c.0.s8 %v1245
        %v1247 = vlaneseq
        %v1248 = vshrl.u32 %v1247, 7
        %v1249 = vsub.s32 %v1246, %v1248
        %v1250 = vrot.slane %v1243, %v1249
        %v1251 = vcombine.low %v1226, %v1234
        %v1252 = vcombine.high %v1226, %v1234
        %v1254 = vunpack.c.l.s4 1934713408
        %v1255 = vunpack.c.0.s8 %v1254
        %v1256 = vlaneseq
        %v1257 = vshrl.u32 %v1256, 7
        %v1258 = vsub.s32 %v1255, %v1257
        %v1259 = vrot.slane %v1251, %v1258
        %v1261 = vunpack.c.l.s4 1934713408
        %v1262 = vunpack.c.0.s8 %v1261
        %v1263 = vlaneseq
        %v1264 = vshrl.u32 %v1263, 7
        %v1265 = vsub.s32 %v1262, %v1264
        %v1266 = vrot.slane %v1252, %v1265
        %v1267 = vcombine.low %v1242, %v1250
        %v1268 = vcombine.high %v1242, %v1250
        %v1270 = vunpack.c.l.s4 1934713408
        %v1271 = vunpack.c.0.s8 %v1270
        %v1272 = vlaneseq
        %v1273 = vshrl.u32 %v1272, 7
        %v1274 = vsub.s32 %v1271, %v1273
        %v1275 = vrot.slane %v1267, %v1274
        %v1277 = vunpack.c.l.s4 1934713408
        %v1278 = vunpack.c.0.s8 %v1277
        %v1279 = vlaneseq
        %v1280 = vshrl.u32 %v1279, 7
        %v1281 = vsub.s32 %v1278, %v1280
        %v1282 = vrot.slane %v1268, %v1281
        %v1283 = vcombine.low %v1259, %v1275
        %v1284 = vcombine.high %v1259, %v1275
        %v1285 = vcombine.low %v1266, %v1282
        %v1286 = vcombine.high %v1266, %v1282
        %v1287 = vpack.c.bf16 %v1283, %v1283
        %v1288 = vpack.c.bf16 %v1284, %v1284
        %v1289 = vpack.c.bf16 %v1285, %v1285
        %v1290 = vpack.c.bf16 %v1286, %v1286
        %1292 = vrot.lane.b32.xlu0 %v986, 120
        %v1293 = vpop.permute.xlu0 %1292
        %1295 = vrot.lane.b32.xlu0 %v986, 112
        %v1296 = vpop.permute.xlu0 %1295
        %1298 = vrot.lane.b32.xlu0 %v986, 104
        %v1299 = vpop.permute.xlu0 %1298
        %v1301 = vcombine.low %v986, %v1296
        %v1302 = vcombine.high %v986, %v1296
        %v1304 = vunpack.c.l.s4 1983009808
        %v1305 = vunpack.c.0.s8 %v1304
        %v1306 = vlaneseq
        %v1307 = vshrl.u32 %v1306, 7
        %v1308 = vsub.s32 %v1305, %v1307
        %v1309 = vrot.slane %v1301, %v1308
        %v1311 = vunpack.c.l.s4 1983009808
        %v1312 = vunpack.c.0.s8 %v1311
        %v1313 = vlaneseq
        %v1314 = vshrl.u32 %v1313, 7
        %v1315 = vsub.s32 %v1312, %v1314
        %v1316 = vrot.slane %v1302, %v1315
        %v1317 = vcombine.low %v1293, %v1299
        %v1318 = vcombine.high %v1293, %v1299
        %v1320 = vunpack.c.l.s4 1983009808
        %v1321 = vunpack.c.0.s8 %v1320
        %v1322 = vlaneseq
        %v1323 = vshrl.u32 %v1322, 7
        %v1324 = vsub.s32 %v1321, %v1323
        %v1325 = vrot.slane %v1317, %v1324
        %v1327 = vunpack.c.l.s4 1983009808
        %v1328 = vunpack.c.0.s8 %v1327
        %v1329 = vlaneseq
        %v1330 = vshrl.u32 %v1329, 7
        %v1331 = vsub.s32 %v1328, %v1330
        %v1332 = vrot.slane %v1318, %v1331
        %v1333 = vcombine.low %v1309, %v1325
        %v1334 = vcombine.high %v1309, %v1325
        %v1336 = vunpack.c.l.s4 1934713408
        %v1337 = vunpack.c.0.s8 %v1336
        %v1338 = vlaneseq
        %v1339 = vshrl.u32 %v1338, 7
        %v1340 = vsub.s32 %v1337, %v1339
        %v1341 = vrot.slane %v1333, %v1340
        %v1343 = vunpack.c.l.s4 1934713408
        %v1344 = vunpack.c.0.s8 %v1343
        %v1345 = vlaneseq
        %v1346 = vshrl.u32 %v1345, 7
        %v1347 = vsub.s32 %v1344, %v1346
        %v1348 = vrot.slane %v1334, %v1347
        %v1349 = vcombine.low %v1316, %v1332
        %v1350 = vcombine.high %v1316, %v1332
        %v1352 = vunpack.c.l.s4 1934713408
        %v1353 = vunpack.c.0.s8 %v1352
        %v1354 = vlaneseq
        %v1355 = vshrl.u32 %v1354, 7
        %v1356 = vsub.s32 %v1353, %v1355
        %v1357 = vrot.slane %v1349, %v1356
        %v1359 = vunpack.c.l.s4 1934713408
        %v1360 = vunpack.c.0.s8 %v1359
        %v1361 = vlaneseq
        %v1362 = vshrl.u32 %v1361, 7
        %v1363 = vsub.s32 %v1360, %v1362
        %v1364 = vrot.slane %v1350, %v1363
        %v1365 = vcombine.high %v1341, 0.0
        %v1366 = vcombine.high %v1348, 0.0
        %v1367 = vcombine.high %v1357, 0.0
        %v1368 = vcombine.high %v1364, 0.0
        %v1369 = vcombine.low %v1341, %v1348
        %v1371 = vunpack.c.l.s4 1983009808
        %v1372 = vunpack.c.0.s8 %v1371
        %v1373 = vlaneseq
        %v1374 = vshrl.u32 %v1373, 7
        %v1375 = vsub.s32 %v1372, %v1374
        %v1376 = vrot.slane %v1369, %v1375
        %v1377 = vcombine.low %v1365, %v1366
        %v1379 = vunpack.c.l.s4 1983009808
        %v1380 = vunpack.c.0.s8 %v1379
        %v1381 = vlaneseq
        %v1382 = vshrl.u32 %v1381, 7
        %v1383 = vsub.s32 %v1380, %v1382
        %v1384 = vrot.slane %v1377, %v1383
        %v1385 = vcombine.low %v1357, %v1364
        %v1387 = vunpack.c.l.s4 1983009808
        %v1388 = vunpack.c.0.s8 %v1387
        %v1389 = vlaneseq
        %v1390 = vshrl.u32 %v1389, 7
        %v1391 = vsub.s32 %v1388, %v1390
        %v1392 = vrot.slane %v1385, %v1391
        %v1393 = vcombine.low %v1367, %v1368
        %v1395 = vunpack.c.l.s4 1983009808
        %v1396 = vunpack.c.0.s8 %v1395
        %v1397 = vlaneseq
        %v1398 = vshrl.u32 %v1397, 7
        %v1399 = vsub.s32 %v1396, %v1398
        %v1400 = vrot.slane %v1393, %v1399
        %v1401 = vcombine.low %v1376, %v1384
        %v1402 = vcombine.high %v1376, %v1384
        %v1404 = vunpack.c.l.s4 1934713408
        %v1405 = vunpack.c.0.s8 %v1404
        %v1406 = vlaneseq
        %v1407 = vshrl.u32 %v1406, 7
        %v1408 = vsub.s32 %v1405, %v1407
        %v1409 = vrot.slane %v1401, %v1408
        %v1411 = vunpack.c.l.s4 1934713408
        %v1412 = vunpack.c.0.s8 %v1411
        %v1413 = vlaneseq
        %v1414 = vshrl.u32 %v1413, 7
        %v1415 = vsub.s32 %v1412, %v1414
        %v1416 = vrot.slane %v1402, %v1415
        %v1417 = vcombine.low %v1392, %v1400
        %v1418 = vcombine.high %v1392, %v1400
        %v1420 = vunpack.c.l.s4 1934713408
        %v1421 = vunpack.c.0.s8 %v1420
        %v1422 = vlaneseq
        %v1423 = vshrl.u32 %v1422, 7
        %v1424 = vsub.s32 %v1421, %v1423
        %v1425 = vrot.slane %v1417, %v1424
        %v1427 = vunpack.c.l.s4 1934713408
        %v1428 = vunpack.c.0.s8 %v1427
        %v1429 = vlaneseq
        %v1430 = vshrl.u32 %v1429, 7
        %v1431 = vsub.s32 %v1428, %v1430
        %v1432 = vrot.slane %v1418, %v1431
        %v1433 = vcombine.low %v1409, %v1425
        %v1434 = vcombine.high %v1409, %v1425
        %v1435 = vcombine.low %v1416, %v1432
        %v1436 = vcombine.high %v1416, %v1432
        %v1437 = vpack.c.bf16 %v1433, %v1433
        %v1438 = vpack.c.bf16 %v1434, %v1434
        %v1439 = vpack.c.bf16 %v1435, %v1435
        %v1440 = vpack.c.bf16 %v1436, %v1436
        %v1442 = vlaneseq
        %v1443 = vshrl.u32 %v1442, 7
        %v1444 = vsub.s32 0, %v1443
        %v1445 = vrot.slane %v791, %v1444
        %vm1447 = vcmask 64512
        %v1449 = vsel %vm1447, %v1137, 0
        %v1452 = vsel %vm1447, %v1287, 0
        %1454 = vmatprep.subr.bf16.mxu0 0
        %1455 = vmatpush1.bf16.xpose.msra.mxu0 %v1452
        %1456 = vmatprep.subr.bf16.mxu0 0
        %1457 = vmatpush1.bf16.xpose.msra.mxu0 0
        %1458 = vmatprep.subr.bf16.mxu0 0
        %1459 = vmatpush1.bf16.xpose.msra.mxu0 0
        %1460 = vmatprep.subr.bf16.mxu0 0
        %1461 = vmatpush1.bf16.xpose.msra.mxu0 0
        %1462 = vmatprep.subr.bf16.mxu0 0
        %1463 = vmatpush1.bf16.xpose.msra.mxu0 0
        %1464 = vmatprep.subr.bf16.mxu0 0
        %1465 = vmatpush1.bf16.xpose.msra.mxu0 0
        %1466 = vmatprep.subr.bf16.mxu0 0
        %1467 = vmatpush1.bf16.xpose.msra.mxu0 0
        %1468 = vmatprep.subr.bf16.mxu0 0
        %1469 = vmatpush1.bf16.xpose.msra.mxu0 0
        %1470 = vmatprep.subr.bf16.mxu0 0
        %1471 = vmatpush1.bf16.xpose.msra.mxu0 0
        %1472 = vmatprep.subr.bf16.mxu0 0
        %1473 = vmatpush1.bf16.xpose.msra.mxu0 0
        %1474 = vmatprep.subr.bf16.mxu0 0
        %1475 = vmatpush1.bf16.xpose.msra.mxu0 0
        %1476 = vmatprep.subr.bf16.mxu0 0
        %1477 = vmatpush1.bf16.xpose.msra.mxu0 0
        %1478 = vmatprep.subr.bf16.mxu0 0
        %1479 = vmatpush1.bf16.xpose.msra.mxu0 0
        %1480 = vmatprep.subr.bf16.mxu0 0
        %1481 = vmatpush1.bf16.xpose.msra.mxu0 0
        %1482 = vmatprep.subr.bf16.mxu0 0
        %1483 = vmatpush1.bf16.xpose.msra.mxu0 0
        %1484 = vmatprep.subr.bf16.mxu0 0
        %1485 = vmatpush1.bf16.xpose.msra.mxu0 0
        %1486 = vmatprep.mubr.bf16.mxu0 0
        %1487 = vmatmul.mubr.bf16.gmra.mrb[0].mxu0 %v1449
        %v1488 = vpop.f32.mrb[0].mxu0
        %v1489 = vadd.f32 %v1445, %v1488
        %v1490 = vpop.f32.mrb[0].mxu0
        %v1491 = vpop.f32.mrb[0].mxu0
        %v1492 = vpop.f32.mrb[0].mxu0
        %1493 = vdwg.mxu0
        %v1495 = vsel %vm1447, %v1138, 0
        %v1498 = vsel %vm1447, %v1288, 0
        %1500 = vmatprep.subr.bf16.mxu0 0
        %1501 = vmatpush1.bf16.xpose.msra.mxu0 %v1498
        %1502 = vmatprep.subr.bf16.mxu0 0
        %1503 = vmatpush1.bf16.xpose.msra.mxu0 0
        %1504 = vmatprep.subr.bf16.mxu0 0
        %1505 = vmatpush1.bf16.xpose.msra.mxu0 0
        %1506 = vmatprep.subr.bf16.mxu0 0
        %1507 = vmatpush1.bf16.xpose.msra.mxu0 0
        %1508 = vmatprep.subr.bf16.mxu0 0
        %1509 = vmatpush1.bf16.xpose.msra.mxu0 0
        %1510 = vmatprep.subr.bf16.mxu0 0
        %1511 = vmatpush1.bf16.xpose.msra.mxu0 0
        %1512 = vmatprep.subr.bf16.mxu0 0
        %1513 = vmatpush1.bf16.xpose.msra.mxu0 0
        %1514 = vmatprep.subr.bf16.mxu0 0
        %1515 = vmatpush1.bf16.xpose.msra.mxu0 0
        %1516 = vmatprep.subr.bf16.mxu0 0
        %1517 = vmatpush1.bf16.xpose.msra.mxu0 0
        %1518 = vmatprep.subr.bf16.mxu0 0
        %1519 = vmatpush1.bf16.xpose.msra.mxu0 0
        %1520 = vmatprep.subr.bf16.mxu0 0
        %1521 = vmatpush1.bf16.xpose.msra.mxu0 0
        %1522 = vmatprep.subr.bf16.mxu0 0
        %1523 = vmatpush1.bf16.xpose.msra.mxu0 0
        %1524 = vmatprep.subr.bf16.mxu0 0
        %1525 = vmatpush1.bf16.xpose.msra.mxu0 0
        %1526 = vmatprep.subr.bf16.mxu0 0
        %1527 = vmatpush1.bf16.xpose.msra.mxu0 0
        %1528 = vmatprep.subr.bf16.mxu0 0
        %1529 = vmatpush1.bf16.xpose.msra.mxu0 0
        %1530 = vmatprep.subr.bf16.mxu0 0
        %1531 = vmatpush1.bf16.xpose.msra.mxu0 0
        %1532 = vmatprep.mubr.bf16.mxu0 0
        %1533 = vmatmul.mubr.bf16.gmra.mrb[0].mxu0 %v1495
        %v1534 = vpop.f32.mrb[0].mxu0
        %v1535 = vadd.f32 %v1445, %v1534
        %v1536 = vpop.f32.mrb[0].mxu0
        %v1537 = vpop.f32.mrb[0].mxu0
        %v1538 = vpop.f32.mrb[0].mxu0
        %1539 = vdwg.mxu0
        %v1541 = vsel %vm1447, %v1139, 0
        %v1544 = vsel %vm1447, %v1289, 0
        %1546 = vmatprep.subr.bf16.mxu0 0
        %1547 = vmatpush1.bf16.xpose.msra.mxu0 %v1544
        %1548 = vmatprep.subr.bf16.mxu0 0
        %1549 = vmatpush1.bf16.xpose.msra.mxu0 0
        %1550 = vmatprep.subr.bf16.mxu0 0
        %1551 = vmatpush1.bf16.xpose.msra.mxu0 0
        %1552 = vmatprep.subr.bf16.mxu0 0
        %1553 = vmatpush1.bf16.xpose.msra.mxu0 0
        %1554 = vmatprep.subr.bf16.mxu0 0
        %1555 = vmatpush1.bf16.xpose.msra.mxu0 0
        %1556 = vmatprep.subr.bf16.mxu0 0
        %1557 = vmatpush1.bf16.xpose.msra.mxu0 0
        %1558 = vmatprep.subr.bf16.mxu0 0
        %1559 = vmatpush1.bf16.xpose.msra.mxu0 0
        %1560 = vmatprep.subr.bf16.mxu0 0
        %1561 = vmatpush1.bf16.xpose.msra.mxu0 0
        %1562 = vmatprep.subr.bf16.mxu0 0
        %1563 = vmatpush1.bf16.xpose.msra.mxu0 0
        %1564 = vmatprep.subr.bf16.mxu0 0
        %1565 = vmatpush1.bf16.xpose.msra.mxu0 0
        %1566 = vmatprep.subr.bf16.mxu0 0
        %1567 = vmatpush1.bf16.xpose.msra.mxu0 0
        %1568 = vmatprep.subr.bf16.mxu0 0
        %1569 = vmatpush1.bf16.xpose.msra.mxu0 0
        %1570 = vmatprep.subr.bf16.mxu0 0
        %1571 = vmatpush1.bf16.xpose.msra.mxu0 0
        %1572 = vmatprep.subr.bf16.mxu0 0
        %1573 = vmatpush1.bf16.xpose.msra.mxu0 0
        %1574 = vmatprep.subr.bf16.mxu0 0
        %1575 = vmatpush1.bf16.xpose.msra.mxu0 0
        %1576 = vmatprep.subr.bf16.mxu0 0
        %1577 = vmatpush1.bf16.xpose.msra.mxu0 0
        %1578 = vmatprep.mubr.bf16.mxu0 0
        %1579 = vmatmul.mubr.bf16.gmra.mrb[0].mxu0 %v1541
        %v1580 = vpop.f32.mrb[0].mxu0
        %v1581 = vadd.f32 %v1445, %v1580
        %v1582 = vpop.f32.mrb[0].mxu0
        %v1583 = vpop.f32.mrb[0].mxu0
        %v1584 = vpop.f32.mrb[0].mxu0
        %1585 = vdwg.mxu0
        %v1587 = vsel %vm1447, %v1140, 0
        %v1590 = vsel %vm1447, %v1290, 0
        %1592 = vmatprep.subr.bf16.mxu0 0
        %1593 = vmatpush1.bf16.xpose.msra.mxu0 %v1590
        %1594 = vmatprep.subr.bf16.mxu0 0
        %1595 = vmatpush1.bf16.xpose.msra.mxu0 0
        %1596 = vmatprep.subr.bf16.mxu0 0
        %1597 = vmatpush1.bf16.xpose.msra.mxu0 0
        %1598 = vmatprep.subr.bf16.mxu0 0
        %1599 = vmatpush1.bf16.xpose.msra.mxu0 0
        %1600 = vmatprep.subr.bf16.mxu0 0
        %1601 = vmatpush1.bf16.xpose.msra.mxu0 0
        %1602 = vmatprep.subr.bf16.mxu0 0
        %1603 = vmatpush1.bf16.xpose.msra.mxu0 0
        %1604 = vmatprep.subr.bf16.mxu0 0
        %1605 = vmatpush1.bf16.xpose.msra.mxu0 0
        %1606 = vmatprep.subr.bf16.mxu0 0
        %1607 = vmatpush1.bf16.xpose.msra.mxu0 0
        %1608 = vmatprep.subr.bf16.mxu0 0
        %1609 = vmatpush1.bf16.xpose.msra.mxu0 0
        %1610 = vmatprep.subr.bf16.mxu0 0
        %1611 = vmatpush1.bf16.xpose.msra.mxu0 0
        %1612 = vmatprep.subr.bf16.mxu0 0
        %1613 = vmatpush1.bf16.xpose.msra.mxu0 0
        %1614 = vmatprep.subr.bf16.mxu0 0
        %1615 = vmatpush1.bf16.xpose.msra.mxu0 0
        %1616 = vmatprep.subr.bf16.mxu0 0
        %1617 = vmatpush1.bf16.xpose.msra.mxu0 0
        %1618 = vmatprep.subr.bf16.mxu0 0
        %1619 = vmatpush1.bf16.xpose.msra.mxu0 0
        %1620 = vmatprep.subr.bf16.mxu0 0
        %1621 = vmatpush1.bf16.xpose.msra.mxu0 0
        %1622 = vmatprep.subr.bf16.mxu0 0
        %1623 = vmatpush1.bf16.xpose.msra.mxu0 0
        %1624 = vmatprep.mubr.bf16.mxu0 0
        %1625 = vmatmul.mubr.bf16.gmra.mrb[0].mxu0 %v1587
        %v1626 = vpop.f32.mrb[0].mxu0
        %v1627 = vadd.f32 %v1445, %v1626
        %v1628 = vpop.f32.mrb[0].mxu0
        %v1629 = vpop.f32.mrb[0].mxu0
        %v1630 = vpop.f32.mrb[0].mxu0
        %1631 = vdwg.mxu0
        %v1632 = vsel %vm1447, %v1489, -inf
        %1633 = vmax.xlane.f32.xlu0 %v1632
        %v1634 = vpop.xlane.xlu0 %1633
        %v1635 = vsel %vm1447, %v1535, -inf
        %1636 = vmax.xlane.f32.xlu0 %v1635
        %v1637 = vpop.xlane.xlu0 %1636
        %v1638 = vsel %vm1447, %v1581, -inf
        %1639 = vmax.xlane.f32.xlu0 %v1638
        %v1640 = vpop.xlane.xlu0 %1639
        %v1641 = vsel %vm1447, %v1627, -inf
        %1642 = vmax.xlane.f32.xlu0 %v1641
        %v1643 = vpop.xlane.xlu0 %1642
        %v1644 = vsub.f32 %v1489, %v1634
        %v1645 = vsub.f32 %v1535, %v1637
        %v1646 = vsub.f32 %v1581, %v1640
        %v1647 = vsub.f32 %v1627, %v1643
        %v1648 = vmul.f32 %v1644, 1.442695
        %v1649 = vpow.pop %v1648
        %v1650 = vmul.f32 %v1645, 1.442695
        %v1651 = vpow.pop %v1650
        %v1652 = vmul.f32 %v1646, 1.442695
        %v1653 = vpow.pop %v1652
        %v1654 = vmul.f32 %v1647, 1.442695
        %v1655 = vpow.pop %v1654
        %v1656 = vsel %vm1447, %v1649, 0.0
        %1657 = vadd.xlane.f32.xlu0 %v1656
        %v1658 = vpop.xlane.xlu0 %1657
        %v1659 = vsel %vm1447, %v1651, 0.0
        %1660 = vadd.xlane.f32.xlu0 %v1659
        %v1661 = vpop.xlane.xlu0 %1660
        %v1662 = vsel %vm1447, %v1653, 0.0
        %1663 = vadd.xlane.f32.xlu0 %v1662
        %v1664 = vpop.xlane.xlu0 %1663
        %v1665 = vsel %vm1447, %v1655, 0.0
        %1666 = vadd.xlane.f32.xlu0 %v1665
        %v1667 = vpop.xlane.xlu0 %1666
        %v1668 = vrcp.pop %v1658
        %v1669 = vrcp.pop %v1661
        %v1670 = vrcp.pop %v1664
        %v1671 = vrcp.pop %v1667
        %v1672 = vmul.f32 %v1649, %v1668
        %v1673 = vmul.f32 %v1651, %v1669
        %v1674 = vmul.f32 %v1653, %v1670
        %v1675 = vmul.f32 %v1655, %v1671
        %v1676 = vpack.c.bf16 %v1672, %v1672
        %v1677 = vpack.c.bf16 %v1673, %v1673
        %v1678 = vpack.c.bf16 %v1674, %v1674
        %v1679 = vpack.c.bf16 %v1675, %v1675
        %v1681 = vsel %vm1447, %v1676, 0
        %vm1683 = vcmask 1043456
        %v1685 = vsel %vm1683, %v1437, 0
        %1687 = vmatprep.subr.bf16.mxu0 0
        %1688 = vmatpush1.bf16.msra.mxu0 %v1685
        %1689 = vmatprep.subr.bf16.mxu0 0
        %1690 = vmatpush1.bf16.msra.mxu0 0
        %1691 = vmatprep.subr.bf16.mxu0 0
        %1692 = vmatpush1.bf16.msra.mxu0 0
        %1693 = vmatprep.subr.bf16.mxu0 0
        %1694 = vmatpush1.bf16.msra.mxu0 0
        %1695 = vmatprep.subr.bf16.mxu0 0
        %1696 = vmatpush1.bf16.msra.mxu0 0
        %1697 = vmatprep.subr.bf16.mxu0 0
        %1698 = vmatpush1.bf16.msra.mxu0 0
        %1699 = vmatprep.subr.bf16.mxu0 0
        %1700 = vmatpush1.bf16.msra.mxu0 0
        %1701 = vmatprep.subr.bf16.mxu0 0
        %1702 = vmatpush1.bf16.msra.mxu0 0
        %1703 = vmatprep.subr.bf16.mxu0 0
        %1704 = vmatpush1.bf16.msra.mxu0 0
        %1705 = vmatprep.subr.bf16.mxu0 0
        %1706 = vmatpush1.bf16.msra.mxu0 0
        %1707 = vmatprep.subr.bf16.mxu0 0
        %1708 = vmatpush1.bf16.msra.mxu0 0
        %1709 = vmatprep.subr.bf16.mxu0 0
        %1710 = vmatpush1.bf16.msra.mxu0 0
        %1711 = vmatprep.subr.bf16.mxu0 0
        %1712 = vmatpush1.bf16.msra.mxu0 0
        %1713 = vmatprep.subr.bf16.mxu0 0
        %1714 = vmatpush1.bf16.msra.mxu0 0
        %1715 = vmatprep.subr.bf16.mxu0 0
        %1716 = vmatpush1.bf16.msra.mxu0 0
        %1717 = vmatprep.subr.bf16.mxu0 0
        %1718 = vmatpush1.bf16.msra.mxu0 0
        %1719 = vmatprep.mubr.bf16.mxu0 0
        %1720 = vmatmul.mubr.bf16.gmra.mrb[0].mxu0 %v1681
        %v1721 = vpop.f32.mrb[0].mxu0
        %v1722 = vadd.f32 0.0, %v1721
        %v1723 = vpop.f32.mrb[0].mxu0
        %v1724 = vpop.f32.mrb[0].mxu0
        %v1725 = vpop.f32.mrb[0].mxu0
        %1726 = vdwg.mxu0
        %v1728 = vsel %vm1447, %v1677, 0
        %v1731 = vsel %vm1683, %v1438, 0
        %1733 = vmatprep.subr.bf16.mxu0 0
        %1734 = vmatpush1.bf16.msra.mxu0 %v1731
        %1735 = vmatprep.subr.bf16.mxu0 0
        %1736 = vmatpush1.bf16.msra.mxu0 0
        %1737 = vmatprep.subr.bf16.mxu0 0
        %1738 = vmatpush1.bf16.msra.mxu0 0
        %1739 = vmatprep.subr.bf16.mxu0 0
        %1740 = vmatpush1.bf16.msra.mxu0 0
        %1741 = vmatprep.subr.bf16.mxu0 0
        %1742 = vmatpush1.bf16.msra.mxu0 0
        %1743 = vmatprep.subr.bf16.mxu0 0
        %1744 = vmatpush1.bf16.msra.mxu0 0
        %1745 = vmatprep.subr.bf16.mxu0 0
        %1746 = vmatpush1.bf16.msra.mxu0 0
        %1747 = vmatprep.subr.bf16.mxu0 0
        %1748 = vmatpush1.bf16.msra.mxu0 0
        %1749 = vmatprep.subr.bf16.mxu0 0
        %1750 = vmatpush1.bf16.msra.mxu0 0
        %1751 = vmatprep.subr.bf16.mxu0 0
        %1752 = vmatpush1.bf16.msra.mxu0 0
        %1753 = vmatprep.subr.bf16.mxu0 0
        %1754 = vmatpush1.bf16.msra.mxu0 0
        %1755 = vmatprep.subr.bf16.mxu0 0
        %1756 = vmatpush1.bf16.msra.mxu0 0
        %1757 = vmatprep.subr.bf16.mxu0 0
        %1758 = vmatpush1.bf16.msra.mxu0 0
        %1759 = vmatprep.subr.bf16.mxu0 0
        %1760 = vmatpush1.bf16.msra.mxu0 0
        %1761 = vmatprep.subr.bf16.mxu0 0
        %1762 = vmatpush1.bf16.msra.mxu0 0
        %1763 = vmatprep.subr.bf16.mxu0 0
        %1764 = vmatpush1.bf16.msra.mxu0 0
        %1765 = vmatprep.mubr.bf16.mxu0 0
        %1766 = vmatmul.mubr.bf16.gmra.mrb[0].mxu0 %v1728
        %v1767 = vpop.f32.mrb[0].mxu0
        %v1768 = vadd.f32 0.0, %v1767
        %v1769 = vpop.f32.mrb[0].mxu0
        %v1770 = vpop.f32.mrb[0].mxu0
        %v1771 = vpop.f32.mrb[0].mxu0
        %1772 = vdwg.mxu0
        %v1774 = vsel %vm1447, %v1678, 0
        %v1777 = vsel %vm1683, %v1439, 0
        %1779 = vmatprep.subr.bf16.mxu0 0
        %1780 = vmatpush1.bf16.msra.mxu0 %v1777
        %1781 = vmatprep.subr.bf16.mxu0 0
        %1782 = vmatpush1.bf16.msra.mxu0 0
        %1783 = vmatprep.subr.bf16.mxu0 0
        %1784 = vmatpush1.bf16.msra.mxu0 0
        %1785 = vmatprep.subr.bf16.mxu0 0
        %1786 = vmatpush1.bf16.msra.mxu0 0
        %1787 = vmatprep.subr.bf16.mxu0 0
        %1788 = vmatpush1.bf16.msra.mxu0 0
        %1789 = vmatprep.subr.bf16.mxu0 0
        %1790 = vmatpush1.bf16.msra.mxu0 0
        %1791 = vmatprep.subr.bf16.mxu0 0
        %1792 = vmatpush1.bf16.msra.mxu0 0
        %1793 = vmatprep.subr.bf16.mxu0 0
        %1794 = vmatpush1.bf16.msra.mxu0 0
        %1795 = vmatprep.subr.bf16.mxu0 0
        %1796 = vmatpush1.bf16.msra.mxu0 0
        %1797 = vmatprep.subr.bf16.mxu0 0
        %1798 = vmatpush1.bf16.msra.mxu0 0
        %1799 = vmatprep.subr.bf16.mxu0 0
        %1800 = vmatpush1.bf16.msra.mxu0 0
        %1801 = vmatprep.subr.bf16.mxu0 0
        %1802 = vmatpush1.bf16.msra.mxu0 0
        %1803 = vmatprep.subr.bf16.mxu0 0
        %1804 = vmatpush1.bf16.msra.mxu0 0
        %1805 = vmatprep.subr.bf16.mxu0 0
        %1806 = vmatpush1.bf16.msra.mxu0 0
        %1807 = vmatprep.subr.bf16.mxu0 0
        %1808 = vmatpush1.bf16.msra.mxu0 0
        %1809 = vmatprep.subr.bf16.mxu0 0
        %1810 = vmatpush1.bf16.msra.mxu0 0
        %1811 = vmatprep.mubr.bf16.mxu0 0
        %1812 = vmatmul.mubr.bf16.gmra.mrb[0].mxu0 %v1774
        %v1813 = vpop.f32.mrb[0].mxu0
        %v1814 = vadd.f32 0.0, %v1813
        %v1815 = vpop.f32.mrb[0].mxu0
        %v1816 = vpop.f32.mrb[0].mxu0
        %v1817 = vpop.f32.mrb[0].mxu0
        %1818 = vdwg.mxu0
        %v1820 = vsel %vm1447, %v1679, 0
        %v1823 = vsel %vm1683, %v1440, 0
        %1825 = vmatprep.subr.bf16.mxu0 0
        %1826 = vmatpush1.bf16.msra.mxu0 %v1823
        %1827 = vmatprep.subr.bf16.mxu0 0
        %1828 = vmatpush1.bf16.msra.mxu0 0
        %1829 = vmatprep.subr.bf16.mxu0 0
        %1830 = vmatpush1.bf16.msra.mxu0 0
        %1831 = vmatprep.subr.bf16.mxu0 0
        %1832 = vmatpush1.bf16.msra.mxu0 0
        %1833 = vmatprep.subr.bf16.mxu0 0
        %1834 = vmatpush1.bf16.msra.mxu0 0
        %1835 = vmatprep.subr.bf16.mxu0 0
        %1836 = vmatpush1.bf16.msra.mxu0 0
        %1837 = vmatprep.subr.bf16.mxu0 0
        %1838 = vmatpush1.bf16.msra.mxu0 0
        %1839 = vmatprep.subr.bf16.mxu0 0
        %1840 = vmatpush1.bf16.msra.mxu0 0
        %1841 = vmatprep.subr.bf16.mxu0 0
        %1842 = vmatpush1.bf16.msra.mxu0 0
        %1843 = vmatprep.subr.bf16.mxu0 0
        %1844 = vmatpush1.bf16.msra.mxu0 0
        %1845 = vmatprep.subr.bf16.mxu0 0
        %1846 = vmatpush1.bf16.msra.mxu0 0
        %1847 = vmatprep.subr.bf16.mxu0 0
        %1848 = vmatpush1.bf16.msra.mxu0 0
        %1849 = vmatprep.subr.bf16.mxu0 0
        %1850 = vmatpush1.bf16.msra.mxu0 0
        %1851 = vmatprep.subr.bf16.mxu0 0
        %1852 = vmatpush1.bf16.msra.mxu0 0
        %1853 = vmatprep.subr.bf16.mxu0 0
        %1854 = vmatpush1.bf16.msra.mxu0 0
        %1855 = vmatprep.subr.bf16.mxu0 0
        %1856 = vmatpush1.bf16.msra.mxu0 0
        %1857 = vmatprep.mubr.bf16.mxu0 0
        %1858 = vmatmul.mubr.bf16.gmra.mrb[0].mxu0 %v1820
        %v1859 = vpop.f32.mrb[0].mxu0
        %v1860 = vadd.f32 0.0, %v1859
        %v1861 = vpop.f32.mrb[0].mxu0
        %v1862 = vpop.f32.mrb[0].mxu0
        %v1863 = vpop.f32.mrb[0].mxu0
        %1864 = vdwg.mxu0
        %v1865 = vcombine.low %v1722, %v1814
        %v1866 = vcombine.high %v1722, %v1814
        %v1868 = vunpack.c.l.s4 1983009808
        %v1869 = vunpack.c.0.s8 %v1868
        %v1870 = vlaneseq
        %v1871 = vshrl.u32 %v1870, 7
        %v1872 = vsub.s32 %v1869, %v1871
        %v1873 = vrot.slane %v1865, %v1872
        %v1875 = vunpack.c.l.s4 1983009808
        %v1876 = vunpack.c.0.s8 %v1875
        %v1877 = vlaneseq
        %v1878 = vshrl.u32 %v1877, 7
        %v1879 = vsub.s32 %v1876, %v1878
        %v1880 = vrot.slane %v1866, %v1879
        %v1881 = vcombine.low %v1768, %v1860
        %v1882 = vcombine.high %v1768, %v1860
        %v1884 = vunpack.c.l.s4 1983009808
        %v1885 = vunpack.c.0.s8 %v1884
        %v1886 = vlaneseq
        %v1887 = vshrl.u32 %v1886, 7
        %v1888 = vsub.s32 %v1885, %v1887
        %v1889 = vrot.slane %v1881, %v1888
        %v1891 = vunpack.c.l.s4 1983009808
        %v1892 = vunpack.c.0.s8 %v1891
        %v1893 = vlaneseq
        %v1894 = vshrl.u32 %v1893, 7
        %v1895 = vsub.s32 %v1892, %v1894
        %v1896 = vrot.slane %v1882, %v1895
        %v1897 = vcombine.low %v1873, %v1889
        %v1898 = vcombine.high %v1873, %v1889
        %v1900 = vunpack.c.l.s4 1934713408
        %v1901 = vunpack.c.0.s8 %v1900
        %v1902 = vlaneseq
        %v1903 = vshrl.u32 %v1902, 7
        %v1904 = vsub.s32 %v1901, %v1903
        %v1905 = vrot.slane %v1897, %v1904
        %v1907 = vunpack.c.l.s4 1934713408
        %v1908 = vunpack.c.0.s8 %v1907
        %v1909 = vlaneseq
        %v1910 = vshrl.u32 %v1909, 7
        %v1911 = vsub.s32 %v1908, %v1910
        %v1912 = vrot.slane %v1898, %v1911
        %v1913 = vcombine.low %v1880, %v1896
        %v1914 = vcombine.high %v1880, %v1896
        %v1916 = vunpack.c.l.s4 1934713408
        %v1917 = vunpack.c.0.s8 %v1916
        %v1918 = vlaneseq
        %v1919 = vshrl.u32 %v1918, 7
        %v1920 = vsub.s32 %v1917, %v1919
        %v1921 = vrot.slane %v1913, %v1920
        %v1923 = vunpack.c.l.s4 1934713408
        %v1924 = vunpack.c.0.s8 %v1923
        %v1925 = vlaneseq
        %v1926 = vshrl.u32 %v1925, 7
        %v1927 = vsub.s32 %v1924, %v1926
        %v1928 = vrot.slane %v1914, %v1927
        %v1929 = vcombine.high %v1905, 0.0
        %v1930 = vcombine.high %v1912, 0.0
        %v1931 = vcombine.high %v1921, 0.0
        %v1932 = vcombine.high %v1928, 0.0
        %v1933 = vcombine.low %v1905, %v1912
        %v1935 = vunpack.c.l.s4 1983009808
        %v1936 = vunpack.c.0.s8 %v1935
        %v1937 = vlaneseq
        %v1938 = vshrl.u32 %v1937, 7
        %v1939 = vsub.s32 %v1936, %v1938
        %v1940 = vrot.slane %v1933, %v1939
        %v1941 = vcombine.low %v1929, %v1930
        %v1943 = vunpack.c.l.s4 1983009808
        %v1944 = vunpack.c.0.s8 %v1943
        %v1945 = vlaneseq
        %v1946 = vshrl.u32 %v1945, 7
        %v1947 = vsub.s32 %v1944, %v1946
        %v1948 = vrot.slane %v1941, %v1947
        %v1949 = vcombine.low %v1921, %v1928
        %v1951 = vunpack.c.l.s4 1983009808
        %v1952 = vunpack.c.0.s8 %v1951
        %v1953 = vlaneseq
        %v1954 = vshrl.u32 %v1953, 7
        %v1955 = vsub.s32 %v1952, %v1954
        %v1956 = vrot.slane %v1949, %v1955
        %v1957 = vcombine.low %v1931, %v1932
        %v1959 = vunpack.c.l.s4 1983009808
        %v1960 = vunpack.c.0.s8 %v1959
        %v1961 = vlaneseq
        %v1962 = vshrl.u32 %v1961, 7
        %v1963 = vsub.s32 %v1960, %v1962
        %v1964 = vrot.slane %v1957, %v1963
        %v1965 = vcombine.low %v1940, %v1948
        %v1966 = vcombine.high %v1940, %v1948
        %v1968 = vunpack.c.l.s4 1934713408
        %v1969 = vunpack.c.0.s8 %v1968
        %v1970 = vlaneseq
        %v1971 = vshrl.u32 %v1970, 7
        %v1972 = vsub.s32 %v1969, %v1971
        %v1973 = vrot.slane %v1965, %v1972
        %v1975 = vunpack.c.l.s4 1934713408
        %v1976 = vunpack.c.0.s8 %v1975
        %v1977 = vlaneseq
        %v1978 = vshrl.u32 %v1977, 7
        %v1979 = vsub.s32 %v1976, %v1978
        %v1980 = vrot.slane %v1966, %v1979
        %v1981 = vcombine.low %v1956, %v1964
        %v1982 = vcombine.high %v1956, %v1964
        %v1984 = vunpack.c.l.s4 1934713408
        %v1985 = vunpack.c.0.s8 %v1984
        %v1986 = vlaneseq
        %v1987 = vshrl.u32 %v1986, 7
        %v1988 = vsub.s32 %v1985, %v1987
        %v1989 = vrot.slane %v1981, %v1988
        %v1991 = vunpack.c.l.s4 1934713408
        %v1992 = vunpack.c.0.s8 %v1991
        %v1993 = vlaneseq
        %v1994 = vshrl.u32 %v1993, 7
        %v1995 = vsub.s32 %v1992, %v1994
        %v1996 = vrot.slane %v1982, %v1995
        %v1997 = vcombine.low %v1973, %v1989
        %v1998 = vcombine.high %v1973, %v1989
        %v1999 = vcombine.low %v1980, %v1996
        %v2000 = vcombine.high %v1980, %v1996
        %2002 = vrot.lane.b32.xlu0 %v1998, 8
        %v2003 = vpop.permute.xlu0 %2002
        %2006 = vrot.lane.b32.xlu0 %v1999, 16
        %v2007 = vpop.permute.xlu0 %2006
        %2010 = vrot.lane.b32.xlu0 %v2000, 24
        %v2011 = vpop.permute.xlu0 %2010
        %v2013 = vsel %vm1447, %v1997, %v2003
        %vm2014 = vcmask 130048
        %v2015 = vsel %vm2014, %v2013, %v2007
        %vm2016 = vcmask 195584
        %v2017 = vsel %vm2016, %v2015, %v2011
        %v2018 = vpack.c.bf16 %v2017, %v2017
        %v2019 = vld [vmem:[%s9] sm:$0xf]
        %v2020 = vld [vmem:[%s9 + $0x4] sm:$0xf]
        %v2021 = vld [vmem:[%s9 + $0x8] sm:$0xf]
        %v2022 = vld [vmem:[%s9 + $0xc] sm:$0xf]
        %v2023 = vld [vmem:[#allocation7] sm:$0x1]
        %v2025 = vlaneseq
        %v2026 = vshrl.u32 %v2025, 7
        %v2027 = vsub.s32 0, %v2026
        %v2028 = vrot.slane %v2023, %v2027
        %v2034 = vunpack.c.l.b16 %v2019
        %v2035 = vunpack.c.l.b16 %v2020
        %v2036 = vunpack.c.l.b16 %v2021
        %v2037 = vunpack.c.l.b16 %v2022
        %v2038 = vpack.c.b16 %v2035, %v2034
        %v2039 = vpack.c.b16 %v2037, %v2036
        %v2043 = vsel %vm817, %v2018, 0
        %2045 = vmatprep.subr.bf16.mxu0 0
        %2046 = vmatpush1.bf16.msra.mxu0 %v2038
        %2047 = vmatprep.subr.bf16.mxu0 0
        %2048 = vmatpush1.bf16.msra.mxu0 %v2039
        %2049 = vmatprep.subr.bf16.mxu0 0
        %2050 = vmatpush1.bf16.msra.mxu0 0
        %2051 = vmatprep.subr.bf16.mxu0 0
        %2052 = vmatpush1.bf16.msra.mxu0 0
        %2053 = vmatprep.subr.bf16.mxu0 0
        %2054 = vmatpush1.bf16.msra.mxu0 0
        %2055 = vmatprep.subr.bf16.mxu0 0
        %2056 = vmatpush1.bf16.msra.mxu0 0
        %2057 = vmatprep.subr.bf16.mxu0 0
        %2058 = vmatpush1.bf16.msra.mxu0 0
        %2059 = vmatprep.subr.bf16.mxu0 0
        %2060 = vmatpush1.bf16.msra.mxu0 0
        %2061 = vmatprep.subr.bf16.mxu0 0
        %2062 = vmatpush1.bf16.msra.mxu0 0
        %2063 = vmatprep.subr.bf16.mxu0 0
        %2064 = vmatpush1.bf16.msra.mxu0 0
        %2065 = vmatprep.subr.bf16.mxu0 0
        %2066 = vmatpush1.bf16.msra.mxu0 0
        %2067 = vmatprep.subr.bf16.mxu0 0
        %2068 = vmatpush1.bf16.msra.mxu0 0
        %2069 = vmatprep.subr.bf16.mxu0 0
        %2070 = vmatpush1.bf16.msra.mxu0 0
        %2071 = vmatprep.subr.bf16.mxu0 0
        %2072 = vmatpush1.bf16.msra.mxu0 0
        %2073 = vmatprep.subr.bf16.mxu0 0
        %2074 = vmatpush1.bf16.msra.mxu0 0
        %2075 = vmatprep.subr.bf16.mxu0 0
        %2076 = vmatpush1.bf16.msra.mxu0 0
        %2077 = vmatprep.mubr.bf16.mxu0 0
        %2078 = vmatmul.mubr.bf16.gmra.mrb[0].mxu0 %v2043
        %v2079 = vpop.f32.mrb[0].mxu0
        %v2080 = vadd.f32 %v2028, %v2079
        %v2081 = vpop.f32.mrb[0].mxu0
        %v2082 = vpop.f32.mrb[0].mxu0
        %v2083 = vpop.f32.mrb[0].mxu0
        %2084 = vdwg.mxu0
        %v2085 = vadd.f32 %v789, %v2080
        %v2086 = vld [vmem:[#allocation9] sm:$0x1]
        %v2087 = vld [vmem:[#allocation10] sm:$0x1]
        %v2088 = vsel %vm817, %v2085, 0.0
        %2089 = vadd.xlane.f32.xlu0 %v2088
        %v2090 = vpop.xlane.xlu0 %2089
        %v2091 = vrcp.pop 32.0
        %v2092 = vmul.f32 %v2090, %v2091
        %v2093 = vsub.f32 %v2085, %v2092
        %v2094 = vmul.f32 %v2093, %v2093
        %v2095 = vsel %vm817, %v2094, 0.0
        %2096 = vadd.xlane.f32.xlu0 %v2095
        %v2097 = vpop.xlane.xlu0 %2096
        %v2098 = vmul.f32 %v2097, %v2091
        %v2099 = vadd.f32 %v2098, 1e-12
        %v2100 = vrsqrt.pop %v2099
        %v2101 = vmul.f32 %v2093, %v2100
        %v2103 = vlaneseq
        %v2104 = vshrl.u32 %v2103, 7
        %v2105 = vsub.s32 0, %v2104
        %v2106 = vrot.slane %v2086, %v2105
        %v2108 = vmul.f32 %v2101, %v2106
        %v2110 = vlaneseq
        %v2111 = vshrl.u32 %v2110, 7
        %v2112 = vsub.s32 0, %v2111
        %v2113 = vrot.slane %v2087, %v2112
        %v2115 = vadd.f32 %v2108, %v2113
        %v2116 = vpack.c.bf16 %v2115, %v2115
        %v2117 = vld [vmem:[#allocation12] sm:$0xf]
        %v2118 = vld [vmem:[#allocation12 + $0x4] sm:$0xf]
        %v2119 = vld [vmem:[#allocation12 + $0x8] sm:$0xf]
        %v2120 = vld [vmem:[#allocation12 + $0xc] sm:$0xf]
        %v2121 = vld [vmem:[#allocation13] sm:$0x1]
        %v2123 = vlaneseq
        %v2124 = vshrl.u32 %v2123, 7
        %v2125 = vsub.s32 0, %v2124
        %v2126 = vrot.slane %v2121, %v2125
        %v2132 = vunpack.c.l.b16 %v2117
        %v2133 = vunpack.c.l.b16 %v2118
        %v2134 = vunpack.c.l.b16 %v2119
        %v2135 = vunpack.c.l.b16 %v2120
        %v2136 = vpack.c.b16 %v2133, %v2132
        %v2137 = vpack.c.b16 %v2135, %v2134
        %v2141 = vsel %vm817, %v2116, 0
        %2143 = vmatprep.subr.bf16.mxu0 0
        %2144 = vmatpush1.bf16.msra.mxu0 %v2136
        %2145 = vmatprep.subr.bf16.mxu0 0
        %2146 = vmatpush1.bf16.msra.mxu0 %v2137
        %2147 = vmatprep.subr.bf16.mxu0 0
        %2148 = vmatpush1.bf16.msra.mxu0 0
        %2149 = vmatprep.subr.bf16.mxu0 0
        %2150 = vmatpush1.bf16.msra.mxu0 0
        %2151 = vmatprep.subr.bf16.mxu0 0
        %2152 = vmatpush1.bf16.msra.mxu0 0
        %2153 = vmatprep.subr.bf16.mxu0 0
        %2154 = vmatpush1.bf16.msra.mxu0 0
        %2155 = vmatprep.subr.bf16.mxu0 0
        %2156 = vmatpush1.bf16.msra.mxu0 0
        %2157 = vmatprep.subr.bf16.mxu0 0
        %2158 = vmatpush1.bf16.msra.mxu0 0
        %2159 = vmatprep.subr.bf16.mxu0 0
        %2160 = vmatpush1.bf16.msra.mxu0 0
        %2161 = vmatprep.subr.bf16.mxu0 0
        %2162 = vmatpush1.bf16.msra.mxu0 0
        %2163 = vmatprep.subr.bf16.mxu0 0
        %2164 = vmatpush1.bf16.msra.mxu0 0
        %2165 = vmatprep.subr.bf16.mxu0 0
        %2166 = vmatpush1.bf16.msra.mxu0 0
        %2167 = vmatprep.subr.bf16.mxu0 0
        %2168 = vmatpush1.bf16.msra.mxu0 0
        %2169 = vmatprep.subr.bf16.mxu0 0
        %2170 = vmatpush1.bf16.msra.mxu0 0
        %2171 = vmatprep.subr.bf16.mxu0 0
        %2172 = vmatpush1.bf16.msra.mxu0 0
        %2173 = vmatprep.subr.bf16.mxu0 0
        %2174 = vmatpush1.bf16.msra.mxu0 0
        %2175 = vmatprep.mubr.bf16.mxu0 0
        %2176 = vmatmul.mubr.bf16.gmra.mrb[0].mxu0 %v2141
        %v2177 = vpop.f32.mrb[0].mxu0
        %v2178 = vadd.f32 %v2126, %v2177
        %v2179 = vpop.f32.mrb[0].mxu0
        %v2180 = vpop.f32.mrb[0].mxu0
        %v2181 = vpop.f32.mrb[0].mxu0
        %2182 = vdwg.mxu0
        %v2183 = vmul.f32 %v2178, 0.5
        %v2184 = vmul.f32 %v2178, 0.044715
        %v2185 = vmul.f32 %v2184, %v2178
        %v2186 = vmul.f32 %v2185, %v2178
        %v2187 = vadd.f32 %v2178, %v2186
        %v2188 = vmul.f32 %v2187, 0.7978846
        %v2189 = vtanh.pop %v2188
        %v2190 = vadd.f32 %v2189, 1.0
        %v2191 = vmul.f32 %v2183, %v2190
        %v2192 = vpack.c.bf16 %v2191, %v2191
        %v2193 = vld [vmem:[%s15] sm:$0xf]
        %v2194 = vld [vmem:[%s15 + $0x4] sm:$0xf]
        %v2195 = vld [vmem:[%s15 + $0x8] sm:$0xf]
        %v2196 = vld [vmem:[%s15 + $0xc] sm:$0xf]
        %v2197 = vld [vmem:[%s15 + $0x10] sm:$0xf]
        %v2198 = vld [vmem:[%s15 + $0x14] sm:$0xf]
        %v2199 = vld [vmem:[%s15 + $0x18] sm:$0xf]
        %v2200 = vld [vmem:[%s15 + $0x1c] sm:$0xf]
        %v2201 = vld [vmem:[#allocation15] sm:$0x1]
        %v2203 = vlaneseq
        %v2204 = vshrl.u32 %v2203, 7
        %v2205 = vsub.s32 0, %v2204
        %v2206 = vrot.slane %v2201, %v2205
        %v2216 = vunpack.c.l.b16 %v2193
        %v2217 = vunpack.c.l.b16 %v2194
        %v2218 = vunpack.c.l.b16 %v2195
        %v2219 = vunpack.c.l.b16 %v2196
        %v2220 = vunpack.c.l.b16 %v2197
        %v2221 = vunpack.c.l.b16 %v2198
        %v2222 = vunpack.c.l.b16 %v2199
        %v2223 = vunpack.c.l.b16 %v2200
        %v2224 = vpack.c.b16 %v2217, %v2216
        %v2225 = vpack.c.b16 %v2219, %v2218
        %v2226 = vpack.c.b16 %v2221, %v2220
        %v2227 = vpack.c.b16 %v2223, %v2222
        %vm2232 = vcmask 523264
        %v2234 = vsel %vm2232, %v2192, 0
        %2236 = vmatprep.subr.bf16.mxu0 0
        %2237 = vmatpush1.bf16.msra.mxu0 %v2224
        %2238 = vmatprep.subr.bf16.mxu0 0
        %2239 = vmatpush1.bf16.msra.mxu0 %v2225
        %2240 = vmatprep.subr.bf16.mxu0 0
        %2241 = vmatpush1.bf16.msra.mxu0 %v2226
        %2242 = vmatprep.subr.bf16.mxu0 0
        %2243 = vmatpush1.bf16.msra.mxu0 %v2227
        %2244 = vmatprep.subr.bf16.mxu0 0
        %2245 = vmatpush1.bf16.msra.mxu0 0
        %2246 = vmatprep.subr.bf16.mxu0 0
        %2247 = vmatpush1.bf16.msra.mxu0 0
        %2248 = vmatprep.subr.bf16.mxu0 0
        %2249 = vmatpush1.bf16.msra.mxu0 0
        %2250 = vmatprep.subr.bf16.mxu0 0
        %2251 = vmatpush1.bf16.msra.mxu0 0
        %2252 = vmatprep.subr.bf16.mxu0 0
        %2253 = vmatpush1.bf16.msra.mxu0 0
        %2254 = vmatprep.subr.bf16.mxu0 0
        %2255 = vmatpush1.bf16.msra.mxu0 0
        %2256 = vmatprep.subr.bf16.mxu0 0
        %2257 = vmatpush1.bf16.msra.mxu0 0
        %2258 = vmatprep.subr.bf16.mxu0 0
        %2259 = vmatpush1.bf16.msra.mxu0 0
        %2260 = vmatprep.subr.bf16.mxu0 0
        %2261 = vmatpush1.bf16.msra.mxu0 0
        %2262 = vmatprep.subr.bf16.mxu0 0
        %2263 = vmatpush1.bf16.msra.mxu0 0
        %2264 = vmatprep.subr.bf16.mxu0 0
        %2265 = vmatpush1.bf16.msra.mxu0 0
        %2266 = vmatprep.subr.bf16.mxu0 0
        %2267 = vmatpush1.bf16.msra.mxu0 0
        %2268 = vmatprep.mubr.bf16.mxu0 0
        %2269 = vmatmul.mubr.bf16.gmra.mrb[0].mxu0 %v2234
        %v2270 = vpop.f32.mrb[0].mxu0
        %v2271 = vadd.f32 %v2206, %v2270
        %v2272 = vpop.f32.mrb[0].mxu0
        %v2273 = vpop.f32.mrb[0].mxu0
        %v2274 = vpop.f32.mrb[0].mxu0
        %2275 = vdwg.mxu0
        %v2276 = vadd.f32 %v2115, %v2271
        %v2277 = vld [vmem:[%s17] sm:$0x1]
        %v2278 = vld [vmem:[#allocation16] sm:$0x1]
        %v2279 = vsel %vm817, %v2276, 0.0
        %2280 = vadd.xlane.f32.xlu0 %v2279
        %v2281 = vpop.xlane.xlu0 %2280
        %v2282 = vmul.f32 %v2281, %v2091
        %v2283 = vsub.f32 %v2276, %v2282
        %v2284 = vmul.f32 %v2283, %v2283
        %v2285 = vsel %vm817, %v2284, 0.0
        %2286 = vadd.xlane.f32.xlu0 %v2285
        %v2287 = vpop.xlane.xlu0 %2286
        %v2288 = vmul.f32 %v2287, %v2091
        %v2289 = vadd.f32 %v2288, 1e-12
        %v2290 = vrsqrt.pop %v2289
        %v2291 = vmul.f32 %v2283, %v2290
        %v2293 = vlaneseq
        %v2294 = vshrl.u32 %v2293, 7
        %v2295 = vsub.s32 0, %v2294
        %v2296 = vrot.slane %v2277, %v2295
        %v2298 = vmul.f32 %v2291, %v2296
        %v2300 = vlaneseq
        %v2301 = vshrl.u32 %v2300, 7
        %v2302 = vsub.s32 0, %v2301
        %v2303 = vrot.slane %v2278, %v2302
        %v2305 = vadd.f32 %v2298, %v2303
        %2306 = vst.msk [vmem:[%s787] sm:$0xff] %vm817, %v2305
        %p2307 = scmp.lt.s32.totalorder %s40, 1
        %s2308 = scalar_select %p2307, %s40, 1
        %p2309 = scmp.lt.s32.totalorder %s41, 0
        %s2310 = scalar_select %p2309, %s41, 0
        %s2311 = sadd.s32 %s2310, %s2308
        %s2312 = smul.addr %s2311, 8
        %s2313 = scalar_lea.vmem %s19, %s2312
        // Predicated region
        $region137: #{_lambda_.6} parent=95 // pred_check
          %p2314 = pneg %p484
        $region138: #{_lambda_.6} parent=95 // pred_check_branch
          %2316 = sbr.rel (%p2314) target = $region140
        $region139: #{_lambda_.6} parent=95 // pred_region
          _
        $region140: #{_lambda_.6} parent=95 // pred_fallthru
          _
      $region96: #{_lambda_.6} parent=5 // pred_fallthru
        _
      %p2317 = scmp.le.s32.totalorder 2, %s31
      // Predicated region
      $region141: #{_lambda_.6} parent=5 // pred_check
        %p2318 = pneg %p2317
      $region142: #{_lambda_.6} parent=5 // pred_check_branch
        %2320 = sbr.rel (%p2318) target = $region144
      $region143: #{_lambda_.6} parent=5 // pred_region
        %s2321 = ssub.s32 %s31, 2
        // Predicated region
        $region145: #{_lambda_.6} parent=143 // pred_check
          %p2322 = pneg %p490
        $region146: #{_lambda_.6} parent=143 // pred_check_branch
          %2324 = sbr.rel (%p2322) target = $region148
        $region147: #{_lambda_.6} parent=143 // pred_region
          %p2325 = scmp.lt.s32.totalorder %s42, 1
          %s2326 = scalar_select %p2325, %s42, 1
          %p2327 = scmp.lt.s32.totalorder %s43, 0
          %s2328 = scalar_select %p2327, %s43, 0
          %s2329 = sadd.s32 %s2328, %s2326
          %s2330 = smul.addr %s2329, 8
          %s2331 = scalar_lea.vmem %s19, %s2330
        $region148: #{_lambda_.6} parent=143 // pred_fallthru
          _
      $region144: #{_lambda_.6} parent=5 // pred_fallthru
        _
    $region6: #{_lambda_.6} parent=1 // loop_footer
      %s35 = sadd.s32 1, %s31
    $region7: #{_lambda_.6} parent=1 // loop_footer_branch
      %30 = sbr.rel target = $region3
    $region8: #{_lambda_.6} parent=1 // loop_exit
      _
    %2332 = vsyncpa [#allocation3], 1
    %s2333 = scalar_lea.sflag [#allocation3], 1
    %2334 = vsyncpa %s2333, 1
    %2335 = vsyncpa [#allocation5], 1
    %2336 = vsyncpa [#allocation8], 1
    %2337 = vsyncpa [#allocation11], 1
    %2338 = vsyncpa [#allocation14], 1
    %2339 = vsyncpa [#allocation17], 1

// kernel: _lambda_.7
$region0: #{_lambda_.7}
  #allocation0 [shape = 'u32[]', space=smem, size = 0x4, offset = 0x4, fixed_abs, tag = 'smem constant byte address 0x4 - core index']
  #allocation1 [shape = 'u32[144,128]{1,0:T(1,128)}', space=vmem, size = 0x12000, scoped, tag = 'internal scratch']
  %s0 = inlined_call_operand.vmem [shape: f32[2,8,32], index: 0, kind: input, shape index: {}, may-alias: {0,1}]
  %s1 = inlined_call_operand.vmem [shape: f32[2,8,32], index: 1, kind: input, shape index: {}, may-alias: {0,1}]
  %s2 = inlined_call_operand.vmem [shape: f32[2,1,1,8], index: 2, kind: input, shape index: {}]
  %s3 = inlined_call_operand.vmem [shape: bf16[32,32], index: 3, kind: input, shape index: {}]
  %s4 = inlined_call_operand.vmem [shape: f32[1,32], index: 4, kind: input, shape index: {}]
  %s5 = inlined_call_operand.vmem [shape: bf16[32,32], index: 5, kind: input, shape index: {}]
  %s6 = inlined_call_operand.vmem [shape: f32[1,32], index: 6, kind: input, shape index: {}]
  %s7 = inlined_call_operand.vmem [shape: bf16[32,32], index: 7, kind: input, shape index: {}]
  %s8 = inlined_call_operand.vmem [shape: f32[1,32], index: 8, kind: input, shape index: {}]
  %s9 = inlined_call_operand.vmem [shape: bf16[32,32], index: 9, kind: input, shape index: {}]
  %s10 = inlined_call_operand.vmem [shape: f32[1,32], index: 10, kind: input, shape index: {}]
  %s11 = inlined_call_operand.vmem [shape: f32[1,32], index: 11, kind: input, shape index: {}]
  %s12 = inlined_call_operand.vmem [shape: f32[1,32], index: 12, kind: input, shape index: {}]
  %s13 = inlined_call_operand.vmem [shape: bf16[32,64], index: 13, kind: input, shape index: {}]
  %s14 = inlined_call_operand.vmem [shape: f32[1,64], index: 14, kind: input, shape index: {}]
  %s15 = inlined_call_operand.vmem [shape: bf16[64,32], index: 15, kind: input, shape index: {}]
  %s16 = inlined_call_operand.vmem [shape: f32[1,32], index: 16, kind: input, shape index: {}]
  %s17 = inlined_call_operand.vmem [shape: f32[1,32], index: 17, kind: input, shape index: {}]
  %s18 = inlined_call_operand.vmem [shape: f32[1,32], index: 18, kind: input, shape index: {}]
  %s19 = inlined_call_operand.vmem [shape: f32[2,8,32], index: 19, kind: output, shape index: {}]
  %s20 = sld [smem:[#allocation0]]
  $region109: #{_lambda_.7} parent=0
    _
  %s22 = ssub.s32 1, %s20
  %s23 = scalar_select 0, %s22, %s20
  loop: start=0, step=1, limit=4
  $region2: #{_lambda_.7} parent=0 // loop_pre_header
    _
  $region3: #{_lambda_.7} parent=0 // loop_header
    %s25 = sphi 0, %s29
    %p26 = scmp.ge.s32.totalorder %s25, 4
    %s32 = sphi 0, %s44
    %s33 = sphi 0, %s40
    %s34 = sphi 0, %s32
    %s35 = sphi 0, %s33
    %s36 = sphi 0, %s34
    %s37 = sphi 0, %s35
    %s49 = sphi 0, %s51
    %s52 = sphi 0, %s49
    %s53 = sphi 0, %s52
    %s69 = sphi 0, %s53
    %s75 = sphi 0, %s77
    %s78 = sphi 0, %s75
    %s79 = sphi 0, %s78
    %s95 = sphi 0, %s79
    %s101 = sphi 0, %s103
    %s104 = sphi 0, %s101
    %s105 = sphi 0, %s104
    %s121 = sphi 0, %s105
    %s125 = sphi 0, %s125
    %s127 = sphi 0, %s125
    %s128 = sphi 0, %s127
    %s142 = sphi 0, %s128
    %s146 = sphi 0, %s146
    %s148 = sphi 0, %s146
    %s149 = sphi 0, %s148
    %s163 = sphi 0, %s149
    %s167 = sphi 0, %s167
    %s169 = sphi 0, %s167
    %s170 = sphi 0, %s169
    %s184 = sphi 0, %s170
    %s188 = sphi 0, %s188
    %s190 = sphi 0, %s188
    %s191 = sphi 0, %s190
    %s205 = sphi 0, %s191
    %s209 = sphi 0, %s209
    %s211 = sphi 0, %s209
    %s212 = sphi 0, %s211
    %s226 = sphi 0, %s212
    %s230 = sphi 0, %s230
    %s232 = sphi 0, %s230
    %s233 = sphi 0, %s232
    %s247 = sphi 0, %s233
    %s251 = sphi 0, %s251
    %s253 = sphi 0, %s251
    %s254 = sphi 0, %s253
    %s268 = sphi 0, %s254
    %s272 = sphi 0, %s272
    %s274 = sphi 0, %s272
    %s275 = sphi 0, %s274
    %s289 = sphi 0, %s275
    %s293 = sphi 0, %s293
    %s295 = sphi 0, %s293
    %s296 = sphi 0, %s295
    %s310 = sphi 0, %s296
    %s314 = sphi 0, %s314
    %s316 = sphi 0, %s314
    %s317 = sphi 0, %s316
    %s331 = sphi 0, %s317
    %s335 = sphi 0, %s335
    %s337 = sphi 0, %s335
    %s338 = sphi 0, %s337
    %s352 = sphi 0, %s338
    %s356 = sphi 0, %s356
    %s358 = sphi 0, %s356
    %s359 = sphi 0, %s358
    %s373 = sphi 0, %s359
    %s377 = sphi 0, %s377
    %s379 = sphi 0, %s377
    %s380 = sphi 0, %s379
    %s394 = sphi 0, %s380
    %s398 = sphi 0, %s398
    %s400 = sphi 0, %s398
    %s401 = sphi 0, %s400
    %s415 = sphi 0, %s401
    %s419 = sphi 0, %s419
    %s421 = sphi 0, %s419
    %s422 = sphi 0, %s421
    %s436 = sphi 0, %s422
    %s440 = sphi 0, %s440
    %s442 = sphi 0, %s440
    %s443 = sphi 0, %s442
    %s457 = sphi 0, %s443
    %s465 = sphi 0, %s467
    %s468 = sphi 0, %s465
    %s469 = sphi 0, %s468
    %s485 = sphi 0, %s469
  $region4: #{_lambda_.7} parent=0 // loop_header_branch
    %28 = sbr.rel (%p26) target = $region8
  $region5: #{_lambda_.7} parent=0 // loop_body
    %s30 = ssub.s32 %s25, 1
    %s31 = ssub.s32 %s25, 2
    %s38 = sadd.s32 1, %s33
    %p39 = scmp.ge.s32.totalorder %s38, 1
    %s40 = scalar_select %p39, 0, %s38
    %s41 = sadd.s32 1, %s32
    %s42 = scalar_select %p39, %s41, %s32
    %p43 = scmp.ge.s32.totalorder %s42, 2
    %s44 = scalar_select %p43, 0, %s42
    %s45 = ssub.s32 %s32, %s44
    %s46 = ssub.s32 %s33, %s40
    %s47 = sor.u32 %s45, %s46
    %p48 = scmp.eq.s32.totalorder %s47, 0
    %s50 = sadd.s32 %s49, 1
    %s51 = scalar_select %p48, %s49, %s50
    %p54 = pneg %p48
    %p55 = scmp.eq.s32.totalorder %s25, 1
    %p56 = por %p54, %p55
    %p57 = scmp.ne.s32.totalorder %s49, %s52
    %p58 = scmp.eq.s32.totalorder %s25, 0
    %p59 = por %p57, %p58
    %p60 = scmp.ne.s32.totalorder %s49, %s52
    %p61 = scmp.eq.s32.totalorder %s30, 1
    %p62 = por %p60, %p61
    %p63 = scmp.ne.s32.totalorder %s52, %s53
    %p64 = scmp.eq.s32.totalorder %s30, 0
    %p65 = por %p63, %p64
    %p66 = scmp.ne.s32.totalorder %s52, %s53
    %p67 = scmp.eq.s32.totalorder %s31, 1
    %p68 = por %p66, %p67
    %p70 = scmp.ne.s32.totalorder %s53, %s69
    %p71 = scmp.eq.s32.totalorder %s31, 0
    %p72 = por %p70, %p71
    %s73 = ssub.s32 %s32, %s44
    %p74 = scmp.eq.s32.totalorder %s73, 0
    %s76 = sadd.s32 %s75, 1
    %s77 = scalar_select %p74, %s75, %s76
    %p80 = pneg %p74
    %p81 = scmp.eq.s32.totalorder %s25, 1
    %p82 = por %p80, %p81
    %p83 = scmp.ne.s32.totalorder %s75, %s78
    %p84 = scmp.eq.s32.totalorder %s25, 0
    %p85 = por %p83, %p84
    %p86 = scmp.ne.s32.totalorder %s75, %s78
    %p87 = scmp.eq.s32.totalorder %s30, 1
    %p88 = por %p86, %p87
    %p89 = scmp.ne.s32.totalorder %s78, %s79
    %p90 = scmp.eq.s32.totalorder %s30, 0
    %p91 = por %p89, %p90
    %p92 = scmp.ne.s32.totalorder %s78, %s79
    %p93 = scmp.eq.s32.totalorder %s31, 1
    %p94 = por %p92, %p93
    %p96 = scmp.ne.s32.totalorder %s79, %s95
    %p97 = scmp.eq.s32.totalorder %s31, 0
    %p98 = por %p96, %p97
    %s99 = ssub.s32 %s32, %s44
    %p100 = scmp.eq.s32.totalorder %s99, 0
    %s102 = sadd.s32 %s101, 1
    %s103 = scalar_select %p100, %s101, %s102
    %p106 = pneg %p100
    %p107 = scmp.eq.s32.totalorder %s25, 1
    %p108 = por %p106, %p107
    %p109 = scmp.ne.s32.totalorder %s101, %s104
    %p110 = scmp.eq.s32.totalorder %s25, 0
    %p111 = por %p109, %p110
    %p112 = scmp.ne.s32.totalorder %s101, %s104
    %p113 = scmp.eq.s32.totalorder %s30, 1
    %p114 = por %p112, %p113
    %p115 = scmp.ne.s32.totalorder %s104, %s105
    %p116 = scmp.eq.s32.totalorder %s30, 0
    %p117 = por %p115, %p116
    %p118 = scmp.ne.s32.totalorder %s104, %s105
    %p119 = scmp.eq.s32.totalorder %s31, 1
    %p120 = por %p118, %p119
    %p122 = scmp.ne.s32.totalorder %s105, %s121
    %p123 = scmp.eq.s32.totalorder %s31, 0
    %p124 = por %p122, %p123
    %s126 = sadd.s32 %s125, 1
    %p129 = scmp.eq.s32.totalorder %s25, 1
    %p130 = scmp.ne.s32.totalorder %s125, %s127
    %p131 = scmp.eq.s32.totalorder %s25, 0
    %p132 = por %p130, %p131
    %p133 = scmp.ne.s32.totalorder %s125, %s127
    %p134 = scmp.eq.s32.totalorder %s30, 1
    %p135 = por %p133, %p134
    %p136 = scmp.ne.s32.totalorder %s127, %s128
    %p137 = scmp.eq.s32.totalorder %s30, 0
    %p138 = por %p136, %p137
    %p139 = scmp.ne.s32.totalorder %s127, %s128
    %p140 = scmp.eq.s32.totalorder %s31, 1
    %p141 = por %p139, %p140
    %p143 = scmp.ne.s32.totalorder %s128, %s142
    %p144 = scmp.eq.s32.totalorder %s31, 0
    %p145 = por %p143, %p144
    %s147 = sadd.s32 %s146, 1
    %p150 = scmp.eq.s32.totalorder %s25, 1
    %p151 = scmp.ne.s32.totalorder %s146, %s148
    %p152 = scmp.eq.s32.totalorder %s25, 0
    %p153 = por %p151, %p152
    %p154 = scmp.ne.s32.totalorder %s146, %s148
    %p155 = scmp.eq.s32.totalorder %s30, 1
    %p156 = por %p154, %p155
    %p157 = scmp.ne.s32.totalorder %s148, %s149
    %p158 = scmp.eq.s32.totalorder %s30, 0
    %p159 = por %p157, %p158
    %p160 = scmp.ne.s32.totalorder %s148, %s149
    %p161 = scmp.eq.s32.totalorder %s31, 1
    %p162 = por %p160, %p161
    %p164 = scmp.ne.s32.totalorder %s149, %s163
    %p165 = scmp.eq.s32.totalorder %s31, 0
    %p166 = por %p164, %p165
    %s168 = sadd.s32 %s167, 1
    %p171 = scmp.eq.s32.totalorder %s25, 1
    %p172 = scmp.ne.s32.totalorder %s167, %s169
    %p173 = scmp.eq.s32.totalorder %s25, 0
    %p174 = por %p172, %p173
    %p175 = scmp.ne.s32.totalorder %s167, %s169
    %p176 = scmp.eq.s32.totalorder %s30, 1
    %p177 = por %p175, %p176
    %p178 = scmp.ne.s32.totalorder %s169, %s170
    %p179 = scmp.eq.s32.totalorder %s30, 0
    %p180 = por %p178, %p179
    %p181 = scmp.ne.s32.totalorder %s169, %s170
    %p182 = scmp.eq.s32.totalorder %s31, 1
    %p183 = por %p181, %p182
    %p185 = scmp.ne.s32.totalorder %s170, %s184
    %p186 = scmp.eq.s32.totalorder %s31, 0
    %p187 = por %p185, %p186
    %s189 = sadd.s32 %s188, 1
    %p192 = scmp.eq.s32.totalorder %s25, 1
    %p193 = scmp.ne.s32.totalorder %s188, %s190
    %p194 = scmp.eq.s32.totalorder %s25, 0
    %p195 = por %p193, %p194
    %p196 = scmp.ne.s32.totalorder %s188, %s190
    %p197 = scmp.eq.s32.totalorder %s30, 1
    %p198 = por %p196, %p197
    %p199 = scmp.ne.s32.totalorder %s190, %s191
    %p200 = scmp.eq.s32.totalorder %s30, 0
    %p201 = por %p199, %p200
    %p202 = scmp.ne.s32.totalorder %s190, %s191
    %p203 = scmp.eq.s32.totalorder %s31, 1
    %p204 = por %p202, %p203
    %p206 = scmp.ne.s32.totalorder %s191, %s205
    %p207 = scmp.eq.s32.totalorder %s31, 0
    %p208 = por %p206, %p207
    %s210 = sadd.s32 %s209, 1
    %p213 = scmp.eq.s32.totalorder %s25, 1
    %p214 = scmp.ne.s32.totalorder %s209, %s211
    %p215 = scmp.eq.s32.totalorder %s25, 0
    %p216 = por %p214, %p215
    %p217 = scmp.ne.s32.totalorder %s209, %s211
    %p218 = scmp.eq.s32.totalorder %s30, 1
    %p219 = por %p217, %p218
    %p220 = scmp.ne.s32.totalorder %s211, %s212
    %p221 = scmp.eq.s32.totalorder %s30, 0
    %p222 = por %p220, %p221
    %p223 = scmp.ne.s32.totalorder %s211, %s212
    %p224 = scmp.eq.s32.totalorder %s31, 1
    %p225 = por %p223, %p224
    %p227 = scmp.ne.s32.totalorder %s212, %s226
    %p228 = scmp.eq.s32.totalorder %s31, 0
    %p229 = por %p227, %p228
    %s231 = sadd.s32 %s230, 1
    %p234 = scmp.eq.s32.totalorder %s25, 1
    %p235 = scmp.ne.s32.totalorder %s230, %s232
    %p236 = scmp.eq.s32.totalorder %s25, 0
    %p237 = por %p235, %p236
    %p238 = scmp.ne.s32.totalorder %s230, %s232
    %p239 = scmp.eq.s32.totalorder %s30, 1
    %p240 = por %p238, %p239
    %p241 = scmp.ne.s32.totalorder %s232, %s233
    %p242 = scmp.eq.s32.totalorder %s30, 0
    %p243 = por %p241, %p242
    %p244 = scmp.ne.s32.totalorder %s232, %s233
    %p245 = scmp.eq.s32.totalorder %s31, 1
    %p246 = por %p244, %p245
    %p248 = scmp.ne.s32.totalorder %s233, %s247
    %p249 = scmp.eq.s32.totalorder %s31, 0
    %p250 = por %p248, %p249
    %s252 = sadd.s32 %s251, 1
    %p255 = scmp.eq.s32.totalorder %s25, 1
    %p256 = scmp.ne.s32.totalorder %s251, %s253
    %p257 = scmp.eq.s32.totalorder %s25, 0
    %p258 = por %p256, %p257
    %p259 = scmp.ne.s32.totalorder %s251, %s253
    %p260 = scmp.eq.s32.totalorder %s30, 1
    %p261 = por %p259, %p260
    %p262 = scmp.ne.s32.totalorder %s253, %s254
    %p263 = scmp.eq.s32.totalorder %s30, 0
    %p264 = por %p262, %p263
    %p265 = scmp.ne.s32.totalorder %s253, %s254
    %p266 = scmp.eq.s32.totalorder %s31, 1
    %p267 = por %p265, %p266
    %p269 = scmp.ne.s32.totalorder %s254, %s268
    %p270 = scmp.eq.s32.totalorder %s31, 0
    %p271 = por %p269, %p270
    %s273 = sadd.s32 %s272, 1
    %p276 = scmp.eq.s32.totalorder %s25, 1
    %p277 = scmp.ne.s32.totalorder %s272, %s274
    %p278 = scmp.eq.s32.totalorder %s25, 0
    %p279 = por %p277, %p278
    %p280 = scmp.ne.s32.totalorder %s272, %s274
    %p281 = scmp.eq.s32.totalorder %s30, 1
    %p282 = por %p280, %p281
    %p283 = scmp.ne.s32.totalorder %s274, %s275
    %p284 = scmp.eq.s32.totalorder %s30, 0
    %p285 = por %p283, %p284
    %p286 = scmp.ne.s32.totalorder %s274, %s275
    %p287 = scmp.eq.s32.totalorder %s31, 1
    %p288 = por %p286, %p287
    %p290 = scmp.ne.s32.totalorder %s275, %s289
    %p291 = scmp.eq.s32.totalorder %s31, 0
    %p292 = por %p290, %p291
    %s294 = sadd.s32 %s293, 1
    %p297 = scmp.eq.s32.totalorder %s25, 1
    %p298 = scmp.ne.s32.totalorder %s293, %s295
    %p299 = scmp.eq.s32.totalorder %s25, 0
    %p300 = por %p298, %p299
    %p301 = scmp.ne.s32.totalorder %s293, %s295
    %p302 = scmp.eq.s32.totalorder %s30, 1
    %p303 = por %p301, %p302
    %p304 = scmp.ne.s32.totalorder %s295, %s296
    %p305 = scmp.eq.s32.totalorder %s30, 0
    %p306 = por %p304, %p305
    %p307 = scmp.ne.s32.totalorder %s295, %s296
    %p308 = scmp.eq.s32.totalorder %s31, 1
    %p309 = por %p307, %p308
    %p311 = scmp.ne.s32.totalorder %s296, %s310
    %p312 = scmp.eq.s32.totalorder %s31, 0
    %p313 = por %p311, %p312
    %s315 = sadd.s32 %s314, 1
    %p318 = scmp.eq.s32.totalorder %s25, 1
    %p319 = scmp.ne.s32.totalorder %s314, %s316
    %p320 = scmp.eq.s32.totalorder %s25, 0
    %p321 = por %p319, %p320
    %p322 = scmp.ne.s32.totalorder %s314, %s316
    %p323 = scmp.eq.s32.totalorder %s30, 1
    %p324 = por %p322, %p323
    %p325 = scmp.ne.s32.totalorder %s316, %s317
    %p326 = scmp.eq.s32.totalorder %s30, 0
    %p327 = por %p325, %p326
    %p328 = scmp.ne.s32.totalorder %s316, %s317
    %p329 = scmp.eq.s32.totalorder %s31, 1
    %p330 = por %p328, %p329
    %p332 = scmp.ne.s32.totalorder %s317, %s331
    %p333 = scmp.eq.s32.totalorder %s31, 0
    %p334 = por %p332, %p333
    %s336 = sadd.s32 %s335, 1
    %p339 = scmp.eq.s32.totalorder %s25, 1
    %p340 = scmp.ne.s32.totalorder %s335, %s337
    %p341 = scmp.eq.s32.totalorder %s25, 0
    %p342 = por %p340, %p341
    %p343 = scmp.ne.s32.totalorder %s335, %s337
    %p344 = scmp.eq.s32.totalorder %s30, 1
    %p345 = por %p343, %p344
    %p346 = scmp.ne.s32.totalorder %s337, %s338
    %p347 = scmp.eq.s32.totalorder %s30, 0
    %p348 = por %p346, %p347
    %p349 = scmp.ne.s32.totalorder %s337, %s338
    %p350 = scmp.eq.s32.totalorder %s31, 1
    %p351 = por %p349, %p350
    %p353 = scmp.ne.s32.totalorder %s338, %s352
    %p354 = scmp.eq.s32.totalorder %s31, 0
    %p355 = por %p353, %p354
    %s357 = sadd.s32 %s356, 1
    %p360 = scmp.eq.s32.totalorder %s25, 1
    %p361 = scmp.ne.s32.totalorder %s356, %s358
    %p362 = scmp.eq.s32.totalorder %s25, 0
    %p363 = por %p361, %p362
    %p364 = scmp.ne.s32.totalorder %s356, %s358
    %p365 = scmp.eq.s32.totalorder %s30, 1
    %p366 = por %p364, %p365
    %p367 = scmp.ne.s32.totalorder %s358, %s359
    %p368 = scmp.eq.s32.totalorder %s30, 0
    %p369 = por %p367, %p368
    %p370 = scmp.ne.s32.totalorder %s358, %s359
    %p371 = scmp.eq.s32.totalorder %s31, 1
    %p372 = por %p370, %p371
    %p374 = scmp.ne.s32.totalorder %s359, %s373
    %p375 = scmp.eq.s32.totalorder %s31, 0
    %p376 = por %p374, %p375
    %s378 = sadd.s32 %s377, 1
    %p381 = scmp.eq.s32.totalorder %s25, 1
    %p382 = scmp.ne.s32.totalorder %s377, %s379
    %p383 = scmp.eq.s32.totalorder %s25, 0
    %p384 = por %p382, %p383
    %p385 = scmp.ne.s32.totalorder %s377, %s379
    %p386 = scmp.eq.s32.totalorder %s30, 1
    %p387 = por %p385, %p386
    %p388 = scmp.ne.s32.totalorder %s379, %s380
    %p389 = scmp.eq.s32.totalorder %s30, 0
    %p390 = por %p388, %p389
    %p391 = scmp.ne.s32.totalorder %s379, %s380
    %p392 = scmp.eq.s32.totalorder %s31, 1
    %p393 = por %p391, %p392
    %p395 = scmp.ne.s32.totalorder %s380, %s394
    %p396 = scmp.eq.s32.totalorder %s31, 0
    %p397 = por %p395, %p396
    %s399 = sadd.s32 %s398, 1
    %p402 = scmp.eq.s32.totalorder %s25, 1
    %p403 = scmp.ne.s32.totalorder %s398, %s400
    %p404 = scmp.eq.s32.totalorder %s25, 0
    %p405 = por %p403, %p404
    %p406 = scmp.ne.s32.totalorder %s398, %s400
    %p407 = scmp.eq.s32.totalorder %s30, 1
    %p408 = por %p406, %p407
    %p409 = scmp.ne.s32.totalorder %s400, %s401
    %p410 = scmp.eq.s32.totalorder %s30, 0
    %p411 = por %p409, %p410
    %p412 = scmp.ne.s32.totalorder %s400, %s401
    %p413 = scmp.eq.s32.totalorder %s31, 1
    %p414 = por %p412, %p413
    %p416 = scmp.ne.s32.totalorder %s401, %s415
    %p417 = scmp.eq.s32.totalorder %s31, 0
    %p418 = por %p416, %p417
    %s420 = sadd.s32 %s419, 1
    %p423 = scmp.eq.s32.totalorder %s25, 1
    %p424 = scmp.ne.s32.totalorder %s419, %s421
    %p425 = scmp.eq.s32.totalorder %s25, 0
    %p426 = por %p424, %p425
    %p427 = scmp.ne.s32.totalorder %s419, %s421
    %p428 = scmp.eq.s32.totalorder %s30, 1
    %p429 = por %p427, %p428
    %p430 = scmp.ne.s32.totalorder %s421, %s422
    %p431 = scmp.eq.s32.totalorder %s30, 0
    %p432 = por %p430, %p431
    %p433 = scmp.ne.s32.totalorder %s421, %s422
    %p434 = scmp.eq.s32.totalorder %s31, 1
    %p435 = por %p433, %p434
    %p437 = scmp.ne.s32.totalorder %s422, %s436
    %p438 = scmp.eq.s32.totalorder %s31, 0
    %p439 = por %p437, %p438
    %s441 = sadd.s32 %s440, 1
    %p444 = scmp.eq.s32.totalorder %s25, 1
    %p445 = scmp.ne.s32.totalorder %s440, %s442
    %p446 = scmp.eq.s32.totalorder %s25, 0
    %p447 = por %p445, %p446
    %p448 = scmp.ne.s32.totalorder %s440, %s442
    %p449 = scmp.eq.s32.totalorder %s30, 1
    %p450 = por %p448, %p449
    %p451 = scmp.ne.s32.totalorder %s442, %s443
    %p452 = scmp.eq.s32.totalorder %s30, 0
    %p453 = por %p451, %p452
    %p454 = scmp.ne.s32.totalorder %s442, %s443
    %p455 = scmp.eq.s32.totalorder %s31, 1
    %p456 = por %p454, %p455
    %p458 = scmp.ne.s32.totalorder %s443, %s457
    %p459 = scmp.eq.s32.totalorder %s31, 0
    %p460 = por %p458, %p459
    %s461 = ssub.s32 %s32, %s44
    %s462 = ssub.s32 %s33, %s40
    %s463 = sor.u32 %s461, %s462
    %p464 = scmp.eq.s32.totalorder %s463, 0
    %s466 = sadd.s32 %s465, 1
    %s467 = scalar_select %p464, %s465, %s466
    %p470 = pneg %p464
    %p471 = scmp.eq.s32.totalorder %s25, 1
    %p472 = por %p470, %p471
    %p473 = scmp.ne.s32.totalorder %s465, %s468
    %p474 = scmp.eq.s32.totalorder %s25, 0
    %p475 = por %p473, %p474
    %p476 = scmp.ne.s32.totalorder %s465, %s468
    %p477 = scmp.eq.s32.totalorder %s30, 1
    %p478 = por %p476, %p477
    %p479 = scmp.ne.s32.totalorder %s468, %s469
    %p480 = scmp.eq.s32.totalorder %s30, 0
    %p481 = por %p479, %p480
    %p482 = scmp.ne.s32.totalorder %s468, %s469
    %p483 = scmp.eq.s32.totalorder %s31, 1
    %p484 = por %p482, %p483
    %p486 = scmp.ne.s32.totalorder %s469, %s485
    %p487 = scmp.eq.s32.totalorder %s31, 0
    %p488 = por %p486, %p487
    %p489 = scmp.le.s32.totalorder 1, %s25
    %p490 = scmp.lt.s32.totalorder %s25, 3
    %p491 = pnand %p489, %p490
    %p492 = pneg %p491
    // Predicated region
    $region9: #{_lambda_.7} parent=5 // pred_check
      _
    $region10: #{_lambda_.7} parent=5 // pred_check_branch
      %494 = sbr.rel (%p491) target = $region12
    $region11: #{_lambda_.7} parent=5 // pred_region
      %s495 = ssub.s32 %s25, 1
      // Predicated region
      $region13: #{_lambda_.7} parent=11 // pred_check
        %p496 = pneg %p138
      $region14: #{_lambda_.7} parent=11 // pred_check_branch
        %498 = sbr.rel (%p496) target = $region16
      $region15: #{_lambda_.7} parent=11 // pred_region
        _
      $region16: #{_lambda_.7} parent=11 // pred_fallthru
        _
      // Predicated region
      $region17: #{_lambda_.7} parent=11 // pred_check
        %p499 = pneg %p159
      $region18: #{_lambda_.7} parent=11 // pred_check_branch
        %501 = sbr.rel (%p499) target = $region20
      $region19: #{_lambda_.7} parent=11 // pred_region
        _
      $region20: #{_lambda_.7} parent=11 // pred_fallthru
        _
      // Predicated region
      $region21: #{_lambda_.7} parent=11 // pred_check
        %p502 = pneg %p180
      $region22: #{_lambda_.7} parent=11 // pred_check_branch
        %504 = sbr.rel (%p502) target = $region24
      $region23: #{_lambda_.7} parent=11 // pred_region
        _
      $region24: #{_lambda_.7} parent=11 // pred_fallthru
        _
      // Predicated region
      $region25: #{_lambda_.7} parent=11 // pred_check
        %p505 = pneg %p201
      $region26: #{_lambda_.7} parent=11 // pred_check_branch
        %507 = sbr.rel (%p505) target = $region28
      $region27: #{_lambda_.7} parent=11 // pred_region
        _
      $region28: #{_lambda_.7} parent=11 // pred_fallthru
        _
      // Predicated region
      $region29: #{_lambda_.7} parent=11 // pred_check
        %p508 = pneg %p222
      $region30: #{_lambda_.7} parent=11 // pred_check_branch
        %510 = sbr.rel (%p508) target = $region32
      $region31: #{_lambda_.7} parent=11 // pred_region
        _
      $region32: #{_lambda_.7} parent=11 // pred_fallthru
        _
      // Predicated region
      $region33: #{_lambda_.7} parent=11 // pred_check
        %p511 = pneg %p243
      $region34: #{_lambda_.7} parent=11 // pred_check_branch
        %513 = sbr.rel (%p511) target = $region36
      $region35: #{_lambda_.7} parent=11 // pred_region
        _
      $region36: #{_lambda_.7} parent=11 // pred_fallthru
        _
      // Predicated region
      $region37: #{_lambda_.7} parent=11 // pred_check
        %p514 = pneg %p264
      $region38: #{_lambda_.7} parent=11 // pred_check_branch
        %516 = sbr.rel (%p514) target = $region40
      $region39: #{_lambda_.7} parent=11 // pred_region
        _
      $region40: #{_lambda_.7} parent=11 // pred_fallthru
        _
      // Predicated region
      $region41: #{_lambda_.7} parent=11 // pred_check
        %p517 = pneg %p285
      $region42: #{_lambda_.7} parent=11 // pred_check_branch
        %519 = sbr.rel (%p517) target = $region44
      $region43: #{_lambda_.7} parent=11 // pred_region
        _
      $region44: #{_lambda_.7} parent=11 // pred_fallthru
        _
      // Predicated region
      $region45: #{_lambda_.7} parent=11 // pred_check
        %p520 = pneg %p306
      $region46: #{_lambda_.7} parent=11 // pred_check_branch
        %522 = sbr.rel (%p520) target = $region48
      $region47: #{_lambda_.7} parent=11 // pred_region
        _
      $region48: #{_lambda_.7} parent=11 // pred_fallthru
        _
      // Predicated region
      $region49: #{_lambda_.7} parent=11 // pred_check
        %p523 = pneg %p327
      $region50: #{_lambda_.7} parent=11 // pred_check_branch
        %525 = sbr.rel (%p523) target = $region52
      $region51: #{_lambda_.7} parent=11 // pred_region
        _
      $region52: #{_lambda_.7} parent=11 // pred_fallthru
        _
      // Predicated region
      $region53: #{_lambda_.7} parent=11 // pred_check
        %p526 = pneg %p348
      $region54: #{_lambda_.7} parent=11 // pred_check_branch
        %528 = sbr.rel (%p526) target = $region56
      $region55: #{_lambda_.7} parent=11 // pred_region
        _
      $region56: #{_lambda_.7} parent=11 // pred_fallthru
        _
      // Predicated region
      $region57: #{_lambda_.7} parent=11 // pred_check
        %p529 = pneg %p369
      $region58: #{_lambda_.7} parent=11 // pred_check_branch
        %531 = sbr.rel (%p529) target = $region60
      $region59: #{_lambda_.7} parent=11 // pred_region
        _
      $region60: #{_lambda_.7} parent=11 // pred_fallthru
        _
      // Predicated region
      $region61: #{_lambda_.7} parent=11 // pred_check
        %p532 = pneg %p390
      $region62: #{_lambda_.7} parent=11 // pred_check_branch
        %534 = sbr.rel (%p532) target = $region64
      $region63: #{_lambda_.7} parent=11 // pred_region
        _
      $region64: #{_lambda_.7} parent=11 // pred_fallthru
        _
      // Predicated region
      $region65: #{_lambda_.7} parent=11 // pred_check
        %p535 = pneg %p411
      $region66: #{_lambda_.7} parent=11 // pred_check_branch
        %537 = sbr.rel (%p535) target = $region68
      $region67: #{_lambda_.7} parent=11 // pred_region
        _
      $region68: #{_lambda_.7} parent=11 // pred_fallthru
        _
      // Predicated region
      $region69: #{_lambda_.7} parent=11 // pred_check
        %p538 = pneg %p432
      $region70: #{_lambda_.7} parent=11 // pred_check_branch
        %540 = sbr.rel (%p538) target = $region72
      $region71: #{_lambda_.7} parent=11 // pred_region
        _
      $region72: #{_lambda_.7} parent=11 // pred_fallthru
        _
      // Predicated region
      $region73: #{_lambda_.7} parent=11 // pred_check
        %p541 = pneg %p453
      $region74: #{_lambda_.7} parent=11 // pred_check_branch
        %543 = sbr.rel (%p541) target = $region76
      $region75: #{_lambda_.7} parent=11 // pred_region
        _
      $region76: #{_lambda_.7} parent=11 // pred_fallthru
        _
    $region12: #{_lambda_.7} parent=5 // pred_fallthru
      _
    %p544 = scmp.lt.s32.totalorder %s25, 2
    // Predicated region
    $region77: #{_lambda_.7} parent=5 // pred_check
      %p545 = pneg %p544
    $region78: #{_lambda_.7} parent=5 // pred_check_branch
      %547 = sbr.rel (%p545) target = $region80
    $region79: #{_lambda_.7} parent=5 // pred_region
      // Predicated region
      $region81: #{_lambda_.7} parent=79 // pred_check
        %p548 = pneg %p59
      $region82: #{_lambda_.7} parent=79 // pred_check_branch
        %550 = sbr.rel (%p548) target = $region84
      $region83: #{_lambda_.7} parent=79 // pred_region
        %p551 = scmp.lt.s32.totalorder %s32, 1
        %s552 = scalar_select %p551, %s32, 1
        %p553 = scmp.lt.s32.totalorder %s33, 0
        %s554 = scalar_select %p553, %s33, 0
        %s555 = sadd.s32 %s554, %s552
        %s556 = smul.addr %s555, 8
        %s557 = scalar_lea.vmem %s0, %s556
      $region84: #{_lambda_.7} parent=79 // pred_fallthru
        _
      // Predicated region
      $region85: #{_lambda_.7} parent=79 // pred_check
        %p558 = pneg %p85
      $region86: #{_lambda_.7} parent=79 // pred_check_branch
        %560 = sbr.rel (%p558) target = $region88
      $region87: #{_lambda_.7} parent=79 // pred_region
        %p561 = scmp.lt.s32.totalorder %s32, 1
        %s562 = scalar_select %p561, %s32, 1
        %s563 = smul.addr %s562, 8
        %s564 = scalar_lea.vmem %s1, %s563
      $region88: #{_lambda_.7} parent=79 // pred_fallthru
        _
      // Predicated region
      $region89: #{_lambda_.7} parent=79 // pred_check
        %p565 = pneg %p111
      $region90: #{_lambda_.7} parent=79 // pred_check_branch
        %567 = sbr.rel (%p565) target = $region92
      $region91: #{_lambda_.7} parent=79 // pred_region
        %p568 = scmp.lt.s32.totalorder %s32, 1
        %s569 = scalar_select %p568, %s32, 1
        %s570 = scalar_lea.vmem %s2, %s569
      $region92: #{_lambda_.7} parent=79 // pred_fallthru
        _
    $region80: #{_lambda_.7} parent=5 // pred_fallthru
      _
    %p571 = scmp.le.s32.totalorder 1, %s25
    %p572 = scmp.lt.s32.totalorder %s25, 3
    %p573 = pnand %p571, %p572
    %p574 = pneg %p573
    // Predicated region
    $region93: #{_lambda_.7} parent=5 // pred_check
      _
    $region94: #{_lambda_.7} parent=5 // pred_check_branch
      %576 = sbr.rel (%p573) target = $region96
    $region95: #{_lambda_.7} parent=5 // pred_region
      %s577 = ssub.s32 %s25, 1
      %p578 = scmp.lt.s32.totalorder %s34, 1
      %s579 = scalar_select %p578, %s34, 1
      %p580 = scmp.lt.s32.totalorder %s35, 0
      %s581 = scalar_select %p580, %s35, 0
      %s582 = sadd.s32 %s581, %s579
      %s583 = smul.addr %s582, 8
      %s584 = scalar_lea.vmem %s0, %s583
      %p585 = pneg %p65
      %p586 = pneg %p62
      %p587 = scmp.lt.s32.totalorder %s34, 1
      %s588 = scalar_select %p587, %s34, 1
      %s589 = smul.addr %s588, 8
      %s590 = scalar_lea.vmem %s1, %s589
      %p591 = pneg %p91
      %p592 = pneg %p88
      %p593 = scmp.lt.s32.totalorder %s34, 1
      %s594 = scalar_select %p593, %s34, 1
      %s595 = scalar_lea.vmem %s2, %s594
      %p596 = pneg %p117
      %p597 = pneg %p114
      %p598 = pneg %p138
      %p599 = pneg %p135
      %p600 = pneg %p159
      %p601 = pneg %p156
      %p602 = pneg %p180
      %p603 = pneg %p177
      %p604 = pneg %p201
      %p605 = pneg %p198
      %p606 = pneg %p222
      %p607 = pneg %p219
      %p608 = pneg %p243
      %p609 = pneg %p240
      %p610 = pneg %p264
      %p611 = pneg %p261
      %p612 = pneg %p285
      %p613 = pneg %p282
      %p614 = pneg %p306
      %p615 = pneg %p303
      %p616 = pneg %p327
      %p617 = pneg %p324
      %p618 = pneg %p348
      %p619 = pneg %p345
      %p620 = pneg %p369
      %p621 = pneg %p366
      %p622 = pneg %p390
      %p623 = pneg %p387
      %p624 = pneg %p411
      %p625 = pneg %p408
      %p626 = pneg %p432
      %p627 = pneg %p429
      %p628 = pneg %p453
      %p629 = pneg %p450
      %p630 = pneg %p481
      %p631 = pneg %p478
      %p632 = scmp.lt.s32.totalorder %s34, 1
      %s633 = scalar_select %p632, %s34, 1
      %p634 = scmp.lt.s32.totalorder %s35, 0
      %s635 = scalar_select %p634, %s35, 0
      %s636 = sadd.s32 %s635, %s633
      %s637 = smul.addr %s636, 8
      %s638 = scalar_lea.vmem %s19, %s637
      %p639 = scmp.lt.s32.totalorder %s34, 1
      %s640 = scalar_select %p639, %s34, 1
      %p641 = scmp.lt.s32.totalorder %s35, 0
      %s642 = scalar_select %p641, %s35, 0
      %s643 = sadd.s32 %s642, %s640
      %s644 = smul.addr %s643, 8
      %s645 = scalar_lea.vmem %s0, %s644
      %p646 = scmp.lt.s32.totalorder %s34, 1
      %s647 = scalar_select %p646, %s34, 1
      %s648 = smul.addr %s647, 8
      %s649 = scalar_lea.vmem %s1, %s648
      %p650 = scmp.lt.s32.totalorder %s34, 1
      %s651 = scalar_select %p650, %s34, 1
      %s652 = scalar_lea.vmem %s2, %s651
      %p653 = scmp.lt.s32.totalorder %s34, 1
      %s654 = scalar_select %p653, %s34, 1
      %p655 = scmp.lt.s32.totalorder %s35, 0
      %s656 = scalar_select %p655, %s35, 0
      %s657 = sadd.s32 %s656, %s654
      %s658 = smul.addr %s657, 8
      %s659 = scalar_lea.vmem %s19, %s658
      %v661 = vld [vmem:[%s645] sm:$0xff]
      %v662 = vld [vmem:[%s649] sm:$0xff]
      %v663 = vld [vmem:[%s652] sm:$0x1]
      %v664 = vpack.c.bf16 %v661, %v661
      %v665 = vpack.c.bf16 %v662, %v662
      %v666 = vld [vmem:[%s3] sm:$0xf]
      %v667 = vld [vmem:[%s3 + $0x4] sm:$0xf]
      %v668 = vld [vmem:[%s3 + $0x8] sm:$0xf]
      %v669 = vld [vmem:[%s3 + $0xc] sm:$0xf]
      %v670 = vld [vmem:[%s4] sm:$0x1]
      %v672 = vlaneseq
      %v673 = vshrl.u32 %v672, 7
      %v674 = vsub.s32 0, %v673
      %v675 = vrot.slane %v670, %v674
      %v681 = vunpack.c.l.b16 %v666
      %v682 = vunpack.c.l.b16 %v667
      %v683 = vunpack.c.l.b16 %v668
      %v684 = vunpack.c.l.b16 %v669
      %v685 = vpack.c.b16 %v682, %v681
      %v686 = vpack.c.b16 %v684, %v683
      %vm689 = vcmask 261120
      %v691 = vsel %vm689, %v664, 0
      %693 = vmatprep.subr.bf16.mxu0 0
      %694 = vmatpush1.bf16.msra.mxu0 %v685
      %695 = vmatprep.subr.bf16.mxu0 0
      %696 = vmatpush1.bf16.msra.mxu0 %v686
      %697 = vmatprep.subr.bf16.mxu0 0
      %698 = vmatpush1.bf16.msra.mxu0 0
      %699 = vmatprep.subr.bf16.mxu0 0
      %700 = vmatpush1.bf16.msra.mxu0 0
      %701 = vmatprep.subr.bf16.mxu0 0
      %702 = vmatpush1.bf16.msra.mxu0 0
      %703 = vmatprep.subr.bf16.mxu0 0
      %704 = vmatpush1.bf16.msra.mxu0 0
      %705 = vmatprep.subr.bf16.mxu0 0
      %706 = vmatpush1.bf16.msra.mxu0 0
      %707 = vmatprep.subr.bf16.mxu0 0
      %708 = vmatpush1.bf16.msra.mxu0 0
      %709 = vmatprep.subr.bf16.mxu0 0
      %710 = vmatpush1.bf16.msra.mxu0 0
      %711 = vmatprep.subr.bf16.mxu0 0
      %712 = vmatpush1.bf16.msra.mxu0 0
      %713 = vmatprep.subr.bf16.mxu0 0
      %714 = vmatpush1.bf16.msra.mxu0 0
      %715 = vmatprep.subr.bf16.mxu0 0
      %716 = vmatpush1.bf16.msra.mxu0 0
      %717 = vmatprep.subr.bf16.mxu0 0
      %718 = vmatpush1.bf16.msra.mxu0 0
      %719 = vmatprep.subr.bf16.mxu0 0
      %720 = vmatpush1.bf16.msra.mxu0 0
      %721 = vmatprep.subr.bf16.mxu0 0
      %722 = vmatpush1.bf16.msra.mxu0 0
      %723 = vmatprep.subr.bf16.mxu0 0
      %724 = vmatpush1.bf16.msra.mxu0 0
      %725 = vmatprep.mubr.bf16.mxu0 0
      %726 = vmatmul.mubr.bf16.gmra.mrb[0].mxu0 %v691
      %v727 = vpop.f32.mrb[0].mxu0
      %v728 = vadd.f32 %v675, %v727
      %v729 = vpop.f32.mrb[0].mxu0
      %v730 = vpop.f32.mrb[0].mxu0
      %v731 = vpop.f32.mrb[0].mxu0
      %732 = vdwg.mxu0
      %v733 = vmul.f32 %v728, 0.35355338
      %v734 = vld [vmem:[%s5] sm:$0xf]
      %v735 = vld [vmem:[%s5 + $0x4] sm:$0xf]
      %v736 = vld [vmem:[%s5 + $0x8] sm:$0xf]
      %v737 = vld [vmem:[%s5 + $0xc] sm:$0xf]
      %v738 = vld [vmem:[%s6] sm:$0x1]
      %v740 = vlaneseq
      %v741 = vshrl.u32 %v740, 7
      %v742 = vsub.s32 0, %v741
      %v743 = vrot.slane %v738, %v742
      %v749 = vunpack.c.l.b16 %v734
      %v750 = vunpack.c.l.b16 %v735
      %v751 = vunpack.c.l.b16 %v736
      %v752 = vunpack.c.l.b16 %v737
      %v753 = vpack.c.b16 %v750, %v749
      %v754 = vpack.c.b16 %v752, %v751
      %v758 = vsel %vm689, %v665, 0
      %760 = vmatprep.subr.bf16.mxu0 0
      %761 = vmatpush1.bf16.msra.mxu0 %v753
      %762 = vmatprep.subr.bf16.mxu0 0
      %763 = vmatpush1.bf16.msra.mxu0 %v754
      %764 = vmatprep.subr.bf16.mxu0 0
      %765 = vmatpush1.bf16.msra.mxu0 0
      %766 = vmatprep.subr.bf16.mxu0 0
      %767 = vmatpush1.bf16.msra.mxu0 0
      %768 = vmatprep.subr.bf16.mxu0 0
      %769 = vmatpush1.bf16.msra.mxu0 0
      %770 = vmatprep.subr.bf16.mxu0 0
      %771 = vmatpush1.bf16.msra.mxu0 0
      %772 = vmatprep.subr.bf16.mxu0 0
      %773 = vmatpush1.bf16.msra.mxu0 0
      %774 = vmatprep.subr.bf16.mxu0 0
      %775 = vmatpush1.bf16.msra.mxu0 0
      %776 = vmatprep.subr.bf16.mxu0 0
      %777 = vmatpush1.bf16.msra.mxu0 0
      %778 = vmatprep.subr.bf16.mxu0 0
      %779 = vmatpush1.bf16.msra.mxu0 0
      %780 = vmatprep.subr.bf16.mxu0 0
      %781 = vmatpush1.bf16.msra.mxu0 0
      %782 = vmatprep.subr.bf16.mxu0 0
      %783 = vmatpush1.bf16.msra.mxu0 0
      %784 = vmatprep.subr.bf16.mxu0 0
      %785 = vmatpush1.bf16.msra.mxu0 0
      %786 = vmatprep.subr.bf16.mxu0 0
      %787 = vmatpush1.bf16.msra.mxu0 0
      %788 = vmatprep.subr.bf16.mxu0 0
      %789 = vmatpush1.bf16.msra.mxu0 0
      %790 = vmatprep.subr.bf16.mxu0 0
      %791 = vmatpush1.bf16.msra.mxu0 0
      %792 = vmatprep.mubr.bf16.mxu0 0
      %793 = vmatmul.mubr.bf16.gmra.mrb[0].mxu0 %v758
      %v794 = vpop.f32.mrb[0].mxu0
      %v795 = vadd.f32 %v743, %v794
      %v796 = vpop.f32.mrb[0].mxu0
      %v797 = vpop.f32.mrb[0].mxu0
      %v798 = vpop.f32.mrb[0].mxu0
      %799 = vdwg.mxu0
      %v800 = vld [vmem:[%s7] sm:$0xf]
      %v801 = vld [vmem:[%s7 + $0x4] sm:$0xf]
      %v802 = vld [vmem:[%s7 + $0x8] sm:$0xf]
      %v803 = vld [vmem:[%s7 + $0xc] sm:$0xf]
      %v804 = vld [vmem:[%s8] sm:$0x1]
      %v806 = vlaneseq
      %v807 = vshrl.u32 %v806, 7
      %v808 = vsub.s32 0, %v807
      %v809 = vrot.slane %v804, %v808
      %v815 = vunpack.c.l.b16 %v800
      %v816 = vunpack.c.l.b16 %v801
      %v817 = vunpack.c.l.b16 %v802
      %v818 = vunpack.c.l.b16 %v803
      %v819 = vpack.c.b16 %v816, %v815
      %v820 = vpack.c.b16 %v818, %v817
      %823 = vmatprep.subr.bf16.mxu0 0
      %824 = vmatpush1.bf16.msra.mxu0 %v819
      %825 = vmatprep.subr.bf16.mxu0 0
      %826 = vmatpush1.bf16.msra.mxu0 %v820
      %827 = vmatprep.subr.bf16.mxu0 0
      %828 = vmatpush1.bf16.msra.mxu0 0
      %829 = vmatprep.subr.bf16.mxu0 0
      %830 = vmatpush1.bf16.msra.mxu0 0
      %831 = vmatprep.subr.bf16.mxu0 0
      %832 = vmatpush1.bf16.msra.mxu0 0
      %833 = vmatprep.subr.bf16.mxu0 0
      %834 = vmatpush1.bf16.msra.mxu0 0
      %835 = vmatprep.subr.bf16.mxu0 0
      %836 = vmatpush1.bf16.msra.mxu0 0
      %837 = vmatprep.subr.bf16.mxu0 0
      %838 = vmatpush1.bf16.msra.mxu0 0
      %839 = vmatprep.subr.bf16.mxu0 0
      %840 = vmatpush1.bf16.msra.mxu0 0
      %841 = vmatprep.subr.bf16.mxu0 0
      %842 = vmatpush1.bf16.msra.mxu0 0
      %843 = vmatprep.subr.bf16.mxu0 0
      %844 = vmatpush1.bf16.msra.mxu0 0
      %845 = vmatprep.subr.bf16.mxu0 0
      %846 = vmatpush1.bf16.msra.mxu0 0
      %847 = vmatprep.subr.bf16.mxu0 0
      %848 = vmatpush1.bf16.msra.mxu0 0
      %849 = vmatprep.subr.bf16.mxu0 0
      %850 = vmatpush1.bf16.msra.mxu0 0
      %851 = vmatprep.subr.bf16.mxu0 0
      %852 = vmatpush1.bf16.msra.mxu0 0
      %853 = vmatprep.subr.bf16.mxu0 0
      %854 = vmatpush1.bf16.msra.mxu0 0
      %855 = vmatprep.mubr.bf16.mxu0 0
      %856 = vmatmul.mubr.bf16.gmra.mrb[0].mxu0 %v758
      %v857 = vpop.f32.mrb[0].mxu0
      %v858 = vadd.f32 %v809, %v857
      %v859 = vpop.f32.mrb[0].mxu0
      %v860 = vpop.f32.mrb[0].mxu0
      %v861 = vpop.f32.mrb[0].mxu0
      %862 = vdwg.mxu0
      %864 = vrot.lane.b32.xlu0 %v733, 120
      %v865 = vpop.permute.xlu0 %864
      %867 = vrot.lane.b32.xlu0 %v733, 112
      %v868 = vpop.permute.xlu0 %867
      %870 = vrot.lane.b32.xlu0 %v733, 104
      %v871 = vpop.permute.xlu0 %870
      %v873 = vcombine.low %v733, %v868
      %v874 = vcombine.high %v733, %v868
      %v876 = vunpack.c.l.s4 1983009808
      %v877 = vunpack.c.0.s8 %v876
      %v878 = vlaneseq
      %v879 = vshrl.u32 %v878, 7
      %v880 = vsub.s32 %v877, %v879
      %v881 = vrot.slane %v873, %v880
      %v883 = vunpack.c.l.s4 1983009808
      %v884 = vunpack.c.0.s8 %v883
      %v885 = vlaneseq
      %v886 = vshrl.u32 %v885, 7
      %v887 = vsub.s32 %v884, %v886
      %v888 = vrot.slane %v874, %v887
      %v889 = vcombine.low %v865, %v871
      %v890 = vcombine.high %v865, %v871
      %v892 = vunpack.c.l.s4 1983009808
      %v893 = vunpack.c.0.s8 %v892
      %v894 = vlaneseq
      %v895 = vshrl.u32 %v894, 7
      %v896 = vsub.s32 %v893, %v895
      %v897 = vrot.slane %v889, %v896
      %v899 = vunpack.c.l.s4 1983009808
      %v900 = vunpack.c.0.s8 %v899
      %v901 = vlaneseq
      %v902 = vshrl.u32 %v901, 7
      %v903 = vsub.s32 %v900, %v902
      %v904 = vrot.slane %v890, %v903
      %v905 = vcombine.low %v881, %v897
      %v906 = vcombine.high %v881, %v897
      %v908 = vunpack.c.l.s4 1934713408
      %v909 = vunpack.c.0.s8 %v908
      %v910 = vlaneseq
      %v911 = vshrl.u32 %v910, 7
      %v912 = vsub.s32 %v909, %v911
      %v913 = vrot.slane %v905, %v912
      %v915 = vunpack.c.l.s4 1934713408
      %v916 = vunpack.c.0.s8 %v915
      %v917 = vlaneseq
      %v918 = vshrl.u32 %v917, 7
      %v919 = vsub.s32 %v916, %v918
      %v920 = vrot.slane %v906, %v919
      %v921 = vcombine.low %v888, %v904
      %v922 = vcombine.high %v888, %v904
      %v924 = vunpack.c.l.s4 1934713408
      %v925 = vunpack.c.0.s8 %v924
      %v926 = vlaneseq
      %v927 = vshrl.u32 %v926, 7
      %v928 = vsub.s32 %v925, %v927
      %v929 = vrot.slane %v921, %v928
      %v931 = vunpack.c.l.s4 1934713408
      %v932 = vunpack.c.0.s8 %v931
      %v933 = vlaneseq
      %v934 = vshrl.u32 %v933, 7
      %v935 = vsub.s32 %v932, %v934
      %v936 = vrot.slane %v922, %v935
      %v937 = vcombine.high %v913, 0.0
      %v938 = vcombine.high %v920, 0.0
      %v939 = vcombine.high %v929, 0.0
      %v940 = vcombine.high %v936, 0.0
      %v941 = vcombine.low %v913, %v920
      %v943 = vunpack.c.l.s4 1983009808
      %v944 = vunpack.c.0.s8 %v943
      %v945 = vlaneseq
      %v946 = vshrl.u32 %v945, 7
      %v947 = vsub.s32 %v944, %v946
      %v948 = vrot.slane %v941, %v947
      %v949 = vcombine.low %v937, %v938
      %v951 = vunpack.c.l.s4 1983009808
      %v952 = vunpack.c.0.s8 %v951
      %v953 = vlaneseq
      %v954 = vshrl.u32 %v953, 7
      %v955 = vsub.s32 %v952, %v954
      %v956 = vrot.slane %v949, %v955
      %v957 = vcombine.low %v929, %v936
      %v959 = vunpack.c.l.s4 1983009808
      %v960 = vunpack.c.0.s8 %v959
      %v961 = vlaneseq
      %v962 = vshrl.u32 %v961, 7
      %v963 = vsub.s32 %v960, %v962
      %v964 = vrot.slane %v957, %v963
      %v965 = vcombine.low %v939, %v940
      %v967 = vunpack.c.l.s4 1983009808
      %v968 = vunpack.c.0.s8 %v967
      %v969 = vlaneseq
      %v970 = vshrl.u32 %v969, 7
      %v971 = vsub.s32 %v968, %v970
      %v972 = vrot.slane %v965, %v971
      %v973 = vcombine.low %v948, %v956
      %v974 = vcombine.high %v948, %v956
      %v976 = vunpack.c.l.s4 1934713408
      %v977 = vunpack.c.0.s8 %v976
      %v978 = vlaneseq
      %v979 = vshrl.u32 %v978, 7
      %v980 = vsub.s32 %v977, %v979
      %v981 = vrot.slane %v973, %v980
      %v983 = vunpack.c.l.s4 1934713408
      %v984 = vunpack.c.0.s8 %v983
      %v985 = vlaneseq
      %v986 = vshrl.u32 %v985, 7
      %v987 = vsub.s32 %v984, %v986
      %v988 = vrot.slane %v974, %v987
      %v989 = vcombine.low %v964, %v972
      %v990 = vcombine.high %v964, %v972
      %v992 = vunpack.c.l.s4 1934713408
      %v993 = vunpack.c.0.s8 %v992
      %v994 = vlaneseq
      %v995 = vshrl.u32 %v994, 7
      %v996 = vsub.s32 %v993, %v995
      %v997 = vrot.slane %v989, %v996
      %v999 = vunpack.c.l.s4 1934713408
      %v1000 = vunpack.c.0.s8 %v999
      %v1001 = vlaneseq
      %v1002 = vshrl.u32 %v1001, 7
      %v1003 = vsub.s32 %v1000, %v1002
      %v1004 = vrot.slane %v990, %v1003
      %v1005 = vcombine.low %v981, %v997
      %v1006 = vcombine.high %v981, %v997
      %v1007 = vcombine.low %v988, %v1004
      %v1008 = vcombine.high %v988, %v1004
      %v1009 = vpack.c.bf16 %v1005, %v1005
      %v1010 = vpack.c.bf16 %v1006, %v1006
      %v1011 = vpack.c.bf16 %v1007, %v1007
      %v1012 = vpack.c.bf16 %v1008, %v1008
      %1014 = vrot.lane.b32.xlu0 %v795, 120
      %v1015 = vpop.permute.xlu0 %1014
      %1017 = vrot.lane.b32.xlu0 %v795, 112
      %v1018 = vpop.permute.xlu0 %1017
      %1020 = vrot.lane.b32.xlu0 %v795, 104
      %v1021 = vpop.permute.xlu0 %1020
      %v1023 = vcombine.low %v795, %v1018
      %v1024 = vcombine.high %v795, %v1018
      %v1026 = vunpack.c.l.s4 1983009808
      %v1027 = vunpack.c.0.s8 %v1026
      %v1028 = vlaneseq
      %v1029 = vshrl.u32 %v1028, 7
      %v1030 = vsub.s32 %v1027, %v1029
      %v1031 = vrot.slane %v1023, %v1030
      %v1033 = vunpack.c.l.s4 1983009808
      %v1034 = vunpack.c.0.s8 %v1033
      %v1035 = vlaneseq
      %v1036 = vshrl.u32 %v1035, 7
      %v1037 = vsub.s32 %v1034, %v1036
      %v1038 = vrot.slane %v1024, %v1037
      %v1039 = vcombine.low %v1015, %v1021
      %v1040 = vcombine.high %v1015, %v1021
      %v1042 = vunpack.c.l.s4 1983009808
      %v1043 = vunpack.c.0.s8 %v1042
      %v1044 = vlaneseq
      %v1045 = vshrl.u32 %v1044, 7
      %v1046 = vsub.s32 %v1043, %v1045
      %v1047 = vrot.slane %v1039, %v1046
      %v1049 = vunpack.c.l.s4 1983009808
      %v1050 = vunpack.c.0.s8 %v1049
      %v1051 = vlaneseq
      %v1052 = vshrl.u32 %v1051, 7
      %v1053 = vsub.s32 %v1050, %v1052
      %v1054 = vrot.slane %v1040, %v1053
      %v1055 = vcombine.low %v1031, %v1047
      %v1056 = vcombine.high %v1031, %v1047
      %v1058 = vunpack.c.l.s4 1934713408
      %v1059 = vunpack.c.0.s8 %v1058
      %v1060 = vlaneseq
      %v1061 = vshrl.u32 %v1060, 7
      %v1062 = vsub.s32 %v1059, %v1061
      %v1063 = vrot.slane %v1055, %v1062
      %v1065 = vunpack.c.l.s4 1934713408
      %v1066 = vunpack.c.0.s8 %v1065
      %v1067 = vlaneseq
      %v1068 = vshrl.u32 %v1067, 7
      %v1069 = vsub.s32 %v1066, %v1068
      %v1070 = vrot.slane %v1056, %v1069
      %v1071 = vcombine.low %v1038, %v1054
      %v1072 = vcombine.high %v1038, %v1054
      %v1074 = vunpack.c.l.s4 1934713408
      %v1075 = vunpack.c.0.s8 %v1074
      %v1076 = vlaneseq
      %v1077 = vshrl.u32 %v1076, 7
      %v1078 = vsub.s32 %v1075, %v1077
      %v1079 = vrot.slane %v1071, %v1078
      %v1081 = vunpack.c.l.s4 1934713408
      %v1082 = vunpack.c.0.s8 %v1081
      %v1083 = vlaneseq
      %v1084 = vshrl.u32 %v1083, 7
      %v1085 = vsub.s32 %v1082, %v1084
      %v1086 = vrot.slane %v1072, %v1085
      %v1087 = vcombine.high %v1063, 0.0
      %v1088 = vcombine.high %v1070, 0.0
      %v1089 = vcombine.high %v1079, 0.0
      %v1090 = vcombine.high %v1086, 0.0
      %v1091 = vcombine.low %v1063, %v1070
      %v1093 = vunpack.c.l.s4 1983009808
      %v1094 = vunpack.c.0.s8 %v1093
      %v1095 = vlaneseq
      %v1096 = vshrl.u32 %v1095, 7
      %v1097 = vsub.s32 %v1094, %v1096
      %v1098 = vrot.slane %v1091, %v1097
      %v1099 = vcombine.low %v1087, %v1088
      %v1101 = vunpack.c.l.s4 1983009808
      %v1102 = vunpack.c.0.s8 %v1101
      %v1103 = vlaneseq
      %v1104 = vshrl.u32 %v1103, 7
      %v1105 = vsub.s32 %v1102, %v1104
      %v1106 = vrot.slane %v1099, %v1105
      %v1107 = vcombine.low %v1079, %v1086
      %v1109 = vunpack.c.l.s4 1983009808
      %v1110 = vunpack.c.0.s8 %v1109
      %v1111 = vlaneseq
      %v1112 = vshrl.u32 %v1111, 7
      %v1113 = vsub.s32 %v1110, %v1112
      %v1114 = vrot.slane %v1107, %v1113
      %v1115 = vcombine.low %v1089, %v1090
      %v1117 = vunpack.c.l.s4 1983009808
      %v1118 = vunpack.c.0.s8 %v1117
      %v1119 = vlaneseq
      %v1120 = vshrl.u32 %v1119, 7
      %v1121 = vsub.s32 %v1118, %v1120
      %v1122 = vrot.slane %v1115, %v1121
      %v1123 = vcombine.low %v1098, %v1106
      %v1124 = vcombine.high %v1098, %v1106
      %v1126 = vunpack.c.l.s4 1934713408
      %v1127 = vunpack.c.0.s8 %v1126
      %v1128 = vlaneseq
      %v1129 = vshrl.u32 %v1128, 7
      %v1130 = vsub.s32 %v1127, %v1129
      %v1131 = vrot.slane %v1123, %v1130
      %v1133 = vunpack.c.l.s4 1934713408
      %v1134 = vunpack.c.0.s8 %v1133
      %v1135 = vlaneseq
      %v1136 = vshrl.u32 %v1135, 7
      %v1137 = vsub.s32 %v1134, %v1136
      %v1138 = vrot.slane %v1124, %v1137
      %v1139 = vcombine.low %v1114, %v1122
      %v1140 = vcombine.high %v1114, %v1122
      %v1142 = vunpack.c.l.s4 1934713408
      %v1143 = vunpack.c.0.s8 %v1142
      %v1144 = vlaneseq
      %v1145 = vshrl.u32 %v1144, 7
      %v1146 = vsub.s32 %v1143, %v1145
      %v1147 = vrot.slane %v1139, %v1146
      %v1149 = vunpack.c.l.s4 1934713408
      %v1150 = vunpack.c.0.s8 %v1149
      %v1151 = vlaneseq
      %v1152 = vshrl.u32 %v1151, 7
      %v1153 = vsub.s32 %v1150, %v1152
      %v1154 = vrot.slane %v1140, %v1153
      %v1155 = vcombine.low %v1131, %v1147
      %v1156 = vcombine.high %v1131, %v1147
      %v1157 = vcombine.low %v1138, %v1154
      %v1158 = vcombine.high %v1138, %v1154
      %v1159 = vpack.c.bf16 %v1155, %v1155
      %v1160 = vpack.c.bf16 %v1156, %v1156
      %v1161 = vpack.c.bf16 %v1157, %v1157
      %v1162 = vpack.c.bf16 %v1158, %v1158
      %1164 = vrot.lane.b32.xlu0 %v858, 120
      %v1165 = vpop.permute.xlu0 %1164
      %1167 = vrot.lane.b32.xlu0 %v858, 112
      %v1168 = vpop.permute.xlu0 %1167
      %1170 = vrot.lane.b32.xlu0 %v858, 104
      %v1171 = vpop.permute.xlu0 %1170
      %v1173 = vcombine.low %v858, %v1168
      %v1174 = vcombine.high %v858, %v1168
      %v1176 = vunpack.c.l.s4 1983009808
      %v1177 = vunpack.c.0.s8 %v1176
      %v1178 = vlaneseq
      %v1179 = vshrl.u32 %v1178, 7
      %v1180 = vsub.s32 %v1177, %v1179
      %v1181 = vrot.slane %v1173, %v1180
      %v1183 = vunpack.c.l.s4 1983009808
      %v1184 = vunpack.c.0.s8 %v1183
      %v1185 = vlaneseq
      %v1186 = vshrl.u32 %v1185, 7
      %v1187 = vsub.s32 %v1184, %v1186
      %v1188 = vrot.slane %v1174, %v1187
      %v1189 = vcombine.low %v1165, %v1171
      %v1190 = vcombine.high %v1165, %v1171
      %v1192 = vunpack.c.l.s4 1983009808
      %v1193 = vunpack.c.0.s8 %v1192
      %v1194 = vlaneseq
      %v1195 = vshrl.u32 %v1194, 7
      %v1196 = vsub.s32 %v1193, %v1195
      %v1197 = vrot.slane %v1189, %v1196
      %v1199 = vunpack.c.l.s4 1983009808
      %v1200 = vunpack.c.0.s8 %v1199
      %v1201 = vlaneseq
      %v1202 = vshrl.u32 %v1201, 7
      %v1203 = vsub.s32 %v1200, %v1202
      %v1204 = vrot.slane %v1190, %v1203
      %v1205 = vcombine.low %v1181, %v1197
      %v1206 = vcombine.high %v1181, %v1197
      %v1208 = vunpack.c.l.s4 1934713408
      %v1209 = vunpack.c.0.s8 %v1208
      %v1210 = vlaneseq
      %v1211 = vshrl.u32 %v1210, 7
      %v1212 = vsub.s32 %v1209, %v1211
      %v1213 = vrot.slane %v1205, %v1212
      %v1215 = vunpack.c.l.s4 1934713408
      %v1216 = vunpack.c.0.s8 %v1215
      %v1217 = vlaneseq
      %v1218 = vshrl.u32 %v1217, 7
      %v1219 = vsub.s32 %v1216, %v1218
      %v1220 = vrot.slane %v1206, %v1219
      %v1221 = vcombine.low %v1188, %v1204
      %v1222 = vcombine.high %v1188, %v1204
      %v1224 = vunpack.c.l.s4 1934713408
      %v1225 = vunpack.c.0.s8 %v1224
      %v1226 = vlaneseq
      %v1227 = vshrl.u32 %v1226, 7
      %v1228 = vsub.s32 %v1225, %v1227
      %v1229 = vrot.slane %v1221, %v1228
      %v1231 = vunpack.c.l.s4 1934713408
      %v1232 = vunpack.c.0.s8 %v1231
      %v1233 = vlaneseq
      %v1234 = vshrl.u32 %v1233, 7
      %v1235 = vsub.s32 %v1232, %v1234
      %v1236 = vrot.slane %v1222, %v1235
      %v1237 = vcombine.high %v1213, 0.0
      %v1238 = vcombine.high %v1220, 0.0
      %v1239 = vcombine.high %v1229, 0.0
      %v1240 = vcombine.high %v1236, 0.0
      %v1241 = vcombine.low %v1213, %v1220
      %v1243 = vunpack.c.l.s4 1983009808
      %v1244 = vunpack.c.0.s8 %v1243
      %v1245 = vlaneseq
      %v1246 = vshrl.u32 %v1245, 7
      %v1247 = vsub.s32 %v1244, %v1246
      %v1248 = vrot.slane %v1241, %v1247
      %v1249 = vcombine.low %v1237, %v1238
      %v1251 = vunpack.c.l.s4 1983009808
      %v1252 = vunpack.c.0.s8 %v1251
      %v1253 = vlaneseq
      %v1254 = vshrl.u32 %v1253, 7
      %v1255 = vsub.s32 %v1252, %v1254
      %v1256 = vrot.slane %v1249, %v1255
      %v1257 = vcombine.low %v1229, %v1236
      %v1259 = vunpack.c.l.s4 1983009808
      %v1260 = vunpack.c.0.s8 %v1259
      %v1261 = vlaneseq
      %v1262 = vshrl.u32 %v1261, 7
      %v1263 = vsub.s32 %v1260, %v1262
      %v1264 = vrot.slane %v1257, %v1263
      %v1265 = vcombine.low %v1239, %v1240
      %v1267 = vunpack.c.l.s4 1983009808
      %v1268 = vunpack.c.0.s8 %v1267
      %v1269 = vlaneseq
      %v1270 = vshrl.u32 %v1269, 7
      %v1271 = vsub.s32 %v1268, %v1270
      %v1272 = vrot.slane %v1265, %v1271
      %v1273 = vcombine.low %v1248, %v1256
      %v1274 = vcombine.high %v1248, %v1256
      %v1276 = vunpack.c.l.s4 1934713408
      %v1277 = vunpack.c.0.s8 %v1276
      %v1278 = vlaneseq
      %v1279 = vshrl.u32 %v1278, 7
      %v1280 = vsub.s32 %v1277, %v1279
      %v1281 = vrot.slane %v1273, %v1280
      %v1283 = vunpack.c.l.s4 1934713408
      %v1284 = vunpack.c.0.s8 %v1283
      %v1285 = vlaneseq
      %v1286 = vshrl.u32 %v1285, 7
      %v1287 = vsub.s32 %v1284, %v1286
      %v1288 = vrot.slane %v1274, %v1287
      %v1289 = vcombine.low %v1264, %v1272
      %v1290 = vcombine.high %v1264, %v1272
      %v1292 = vunpack.c.l.s4 1934713408
      %v1293 = vunpack.c.0.s8 %v1292
      %v1294 = vlaneseq
      %v1295 = vshrl.u32 %v1294, 7
      %v1296 = vsub.s32 %v1293, %v1295
      %v1297 = vrot.slane %v1289, %v1296
      %v1299 = vunpack.c.l.s4 1934713408
      %v1300 = vunpack.c.0.s8 %v1299
      %v1301 = vlaneseq
      %v1302 = vshrl.u32 %v1301, 7
      %v1303 = vsub.s32 %v1300, %v1302
      %v1304 = vrot.slane %v1290, %v1303
      %v1305 = vcombine.low %v1281, %v1297
      %v1306 = vcombine.high %v1281, %v1297
      %v1307 = vcombine.low %v1288, %v1304
      %v1308 = vcombine.high %v1288, %v1304
      %v1309 = vpack.c.bf16 %v1305, %v1305
      %v1310 = vpack.c.bf16 %v1306, %v1306
      %v1311 = vpack.c.bf16 %v1307, %v1307
      %v1312 = vpack.c.bf16 %v1308, %v1308
      %v1314 = vlaneseq
      %v1315 = vshrl.u32 %v1314, 7
      %v1316 = vsub.s32 0, %v1315
      %v1317 = vrot.slane %v663, %v1316
      %vm1319 = vcmask 64512
      %v1321 = vsel %vm1319, %v1009, 0
      %v1324 = vsel %vm1319, %v1159, 0
      %1326 = vmatprep.subr.bf16.mxu0 0
      %1327 = vmatpush1.bf16.xpose.msra.mxu0 %v1324
      %1328 = vmatprep.subr.bf16.mxu0 0
      %1329 = vmatpush1.bf16.xpose.msra.mxu0 0
      %1330 = vmatprep.subr.bf16.mxu0 0
      %1331 = vmatpush1.bf16.xpose.msra.mxu0 0
      %1332 = vmatprep.subr.bf16.mxu0 0
      %1333 = vmatpush1.bf16.xpose.msra.mxu0 0
      %1334 = vmatprep.subr.bf16.mxu0 0
      %1335 = vmatpush1.bf16.xpose.msra.mxu0 0
      %1336 = vmatprep.subr.bf16.mxu0 0
      %1337 = vmatpush1.bf16.xpose.msra.mxu0 0
      %1338 = vmatprep.subr.bf16.mxu0 0
      %1339 = vmatpush1.bf16.xpose.msra.mxu0 0
      %1340 = vmatprep.subr.bf16.mxu0 0
      %1341 = vmatpush1.bf16.xpose.msra.mxu0 0
      %1342 = vmatprep.subr.bf16.mxu0 0
      %1343 = vmatpush1.bf16.xpose.msra.mxu0 0
      %1344 = vmatprep.subr.bf16.mxu0 0
      %1345 = vmatpush1.bf16.xpose.msra.mxu0 0
      %1346 = vmatprep.subr.bf16.mxu0 0
      %1347 = vmatpush1.bf16.xpose.msra.mxu0 0
      %1348 = vmatprep.subr.bf16.mxu0 0
      %1349 = vmatpush1.bf16.xpose.msra.mxu0 0
      %1350 = vmatprep.subr.bf16.mxu0 0
      %1351 = vmatpush1.bf16.xpose.msra.mxu0 0
      %1352 = vmatprep.subr.bf16.mxu0 0
      %1353 = vmatpush1.bf16.xpose.msra.mxu0 0
      %1354 = vmatprep.subr.bf16.mxu0 0
      %1355 = vmatpush1.bf16.xpose.msra.mxu0 0
      %1356 = vmatprep.subr.bf16.mxu0 0
      %1357 = vmatpush1.bf16.xpose.msra.mxu0 0
      %1358 = vmatprep.mubr.bf16.mxu0 0
      %1359 = vmatmul.mubr.bf16.gmra.mrb[0].mxu0 %v1321
      %v1360 = vpop.f32.mrb[0].mxu0
      %v1361 = vadd.f32 %v1317, %v1360
      %v1362 = vpop.f32.mrb[0].mxu0
      %v1363 = vpop.f32.mrb[0].mxu0
      %v1364 = vpop.f32.mrb[0].mxu0
      %1365 = vdwg.mxu0
      %v1367 = vsel %vm1319, %v1010, 0
      %v1370 = vsel %vm1319, %v1160, 0
      %1372 = vmatprep.subr.bf16.mxu0 0
      %1373 = vmatpush1.bf16.xpose.msra.mxu0 %v1370
      %1374 = vmatprep.subr.bf16.mxu0 0
      %1375 = vmatpush1.bf16.xpose.msra.mxu0 0
      %1376 = vmatprep.subr.bf16.mxu0 0
      %1377 = vmatpush1.bf16.xpose.msra.mxu0 0
      %1378 = vmatprep.subr.bf16.mxu0 0
      %1379 = vmatpush1.bf16.xpose.msra.mxu0 0
      %1380 = vmatprep.subr.bf16.mxu0 0
      %1381 = vmatpush1.bf16.xpose.msra.mxu0 0
      %1382 = vmatprep.subr.bf16.mxu0 0
      %1383 = vmatpush1.bf16.xpose.msra.mxu0 0
      %1384 = vmatprep.subr.bf16.mxu0 0
      %1385 = vmatpush1.bf16.xpose.msra.mxu0 0
      %1386 = vmatprep.subr.bf16.mxu0 0
      %1387 = vmatpush1.bf16.xpose.msra.mxu0 0
      %1388 = vmatprep.subr.bf16.mxu0 0
      %1389 = vmatpush1.bf16.xpose.msra.mxu0 0
      %1390 = vmatprep.subr.bf16.mxu0 0
      %1391 = vmatpush1.bf16.xpose.msra.mxu0 0
      %1392 = vmatprep.subr.bf16.mxu0 0
      %1393 = vmatpush1.bf16.xpose.msra.mxu0 0
      %1394 = vmatprep.subr.bf16.mxu0 0
      %1395 = vmatpush1.bf16.xpose.msra.mxu0 0
      %1396 = vmatprep.subr.bf16.mxu0 0
      %1397 = vmatpush1.bf16.xpose.msra.mxu0 0
      %1398 = vmatprep.subr.bf16.mxu0 0
      %1399 = vmatpush1.bf16.xpose.msra.mxu0 0
      %1400 = vmatprep.subr.bf16.mxu0 0
      %1401 = vmatpush1.bf16.xpose.msra.mxu0 0
      %1402 = vmatprep.subr.bf16.mxu0 0
      %1403 = vmatpush1.bf16.xpose.msra.mxu0 0
      %1404 = vmatprep.mubr.bf16.mxu0 0
      %1405 = vmatmul.mubr.bf16.gmra.mrb[0].mxu0 %v1367
      %v1406 = vpop.f32.mrb[0].mxu0
      %v1407 = vadd.f32 %v1317, %v1406
      %v1408 = vpop.f32.mrb[0].mxu0
      %v1409 = vpop.f32.mrb[0].mxu0
      %v1410 = vpop.f32.mrb[0].mxu0
      %1411 = vdwg.mxu0
      %v1413 = vsel %vm1319, %v1011, 0
      %v1416 = vsel %vm1319, %v1161, 0
      %1418 = vmatprep.subr.bf16.mxu0 0
      %1419 = vmatpush1.bf16.xpose.msra.mxu0 %v1416
      %1420 = vmatprep.subr.bf16.mxu0 0
      %1421 = vmatpush1.bf16.xpose.msra.mxu0 0
      %1422 = vmatprep.subr.bf16.mxu0 0
      %1423 = vmatpush1.bf16.xpose.msra.mxu0 0
      %1424 = vmatprep.subr.bf16.mxu0 0
      %1425 = vmatpush1.bf16.xpose.msra.mxu0 0
      %1426 = vmatprep.subr.bf16.mxu0 0
      %1427 = vmatpush1.bf16.xpose.msra.mxu0 0
      %1428 = vmatprep.subr.bf16.mxu0 0
      %1429 = vmatpush1.bf16.xpose.msra.mxu0 0
      %1430 = vmatprep.subr.bf16.mxu0 0
      %1431 = vmatpush1.bf16.xpose.msra.mxu0 0
      %1432 = vmatprep.subr.bf16.mxu0 0
      %1433 = vmatpush1.bf16.xpose.msra.mxu0 0
      %1434 = vmatprep.subr.bf16.mxu0 0
      %1435 = vmatpush1.bf16.xpose.msra.mxu0 0
      %1436 = vmatprep.subr.bf16.mxu0 0
      %1437 = vmatpush1.bf16.xpose.msra.mxu0 0
      %1438 = vmatprep.subr.bf16.mxu0 0
      %1439 = vmatpush1.bf16.xpose.msra.mxu0 0
      %1440 = vmatprep.subr.bf16.mxu0 0
      %1441 = vmatpush1.bf16.xpose.msra.mxu0 0
      %1442 = vmatprep.subr.bf16.mxu0 0
      %1443 = vmatpush1.bf16.xpose.msra.mxu0 0
      %1444 = vmatprep.subr.bf16.mxu0 0
      %1445 = vmatpush1.bf16.xpose.msra.mxu0 0
      %1446 = vmatprep.subr.bf16.mxu0 0
      %1447 = vmatpush1.bf16.xpose.msra.mxu0 0
      %1448 = vmatprep.subr.bf16.mxu0 0
      %1449 = vmatpush1.bf16.xpose.msra.mxu0 0
      %1450 = vmatprep.mubr.bf16.mxu0 0
      %1451 = vmatmul.mubr.bf16.gmra.mrb[0].mxu0 %v1413
      %v1452 = vpop.f32.mrb[0].mxu0
      %v1453 = vadd.f32 %v1317, %v1452
      %v1454 = vpop.f32.mrb[0].mxu0
      %v1455 = vpop.f32.mrb[0].mxu0
      %v1456 = vpop.f32.mrb[0].mxu0
      %1457 = vdwg.mxu0
      %v1459 = vsel %vm1319, %v1012, 0
      %v1462 = vsel %vm1319, %v1162, 0
      %1464 = vmatprep.subr.bf16.mxu0 0
      %1465 = vmatpush1.bf16.xpose.msra.mxu0 %v1462
      %1466 = vmatprep.subr.bf16.mxu0 0
      %1467 = vmatpush1.bf16.xpose.msra.mxu0 0
      %1468 = vmatprep.subr.bf16.mxu0 0
      %1469 = vmatpush1.bf16.xpose.msra.mxu0 0
      %1470 = vmatprep.subr.bf16.mxu0 0
      %1471 = vmatpush1.bf16.xpose.msra.mxu0 0
      %1472 = vmatprep.subr.bf16.mxu0 0
      %1473 = vmatpush1.bf16.xpose.msra.mxu0 0
      %1474 = vmatprep.subr.bf16.mxu0 0
      %1475 = vmatpush1.bf16.xpose.msra.mxu0 0
      %1476 = vmatprep.subr.bf16.mxu0 0
      %1477 = vmatpush1.bf16.xpose.msra.mxu0 0
      %1478 = vmatprep.subr.bf16.mxu0 0
      %1479 = vmatpush1.bf16.xpose.msra.mxu0 0
      %1480 = vmatprep.subr.bf16.mxu0 0
      %1481 = vmatpush1.bf16.xpose.msra.mxu0 0
      %1482 = vmatprep.subr.bf16.mxu0 0
      %1483 = vmatpush1.bf16.xpose.msra.mxu0 0
      %1484 = vmatprep.subr.bf16.mxu0 0
      %1485 = vmatpush1.bf16.xpose.msra.mxu0 0
      %1486 = vmatprep.subr.bf16.mxu0 0
      %1487 = vmatpush1.bf16.xpose.msra.mxu0 0
      %1488 = vmatprep.subr.bf16.mxu0 0
      %1489 = vmatpush1.bf16.xpose.msra.mxu0 0
      %1490 = vmatprep.subr.bf16.mxu0 0
      %1491 = vmatpush1.bf16.xpose.msra.mxu0 0
      %1492 = vmatprep.subr.bf16.mxu0 0
      %1493 = vmatpush1.bf16.xpose.msra.mxu0 0
      %1494 = vmatprep.subr.bf16.mxu0 0
      %1495 = vmatpush1.bf16.xpose.msra.mxu0 0
      %1496 = vmatprep.mubr.bf16.mxu0 0
      %1497 = vmatmul.mubr.bf16.gmra.mrb[0].mxu0 %v1459
      %v1498 = vpop.f32.mrb[0].mxu0
      %v1499 = vadd.f32 %v1317, %v1498
      %v1500 = vpop.f32.mrb[0].mxu0
      %v1501 = vpop.f32.mrb[0].mxu0
      %v1502 = vpop.f32.mrb[0].mxu0
      %1503 = vdwg.mxu0
      %v1504 = vsel %vm1319, %v1361, -inf
      %1505 = vmax.xlane.f32.xlu0 %v1504
      %v1506 = vpop.xlane.xlu0 %1505
      %v1507 = vsel %vm1319, %v1407, -inf
      %1508 = vmax.xlane.f32.xlu0 %v1507
      %v1509 = vpop.xlane.xlu0 %1508
      %v1510 = vsel %vm1319, %v1453, -inf
      %1511 = vmax.xlane.f32.xlu0 %v1510
      %v1512 = vpop.xlane.xlu0 %1511
      %v1513 = vsel %vm1319, %v1499, -inf
      %1514 = vmax.xlane.f32.xlu0 %v1513
      %v1515 = vpop.xlane.xlu0 %1514
      %v1516 = vsub.f32 %v1361, %v1506
      %v1517 = vsub.f32 %v1407, %v1509
      %v1518 = vsub.f32 %v1453, %v1512
      %v1519 = vsub.f32 %v1499, %v1515
      %v1520 = vmul.f32 %v1516, 1.442695
      %v1521 = vpow.pop %v1520
      %v1522 = vmul.f32 %v1517, 1.442695
      %v1523 = vpow.pop %v1522
      %v1524 = vmul.f32 %v1518, 1.442695
      %v1525 = vpow.pop %v1524
      %v1526 = vmul.f32 %v1519, 1.442695
      %v1527 = vpow.pop %v1526
      %v1528 = vsel %vm1319, %v1521, 0.0
      %1529 = vadd.xlane.f32.xlu0 %v1528
      %v1530 = vpop.xlane.xlu0 %1529
      %v1531 = vsel %vm1319, %v1523, 0.0
      %1532 = vadd.xlane.f32.xlu0 %v1531
      %v1533 = vpop.xlane.xlu0 %1532
      %v1534 = vsel %vm1319, %v1525, 0.0
      %1535 = vadd.xlane.f32.xlu0 %v1534
      %v1536 = vpop.xlane.xlu0 %1535
      %v1537 = vsel %vm1319, %v1527, 0.0
      %1538 = vadd.xlane.f32.xlu0 %v1537
      %v1539 = vpop.xlane.xlu0 %1538
      %v1540 = vrcp.pop %v1530
      %v1541 = vrcp.pop %v1533
      %v1542 = vrcp.pop %v1536
      %v1543 = vrcp.pop %v1539
      %v1544 = vmul.f32 %v1521, %v1540
      %v1545 = vmul.f32 %v1523, %v1541
      %v1546 = vmul.f32 %v1525, %v1542
      %v1547 = vmul.f32 %v1527, %v1543
      %v1548 = vpack.c.bf16 %v1544, %v1544
      %v1549 = vpack.c.bf16 %v1545, %v1545
      %v1550 = vpack.c.bf16 %v1546, %v1546
      %v1551 = vpack.c.bf16 %v1547, %v1547
      %v1553 = vsel %vm1319, %v1548, 0
      %vm1555 = vcmask 1043456
      %v1557 = vsel %vm1555, %v1309, 0
      %1559 = vmatprep.subr.bf16.mxu0 0
      %1560 = vmatpush1.bf16.msra.mxu0 %v1557
      %1561 = vmatprep.subr.bf16.mxu0 0
      %1562 = vmatpush1.bf16.msra.mxu0 0
      %1563 = vmatprep.subr.bf16.mxu0 0
      %1564 = vmatpush1.bf16.msra.mxu0 0
      %1565 = vmatprep.subr.bf16.mxu0 0
      %1566 = vmatpush1.bf16.msra.mxu0 0
      %1567 = vmatprep.subr.bf16.mxu0 0
      %1568 = vmatpush1.bf16.msra.mxu0 0
      %1569 = vmatprep.subr.bf16.mxu0 0
      %1570 = vmatpush1.bf16.msra.mxu0 0
      %1571 = vmatprep.subr.bf16.mxu0 0
      %1572 = vmatpush1.bf16.msra.mxu0 0
      %1573 = vmatprep.subr.bf16.mxu0 0
      %1574 = vmatpush1.bf16.msra.mxu0 0
      %1575 = vmatprep.subr.bf16.mxu0 0
      %1576 = vmatpush1.bf16.msra.mxu0 0
      %1577 = vmatprep.subr.bf16.mxu0 0
      %1578 = vmatpush1.bf16.msra.mxu0 0
      %1579 = vmatprep.subr.bf16.mxu0 0
      %1580 = vmatpush1.bf16.msra.mxu0 0
      %1581 = vmatprep.subr.bf16.mxu0 0
      %1582 = vmatpush1.bf16.msra.mxu0 0
      %1583 = vmatprep.subr.bf16.mxu0 0
      %1584 = vmatpush1.bf16.msra.mxu0 0
      %1585 = vmatprep.subr.bf16.mxu0 0
      %1586 = vmatpush1.bf16.msra.mxu0 0
      %1587 = vmatprep.subr.bf16.mxu0 0
      %1588 = vmatpush1.bf16.msra.mxu0 0
      %1589 = vmatprep.subr.bf16.mxu0 0
      %1590 = vmatpush1.bf16.msra.mxu0 0
      %1591 = vmatprep.mubr.bf16.mxu0 0
      %1592 = vmatmul.mubr.bf16.gmra.mrb[0].mxu0 %v1553
      %v1593 = vpop.f32.mrb[0].mxu0
      %v1594 = vadd.f32 0.0, %v1593
      %v1595 = vpop.f32.mrb[0].mxu0
      %v1596 = vpop.f32.mrb[0].mxu0
      %v1597 = vpop.f32.mrb[0].mxu0
      %1598 = vdwg.mxu0
      %v1600 = vsel %vm1319, %v1549, 0
      %v1603 = vsel %vm1555, %v1310, 0
      %1605 = vmatprep.subr.bf16.mxu0 0
      %1606 = vmatpush1.bf16.msra.mxu0 %v1603
      %1607 = vmatprep.subr.bf16.mxu0 0
      %1608 = vmatpush1.bf16.msra.mxu0 0
      %1609 = vmatprep.subr.bf16.mxu0 0
      %1610 = vmatpush1.bf16.msra.mxu0 0
      %1611 = vmatprep.subr.bf16.mxu0 0
      %1612 = vmatpush1.bf16.msra.mxu0 0
      %1613 = vmatprep.subr.bf16.mxu0 0
      %1614 = vmatpush1.bf16.msra.mxu0 0
      %1615 = vmatprep.subr.bf16.mxu0 0
      %1616 = vmatpush1.bf16.msra.mxu0 0
      %1617 = vmatprep.subr.bf16.mxu0 0
      %1618 = vmatpush1.bf16.msra.mxu0 0
      %1619 = vmatprep.subr.bf16.mxu0 0
      %1620 = vmatpush1.bf16.msra.mxu0 0
      %1621 = vmatprep.subr.bf16.mxu0 0
      %1622 = vmatpush1.bf16.msra.mxu0 0
      %1623 = vmatprep.subr.bf16.mxu0 0
      %1624 = vmatpush1.bf16.msra.mxu0 0
      %1625 = vmatprep.subr.bf16.mxu0 0
      %1626 = vmatpush1.bf16.msra.mxu0 0
      %1627 = vmatprep.subr.bf16.mxu0 0
      %1628 = vmatpush1.bf16.msra.mxu0 0
      %1629 = vmatprep.subr.bf16.mxu0 0
      %1630 = vmatpush1.bf16.msra.mxu0 0
      %1631 = vmatprep.subr.bf16.mxu0 0
      %1632 = vmatpush1.bf16.msra.mxu0 0
      %1633 = vmatprep.subr.bf16.mxu0 0
      %1634 = vmatpush1.bf16.msra.mxu0 0
      %1635 = vmatprep.subr.bf16.mxu0 0
      %1636 = vmatpush1.bf16.msra.mxu0 0
      %1637 = vmatprep.mubr.bf16.mxu0 0
      %1638 = vmatmul.mubr.bf16.gmra.mrb[0].mxu0 %v1600
      %v1639 = vpop.f32.mrb[0].mxu0
      %v1640 = vadd.f32 0.0, %v1639
      %v1641 = vpop.f32.mrb[0].mxu0
      %v1642 = vpop.f32.mrb[0].mxu0
      %v1643 = vpop.f32.mrb[0].mxu0
      %1644 = vdwg.mxu0
      %v1646 = vsel %vm1319, %v1550, 0
      %v1649 = vsel %vm1555, %v1311, 0
      %1651 = vmatprep.subr.bf16.mxu0 0
      %1652 = vmatpush1.bf16.msra.mxu0 %v1649
      %1653 = vmatprep.subr.bf16.mxu0 0
      %1654 = vmatpush1.bf16.msra.mxu0 0
      %1655 = vmatprep.subr.bf16.mxu0 0
      %1656 = vmatpush1.bf16.msra.mxu0 0
      %1657 = vmatprep.subr.bf16.mxu0 0
      %1658 = vmatpush1.bf16.msra.mxu0 0
      %1659 = vmatprep.subr.bf16.mxu0 0
      %1660 = vmatpush1.bf16.msra.mxu0 0
      %1661 = vmatprep.subr.bf16.mxu0 0
      %1662 = vmatpush1.bf16.msra.mxu0 0
      %1663 = vmatprep.subr.bf16.mxu0 0
      %1664 = vmatpush1.bf16.msra.mxu0 0
      %1665 = vmatprep.subr.bf16.mxu0 0
      %1666 = vmatpush1.bf16.msra.mxu0 0
      %1667 = vmatprep.subr.bf16.mxu0 0
      %1668 = vmatpush1.bf16.msra.mxu0 0
      %1669 = vmatprep.subr.bf16.mxu0 0
      %1670 = vmatpush1.bf16.msra.mxu0 0
      %1671 = vmatprep.subr.bf16.mxu0 0
      %1672 = vmatpush1.bf16.msra.mxu0 0
      %1673 = vmatprep.subr.bf16.mxu0 0
      %1674 = vmatpush1.bf16.msra.mxu0 0
      %1675 = vmatprep.subr.bf16.mxu0 0
      %1676 = vmatpush1.bf16.msra.mxu0 0
      %1677 = vmatprep.subr.bf16.mxu0 0
      %1678 = vmatpush1.bf16.msra.mxu0 0
      %1679 = vmatprep.subr.bf16.mxu0 0
      %1680 = vmatpush1.bf16.msra.mxu0 0
      %1681 = vmatprep.subr.bf16.mxu0 0
      %1682 = vmatpush1.bf16.msra.mxu0 0
      %1683 = vmatprep.mubr.bf16.mxu0 0
      %1684 = vmatmul.mubr.bf16.gmra.mrb[0].mxu0 %v1646
      %v1685 = vpop.f32.mrb[0].mxu0
      %v1686 = vadd.f32 0.0, %v1685
      %v1687 = vpop.f32.mrb[0].mxu0
      %v1688 = vpop.f32.mrb[0].mxu0
      %v1689 = vpop.f32.mrb[0].mxu0
      %1690 = vdwg.mxu0
      %v1692 = vsel %vm1319, %v1551, 0
      %v1695 = vsel %vm1555, %v1312, 0
      %1697 = vmatprep.subr.bf16.mxu0 0
      %1698 = vmatpush1.bf16.msra.mxu0 %v1695
      %1699 = vmatprep.subr.bf16.mxu0 0
      %1700 = vmatpush1.bf16.msra.mxu0 0
      %1701 = vmatprep.subr.bf16.mxu0 0
      %1702 = vmatpush1.bf16.msra.mxu0 0
      %1703 = vmatprep.subr.bf16.mxu0 0
      %1704 = vmatpush1.bf16.msra.mxu0 0
      %1705 = vmatprep.subr.bf16.mxu0 0
      %1706 = vmatpush1.bf16.msra.mxu0 0
      %1707 = vmatprep.subr.bf16.mxu0 0
      %1708 = vmatpush1.bf16.msra.mxu0 0
      %1709 = vmatprep.subr.bf16.mxu0 0
      %1710 = vmatpush1.bf16.msra.mxu0 0
      %1711 = vmatprep.subr.bf16.mxu0 0
      %1712 = vmatpush1.bf16.msra.mxu0 0
      %1713 = vmatprep.subr.bf16.mxu0 0
      %1714 = vmatpush1.bf16.msra.mxu0 0
      %1715 = vmatprep.subr.bf16.mxu0 0
      %1716 = vmatpush1.bf16.msra.mxu0 0
      %1717 = vmatprep.subr.bf16.mxu0 0
      %1718 = vmatpush1.bf16.msra.mxu0 0
      %1719 = vmatprep.subr.bf16.mxu0 0
      %1720 = vmatpush1.bf16.msra.mxu0 0
      %1721 = vmatprep.subr.bf16.mxu0 0
      %1722 = vmatpush1.bf16.msra.mxu0 0
      %1723 = vmatprep.subr.bf16.mxu0 0
      %1724 = vmatpush1.bf16.msra.mxu0 0
      %1725 = vmatprep.subr.bf16.mxu0 0
      %1726 = vmatpush1.bf16.msra.mxu0 0
      %1727 = vmatprep.subr.bf16.mxu0 0
      %1728 = vmatpush1.bf16.msra.mxu0 0
      %1729 = vmatprep.mubr.bf16.mxu0 0
      %1730 = vmatmul.mubr.bf16.gmra.mrb[0].mxu0 %v1692
      %v1731 = vpop.f32.mrb[0].mxu0
      %v1732 = vadd.f32 0.0, %v1731
      %v1733 = vpop.f32.mrb[0].mxu0
      %v1734 = vpop.f32.mrb[0].mxu0
      %v1735 = vpop.f32.mrb[0].mxu0
      %1736 = vdwg.mxu0
      %v1737 = vcombine.low %v1594, %v1686
      %v1738 = vcombine.high %v1594, %v1686
      %v1740 = vunpack.c.l.s4 1983009808
      %v1741 = vunpack.c.0.s8 %v1740
      %v1742 = vlaneseq
      %v1743 = vshrl.u32 %v1742, 7
      %v1744 = vsub.s32 %v1741, %v1743
      %v1745 = vrot.slane %v1737, %v1744
      %v1747 = vunpack.c.l.s4 1983009808
      %v1748 = vunpack.c.0.s8 %v1747
      %v1749 = vlaneseq
      %v1750 = vshrl.u32 %v1749, 7
      %v1751 = vsub.s32 %v1748, %v1750
      %v1752 = vrot.slane %v1738, %v1751
      %v1753 = vcombine.low %v1640, %v1732
      %v1754 = vcombine.high %v1640, %v1732
      %v1756 = vunpack.c.l.s4 1983009808
      %v1757 = vunpack.c.0.s8 %v1756
      %v1758 = vlaneseq
      %v1759 = vshrl.u32 %v1758, 7
      %v1760 = vsub.s32 %v1757, %v1759
      %v1761 = vrot.slane %v1753, %v1760
      %v1763 = vunpack.c.l.s4 1983009808
      %v1764 = vunpack.c.0.s8 %v1763
      %v1765 = vlaneseq
      %v1766 = vshrl.u32 %v1765, 7
      %v1767 = vsub.s32 %v1764, %v1766
      %v1768 = vrot.slane %v1754, %v1767
      %v1769 = vcombine.low %v1745, %v1761
      %v1770 = vcombine.high %v1745, %v1761
      %v1772 = vunpack.c.l.s4 1934713408
      %v1773 = vunpack.c.0.s8 %v1772
      %v1774 = vlaneseq
      %v1775 = vshrl.u32 %v1774, 7
      %v1776 = vsub.s32 %v1773, %v1775
      %v1777 = vrot.slane %v1769, %v1776
      %v1779 = vunpack.c.l.s4 1934713408
      %v1780 = vunpack.c.0.s8 %v1779
      %v1781 = vlaneseq
      %v1782 = vshrl.u32 %v1781, 7
      %v1783 = vsub.s32 %v1780, %v1782
      %v1784 = vrot.slane %v1770, %v1783
      %v1785 = vcombine.low %v1752, %v1768
      %v1786 = vcombine.high %v1752, %v1768
      %v1788 = vunpack.c.l.s4 1934713408
      %v1789 = vunpack.c.0.s8 %v1788
      %v1790 = vlaneseq
      %v1791 = vshrl.u32 %v1790, 7
      %v1792 = vsub.s32 %v1789, %v1791
      %v1793 = vrot.slane %v1785, %v1792
      %v1795 = vunpack.c.l.s4 1934713408
      %v1796 = vunpack.c.0.s8 %v1795
      %v1797 = vlaneseq
      %v1798 = vshrl.u32 %v1797, 7
      %v1799 = vsub.s32 %v1796, %v1798
      %v1800 = vrot.slane %v1786, %v1799
      %v1801 = vcombine.high %v1777, 0.0
      %v1802 = vcombine.high %v1784, 0.0
      %v1803 = vcombine.high %v1793, 0.0
      %v1804 = vcombine.high %v1800, 0.0
      %v1805 = vcombine.low %v1777, %v1784
      %v1807 = vunpack.c.l.s4 1983009808
      %v1808 = vunpack.c.0.s8 %v1807
      %v1809 = vlaneseq
      %v1810 = vshrl.u32 %v1809, 7
      %v1811 = vsub.s32 %v1808, %v1810
      %v1812 = vrot.slane %v1805, %v1811
      %v1813 = vcombine.low %v1801, %v1802
      %v1815 = vunpack.c.l.s4 1983009808
      %v1816 = vunpack.c.0.s8 %v1815
      %v1817 = vlaneseq
      %v1818 = vshrl.u32 %v1817, 7
      %v1819 = vsub.s32 %v1816, %v1818
      %v1820 = vrot.slane %v1813, %v1819
      %v1821 = vcombine.low %v1793, %v1800
      %v1823 = vunpack.c.l.s4 1983009808
      %v1824 = vunpack.c.0.s8 %v1823
      %v1825 = vlaneseq
      %v1826 = vshrl.u32 %v1825, 7
      %v1827 = vsub.s32 %v1824, %v1826
      %v1828 = vrot.slane %v1821, %v1827
      %v1829 = vcombine.low %v1803, %v1804
      %v1831 = vunpack.c.l.s4 1983009808
      %v1832 = vunpack.c.0.s8 %v1831
      %v1833 = vlaneseq
      %v1834 = vshrl.u32 %v1833, 7
      %v1835 = vsub.s32 %v1832, %v1834
      %v1836 = vrot.slane %v1829, %v1835
      %v1837 = vcombine.low %v1812, %v1820
      %v1838 = vcombine.high %v1812, %v1820
      %v1840 = vunpack.c.l.s4 1934713408
      %v1841 = vunpack.c.0.s8 %v1840
      %v1842 = vlaneseq
      %v1843 = vshrl.u32 %v1842, 7
      %v1844 = vsub.s32 %v1841, %v1843
      %v1845 = vrot.slane %v1837, %v1844
      %v1847 = vunpack.c.l.s4 1934713408
      %v1848 = vunpack.c.0.s8 %v1847
      %v1849 = vlaneseq
      %v1850 = vshrl.u32 %v1849, 7
      %v1851 = vsub.s32 %v1848, %v1850
      %v1852 = vrot.slane %v1838, %v1851
      %v1853 = vcombine.low %v1828, %v1836
      %v1854 = vcombine.high %v1828, %v1836
      %v1856 = vunpack.c.l.s4 1934713408
      %v1857 = vunpack.c.0.s8 %v1856
      %v1858 = vlaneseq
      %v1859 = vshrl.u32 %v1858, 7
      %v1860 = vsub.s32 %v1857, %v1859
      %v1861 = vrot.slane %v1853, %v1860
      %v1863 = vunpack.c.l.s4 1934713408
      %v1864 = vunpack.c.0.s8 %v1863
      %v1865 = vlaneseq
      %v1866 = vshrl.u32 %v1865, 7
      %v1867 = vsub.s32 %v1864, %v1866
      %v1868 = vrot.slane %v1854, %v1867
      %v1869 = vcombine.low %v1845, %v1861
      %v1870 = vcombine.high %v1845, %v1861
      %v1871 = vcombine.low %v1852, %v1868
      %v1872 = vcombine.high %v1852, %v1868
      %1874 = vrot.lane.b32.xlu0 %v1870, 8
      %v1875 = vpop.permute.xlu0 %1874
      %1878 = vrot.lane.b32.xlu0 %v1871, 16
      %v1879 = vpop.permute.xlu0 %1878
      %1882 = vrot.lane.b32.xlu0 %v1872, 24
      %v1883 = vpop.permute.xlu0 %1882
      %v1885 = vsel %vm1319, %v1869, %v1875
      %vm1886 = vcmask 130048
      %v1887 = vsel %vm1886, %v1885, %v1879
      %vm1888 = vcmask 195584
      %v1889 = vsel %vm1888, %v1887, %v1883
      %v1890 = vpack.c.bf16 %v1889, %v1889
      %v1891 = vld [vmem:[%s9] sm:$0xf]
      %v1892 = vld [vmem:[%s9 + $0x4] sm:$0xf]
      %v1893 = vld [vmem:[%s9 + $0x8] sm:$0xf]
      %v1894 = vld [vmem:[%s9 + $0xc] sm:$0xf]
      %v1895 = vld [vmem:[%s10] sm:$0x1]
      %v1897 = vlaneseq
      %v1898 = vshrl.u32 %v1897, 7
      %v1899 = vsub.s32 0, %v1898
      %v1900 = vrot.slane %v1895, %v1899
      %v1906 = vunpack.c.l.b16 %v1891
      %v1907 = vunpack.c.l.b16 %v1892
      %v1908 = vunpack.c.l.b16 %v1893
      %v1909 = vunpack.c.l.b16 %v1894
      %v1910 = vpack.c.b16 %v1907, %v1906
      %v1911 = vpack.c.b16 %v1909, %v1908
      %v1915 = vsel %vm689, %v1890, 0
      %1917 = vmatprep.subr.bf16.mxu0 0
      %1918 = vmatpush1.bf16.msra.mxu0 %v1910
      %1919 = vmatprep.subr.bf16.mxu0 0
      %1920 = vmatpush1.bf16.msra.mxu0 %v1911
      %1921 = vmatprep.subr.bf16.mxu0 0
      %1922 = vmatpush1.bf16.msra.mxu0 0
      %1923 = vmatprep.subr.bf16.mxu0 0
      %1924 = vmatpush1.bf16.msra.mxu0 0
      %1925 = vmatprep.subr.bf16.mxu0 0
      %1926 = vmatpush1.bf16.msra.mxu0 0
      %1927 = vmatprep.subr.bf16.mxu0 0
      %1928 = vmatpush1.bf16.msra.mxu0 0
      %1929 = vmatprep.subr.bf16.mxu0 0
      %1930 = vmatpush1.bf16.msra.mxu0 0
      %1931 = vmatprep.subr.bf16.mxu0 0
      %1932 = vmatpush1.bf16.msra.mxu0 0
      %1933 = vmatprep.subr.bf16.mxu0 0
      %1934 = vmatpush1.bf16.msra.mxu0 0
      %1935 = vmatprep.subr.bf16.mxu0 0
      %1936 = vmatpush1.bf16.msra.mxu0 0
      %1937 = vmatprep.subr.bf16.mxu0 0
      %1938 = vmatpush1.bf16.msra.mxu0 0
      %1939 = vmatprep.subr.bf16.mxu0 0
      %1940 = vmatpush1.bf16.msra.mxu0 0
      %1941 = vmatprep.subr.bf16.mxu0 0
      %1942 = vmatpush1.bf16.msra.mxu0 0
      %1943 = vmatprep.subr.bf16.mxu0 0
      %1944 = vmatpush1.bf16.msra.mxu0 0
      %1945 = vmatprep.subr.bf16.mxu0 0
      %1946 = vmatpush1.bf16.msra.mxu0 0
      %1947 = vmatprep.subr.bf16.mxu0 0
      %1948 = vmatpush1.bf16.msra.mxu0 0
      %1949 = vmatprep.mubr.bf16.mxu0 0
      %1950 = vmatmul.mubr.bf16.gmra.mrb[0].mxu0 %v1915
      %v1951 = vpop.f32.mrb[0].mxu0
      %v1952 = vadd.f32 %v1900, %v1951
      %v1953 = vpop.f32.mrb[0].mxu0
      %v1954 = vpop.f32.mrb[0].mxu0
      %v1955 = vpop.f32.mrb[0].mxu0
      %1956 = vdwg.mxu0
      %v1957 = vadd.f32 %v661, %v1952
      %v1958 = vld [vmem:[%s11] sm:$0x1]
      %v1959 = vld [vmem:[%s12] sm:$0x1]
      %v1960 = vsel %vm689, %v1957, 0.0
      %1961 = vadd.xlane.f32.xlu0 %v1960
      %v1962 = vpop.xlane.xlu0 %1961
      %v1963 = vrcp.pop 32.0
      %v1964 = vmul.f32 %v1962, %v1963
      %v1965 = vsub.f32 %v1957, %v1964
      %v1966 = vmul.f32 %v1965, %v1965
      %v1967 = vsel %vm689, %v1966, 0.0
      %1968 = vadd.xlane.f32.xlu0 %v1967
      %v1969 = vpop.xlane.xlu0 %1968
      %v1970 = vmul.f32 %v1969, %v1963
      %v1971 = vadd.f32 %v1970, 1e-12
      %v1972 = vrsqrt.pop %v1971
      %v1973 = vmul.f32 %v1965, %v1972
      %v1975 = vlaneseq
      %v1976 = vshrl.u32 %v1975, 7
      %v1977 = vsub.s32 0, %v1976
      %v1978 = vrot.slane %v1958, %v1977
      %v1980 = vmul.f32 %v1973, %v1978
      %v1982 = vlaneseq
      %v1983 = vshrl.u32 %v1982, 7
      %v1984 = vsub.s32 0, %v1983
      %v1985 = vrot.slane %v1959, %v1984
      %v1987 = vadd.f32 %v1980, %v1985
      %v1988 = vpack.c.bf16 %v1987, %v1987
      %v1989 = vld [vmem:[%s13] sm:$0xf]
      %v1990 = vld [vmem:[%s13 + $0x4] sm:$0xf]
      %v1991 = vld [vmem:[%s13 + $0x8] sm:$0xf]
      %v1992 = vld [vmem:[%s13 + $0xc] sm:$0xf]
      %v1993 = vld [vmem:[%s14] sm:$0x1]
      %v1995 = vlaneseq
      %v1996 = vshrl.u32 %v1995, 7
      %v1997 = vsub.s32 0, %v1996
      %v1998 = vrot.slane %v1993, %v1997
      %v2004 = vunpack.c.l.b16 %v1989
      %v2005 = vunpack.c.l.b16 %v1990
      %v2006 = vunpack.c.l.b16 %v1991
      %v2007 = vunpack.c.l.b16 %v1992
      %v2008 = vpack.c.b16 %v2005, %v2004
      %v2009 = vpack.c.b16 %v2007, %v2006
      %v2013 = vsel %vm689, %v1988, 0
      %2015 = vmatprep.subr.bf16.mxu0 0
      %2016 = vmatpush1.bf16.msra.mxu0 %v2008
      %2017 = vmatprep.subr.bf16.mxu0 0
      %2018 = vmatpush1.bf16.msra.mxu0 %v2009
      %2019 = vmatprep.subr.bf16.mxu0 0
      %2020 = vmatpush1.bf16.msra.mxu0 0
      %2021 = vmatprep.subr.bf16.mxu0 0
      %2022 = vmatpush1.bf16.msra.mxu0 0
      %2023 = vmatprep.subr.bf16.mxu0 0
      %2024 = vmatpush1.bf16.msra.mxu0 0
      %2025 = vmatprep.subr.bf16.mxu0 0
      %2026 = vmatpush1.bf16.msra.mxu0 0
      %2027 = vmatprep.subr.bf16.mxu0 0
      %2028 = vmatpush1.bf16.msra.mxu0 0
      %2029 = vmatprep.subr.bf16.mxu0 0
      %2030 = vmatpush1.bf16.msra.mxu0 0
      %2031 = vmatprep.subr.bf16.mxu0 0
      %2032 = vmatpush1.bf16.msra.mxu0 0
      %2033 = vmatprep.subr.bf16.mxu0 0
      %2034 = vmatpush1.bf16.msra.mxu0 0
      %2035 = vmatprep.subr.bf16.mxu0 0
      %2036 = vmatpush1.bf16.msra.mxu0 0
      %2037 = vmatprep.subr.bf16.mxu0 0
      %2038 = vmatpush1.bf16.msra.mxu0 0
      %2039 = vmatprep.subr.bf16.mxu0 0
      %2040 = vmatpush1.bf16.msra.mxu0 0
      %2041 = vmatprep.subr.bf16.mxu0 0
      %2042 = vmatpush1.bf16.msra.mxu0 0
      %2043 = vmatprep.subr.bf16.mxu0 0
      %2044 = vmatpush1.bf16.msra.mxu0 0
      %2045 = vmatprep.subr.bf16.mxu0 0
      %2046 = vmatpush1.bf16.msra.mxu0 0
      %2047 = vmatprep.mubr.bf16.mxu0 0
      %2048 = vmatmul.mubr.bf16.gmra.mrb[0].mxu0 %v2013
      %v2049 = vpop.f32.mrb[0].mxu0
      %v2050 = vadd.f32 %v1998, %v2049
      %v2051 = vpop.f32.mrb[0].mxu0
      %v2052 = vpop.f32.mrb[0].mxu0
      %v2053 = vpop.f32.mrb[0].mxu0
      %2054 = vdwg.mxu0
      %v2055 = vmul.f32 %v2050, 0.5
      %v2056 = vmul.f32 %v2050, 0.044715
      %v2057 = vmul.f32 %v2056, %v2050
      %v2058 = vmul.f32 %v2057, %v2050
      %v2059 = vadd.f32 %v2050, %v2058
      %v2060 = vmul.f32 %v2059, 0.7978846
      %v2061 = vtanh.pop %v2060
      %v2062 = vadd.f32 %v2061, 1.0
      %v2063 = vmul.f32 %v2055, %v2062
      %v2064 = vpack.c.bf16 %v2063, %v2063
      %v2065 = vld [vmem:[%s15] sm:$0xf]
      %v2066 = vld [vmem:[%s15 + $0x4] sm:$0xf]
      %v2067 = vld [vmem:[%s15 + $0x8] sm:$0xf]
      %v2068 = vld [vmem:[%s15 + $0xc] sm:$0xf]
      %v2069 = vld [vmem:[%s15 + $0x10] sm:$0xf]
      %v2070 = vld [vmem:[%s15 + $0x14] sm:$0xf]
      %v2071 = vld [vmem:[%s15 + $0x18] sm:$0xf]
      %v2072 = vld [vmem:[%s15 + $0x1c] sm:$0xf]
      %v2073 = vld [vmem:[%s16] sm:$0x1]
      %v2075 = vlaneseq
      %v2076 = vshrl.u32 %v2075, 7
      %v2077 = vsub.s32 0, %v2076
      %v2078 = vrot.slane %v2073, %v2077
      %v2088 = vunpack.c.l.b16 %v2065
      %v2089 = vunpack.c.l.b16 %v2066
      %v2090 = vunpack.c.l.b16 %v2067
      %v2091 = vunpack.c.l.b16 %v2068
      %v2092 = vunpack.c.l.b16 %v2069
      %v2093 = vunpack.c.l.b16 %v2070
      %v2094 = vunpack.c.l.b16 %v2071
      %v2095 = vunpack.c.l.b16 %v2072
      %v2096 = vpack.c.b16 %v2089, %v2088
      %v2097 = vpack.c.b16 %v2091, %v2090
      %v2098 = vpack.c.b16 %v2093, %v2092
      %v2099 = vpack.c.b16 %v2095, %v2094
      %vm2104 = vcmask 523264
      %v2106 = vsel %vm2104, %v2064, 0
      %2108 = vmatprep.subr.bf16.mxu0 0
      %2109 = vmatpush1.bf16.msra.mxu0 %v2096
      %2110 = vmatprep.subr.bf16.mxu0 0
      %2111 = vmatpush1.bf16.msra.mxu0 %v2097
      %2112 = vmatprep.subr.bf16.mxu0 0
      %2113 = vmatpush1.bf16.msra.mxu0 %v2098
      %2114 = vmatprep.subr.bf16.mxu0 0
      %2115 = vmatpush1.bf16.msra.mxu0 %v2099
      %2116 = vmatprep.subr.bf16.mxu0 0
      %2117 = vmatpush1.bf16.msra.mxu0 0
      %2118 = vmatprep.subr.bf16.mxu0 0
      %2119 = vmatpush1.bf16.msra.mxu0 0
      %2120 = vmatprep.subr.bf16.mxu0 0
      %2121 = vmatpush1.bf16.msra.mxu0 0
      %2122 = vmatprep.subr.bf16.mxu0 0
      %2123 = vmatpush1.bf16.msra.mxu0 0
      %2124 = vmatprep.subr.bf16.mxu0 0
      %2125 = vmatpush1.bf16.msra.mxu0 0
      %2126 = vmatprep.subr.bf16.mxu0 0
      %2127 = vmatpush1.bf16.msra.mxu0 0
      %2128 = vmatprep.subr.bf16.mxu0 0
      %2129 = vmatpush1.bf16.msra.mxu0 0
      %2130 = vmatprep.subr.bf16.mxu0 0
      %2131 = vmatpush1.bf16.msra.mxu0 0
      %2132 = vmatprep.subr.bf16.mxu0 0
      %2133 = vmatpush1.bf16.msra.mxu0 0
      %2134 = vmatprep.subr.bf16.mxu0 0
      %2135 = vmatpush1.bf16.msra.mxu0 0
      %2136 = vmatprep.subr.bf16.mxu0 0
      %2137 = vmatpush1.bf16.msra.mxu0 0
      %2138 = vmatprep.subr.bf16.mxu0 0
      %2139 = vmatpush1.bf16.msra.mxu0 0
      %2140 = vmatprep.mubr.bf16.mxu0 0
      %2141 = vmatmul.mubr.bf16.gmra.mrb[0].mxu0 %v2106
      %v2142 = vpop.f32.mrb[0].mxu0
      %v2143 = vadd.f32 %v2078, %v2142
      %v2144 = vpop.f32.mrb[0].mxu0
      %v2145 = vpop.f32.mrb[0].mxu0
      %v2146 = vpop.f32.mrb[0].mxu0
      %2147 = vdwg.mxu0
      %v2148 = vadd.f32 %v1987, %v2143
      %v2149 = vld [vmem:[%s17] sm:$0x1]
      %v2150 = vld [vmem:[%s18] sm:$0x1]
      %v2151 = vsel %vm689, %v2148, 0.0
      %2152 = vadd.xlane.f32.xlu0 %v2151
      %v2153 = vpop.xlane.xlu0 %2152
      %v2154 = vmul.f32 %v2153, %v1963
      %v2155 = vsub.f32 %v2148, %v2154
      %v2156 = vmul.f32 %v2155, %v2155
      %v2157 = vsel %vm689, %v2156, 0.0
      %2158 = vadd.xlane.f32.xlu0 %v2157
      %v2159 = vpop.xlane.xlu0 %2158
      %v2160 = vmul.f32 %v2159, %v1963
      %v2161 = vadd.f32 %v2160, 1e-12
      %v2162 = vrsqrt.pop %v2161
      %v2163 = vmul.f32 %v2155, %v2162
      %v2165 = vlaneseq
      %v2166 = vshrl.u32 %v2165, 7
      %v2167 = vsub.s32 0, %v2166
      %v2168 = vrot.slane %v2149, %v2167
      %v2170 = vmul.f32 %v2163, %v2168
      %v2172 = vlaneseq
      %v2173 = vshrl.u32 %v2172, 7
      %v2174 = vsub.s32 0, %v2173
      %v2175 = vrot.slane %v2150, %v2174
      %v2177 = vadd.f32 %v2170, %v2175
      %2178 = vst.msk [vmem:[%s659] sm:$0xff] %vm689, %v2177
      %p2179 = scmp.lt.s32.totalorder %s34, 1
      %s2180 = scalar_select %p2179, %s34, 1
      %p2181 = scmp.lt.s32.totalorder %s35, 0
      %s2182 = scalar_select %p2181, %s35, 0
      %s2183 = sadd.s32 %s2182, %s2180
      %s2184 = smul.addr %s2183, 8
      %s2185 = scalar_lea.vmem %s19, %s2184
      // Predicated region
      $region97: #{_lambda_.7} parent=95 // pred_check
        %p2186 = pneg %p478
      $region98: #{_lambda_.7} parent=95 // pred_check_branch
        %2188 = sbr.rel (%p2186) target = $region100
      $region99: #{_lambda_.7} parent=95 // pred_region
        _
      $region100: #{_lambda_.7} parent=95 // pred_fallthru
        _
    $region96: #{_lambda_.7} parent=5 // pred_fallthru
      _
    %p2189 = scmp.le.s32.totalorder 2, %s25
    // Predicated region
    $region101: #{_lambda_.7} parent=5 // pred_check
      %p2190 = pneg %p2189
    $region102: #{_lambda_.7} parent=5 // pred_check_branch
      %2192 = sbr.rel (%p2190) target = $region104
    $region103: #{_lambda_.7} parent=5 // pred_region
      %s2193 = ssub.s32 %s25, 2
      // Predicated region
      $region105: #{_lambda_.7} parent=103 // pred_check
        %p2194 = pneg %p484
      $region106: #{_lambda_.7} parent=103 // pred_check_branch
        %2196 = sbr.rel (%p2194) target = $region108
      $region107: #{_lambda_.7} parent=103 // pred_region
        %p2197 = scmp.lt.s32.totalorder %s36, 1
        %s2198 = scalar_select %p2197, %s36, 1
        %p2199 = scmp.lt.s32.totalorder %s37, 0
        %s2200 = scalar_select %p2199, %s37, 0
        %s2201 = sadd.s32 %s2200, %s2198
        %s2202 = smul.addr %s2201, 8
        %s2203 = scalar_lea.vmem %s19, %s2202
      $region108: #{_lambda_.7} parent=103 // pred_fallthru
        _
    $region104: #{_lambda_.7} parent=5 // pred_fallthru
      _
  $region6: #{_lambda_.7} parent=0 // loop_footer
    %s29 = sadd.s32 1, %s25
  $region7: #{_lambda_.7} parent=0 // loop_footer_branch
    %24 = sbr.rel target = $region3
  $region8: #{_lambda_.7} parent=0 // loop_exit
    _

// kernel: _lambda_.11
$region0: #{_lambda_.11}
  #allocation0 [shape = 'u32[]', space=smem, size = 0x4, offset = 0x4, fixed_abs, tag = 'smem constant byte address 0x4 - core index']
  #allocation1 [shape = 'u32[144,128]{1,0:T(1,128)}', space=vmem, size = 0x12000, scoped, tag = 'internal scratch']
  %s0 = inlined_call_operand.vmem [shape: f32[2,8,32], index: 0, kind: input, shape index: {}, may-alias: {0,1}]
  %s1 = inlined_call_operand.vmem [shape: f32[2,8,32], index: 1, kind: input, shape index: {}, may-alias: {0,1}]
  %s2 = inlined_call_operand.vmem [shape: f32[2,1,1,8], index: 2, kind: input, shape index: {}]
  %s3 = inlined_call_operand.vmem [shape: bf16[32,32], index: 3, kind: input, shape index: {}]
  %s4 = inlined_call_operand.vmem [shape: f32[1,32], index: 4, kind: input, shape index: {}]
  %s5 = inlined_call_operand.vmem [shape: bf16[32,32], index: 5, kind: input, shape index: {}]
  %s6 = inlined_call_operand.vmem [shape: f32[1,32], index: 6, kind: input, shape index: {}]
  %s7 = inlined_call_operand.vmem [shape: bf16[32,32], index: 7, kind: input, shape index: {}]
  %s8 = inlined_call_operand.vmem [shape: f32[1,32], index: 8, kind: input, shape index: {}]
  %s9 = inlined_call_operand.vmem [shape: bf16[32,32], index: 9, kind: input, shape index: {}]
  %s10 = inlined_call_operand.vmem [shape: f32[1,32], index: 10, kind: input, shape index: {}]
  %s11 = inlined_call_operand.vmem [shape: f32[1,32], index: 11, kind: input, shape index: {}]
  %s12 = inlined_call_operand.vmem [shape: f32[1,32], index: 12, kind: input, shape index: {}]
  %s13 = inlined_call_operand.vmem [shape: bf16[32,64], index: 13, kind: input, shape index: {}]
  %s14 = inlined_call_operand.vmem [shape: f32[1,64], index: 14, kind: input, shape index: {}]
  %s15 = inlined_call_operand.vmem [shape: bf16[64,32], index: 15, kind: input, shape index: {}]
  %s16 = inlined_call_operand.vmem [shape: f32[1,32], index: 16, kind: input, shape index: {}]
  %s17 = inlined_call_operand.vmem [shape: f32[1,32], index: 17, kind: input, shape index: {}]
  %s18 = inlined_call_operand.vmem [shape: f32[1,32], index: 18, kind: input, shape index: {}]
  %s19 = inlined_call_operand.hbm [shape: f32[2,8,32], index: 19, kind: output, shape index: {}]
  %s20 = sld [smem:[#allocation0]]
  $region109: #{_lambda_.11} parent=0
    _
  %s22 = ssub.s32 1, %s20
  %s23 = scalar_select 0, %s22, %s20
  $region1: #{_lambda_.11} parent=0
    #allocation2 [shape = 'u8[8192]{0}', space=vmem, size = 0x2000, scoped, tag = 'output window, operand 0']
    #allocation3 [shape = 's32[2]{0}', space=sflag, size = 0x8, scoped, tag = 'scoped memory for _lambda_.11']
    %24 = vsyncpa [#allocation3], 0
    %s25 = scalar_lea.sflag [#allocation3], 1
    %26 = vsyncpa %s25, 0
    loop: start=0, step=1, limit=4
    $region2: #{_lambda_.11} parent=1 // loop_pre_header
      _
    $region3: #{_lambda_.11} parent=1 // loop_header
      %s28 = sphi 0, %s32
      %p29 = scmp.ge.s32.totalorder %s28, 4
      %s35 = sphi 0, %s47
      %s36 = sphi 0, %s43
      %s37 = sphi 0, %s35
      %s38 = sphi 0, %s36
      %s39 = sphi 0, %s37
      %s40 = sphi 0, %s38
      %s52 = sphi 0, %s54
      %s55 = sphi 0, %s52
      %s56 = sphi 0, %s55
      %s72 = sphi 0, %s56
      %s78 = sphi 0, %s80
      %s81 = sphi 0, %s78
      %s82 = sphi 0, %s81
      %s98 = sphi 0, %s82
      %s104 = sphi 0, %s106
      %s107 = sphi 0, %s104
      %s108 = sphi 0, %s107
      %s124 = sphi 0, %s108
      %s128 = sphi 0, %s128
      %s130 = sphi 0, %s128
      %s131 = sphi 0, %s130
      %s145 = sphi 0, %s131
      %s149 = sphi 0, %s149
      %s151 = sphi 0, %s149
      %s152 = sphi 0, %s151
      %s166 = sphi 0, %s152
      %s170 = sphi 0, %s170
      %s172 = sphi 0, %s170
      %s173 = sphi 0, %s172
      %s187 = sphi 0, %s173
      %s191 = sphi 0, %s191
      %s193 = sphi 0, %s191
      %s194 = sphi 0, %s193
      %s208 = sphi 0, %s194
      %s212 = sphi 0, %s212
      %s214 = sphi 0, %s212
      %s215 = sphi 0, %s214
      %s229 = sphi 0, %s215
      %s233 = sphi 0, %s233
      %s235 = sphi 0, %s233
      %s236 = sphi 0, %s235
      %s250 = sphi 0, %s236
      %s254 = sphi 0, %s254
      %s256 = sphi 0, %s254
      %s257 = sphi 0, %s256
      %s271 = sphi 0, %s257
      %s275 = sphi 0, %s275
      %s277 = sphi 0, %s275
      %s278 = sphi 0, %s277
      %s292 = sphi 0, %s278
      %s296 = sphi 0, %s296
      %s298 = sphi 0, %s296
      %s299 = sphi 0, %s298
      %s313 = sphi 0, %s299
      %s317 = sphi 0, %s317
      %s319 = sphi 0, %s317
      %s320 = sphi 0, %s319
      %s334 = sphi 0, %s320
      %s338 = sphi 0, %s338
      %s340 = sphi 0, %s338
      %s341 = sphi 0, %s340
      %s355 = sphi 0, %s341
      %s359 = sphi 0, %s359
      %s361 = sphi 0, %s359
      %s362 = sphi 0, %s361
      %s376 = sphi 0, %s362
      %s380 = sphi 0, %s380
      %s382 = sphi 0, %s380
      %s383 = sphi 0, %s382
      %s397 = sphi 0, %s383
      %s401 = sphi 0, %s401
      %s403 = sphi 0, %s401
      %s404 = sphi 0, %s403
      %s418 = sphi 0, %s404
      %s422 = sphi 0, %s422
      %s424 = sphi 0, %s422
      %s425 = sphi 0, %s424
      %s439 = sphi 0, %s425
      %s443 = sphi 0, %s443
      %s445 = sphi 0, %s443
      %s446 = sphi 0, %s445
      %s460 = sphi 0, %s446
      %s468 = sphi 0, %s470
      %s471 = sphi 0, %s468
      %s472 = sphi 0, %s471
      %s488 = sphi 0, %s472
    $region4: #{_lambda_.11} parent=1 // loop_header_branch
      %31 = sbr.rel (%p29) target = $region8
    $region5: #{_lambda_.11} parent=1 // loop_body
      %s33 = ssub.s32 %s28, 1
      %s34 = ssub.s32 %s28, 2
      %s41 = sadd.s32 1, %s36
      %p42 = scmp.ge.s32.totalorder %s41, 1
      %s43 = scalar_select %p42, 0, %s41
      %s44 = sadd.s32 1, %s35
      %s45 = scalar_select %p42, %s44, %s35
      %p46 = scmp.ge.s32.totalorder %s45, 2
      %s47 = scalar_select %p46, 0, %s45
      %s48 = ssub.s32 %s35, %s47
      %s49 = ssub.s32 %s36, %s43
      %s50 = sor.u32 %s48, %s49
      %p51 = scmp.eq.s32.totalorder %s50, 0
      %s53 = sadd.s32 %s52, 1
      %s54 = scalar_select %p51, %s52, %s53
      %p57 = pneg %p51
      %p58 = scmp.eq.s32.totalorder %s28, 1
      %p59 = por %p57, %p58
      %p60 = scmp.ne.s32.totalorder %s52, %s55
      %p61 = scmp.eq.s32.totalorder %s28, 0
      %p62 = por %p60, %p61
      %p63 = scmp.ne.s32.totalorder %s52, %s55
      %p64 = scmp.eq.s32.totalorder %s33, 1
      %p65 = por %p63, %p64
      %p66 = scmp.ne.s32.totalorder %s55, %s56
      %p67 = scmp.eq.s32.totalorder %s33, 0
      %p68 = por %p66, %p67
      %p69 = scmp.ne.s32.totalorder %s55, %s56
      %p70 = scmp.eq.s32.totalorder %s34, 1
      %p71 = por %p69, %p70
      %p73 = scmp.ne.s32.totalorder %s56, %s72
      %p74 = scmp.eq.s32.totalorder %s34, 0
      %p75 = por %p73, %p74
      %s76 = ssub.s32 %s35, %s47
      %p77 = scmp.eq.s32.totalorder %s76, 0
      %s79 = sadd.s32 %s78, 1
      %s80 = scalar_select %p77, %s78, %s79
      %p83 = pneg %p77
      %p84 = scmp.eq.s32.totalorder %s28, 1
      %p85 = por %p83, %p84
      %p86 = scmp.ne.s32.totalorder %s78, %s81
      %p87 = scmp.eq.s32.totalorder %s28, 0
      %p88 = por %p86, %p87
      %p89 = scmp.ne.s32.totalorder %s78, %s81
      %p90 = scmp.eq.s32.totalorder %s33, 1
      %p91 = por %p89, %p90
      %p92 = scmp.ne.s32.totalorder %s81, %s82
      %p93 = scmp.eq.s32.totalorder %s33, 0
      %p94 = por %p92, %p93
      %p95 = scmp.ne.s32.totalorder %s81, %s82
      %p96 = scmp.eq.s32.totalorder %s34, 1
      %p97 = por %p95, %p96
      %p99 = scmp.ne.s32.totalorder %s82, %s98
      %p100 = scmp.eq.s32.totalorder %s34, 0
      %p101 = por %p99, %p100
      %s102 = ssub.s32 %s35, %s47
      %p103 = scmp.eq.s32.totalorder %s102, 0
      %s105 = sadd.s32 %s104, 1
      %s106 = scalar_select %p103, %s104, %s105
      %p109 = pneg %p103
      %p110 = scmp.eq.s32.totalorder %s28, 1
      %p111 = por %p109, %p110
      %p112 = scmp.ne.s32.totalorder %s104, %s107
      %p113 = scmp.eq.s32.totalorder %s28, 0
      %p114 = por %p112, %p113
      %p115 = scmp.ne.s32.totalorder %s104, %s107
      %p116 = scmp.eq.s32.totalorder %s33, 1
      %p117 = por %p115, %p116
      %p118 = scmp.ne.s32.totalorder %s107, %s108
      %p119 = scmp.eq.s32.totalorder %s33, 0
      %p120 = por %p118, %p119
      %p121 = scmp.ne.s32.totalorder %s107, %s108
      %p122 = scmp.eq.s32.totalorder %s34, 1
      %p123 = por %p121, %p122
      %p125 = scmp.ne.s32.totalorder %s108, %s124
      %p126 = scmp.eq.s32.totalorder %s34, 0
      %p127 = por %p125, %p126
      %s129 = sadd.s32 %s128, 1
      %p132 = scmp.eq.s32.totalorder %s28, 1
      %p133 = scmp.ne.s32.totalorder %s128, %s130
      %p134 = scmp.eq.s32.totalorder %s28, 0
      %p135 = por %p133, %p134
      %p136 = scmp.ne.s32.totalorder %s128, %s130
      %p137 = scmp.eq.s32.totalorder %s33, 1
      %p138 = por %p136, %p137
      %p139 = scmp.ne.s32.totalorder %s130, %s131
      %p140 = scmp.eq.s32.totalorder %s33, 0
      %p141 = por %p139, %p140
      %p142 = scmp.ne.s32.totalorder %s130, %s131
      %p143 = scmp.eq.s32.totalorder %s34, 1
      %p144 = por %p142, %p143
      %p146 = scmp.ne.s32.totalorder %s131, %s145
      %p147 = scmp.eq.s32.totalorder %s34, 0
      %p148 = por %p146, %p147
      %s150 = sadd.s32 %s149, 1
      %p153 = scmp.eq.s32.totalorder %s28, 1
      %p154 = scmp.ne.s32.totalorder %s149, %s151
      %p155 = scmp.eq.s32.totalorder %s28, 0
      %p156 = por %p154, %p155
      %p157 = scmp.ne.s32.totalorder %s149, %s151
      %p158 = scmp.eq.s32.totalorder %s33, 1
      %p159 = por %p157, %p158
      %p160 = scmp.ne.s32.totalorder %s151, %s152
      %p161 = scmp.eq.s32.totalorder %s33, 0
      %p162 = por %p160, %p161
      %p163 = scmp.ne.s32.totalorder %s151, %s152
      %p164 = scmp.eq.s32.totalorder %s34, 1
      %p165 = por %p163, %p164
      %p167 = scmp.ne.s32.totalorder %s152, %s166
      %p168 = scmp.eq.s32.totalorder %s34, 0
      %p169 = por %p167, %p168
      %s171 = sadd.s32 %s170, 1
      %p174 = scmp.eq.s32.totalorder %s28, 1
      %p175 = scmp.ne.s32.totalorder %s170, %s172
      %p176 = scmp.eq.s32.totalorder %s28, 0
      %p177 = por %p175, %p176
      %p178 = scmp.ne.s32.totalorder %s170, %s172
      %p179 = scmp.eq.s32.totalorder %s33, 1
      %p180 = por %p178, %p179
      %p181 = scmp.ne.s32.totalorder %s172, %s173
      %p182 = scmp.eq.s32.totalorder %s33, 0
      %p183 = por %p181, %p182
      %p184 = scmp.ne.s32.totalorder %s172, %s173
      %p185 = scmp.eq.s32.totalorder %s34, 1
      %p186 = por %p184, %p185
      %p188 = scmp.ne.s32.totalorder %s173, %s187
      %p189 = scmp.eq.s32.totalorder %s34, 0
      %p190 = por %p188, %p189
      %s192 = sadd.s32 %s191, 1
      %p195 = scmp.eq.s32.totalorder %s28, 1
      %p196 = scmp.ne.s32.totalorder %s191, %s193
      %p197 = scmp.eq.s32.totalorder %s28, 0
      %p198 = por %p196, %p197
      %p199 = scmp.ne.s32.totalorder %s191, %s193
      %p200 = scmp.eq.s32.totalorder %s33, 1
      %p201 = por %p199, %p200
      %p202 = scmp.ne.s32.totalorder %s193, %s194
      %p203 = scmp.eq.s32.totalorder %s33, 0
      %p204 = por %p202, %p203
      %p205 = scmp.ne.s32.totalorder %s193, %s194
      %p206 = scmp.eq.s32.totalorder %s34, 1
      %p207 = por %p205, %p206
      %p209 = scmp.ne.s32.totalorder %s194, %s208
      %p210 = scmp.eq.s32.totalorder %s34, 0
      %p211 = por %p209, %p210
      %s213 = sadd.s32 %s212, 1
      %p216 = scmp.eq.s32.totalorder %s28, 1
      %p217 = scmp.ne.s32.totalorder %s212, %s214
      %p218 = scmp.eq.s32.totalorder %s28, 0
      %p219 = por %p217, %p218
      %p220 = scmp.ne.s32.totalorder %s212, %s214
      %p221 = scmp.eq.s32.totalorder %s33, 1
      %p222 = por %p220, %p221
      %p223 = scmp.ne.s32.totalorder %s214, %s215
      %p224 = scmp.eq.s32.totalorder %s33, 0
      %p225 = por %p223, %p224
      %p226 = scmp.ne.s32.totalorder %s214, %s215
      %p227 = scmp.eq.s32.totalorder %s34, 1
      %p228 = por %p226, %p227
      %p230 = scmp.ne.s32.totalorder %s215, %s229
      %p231 = scmp.eq.s32.totalorder %s34, 0
      %p232 = por %p230, %p231
      %s234 = sadd.s32 %s233, 1
      %p237 = scmp.eq.s32.totalorder %s28, 1
      %p238 = scmp.ne.s32.totalorder %s233, %s235
      %p239 = scmp.eq.s32.totalorder %s28, 0
      %p240 = por %p238, %p239
      %p241 = scmp.ne.s32.totalorder %s233, %s235
      %p242 = scmp.eq.s32.totalorder %s33, 1
      %p243 = por %p241, %p242
      %p244 = scmp.ne.s32.totalorder %s235, %s236
      %p245 = scmp.eq.s32.totalorder %s33, 0
      %p246 = por %p244, %p245
      %p247 = scmp.ne.s32.totalorder %s235, %s236
      %p248 = scmp.eq.s32.totalorder %s34, 1
      %p249 = por %p247, %p248
      %p251 = scmp.ne.s32.totalorder %s236, %s250
      %p252 = scmp.eq.s32.totalorder %s34, 0
      %p253 = por %p251, %p252
      %s255 = sadd.s32 %s254, 1
      %p258 = scmp.eq.s32.totalorder %s28, 1
      %p259 = scmp.ne.s32.totalorder %s254, %s256
      %p260 = scmp.eq.s32.totalorder %s28, 0
      %p261 = por %p259, %p260
      %p262 = scmp.ne.s32.totalorder %s254, %s256
      %p263 = scmp.eq.s32.totalorder %s33, 1
      %p264 = por %p262, %p263
      %p265 = scmp.ne.s32.totalorder %s256, %s257
      %p266 = scmp.eq.s32.totalorder %s33, 0
      %p267 = por %p265, %p266
      %p268 = scmp.ne.s32.totalorder %s256, %s257
      %p269 = scmp.eq.s32.totalorder %s34, 1
      %p270 = por %p268, %p269
      %p272 = scmp.ne.s32.totalorder %s257, %s271
      %p273 = scmp.eq.s32.totalorder %s34, 0
      %p274 = por %p272, %p273
      %s276 = sadd.s32 %s275, 1
      %p279 = scmp.eq.s32.totalorder %s28, 1
      %p280 = scmp.ne.s32.totalorder %s275, %s277
      %p281 = scmp.eq.s32.totalorder %s28, 0
      %p282 = por %p280, %p281
      %p283 = scmp.ne.s32.totalorder %s275, %s277
      %p284 = scmp.eq.s32.totalorder %s33, 1
      %p285 = por %p283, %p284
      %p286 = scmp.ne.s32.totalorder %s277, %s278
      %p287 = scmp.eq.s32.totalorder %s33, 0
      %p288 = por %p286, %p287
      %p289 = scmp.ne.s32.totalorder %s277, %s278
      %p290 = scmp.eq.s32.totalorder %s34, 1
      %p291 = por %p289, %p290
      %p293 = scmp.ne.s32.totalorder %s278, %s292
      %p294 = scmp.eq.s32.totalorder %s34, 0
      %p295 = por %p293, %p294
      %s297 = sadd.s32 %s296, 1
      %p300 = scmp.eq.s32.totalorder %s28, 1
      %p301 = scmp.ne.s32.totalorder %s296, %s298
      %p302 = scmp.eq.s32.totalorder %s28, 0
      %p303 = por %p301, %p302
      %p304 = scmp.ne.s32.totalorder %s296, %s298
      %p305 = scmp.eq.s32.totalorder %s33, 1
      %p306 = por %p304, %p305
      %p307 = scmp.ne.s32.totalorder %s298, %s299
      %p308 = scmp.eq.s32.totalorder %s33, 0
      %p309 = por %p307, %p308
      %p310 = scmp.ne.s32.totalorder %s298, %s299
      %p311 = scmp.eq.s32.totalorder %s34, 1
      %p312 = por %p310, %p311
      %p314 = scmp.ne.s32.totalorder %s299, %s313
      %p315 = scmp.eq.s32.totalorder %s34, 0
      %p316 = por %p314, %p315
      %s318 = sadd.s32 %s317, 1
      %p321 = scmp.eq.s32.totalorder %s28, 1
      %p322 = scmp.ne.s32.totalorder %s317, %s319
      %p323 = scmp.eq.s32.totalorder %s28, 0
      %p324 = por %p322, %p323
      %p325 = scmp.ne.s32.totalorder %s317, %s319
      %p326 = scmp.eq.s32.totalorder %s33, 1
      %p327 = por %p325, %p326
      %p328 = scmp.ne.s32.totalorder %s319, %s320
      %p329 = scmp.eq.s32.totalorder %s33, 0
      %p330 = por %p328, %p329
      %p331 = scmp.ne.s32.totalorder %s319, %s320
      %p332 = scmp.eq.s32.totalorder %s34, 1
      %p333 = por %p331, %p332
      %p335 = scmp.ne.s32.totalorder %s320, %s334
      %p336 = scmp.eq.s32.totalorder %s34, 0
      %p337 = por %p335, %p336
      %s339 = sadd.s32 %s338, 1
      %p342 = scmp.eq.s32.totalorder %s28, 1
      %p343 = scmp.ne.s32.totalorder %s338, %s340
      %p344 = scmp.eq.s32.totalorder %s28, 0
      %p345 = por %p343, %p344
      %p346 = scmp.ne.s32.totalorder %s338, %s340
      %p347 = scmp.eq.s32.totalorder %s33, 1
      %p348 = por %p346, %p347
      %p349 = scmp.ne.s32.totalorder %s340, %s341
      %p350 = scmp.eq.s32.totalorder %s33, 0
      %p351 = por %p349, %p350
      %p352 = scmp.ne.s32.totalorder %s340, %s341
      %p353 = scmp.eq.s32.totalorder %s34, 1
      %p354 = por %p352, %p353
      %p356 = scmp.ne.s32.totalorder %s341, %s355
      %p357 = scmp.eq.s32.totalorder %s34, 0
      %p358 = por %p356, %p357
      %s360 = sadd.s32 %s359, 1
      %p363 = scmp.eq.s32.totalorder %s28, 1
      %p364 = scmp.ne.s32.totalorder %s359, %s361
      %p365 = scmp.eq.s32.totalorder %s28, 0
      %p366 = por %p364, %p365
      %p367 = scmp.ne.s32.totalorder %s359, %s361
      %p368 = scmp.eq.s32.totalorder %s33, 1
      %p369 = por %p367, %p368
      %p370 = scmp.ne.s32.totalorder %s361, %s362
      %p371 = scmp.eq.s32.totalorder %s33, 0
      %p372 = por %p370, %p371
      %p373 = scmp.ne.s32.totalorder %s361, %s362
      %p374 = scmp.eq.s32.totalorder %s34, 1
      %p375 = por %p373, %p374
      %p377 = scmp.ne.s32.totalorder %s362, %s376
      %p378 = scmp.eq.s32.totalorder %s34, 0
      %p379 = por %p377, %p378
      %s381 = sadd.s32 %s380, 1
      %p384 = scmp.eq.s32.totalorder %s28, 1
      %p385 = scmp.ne.s32.totalorder %s380, %s382
      %p386 = scmp.eq.s32.totalorder %s28, 0
      %p387 = por %p385, %p386
      %p388 = scmp.ne.s32.totalorder %s380, %s382
      %p389 = scmp.eq.s32.totalorder %s33, 1
      %p390 = por %p388, %p389
      %p391 = scmp.ne.s32.totalorder %s382, %s383
      %p392 = scmp.eq.s32.totalorder %s33, 0
      %p393 = por %p391, %p392
      %p394 = scmp.ne.s32.totalorder %s382, %s383
      %p395 = scmp.eq.s32.totalorder %s34, 1
      %p396 = por %p394, %p395
      %p398 = scmp.ne.s32.totalorder %s383, %s397
      %p399 = scmp.eq.s32.totalorder %s34, 0
      %p400 = por %p398, %p399
      %s402 = sadd.s32 %s401, 1
      %p405 = scmp.eq.s32.totalorder %s28, 1
      %p406 = scmp.ne.s32.totalorder %s401, %s403
      %p407 = scmp.eq.s32.totalorder %s28, 0
      %p408 = por %p406, %p407
      %p409 = scmp.ne.s32.totalorder %s401, %s403
      %p410 = scmp.eq.s32.totalorder %s33, 1
      %p411 = por %p409, %p410
      %p412 = scmp.ne.s32.totalorder %s403, %s404
      %p413 = scmp.eq.s32.totalorder %s33, 0
      %p414 = por %p412, %p413
      %p415 = scmp.ne.s32.totalorder %s403, %s404
      %p416 = scmp.eq.s32.totalorder %s34, 1
      %p417 = por %p415, %p416
      %p419 = scmp.ne.s32.totalorder %s404, %s418
      %p420 = scmp.eq.s32.totalorder %s34, 0
      %p421 = por %p419, %p420
      %s423 = sadd.s32 %s422, 1
      %p426 = scmp.eq.s32.totalorder %s28, 1
      %p427 = scmp.ne.s32.totalorder %s422, %s424
      %p428 = scmp.eq.s32.totalorder %s28, 0
      %p429 = por %p427, %p428
      %p430 = scmp.ne.s32.totalorder %s422, %s424
      %p431 = scmp.eq.s32.totalorder %s33, 1
      %p432 = por %p430, %p431
      %p433 = scmp.ne.s32.totalorder %s424, %s425
      %p434 = scmp.eq.s32.totalorder %s33, 0
      %p435 = por %p433, %p434
      %p436 = scmp.ne.s32.totalorder %s424, %s425
      %p437 = scmp.eq.s32.totalorder %s34, 1
      %p438 = por %p436, %p437
      %p440 = scmp.ne.s32.totalorder %s425, %s439
      %p441 = scmp.eq.s32.totalorder %s34, 0
      %p442 = por %p440, %p441
      %s444 = sadd.s32 %s443, 1
      %p447 = scmp.eq.s32.totalorder %s28, 1
      %p448 = scmp.ne.s32.totalorder %s443, %s445
      %p449 = scmp.eq.s32.totalorder %s28, 0
      %p450 = por %p448, %p449
      %p451 = scmp.ne.s32.totalorder %s443, %s445
      %p452 = scmp.eq.s32.totalorder %s33, 1
      %p453 = por %p451, %p452
      %p454 = scmp.ne.s32.totalorder %s445, %s446
      %p455 = scmp.eq.s32.totalorder %s33, 0
      %p456 = por %p454, %p455
      %p457 = scmp.ne.s32.totalorder %s445, %s446
      %p458 = scmp.eq.s32.totalorder %s34, 1
      %p459 = por %p457, %p458
      %p461 = scmp.ne.s32.totalorder %s446, %s460
      %p462 = scmp.eq.s32.totalorder %s34, 0
      %p463 = por %p461, %p462
      %s464 = ssub.s32 %s35, %s47
      %s465 = ssub.s32 %s36, %s43
      %s466 = sor.u32 %s464, %s465
      %p467 = scmp.eq.s32.totalorder %s466, 0
      %s469 = sadd.s32 %s468, 1
      %s470 = scalar_select %p467, %s468, %s469
      %p473 = pneg %p467
      %p474 = scmp.eq.s32.totalorder %s28, 1
      %p475 = por %p473, %p474
      %p476 = scmp.ne.s32.totalorder %s468, %s471
      %p477 = scmp.eq.s32.totalorder %s28, 0
      %p478 = por %p476, %p477
      %p479 = scmp.ne.s32.totalorder %s468, %s471
      %p480 = scmp.eq.s32.totalorder %s33, 1
      %p481 = por %p479, %p480
      %p482 = scmp.ne.s32.totalorder %s471, %s472
      %p483 = scmp.eq.s32.totalorder %s33, 0
      %p484 = por %p482, %p483
      %p485 = scmp.ne.s32.totalorder %s471, %s472
      %p486 = scmp.eq.s32.totalorder %s34, 1
      %p487 = por %p485, %p486
      %p489 = scmp.ne.s32.totalorder %s472, %s488
      %p490 = scmp.eq.s32.totalorder %s34, 0
      %p491 = por %p489, %p490
      %p492 = scmp.le.s32.totalorder 1, %s28
      %p493 = scmp.lt.s32.totalorder %s28, 3
      %p494 = pnand %p492, %p493
      %p495 = pneg %p494
      // Predicated region
      $region9: #{_lambda_.11} parent=5 // pred_check
        _
      $region10: #{_lambda_.11} parent=5 // pred_check_branch
        %497 = sbr.rel (%p494) target = $region12
      $region11: #{_lambda_.11} parent=5 // pred_region
        %s498 = ssub.s32 %s28, 1
        // Predicated region
        $region13: #{_lambda_.11} parent=11 // pred_check
          %p499 = pneg %p141
        $region14: #{_lambda_.11} parent=11 // pred_check_branch
          %501 = sbr.rel (%p499) target = $region16
        $region15: #{_lambda_.11} parent=11 // pred_region
          _
        $region16: #{_lambda_.11} parent=11 // pred_fallthru
          _
        // Predicated region
        $region17: #{_lambda_.11} parent=11 // pred_check
          %p502 = pneg %p162
        $region18: #{_lambda_.11} parent=11 // pred_check_branch
          %504 = sbr.rel (%p502) target = $region20
        $region19: #{_lambda_.11} parent=11 // pred_region
          _
        $region20: #{_lambda_.11} parent=11 // pred_fallthru
          _
        // Predicated region
        $region21: #{_lambda_.11} parent=11 // pred_check
          %p505 = pneg %p183
        $region22: #{_lambda_.11} parent=11 // pred_check_branch
          %507 = sbr.rel (%p505) target = $region24
        $region23: #{_lambda_.11} parent=11 // pred_region
          _
        $region24: #{_lambda_.11} parent=11 // pred_fallthru
          _
        // Predicated region
        $region25: #{_lambda_.11} parent=11 // pred_check
          %p508 = pneg %p204
        $region26: #{_lambda_.11} parent=11 // pred_check_branch
          %510 = sbr.rel (%p508) target = $region28
        $region27: #{_lambda_.11} parent=11 // pred_region
          _
        $region28: #{_lambda_.11} parent=11 // pred_fallthru
          _
        // Predicated region
        $region29: #{_lambda_.11} parent=11 // pred_check
          %p511 = pneg %p225
        $region30: #{_lambda_.11} parent=11 // pred_check_branch
          %513 = sbr.rel (%p511) target = $region32
        $region31: #{_lambda_.11} parent=11 // pred_region
          _
        $region32: #{_lambda_.11} parent=11 // pred_fallthru
          _
        // Predicated region
        $region33: #{_lambda_.11} parent=11 // pred_check
          %p514 = pneg %p246
        $region34: #{_lambda_.11} parent=11 // pred_check_branch
          %516 = sbr.rel (%p514) target = $region36
        $region35: #{_lambda_.11} parent=11 // pred_region
          _
        $region36: #{_lambda_.11} parent=11 // pred_fallthru
          _
        // Predicated region
        $region37: #{_lambda_.11} parent=11 // pred_check
          %p517 = pneg %p267
        $region38: #{_lambda_.11} parent=11 // pred_check_branch
          %519 = sbr.rel (%p517) target = $region40
        $region39: #{_lambda_.11} parent=11 // pred_region
          _
        $region40: #{_lambda_.11} parent=11 // pred_fallthru
          _
        // Predicated region
        $region41: #{_lambda_.11} parent=11 // pred_check
          %p520 = pneg %p288
        $region42: #{_lambda_.11} parent=11 // pred_check_branch
          %522 = sbr.rel (%p520) target = $region44
        $region43: #{_lambda_.11} parent=11 // pred_region
          _
        $region44: #{_lambda_.11} parent=11 // pred_fallthru
          _
        // Predicated region
        $region45: #{_lambda_.11} parent=11 // pred_check
          %p523 = pneg %p309
        $region46: #{_lambda_.11} parent=11 // pred_check_branch
          %525 = sbr.rel (%p523) target = $region48
        $region47: #{_lambda_.11} parent=11 // pred_region
          _
        $region48: #{_lambda_.11} parent=11 // pred_fallthru
          _
        // Predicated region
        $region49: #{_lambda_.11} parent=11 // pred_check
          %p526 = pneg %p330
        $region50: #{_lambda_.11} parent=11 // pred_check_branch
          %528 = sbr.rel (%p526) target = $region52
        $region51: #{_lambda_.11} parent=11 // pred_region
          _
        $region52: #{_lambda_.11} parent=11 // pred_fallthru
          _
        // Predicated region
        $region53: #{_lambda_.11} parent=11 // pred_check
          %p529 = pneg %p351
        $region54: #{_lambda_.11} parent=11 // pred_check_branch
          %531 = sbr.rel (%p529) target = $region56
        $region55: #{_lambda_.11} parent=11 // pred_region
          _
        $region56: #{_lambda_.11} parent=11 // pred_fallthru
          _
        // Predicated region
        $region57: #{_lambda_.11} parent=11 // pred_check
          %p532 = pneg %p372
        $region58: #{_lambda_.11} parent=11 // pred_check_branch
          %534 = sbr.rel (%p532) target = $region60
        $region59: #{_lambda_.11} parent=11 // pred_region
          _
        $region60: #{_lambda_.11} parent=11 // pred_fallthru
          _
        // Predicated region
        $region61: #{_lambda_.11} parent=11 // pred_check
          %p535 = pneg %p393
        $region62: #{_lambda_.11} parent=11 // pred_check_branch
          %537 = sbr.rel (%p535) target = $region64
        $region63: #{_lambda_.11} parent=11 // pred_region
          _
        $region64: #{_lambda_.11} parent=11 // pred_fallthru
          _
        // Predicated region
        $region65: #{_lambda_.11} parent=11 // pred_check
          %p538 = pneg %p414
        $region66: #{_lambda_.11} parent=11 // pred_check_branch
          %540 = sbr.rel (%p538) target = $region68
        $region67: #{_lambda_.11} parent=11 // pred_region
          _
        $region68: #{_lambda_.11} parent=11 // pred_fallthru
          _
        // Predicated region
        $region69: #{_lambda_.11} parent=11 // pred_check
          %p541 = pneg %p435
        $region70: #{_lambda_.11} parent=11 // pred_check_branch
          %543 = sbr.rel (%p541) target = $region72
        $region71: #{_lambda_.11} parent=11 // pred_region
          _
        $region72: #{_lambda_.11} parent=11 // pred_fallthru
          _
        // Predicated region
        $region73: #{_lambda_.11} parent=11 // pred_check
          %p544 = pneg %p456
        $region74: #{_lambda_.11} parent=11 // pred_check_branch
          %546 = sbr.rel (%p544) target = $region76
        $region75: #{_lambda_.11} parent=11 // pred_region
          _
        $region76: #{_lambda_.11} parent=11 // pred_fallthru
          _
      $region12: #{_lambda_.11} parent=5 // pred_fallthru
        _
      %p547 = scmp.lt.s32.totalorder %s28, 2
      // Predicated region
      $region77: #{_lambda_.11} parent=5 // pred_check
        %p548 = pneg %p547
      $region78: #{_lambda_.11} parent=5 // pred_check_branch
        %550 = sbr.rel (%p548) target = $region80
      $region79: #{_lambda_.11} parent=5 // pred_region
        // Predicated region
        $region81: #{_lambda_.11} parent=79 // pred_check
          %p551 = pneg %p62
        $region82: #{_lambda_.11} parent=79 // pred_check_branch
          %553 = sbr.rel (%p551) target = $region84
        $region83: #{_lambda_.11} parent=79 // pred_region
          %p554 = scmp.lt.s32.totalorder %s35, 1
          %s555 = scalar_select %p554, %s35, 1
          %p556 = scmp.lt.s32.totalorder %s36, 0
          %s557 = scalar_select %p556, %s36, 0
          %s558 = sadd.s32 %s557, %s555
          %s559 = smul.addr %s558, 8
          %s560 = scalar_lea.vmem %s0, %s559
        $region84: #{_lambda_.11} parent=79 // pred_fallthru
          _
        // Predicated region
        $region85: #{_lambda_.11} parent=79 // pred_check
          %p561 = pneg %p88
        $region86: #{_lambda_.11} parent=79 // pred_check_branch
          %563 = sbr.rel (%p561) target = $region88
        $region87: #{_lambda_.11} parent=79 // pred_region
          %p564 = scmp.lt.s32.totalorder %s35, 1
          %s565 = scalar_select %p564, %s35, 1
          %s566 = smul.addr %s565, 8
          %s567 = scalar_lea.vmem %s1, %s566
        $region88: #{_lambda_.11} parent=79 // pred_fallthru
          _
        // Predicated region
        $region89: #{_lambda_.11} parent=79 // pred_check
          %p568 = pneg %p114
        $region90: #{_lambda_.11} parent=79 // pred_check_branch
          %570 = sbr.rel (%p568) target = $region92
        $region91: #{_lambda_.11} parent=79 // pred_region
          %p571 = scmp.lt.s32.totalorder %s35, 1
          %s572 = scalar_select %p571, %s35, 1
          %s573 = scalar_lea.vmem %s2, %s572
        $region92: #{_lambda_.11} parent=79 // pred_fallthru
          _
      $region80: #{_lambda_.11} parent=5 // pred_fallthru
        _
      %p574 = scmp.le.s32.totalorder 1, %s28
      %p575 = scmp.lt.s32.totalorder %s28, 3
      %p576 = pnand %p574, %p575
      %p577 = pneg %p576
      // Predicated region
      $region93: #{_lambda_.11} parent=5 // pred_check
        _
      $region94: #{_lambda_.11} parent=5 // pred_check_branch
        %579 = sbr.rel (%p576) target = $region96
      $region95: #{_lambda_.11} parent=5 // pred_region
        %s580 = ssub.s32 %s28, 1
        %p581 = scmp.lt.s32.totalorder %s37, 1
        %s582 = scalar_select %p581, %s37, 1
        %p583 = scmp.lt.s32.totalorder %s38, 0
        %s584 = scalar_select %p583, %s38, 0
        %s585 = sadd.s32 %s584, %s582
        %s586 = smul.addr %s585, 8
        %s587 = scalar_lea.vmem %s0, %s586
        %p588 = pneg %p68
        %p589 = pneg %p65
        %p590 = scmp.lt.s32.totalorder %s37, 1
        %s591 = scalar_select %p590, %s37, 1
        %s592 = smul.addr %s591, 8
        %s593 = scalar_lea.vmem %s1, %s592
        %p594 = pneg %p94
        %p595 = pneg %p91
        %p596 = scmp.lt.s32.totalorder %s37, 1
        %s597 = scalar_select %p596, %s37, 1
        %s598 = scalar_lea.vmem %s2, %s597
        %p599 = pneg %p120
        %p600 = pneg %p117
        %p601 = pneg %p141
        %p602 = pneg %p138
        %p603 = pneg %p162
        %p604 = pneg %p159
        %p605 = pneg %p183
        %p606 = pneg %p180
        %p607 = pneg %p204
        %p608 = pneg %p201
        %p609 = pneg %p225
        %p610 = pneg %p222
        %p611 = pneg %p246
        %p612 = pneg %p243
        %p613 = pneg %p267
        %p614 = pneg %p264
        %p615 = pneg %p288
        %p616 = pneg %p285
        %p617 = pneg %p309
        %p618 = pneg %p306
        %p619 = pneg %p330
        %p620 = pneg %p327
        %p621 = pneg %p351
        %p622 = pneg %p348
        %p623 = pneg %p372
        %p624 = pneg %p369
        %p625 = pneg %p393
        %p626 = pneg %p390
        %p627 = pneg %p414
        %p628 = pneg %p411
        %p629 = pneg %p435
        %p630 = pneg %p432
        %p631 = pneg %p456
        %p632 = pneg %p453
        %p633 = pneg %p484
        %p634 = pneg %p481
        %s635 = sand.u32 %s471, 1
        %s636 = scalar_lea.sflag [#allocation3], %s635
        %s637 = sand.u32 %s471, 1
        %s638 = smul.addr %s637, 8
        %s639 = scalar_lea.vmem [#allocation2], %s638
        %p640 = scmp.lt.s32.totalorder %s37, 1
        %s641 = scalar_select %p640, %s37, 1
        %p642 = scmp.lt.s32.totalorder %s38, 0
        %s643 = scalar_select %p642, %s38, 0
        %s644 = sadd.s32 %s643, %s641
        %s645 = smul.addr %s644, 8
        %s646 = scalar_lea.vmem %s0, %s645
        %p647 = scmp.lt.s32.totalorder %s37, 1
        %s648 = scalar_select %p647, %s37, 1
        %s649 = smul.addr %s648, 8
        %s650 = scalar_lea.vmem %s1, %s649
        %p651 = scmp.lt.s32.totalorder %s37, 1
        %s652 = scalar_select %p651, %s37, 1
        %s653 = scalar_lea.vmem %s2, %s652
        %v655 = vld [vmem:[%s646] sm:$0xff]
        %v656 = vld [vmem:[%s650] sm:$0xff]
        %v657 = vld [vmem:[%s653] sm:$0x1]
        %v658 = vpack.c.bf16 %v655, %v655
        %v659 = vpack.c.bf16 %v656, %v656
        %v660 = vld [vmem:[%s3] sm:$0xf]
        %v661 = vld [vmem:[%s3 + $0x4] sm:$0xf]
        %v662 = vld [vmem:[%s3 + $0x8] sm:$0xf]
        %v663 = vld [vmem:[%s3 + $0xc] sm:$0xf]
        %v664 = vld [vmem:[%s4] sm:$0x1]
        %v666 = vlaneseq
        %v667 = vshrl.u32 %v666, 7
        %v668 = vsub.s32 0, %v667
        %v669 = vrot.slane %v664, %v668
        %v675 = vunpack.c.l.b16 %v660
        %v676 = vunpack.c.l.b16 %v661
        %v677 = vunpack.c.l.b16 %v662
        %v678 = vunpack.c.l.b16 %v663
        %v679 = vpack.c.b16 %v676, %v675
        %v680 = vpack.c.b16 %v678, %v677
        %vm683 = vcmask 261120
        %v685 = vsel %vm683, %v658, 0
        %687 = vmatprep.subr.bf16.mxu0 0
        %688 = vmatpush1.bf16.msra.mxu0 %v679
        %689 = vmatprep.subr.bf16.mxu0 0
        %690 = vmatpush1.bf16.msra.mxu0 %v680
        %691 = vmatprep.subr.bf16.mxu0 0
        %692 = vmatpush1.bf16.msra.mxu0 0
        %693 = vmatprep.subr.bf16.mxu0 0
        %694 = vmatpush1.bf16.msra.mxu0 0
        %695 = vmatprep.subr.bf16.mxu0 0
        %696 = vmatpush1.bf16.msra.mxu0 0
        %697 = vmatprep.subr.bf16.mxu0 0
        %698 = vmatpush1.bf16.msra.mxu0 0
        %699 = vmatprep.subr.bf16.mxu0 0
        %700 = vmatpush1.bf16.msra.mxu0 0
        %701 = vmatprep.subr.bf16.mxu0 0
        %702 = vmatpush1.bf16.msra.mxu0 0
        %703 = vmatprep.subr.bf16.mxu0 0
        %704 = vmatpush1.bf16.msra.mxu0 0
        %705 = vmatprep.subr.bf16.mxu0 0
        %706 = vmatpush1.bf16.msra.mxu0 0
        %707 = vmatprep.subr.bf16.mxu0 0
        %708 = vmatpush1.bf16.msra.mxu0 0
        %709 = vmatprep.subr.bf16.mxu0 0
        %710 = vmatpush1.bf16.msra.mxu0 0
        %711 = vmatprep.subr.bf16.mxu0 0
        %712 = vmatpush1.bf16.msra.mxu0 0
        %713 = vmatprep.subr.bf16.mxu0 0
        %714 = vmatpush1.bf16.msra.mxu0 0
        %715 = vmatprep.subr.bf16.mxu0 0
        %716 = vmatpush1.bf16.msra.mxu0 0
        %717 = vmatprep.subr.bf16.mxu0 0
        %718 = vmatpush1.bf16.msra.mxu0 0
        %719 = vmatprep.mubr.bf16.mxu0 0
        %720 = vmatmul.mubr.bf16.gmra.mrb[0].mxu0 %v685
        %v721 = vpop.f32.mrb[0].mxu0
        %v722 = vadd.f32 %v669, %v721
        %v723 = vpop.f32.mrb[0].mxu0
        %v724 = vpop.f32.mrb[0].mxu0
        %v725 = vpop.f32.mrb[0].mxu0
        %726 = vdwg.mxu0
        %v727 = vmul.f32 %v722, 0.35355338
        %v728 = vld [vmem:[%s5] sm:$0xf]
        %v729 = vld [vmem:[%s5 + $0x4] sm:$0xf]
        %v730 = vld [vmem:[%s5 + $0x8] sm:$0xf]
        %v731 = vld [vmem:[%s5 + $0xc] sm:$0xf]
        %v732 = vld [vmem:[%s6] sm:$0x1]
        %v734 = vlaneseq
        %v735 = vshrl.u32 %v734, 7
        %v736 = vsub.s32 0, %v735
        %v737 = vrot.slane %v732, %v736
        %v743 = vunpack.c.l.b16 %v728
        %v744 = vunpack.c.l.b16 %v729
        %v745 = vunpack.c.l.b16 %v730
        %v746 = vunpack.c.l.b16 %v731
        %v747 = vpack.c.b16 %v744, %v743
        %v748 = vpack.c.b16 %v746, %v745
        %v752 = vsel %vm683, %v659, 0
        %754 = vmatprep.subr.bf16.mxu0 0
        %755 = vmatpush1.bf16.msra.mxu0 %v747
        %756 = vmatprep.subr.bf16.mxu0 0
        %757 = vmatpush1.bf16.msra.mxu0 %v748
        %758 = vmatprep.subr.bf16.mxu0 0
        %759 = vmatpush1.bf16.msra.mxu0 0
        %760 = vmatprep.subr.bf16.mxu0 0
        %761 = vmatpush1.bf16.msra.mxu0 0
        %762 = vmatprep.subr.bf16.mxu0 0
        %763 = vmatpush1.bf16.msra.mxu0 0
        %764 = vmatprep.subr.bf16.mxu0 0
        %765 = vmatpush1.bf16.msra.mxu0 0
        %766 = vmatprep.subr.bf16.mxu0 0
        %767 = vmatpush1.bf16.msra.mxu0 0
        %768 = vmatprep.subr.bf16.mxu0 0
        %769 = vmatpush1.bf16.msra.mxu0 0
        %770 = vmatprep.subr.bf16.mxu0 0
        %771 = vmatpush1.bf16.msra.mxu0 0
        %772 = vmatprep.subr.bf16.mxu0 0
        %773 = vmatpush1.bf16.msra.mxu0 0
        %774 = vmatprep.subr.bf16.mxu0 0
        %775 = vmatpush1.bf16.msra.mxu0 0
        %776 = vmatprep.subr.bf16.mxu0 0
        %777 = vmatpush1.bf16.msra.mxu0 0
        %778 = vmatprep.subr.bf16.mxu0 0
        %779 = vmatpush1.bf16.msra.mxu0 0
        %780 = vmatprep.subr.bf16.mxu0 0
        %781 = vmatpush1.bf16.msra.mxu0 0
        %782 = vmatprep.subr.bf16.mxu0 0
        %783 = vmatpush1.bf16.msra.mxu0 0
        %784 = vmatprep.subr.bf16.mxu0 0
        %785 = vmatpush1.bf16.msra.mxu0 0
        %786 = vmatprep.mubr.bf16.mxu0 0
        %787 = vmatmul.mubr.bf16.gmra.mrb[0].mxu0 %v752
        %v788 = vpop.f32.mrb[0].mxu0
        %v789 = vadd.f32 %v737, %v788
        %v790 = vpop.f32.mrb[0].mxu0
        %v791 = vpop.f32.mrb[0].mxu0
        %v792 = vpop.f32.mrb[0].mxu0
        %793 = vdwg.mxu0
        %v794 = vld [vmem:[%s7] sm:$0xf]
        %v795 = vld [vmem:[%s7 + $0x4] sm:$0xf]
        %v796 = vld [vmem:[%s7 + $0x8] sm:$0xf]
        %v797 = vld [vmem:[%s7 + $0xc] sm:$0xf]
        %v798 = vld [vmem:[%s8] sm:$0x1]
        %v800 = vlaneseq
        %v801 = vshrl.u32 %v800, 7
        %v802 = vsub.s32 0, %v801
        %v803 = vrot.slane %v798, %v802
        %v809 = vunpack.c.l.b16 %v794
        %v810 = vunpack.c.l.b16 %v795
        %v811 = vunpack.c.l.b16 %v796
        %v812 = vunpack.c.l.b16 %v797
        %v813 = vpack.c.b16 %v810, %v809
        %v814 = vpack.c.b16 %v812, %v811
        %817 = vmatprep.subr.bf16.mxu0 0
        %818 = vmatpush1.bf16.msra.mxu0 %v813
        %819 = vmatprep.subr.bf16.mxu0 0
        %820 = vmatpush1.bf16.msra.mxu0 %v814
        %821 = vmatprep.subr.bf16.mxu0 0
        %822 = vmatpush1.bf16.msra.mxu0 0
        %823 = vmatprep.subr.bf16.mxu0 0
        %824 = vmatpush1.bf16.msra.mxu0 0
        %825 = vmatprep.subr.bf16.mxu0 0
        %826 = vmatpush1.bf16.msra.mxu0 0
        %827 = vmatprep.subr.bf16.mxu0 0
        %828 = vmatpush1.bf16.msra.mxu0 0
        %829 = vmatprep.subr.bf16.mxu0 0
        %830 = vmatpush1.bf16.msra.mxu0 0
        %831 = vmatprep.subr.bf16.mxu0 0
        %832 = vmatpush1.bf16.msra.mxu0 0
        %833 = vmatprep.subr.bf16.mxu0 0
        %834 = vmatpush1.bf16.msra.mxu0 0
        %835 = vmatprep.subr.bf16.mxu0 0
        %836 = vmatpush1.bf16.msra.mxu0 0
        %837 = vmatprep.subr.bf16.mxu0 0
        %838 = vmatpush1.bf16.msra.mxu0 0
        %839 = vmatprep.subr.bf16.mxu0 0
        %840 = vmatpush1.bf16.msra.mxu0 0
        %841 = vmatprep.subr.bf16.mxu0 0
        %842 = vmatpush1.bf16.msra.mxu0 0
        %843 = vmatprep.subr.bf16.mxu0 0
        %844 = vmatpush1.bf16.msra.mxu0 0
        %845 = vmatprep.subr.bf16.mxu0 0
        %846 = vmatpush1.bf16.msra.mxu0 0
        %847 = vmatprep.subr.bf16.mxu0 0
        %848 = vmatpush1.bf16.msra.mxu0 0
        %849 = vmatprep.mubr.bf16.mxu0 0
        %850 = vmatmul.mubr.bf16.gmra.mrb[0].mxu0 %v752
        %v851 = vpop.f32.mrb[0].mxu0
        %v852 = vadd.f32 %v803, %v851
        %v853 = vpop.f32.mrb[0].mxu0
        %v854 = vpop.f32.mrb[0].mxu0
        %v855 = vpop.f32.mrb[0].mxu0
        %856 = vdwg.mxu0
        %858 = vrot.lane.b32.xlu0 %v727, 120
        %v859 = vpop.permute.xlu0 %858
        %861 = vrot.lane.b32.xlu0 %v727, 112
        %v862 = vpop.permute.xlu0 %861
        %864 = vrot.lane.b32.xlu0 %v727, 104
        %v865 = vpop.permute.xlu0 %864
        %v867 = vcombine.low %v727, %v862
        %v868 = vcombine.high %v727, %v862
        %v870 = vunpack.c.l.s4 1983009808
        %v871 = vunpack.c.0.s8 %v870
        %v872 = vlaneseq
        %v873 = vshrl.u32 %v872, 7
        %v874 = vsub.s32 %v871, %v873
        %v875 = vrot.slane %v867, %v874
        %v877 = vunpack.c.l.s4 1983009808
        %v878 = vunpack.c.0.s8 %v877
        %v879 = vlaneseq
        %v880 = vshrl.u32 %v879, 7
        %v881 = vsub.s32 %v878, %v880
        %v882 = vrot.slane %v868, %v881
        %v883 = vcombine.low %v859, %v865
        %v884 = vcombine.high %v859, %v865
        %v886 = vunpack.c.l.s4 1983009808
        %v887 = vunpack.c.0.s8 %v886
        %v888 = vlaneseq
        %v889 = vshrl.u32 %v888, 7
        %v890 = vsub.s32 %v887, %v889
        %v891 = vrot.slane %v883, %v890
        %v893 = vunpack.c.l.s4 1983009808
        %v894 = vunpack.c.0.s8 %v893
        %v895 = vlaneseq
        %v896 = vshrl.u32 %v895, 7
        %v897 = vsub.s32 %v894, %v896
        %v898 = vrot.slane %v884, %v897
        %v899 = vcombine.low %v875, %v891
        %v900 = vcombine.high %v875, %v891
        %v902 = vunpack.c.l.s4 1934713408
        %v903 = vunpack.c.0.s8 %v902
        %v904 = vlaneseq
        %v905 = vshrl.u32 %v904, 7
        %v906 = vsub.s32 %v903, %v905
        %v907 = vrot.slane %v899, %v906
        %v909 = vunpack.c.l.s4 1934713408
        %v910 = vunpack.c.0.s8 %v909
        %v911 = vlaneseq
        %v912 = vshrl.u32 %v911, 7
        %v913 = vsub.s32 %v910, %v912
        %v914 = vrot.slane %v900, %v913
        %v915 = vcombine.low %v882, %v898
        %v916 = vcombine.high %v882, %v898
        %v918 = vunpack.c.l.s4 1934713408
        %v919 = vunpack.c.0.s8 %v918
        %v920 = vlaneseq
        %v921 = vshrl.u32 %v920, 7
        %v922 = vsub.s32 %v919, %v921
        %v923 = vrot.slane %v915, %v922
        %v925 = vunpack.c.l.s4 1934713408
        %v926 = vunpack.c.0.s8 %v925
        %v927 = vlaneseq
        %v928 = vshrl.u32 %v927, 7
        %v929 = vsub.s32 %v926, %v928
        %v930 = vrot.slane %v916, %v929
        %v931 = vcombine.high %v907, 0.0
        %v932 = vcombine.high %v914, 0.0
        %v933 = vcombine.high %v923, 0.0
        %v934 = vcombine.high %v930, 0.0
        %v935 = vcombine.low %v907, %v914
        %v937 = vunpack.c.l.s4 1983009808
        %v938 = vunpack.c.0.s8 %v937
        %v939 = vlaneseq
        %v940 = vshrl.u32 %v939, 7
        %v941 = vsub.s32 %v938, %v940
        %v942 = vrot.slane %v935, %v941
        %v943 = vcombine.low %v931, %v932
        %v945 = vunpack.c.l.s4 1983009808
        %v946 = vunpack.c.0.s8 %v945
        %v947 = vlaneseq
        %v948 = vshrl.u32 %v947, 7
        %v949 = vsub.s32 %v946, %v948
        %v950 = vrot.slane %v943, %v949
        %v951 = vcombine.low %v923, %v930
        %v953 = vunpack.c.l.s4 1983009808
        %v954 = vunpack.c.0.s8 %v953
        %v955 = vlaneseq
        %v956 = vshrl.u32 %v955, 7
        %v957 = vsub.s32 %v954, %v956
        %v958 = vrot.slane %v951, %v957
        %v959 = vcombine.low %v933, %v934
        %v961 = vunpack.c.l.s4 1983009808
        %v962 = vunpack.c.0.s8 %v961
        %v963 = vlaneseq
        %v964 = vshrl.u32 %v963, 7
        %v965 = vsub.s32 %v962, %v964
        %v966 = vrot.slane %v959, %v965
        %v967 = vcombine.low %v942, %v950
        %v968 = vcombine.high %v942, %v950
        %v970 = vunpack.c.l.s4 1934713408
        %v971 = vunpack.c.0.s8 %v970
        %v972 = vlaneseq
        %v973 = vshrl.u32 %v972, 7
        %v974 = vsub.s32 %v971, %v973
        %v975 = vrot.slane %v967, %v974
        %v977 = vunpack.c.l.s4 1934713408
        %v978 = vunpack.c.0.s8 %v977
        %v979 = vlaneseq
        %v980 = vshrl.u32 %v979, 7
        %v981 = vsub.s32 %v978, %v980
        %v982 = vrot.slane %v968, %v981
        %v983 = vcombine.low %v958, %v966
        %v984 = vcombine.high %v958, %v966
        %v986 = vunpack.c.l.s4 1934713408
        %v987 = vunpack.c.0.s8 %v986
        %v988 = vlaneseq
        %v989 = vshrl.u32 %v988, 7
        %v990 = vsub.s32 %v987, %v989
        %v991 = vrot.slane %v983, %v990
        %v993 = vunpack.c.l.s4 1934713408
        %v994 = vunpack.c.0.s8 %v993
        %v995 = vlaneseq
        %v996 = vshrl.u32 %v995, 7
        %v997 = vsub.s32 %v994, %v996
        %v998 = vrot.slane %v984, %v997
        %v999 = vcombine.low %v975, %v991
        %v1000 = vcombine.high %v975, %v991
        %v1001 = vcombine.low %v982, %v998
        %v1002 = vcombine.high %v982, %v998
        %v1003 = vpack.c.bf16 %v999, %v999
        %v1004 = vpack.c.bf16 %v1000, %v1000
        %v1005 = vpack.c.bf16 %v1001, %v1001
        %v1006 = vpack.c.bf16 %v1002, %v1002
        %1008 = vrot.lane.b32.xlu0 %v789, 120
        %v1009 = vpop.permute.xlu0 %1008
        %1011 = vrot.lane.b32.xlu0 %v789, 112
        %v1012 = vpop.permute.xlu0 %1011
        %1014 = vrot.lane.b32.xlu0 %v789, 104
        %v1015 = vpop.permute.xlu0 %1014
        %v1017 = vcombine.low %v789, %v1012
        %v1018 = vcombine.high %v789, %v1012
        %v1020 = vunpack.c.l.s4 1983009808
        %v1021 = vunpack.c.0.s8 %v1020
        %v1022 = vlaneseq
        %v1023 = vshrl.u32 %v1022, 7
        %v1024 = vsub.s32 %v1021, %v1023
        %v1025 = vrot.slane %v1017, %v1024
        %v1027 = vunpack.c.l.s4 1983009808
        %v1028 = vunpack.c.0.s8 %v1027
        %v1029 = vlaneseq
        %v1030 = vshrl.u32 %v1029, 7
        %v1031 = vsub.s32 %v1028, %v1030
        %v1032 = vrot.slane %v1018, %v1031
        %v1033 = vcombine.low %v1009, %v1015
        %v1034 = vcombine.high %v1009, %v1015
        %v1036 = vunpack.c.l.s4 1983009808
        %v1037 = vunpack.c.0.s8 %v1036
        %v1038 = vlaneseq
        %v1039 = vshrl.u32 %v1038, 7
        %v1040 = vsub.s32 %v1037, %v1039
        %v1041 = vrot.slane %v1033, %v1040
        %v1043 = vunpack.c.l.s4 1983009808
        %v1044 = vunpack.c.0.s8 %v1043
        %v1045 = vlaneseq
        %v1046 = vshrl.u32 %v1045, 7
        %v1047 = vsub.s32 %v1044, %v1046
        %v1048 = vrot.slane %v1034, %v1047
        %v1049 = vcombine.low %v1025, %v1041
        %v1050 = vcombine.high %v1025, %v1041
        %v1052 = vunpack.c.l.s4 1934713408
        %v1053 = vunpack.c.0.s8 %v1052
        %v1054 = vlaneseq
        %v1055 = vshrl.u32 %v1054, 7
        %v1056 = vsub.s32 %v1053, %v1055
        %v1057 = vrot.slane %v1049, %v1056
        %v1059 = vunpack.c.l.s4 1934713408
        %v1060 = vunpack.c.0.s8 %v1059
        %v1061 = vlaneseq
        %v1062 = vshrl.u32 %v1061, 7
        %v1063 = vsub.s32 %v1060, %v1062
        %v1064 = vrot.slane %v1050, %v1063
        %v1065 = vcombine.low %v1032, %v1048
        %v1066 = vcombine.high %v1032, %v1048
        %v1068 = vunpack.c.l.s4 1934713408
        %v1069 = vunpack.c.0.s8 %v1068
        %v1070 = vlaneseq
        %v1071 = vshrl.u32 %v1070, 7
        %v1072 = vsub.s32 %v1069, %v1071
        %v1073 = vrot.slane %v1065, %v1072
        %v1075 = vunpack.c.l.s4 1934713408
        %v1076 = vunpack.c.0.s8 %v1075
        %v1077 = vlaneseq
        %v1078 = vshrl.u32 %v1077, 7
        %v1079 = vsub.s32 %v1076, %v1078
        %v1080 = vrot.slane %v1066, %v1079
        %v1081 = vcombine.high %v1057, 0.0
        %v1082 = vcombine.high %v1064, 0.0
        %v1083 = vcombine.high %v1073, 0.0
        %v1084 = vcombine.high %v1080, 0.0
        %v1085 = vcombine.low %v1057, %v1064
        %v1087 = vunpack.c.l.s4 1983009808
        %v1088 = vunpack.c.0.s8 %v1087
        %v1089 = vlaneseq
        %v1090 = vshrl.u32 %v1089, 7
        %v1091 = vsub.s32 %v1088, %v1090
        %v1092 = vrot.slane %v1085, %v1091
        %v1093 = vcombine.low %v1081, %v1082
        %v1095 = vunpack.c.l.s4 1983009808
        %v1096 = vunpack.c.0.s8 %v1095
        %v1097 = vlaneseq
        %v1098 = vshrl.u32 %v1097, 7
        %v1099 = vsub.s32 %v1096, %v1098
        %v1100 = vrot.slane %v1093, %v1099
        %v1101 = vcombine.low %v1073, %v1080
        %v1103 = vunpack.c.l.s4 1983009808
        %v1104 = vunpack.c.0.s8 %v1103
        %v1105 = vlaneseq
        %v1106 = vshrl.u32 %v1105, 7
        %v1107 = vsub.s32 %v1104, %v1106
        %v1108 = vrot.slane %v1101, %v1107
        %v1109 = vcombine.low %v1083, %v1084
        %v1111 = vunpack.c.l.s4 1983009808
        %v1112 = vunpack.c.0.s8 %v1111
        %v1113 = vlaneseq
        %v1114 = vshrl.u32 %v1113, 7
        %v1115 = vsub.s32 %v1112, %v1114
        %v1116 = vrot.slane %v1109, %v1115
        %v1117 = vcombine.low %v1092, %v1100
        %v1118 = vcombine.high %v1092, %v1100
        %v1120 = vunpack.c.l.s4 1934713408
        %v1121 = vunpack.c.0.s8 %v1120
        %v1122 = vlaneseq
        %v1123 = vshrl.u32 %v1122, 7
        %v1124 = vsub.s32 %v1121, %v1123
        %v1125 = vrot.slane %v1117, %v1124
        %v1127 = vunpack.c.l.s4 1934713408
        %v1128 = vunpack.c.0.s8 %v1127
        %v1129 = vlaneseq
        %v1130 = vshrl.u32 %v1129, 7
        %v1131 = vsub.s32 %v1128, %v1130
        %v1132 = vrot.slane %v1118, %v1131
        %v1133 = vcombine.low %v1108, %v1116
        %v1134 = vcombine.high %v1108, %v1116
        %v1136 = vunpack.c.l.s4 1934713408
        %v1137 = vunpack.c.0.s8 %v1136
        %v1138 = vlaneseq
        %v1139 = vshrl.u32 %v1138, 7
        %v1140 = vsub.s32 %v1137, %v1139
        %v1141 = vrot.slane %v1133, %v1140
        %v1143 = vunpack.c.l.s4 1934713408
        %v1144 = vunpack.c.0.s8 %v1143
        %v1145 = vlaneseq
        %v1146 = vshrl.u32 %v1145, 7
        %v1147 = vsub.s32 %v1144, %v1146
        %v1148 = vrot.slane %v1134, %v1147
        %v1149 = vcombine.low %v1125, %v1141
        %v1150 = vcombine.high %v1125, %v1141
        %v1151 = vcombine.low %v1132, %v1148
        %v1152 = vcombine.high %v1132, %v1148
        %v1153 = vpack.c.bf16 %v1149, %v1149
        %v1154 = vpack.c.bf16 %v1150, %v1150
        %v1155 = vpack.c.bf16 %v1151, %v1151
        %v1156 = vpack.c.bf16 %v1152, %v1152
        %1158 = vrot.lane.b32.xlu0 %v852, 120
        %v1159 = vpop.permute.xlu0 %1158
        %1161 = vrot.lane.b32.xlu0 %v852, 112
        %v1162 = vpop.permute.xlu0 %1161
        %1164 = vrot.lane.b32.xlu0 %v852, 104
        %v1165 = vpop.permute.xlu0 %1164
        %v1167 = vcombine.low %v852, %v1162
        %v1168 = vcombine.high %v852, %v1162
        %v1170 = vunpack.c.l.s4 1983009808
        %v1171 = vunpack.c.0.s8 %v1170
        %v1172 = vlaneseq
        %v1173 = vshrl.u32 %v1172, 7
        %v1174 = vsub.s32 %v1171, %v1173
        %v1175 = vrot.slane %v1167, %v1174
        %v1177 = vunpack.c.l.s4 1983009808
        %v1178 = vunpack.c.0.s8 %v1177
        %v1179 = vlaneseq
        %v1180 = vshrl.u32 %v1179, 7
        %v1181 = vsub.s32 %v1178, %v1180
        %v1182 = vrot.slane %v1168, %v1181
        %v1183 = vcombine.low %v1159, %v1165
        %v1184 = vcombine.high %v1159, %v1165
        %v1186 = vunpack.c.l.s4 1983009808
        %v1187 = vunpack.c.0.s8 %v1186
        %v1188 = vlaneseq
        %v1189 = vshrl.u32 %v1188, 7
        %v1190 = vsub.s32 %v1187, %v1189
        %v1191 = vrot.slane %v1183, %v1190
        %v1193 = vunpack.c.l.s4 1983009808
        %v1194 = vunpack.c.0.s8 %v1193
        %v1195 = vlaneseq
        %v1196 = vshrl.u32 %v1195, 7
        %v1197 = vsub.s32 %v1194, %v1196
        %v1198 = vrot.slane %v1184, %v1197
        %v1199 = vcombine.low %v1175, %v1191
        %v1200 = vcombine.high %v1175, %v1191
        %v1202 = vunpack.c.l.s4 1934713408
        %v1203 = vunpack.c.0.s8 %v1202
        %v1204 = vlaneseq
        %v1205 = vshrl.u32 %v1204, 7
        %v1206 = vsub.s32 %v1203, %v1205
        %v1207 = vrot.slane %v1199, %v1206
        %v1209 = vunpack.c.l.s4 1934713408
        %v1210 = vunpack.c.0.s8 %v1209
        %v1211 = vlaneseq
        %v1212 = vshrl.u32 %v1211, 7
        %v1213 = vsub.s32 %v1210, %v1212
        %v1214 = vrot.slane %v1200, %v1213
        %v1215 = vcombine.low %v1182, %v1198
        %v1216 = vcombine.high %v1182, %v1198
        %v1218 = vunpack.c.l.s4 1934713408
        %v1219 = vunpack.c.0.s8 %v1218
        %v1220 = vlaneseq
        %v1221 = vshrl.u32 %v1220, 7
        %v1222 = vsub.s32 %v1219, %v1221
        %v1223 = vrot.slane %v1215, %v1222
        %v1225 = vunpack.c.l.s4 1934713408
        %v1226 = vunpack.c.0.s8 %v1225
        %v1227 = vlaneseq
        %v1228 = vshrl.u32 %v1227, 7
        %v1229 = vsub.s32 %v1226, %v1228
        %v1230 = vrot.slane %v1216, %v1229
        %v1231 = vcombine.high %v1207, 0.0
        %v1232 = vcombine.high %v1214, 0.0
        %v1233 = vcombine.high %v1223, 0.0
        %v1234 = vcombine.high %v1230, 0.0
        %v1235 = vcombine.low %v1207, %v1214
        %v1237 = vunpack.c.l.s4 1983009808
        %v1238 = vunpack.c.0.s8 %v1237
        %v1239 = vlaneseq
        %v1240 = vshrl.u32 %v1239, 7
        %v1241 = vsub.s32 %v1238, %v1240
        %v1242 = vrot.slane %v1235, %v1241
        %v1243 = vcombine.low %v1231, %v1232
        %v1245 = vunpack.c.l.s4 1983009808
        %v1246 = vunpack.c.0.s8 %v1245
        %v1247 = vlaneseq
        %v1248 = vshrl.u32 %v1247, 7
        %v1249 = vsub.s32 %v1246, %v1248
        %v1250 = vrot.slane %v1243, %v1249
        %v1251 = vcombine.low %v1223, %v1230
        %v1253 = vunpack.c.l.s4 1983009808
        %v1254 = vunpack.c.0.s8 %v1253
        %v1255 = vlaneseq
        %v1256 = vshrl.u32 %v1255, 7
        %v1257 = vsub.s32 %v1254, %v1256
        %v1258 = vrot.slane %v1251, %v1257
        %v1259 = vcombine.low %v1233, %v1234
        %v1261 = vunpack.c.l.s4 1983009808
        %v1262 = vunpack.c.0.s8 %v1261
        %v1263 = vlaneseq
        %v1264 = vshrl.u32 %v1263, 7
        %v1265 = vsub.s32 %v1262, %v1264
        %v1266 = vrot.slane %v1259, %v1265
        %v1267 = vcombine.low %v1242, %v1250
        %v1268 = vcombine.high %v1242, %v1250
        %v1270 = vunpack.c.l.s4 1934713408
        %v1271 = vunpack.c.0.s8 %v1270
        %v1272 = vlaneseq
        %v1273 = vshrl.u32 %v1272, 7
        %v1274 = vsub.s32 %v1271, %v1273
        %v1275 = vrot.slane %v1267, %v1274
        %v1277 = vunpack.c.l.s4 1934713408
        %v1278 = vunpack.c.0.s8 %v1277
        %v1279 = vlaneseq
        %v1280 = vshrl.u32 %v1279, 7
        %v1281 = vsub.s32 %v1278, %v1280
        %v1282 = vrot.slane %v1268, %v1281
        %v1283 = vcombine.low %v1258, %v1266
        %v1284 = vcombine.high %v1258, %v1266
        %v1286 = vunpack.c.l.s4 1934713408
        %v1287 = vunpack.c.0.s8 %v1286
        %v1288 = vlaneseq
        %v1289 = vshrl.u32 %v1288, 7
        %v1290 = vsub.s32 %v1287, %v1289
        %v1291 = vrot.slane %v1283, %v1290
        %v1293 = vunpack.c.l.s4 1934713408
        %v1294 = vunpack.c.0.s8 %v1293
        %v1295 = vlaneseq
        %v1296 = vshrl.u32 %v1295, 7
        %v1297 = vsub.s32 %v1294, %v1296
        %v1298 = vrot.slane %v1284, %v1297
        %v1299 = vcombine.low %v1275, %v1291
        %v1300 = vcombine.high %v1275, %v1291
        %v1301 = vcombine.low %v1282, %v1298
        %v1302 = vcombine.high %v1282, %v1298
        %v1303 = vpack.c.bf16 %v1299, %v1299
        %v1304 = vpack.c.bf16 %v1300, %v1300
        %v1305 = vpack.c.bf16 %v1301, %v1301
        %v1306 = vpack.c.bf16 %v1302, %v1302
        %v1308 = vlaneseq
        %v1309 = vshrl.u32 %v1308, 7
        %v1310 = vsub.s32 0, %v1309
        %v1311 = vrot.slane %v657, %v1310
        %vm1313 = vcmask 64512
        %v1315 = vsel %vm1313, %v1003, 0
        %v1318 = vsel %vm1313, %v1153, 0
        %1320 = vmatprep.subr.bf16.mxu0 0
        %1321 = vmatpush1.bf16.xpose.msra.mxu0 %v1318
        %1322 = vmatprep.subr.bf16.mxu0 0
        %1323 = vmatpush1.bf16.xpose.msra.mxu0 0
        %1324 = vmatprep.subr.bf16.mxu0 0
        %1325 = vmatpush1.bf16.xpose.msra.mxu0 0
        %1326 = vmatprep.subr.bf16.mxu0 0
        %1327 = vmatpush1.bf16.xpose.msra.mxu0 0
        %1328 = vmatprep.subr.bf16.mxu0 0
        %1329 = vmatpush1.bf16.xpose.msra.mxu0 0
        %1330 = vmatprep.subr.bf16.mxu0 0
        %1331 = vmatpush1.bf16.xpose.msra.mxu0 0
        %1332 = vmatprep.subr.bf16.mxu0 0
        %1333 = vmatpush1.bf16.xpose.msra.mxu0 0
        %1334 = vmatprep.subr.bf16.mxu0 0
        %1335 = vmatpush1.bf16.xpose.msra.mxu0 0
        %1336 = vmatprep.subr.bf16.mxu0 0
        %1337 = vmatpush1.bf16.xpose.msra.mxu0 0
        %1338 = vmatprep.subr.bf16.mxu0 0
        %1339 = vmatpush1.bf16.xpose.msra.mxu0 0
        %1340 = vmatprep.subr.bf16.mxu0 0
        %1341 = vmatpush1.bf16.xpose.msra.mxu0 0
        %1342 = vmatprep.subr.bf16.mxu0 0
        %1343 = vmatpush1.bf16.xpose.msra.mxu0 0
        %1344 = vmatprep.subr.bf16.mxu0 0
        %1345 = vmatpush1.bf16.xpose.msra.mxu0 0
        %1346 = vmatprep.subr.bf16.mxu0 0
        %1347 = vmatpush1.bf16.xpose.msra.mxu0 0
        %1348 = vmatprep.subr.bf16.mxu0 0
        %1349 = vmatpush1.bf16.xpose.msra.mxu0 0
        %1350 = vmatprep.subr.bf16.mxu0 0
        %1351 = vmatpush1.bf16.xpose.msra.mxu0 0
        %1352 = vmatprep.mubr.bf16.mxu0 0
        %1353 = vmatmul.mubr.bf16.gmra.mrb[0].mxu0 %v1315
        %v1354 = vpop.f32.mrb[0].mxu0
        %v1355 = vadd.f32 %v1311, %v1354
        %v1356 = vpop.f32.mrb[0].mxu0
        %v1357 = vpop.f32.mrb[0].mxu0
        %v1358 = vpop.f32.mrb[0].mxu0
        %1359 = vdwg.mxu0
        %v1361 = vsel %vm1313, %v1004, 0
        %v1364 = vsel %vm1313, %v1154, 0
        %1366 = vmatprep.subr.bf16.mxu0 0
        %1367 = vmatpush1.bf16.xpose.msra.mxu0 %v1364
        %1368 = vmatprep.subr.bf16.mxu0 0
        %1369 = vmatpush1.bf16.xpose.msra.mxu0 0
        %1370 = vmatprep.subr.bf16.mxu0 0
        %1371 = vmatpush1.bf16.xpose.msra.mxu0 0
        %1372 = vmatprep.subr.bf16.mxu0 0
        %1373 = vmatpush1.bf16.xpose.msra.mxu0 0
        %1374 = vmatprep.subr.bf16.mxu0 0
        %1375 = vmatpush1.bf16.xpose.msra.mxu0 0
        %1376 = vmatprep.subr.bf16.mxu0 0
        %1377 = vmatpush1.bf16.xpose.msra.mxu0 0
        %1378 = vmatprep.subr.bf16.mxu0 0
        %1379 = vmatpush1.bf16.xpose.msra.mxu0 0
        %1380 = vmatprep.subr.bf16.mxu0 0
        %1381 = vmatpush1.bf16.xpose.msra.mxu0 0
        %1382 = vmatprep.subr.bf16.mxu0 0
        %1383 = vmatpush1.bf16.xpose.msra.mxu0 0
        %1384 = vmatprep.subr.bf16.mxu0 0
        %1385 = vmatpush1.bf16.xpose.msra.mxu0 0
        %1386 = vmatprep.subr.bf16.mxu0 0
        %1387 = vmatpush1.bf16.xpose.msra.mxu0 0
        %1388 = vmatprep.subr.bf16.mxu0 0
        %1389 = vmatpush1.bf16.xpose.msra.mxu0 0
        %1390 = vmatprep.subr.bf16.mxu0 0
        %1391 = vmatpush1.bf16.xpose.msra.mxu0 0
        %1392 = vmatprep.subr.bf16.mxu0 0
        %1393 = vmatpush1.bf16.xpose.msra.mxu0 0
        %1394 = vmatprep.subr.bf16.mxu0 0
        %1395 = vmatpush1.bf16.xpose.msra.mxu0 0
        %1396 = vmatprep.subr.bf16.mxu0 0
        %1397 = vmatpush1.bf16.xpose.msra.mxu0 0
        %1398 = vmatprep.mubr.bf16.mxu0 0
        %1399 = vmatmul.mubr.bf16.gmra.mrb[0].mxu0 %v1361
        %v1400 = vpop.f32.mrb[0].mxu0
        %v1401 = vadd.f32 %v1311, %v1400
        %v1402 = vpop.f32.mrb[0].mxu0
        %v1403 = vpop.f32.mrb[0].mxu0
        %v1404 = vpop.f32.mrb[0].mxu0
        %1405 = vdwg.mxu0
        %v1407 = vsel %vm1313, %v1005, 0
        %v1410 = vsel %vm1313, %v1155, 0
        %1412 = vmatprep.subr.bf16.mxu0 0
        %1413 = vmatpush1.bf16.xpose.msra.mxu0 %v1410
        %1414 = vmatprep.subr.bf16.mxu0 0
        %1415 = vmatpush1.bf16.xpose.msra.mxu0 0
        %1416 = vmatprep.subr.bf16.mxu0 0
        %1417 = vmatpush1.bf16.xpose.msra.mxu0 0
        %1418 = vmatprep.subr.bf16.mxu0 0
        %1419 = vmatpush1.bf16.xpose.msra.mxu0 0
        %1420 = vmatprep.subr.bf16.mxu0 0
        %1421 = vmatpush1.bf16.xpose.msra.mxu0 0
        %1422 = vmatprep.subr.bf16.mxu0 0
        %1423 = vmatpush1.bf16.xpose.msra.mxu0 0
        %1424 = vmatprep.subr.bf16.mxu0 0
        %1425 = vmatpush1.bf16.xpose.msra.mxu0 0
        %1426 = vmatprep.subr.bf16.mxu0 0
        %1427 = vmatpush1.bf16.xpose.msra.mxu0 0
        %1428 = vmatprep.subr.bf16.mxu0 0
        %1429 = vmatpush1.bf16.xpose.msra.mxu0 0
        %1430 = vmatprep.subr.bf16.mxu0 0
        %1431 = vmatpush1.bf16.xpose.msra.mxu0 0
        %1432 = vmatprep.subr.bf16.mxu0 0
        %1433 = vmatpush1.bf16.xpose.msra.mxu0 0
        %1434 = vmatprep.subr.bf16.mxu0 0
        %1435 = vmatpush1.bf16.xpose.msra.mxu0 0
        %1436 = vmatprep.subr.bf16.mxu0 0
        %1437 = vmatpush1.bf16.xpose.msra.mxu0 0
        %1438 = vmatprep.subr.bf16.mxu0 0
        %1439 = vmatpush1.bf16.xpose.msra.mxu0 0
        %1440 = vmatprep.subr.bf16.mxu0 0
        %1441 = vmatpush1.bf16.xpose.msra.mxu0 0
        %1442 = vmatprep.subr.bf16.mxu0 0
        %1443 = vmatpush1.bf16.xpose.msra.mxu0 0
        %1444 = vmatprep.mubr.bf16.mxu0 0
        %1445 = vmatmul.mubr.bf16.gmra.mrb[0].mxu0 %v1407
        %v1446 = vpop.f32.mrb[0].mxu0
        %v1447 = vadd.f32 %v1311, %v1446
        %v1448 = vpop.f32.mrb[0].mxu0
        %v1449 = vpop.f32.mrb[0].mxu0
        %v1450 = vpop.f32.mrb[0].mxu0
        %1451 = vdwg.mxu0
        %v1453 = vsel %vm1313, %v1006, 0
        %v1456 = vsel %vm1313, %v1156, 0
        %1458 = vmatprep.subr.bf16.mxu0 0
        %1459 = vmatpush1.bf16.xpose.msra.mxu0 %v1456
        %1460 = vmatprep.subr.bf16.mxu0 0
        %1461 = vmatpush1.bf16.xpose.msra.mxu0 0
        %1462 = vmatprep.subr.bf16.mxu0 0
        %1463 = vmatpush1.bf16.xpose.msra.mxu0 0
        %1464 = vmatprep.subr.bf16.mxu0 0
        %1465 = vmatpush1.bf16.xpose.msra.mxu0 0
        %1466 = vmatprep.subr.bf16.mxu0 0
        %1467 = vmatpush1.bf16.xpose.msra.mxu0 0
        %1468 = vmatprep.subr.bf16.mxu0 0
        %1469 = vmatpush1.bf16.xpose.msra.mxu0 0
        %1470 = vmatprep.subr.bf16.mxu0 0
        %1471 = vmatpush1.bf16.xpose.msra.mxu0 0
        %1472 = vmatprep.subr.bf16.mxu0 0
        %1473 = vmatpush1.bf16.xpose.msra.mxu0 0
        %1474 = vmatprep.subr.bf16.mxu0 0
        %1475 = vmatpush1.bf16.xpose.msra.mxu0 0
        %1476 = vmatprep.subr.bf16.mxu0 0
        %1477 = vmatpush1.bf16.xpose.msra.mxu0 0
        %1478 = vmatprep.subr.bf16.mxu0 0
        %1479 = vmatpush1.bf16.xpose.msra.mxu0 0
        %1480 = vmatprep.subr.bf16.mxu0 0
        %1481 = vmatpush1.bf16.xpose.msra.mxu0 0
        %1482 = vmatprep.subr.bf16.mxu0 0
        %1483 = vmatpush1.bf16.xpose.msra.mxu0 0
        %1484 = vmatprep.subr.bf16.mxu0 0
        %1485 = vmatpush1.bf16.xpose.msra.mxu0 0
        %1486 = vmatprep.subr.bf16.mxu0 0
        %1487 = vmatpush1.bf16.xpose.msra.mxu0 0
        %1488 = vmatprep.subr.bf16.mxu0 0
        %1489 = vmatpush1.bf16.xpose.msra.mxu0 0
        %1490 = vmatprep.mubr.bf16.mxu0 0
        %1491 = vmatmul.mubr.bf16.gmra.mrb[0].mxu0 %v1453
        %v1492 = vpop.f32.mrb[0].mxu0
        %v1493 = vadd.f32 %v1311, %v1492
        %v1494 = vpop.f32.mrb[0].mxu0
        %v1495 = vpop.f32.mrb[0].mxu0
        %v1496 = vpop.f32.mrb[0].mxu0
        %1497 = vdwg.mxu0
        %v1498 = vsel %vm1313, %v1355, -inf
        %1499 = vmax.xlane.f32.xlu0 %v1498
        %v1500 = vpop.xlane.xlu0 %1499
        %v1501 = vsel %vm1313, %v1401, -inf
        %1502 = vmax.xlane.f32.xlu0 %v1501
        %v1503 = vpop.xlane.xlu0 %1502
        %v1504 = vsel %vm1313, %v1447, -inf
        %1505 = vmax.xlane.f32.xlu0 %v1504
        %v1506 = vpop.xlane.xlu0 %1505
        %v1507 = vsel %vm1313, %v1493, -inf
        %1508 = vmax.xlane.f32.xlu0 %v1507
        %v1509 = vpop.xlane.xlu0 %1508
        %v1510 = vsub.f32 %v1355, %v1500
        %v1511 = vsub.f32 %v1401, %v1503
        %v1512 = vsub.f32 %v1447, %v1506
        %v1513 = vsub.f32 %v1493, %v1509
        %v1514 = vmul.f32 %v1510, 1.442695
        %v1515 = vpow.pop %v1514
        %v1516 = vmul.f32 %v1511, 1.442695
        %v1517 = vpow.pop %v1516
        %v1518 = vmul.f32 %v1512, 1.442695
        %v1519 = vpow.pop %v1518
        %v1520 = vmul.f32 %v1513, 1.442695
        %v1521 = vpow.pop %v1520
        %v1522 = vsel %vm1313, %v1515, 0.0
        %1523 = vadd.xlane.f32.xlu0 %v1522
        %v1524 = vpop.xlane.xlu0 %1523
        %v1525 = vsel %vm1313, %v1517, 0.0
        %1526 = vadd.xlane.f32.xlu0 %v1525
        %v1527 = vpop.xlane.xlu0 %1526
        %v1528 = vsel %vm1313, %v1519, 0.0
        %1529 = vadd.xlane.f32.xlu0 %v1528
        %v1530 = vpop.xlane.xlu0 %1529
        %v1531 = vsel %vm1313, %v1521, 0.0
        %1532 = vadd.xlane.f32.xlu0 %v1531
        %v1533 = vpop.xlane.xlu0 %1532
        %v1534 = vrcp.pop %v1524
        %v1535 = vrcp.pop %v1527
        %v1536 = vrcp.pop %v1530
        %v1537 = vrcp.pop %v1533
        %v1538 = vmul.f32 %v1515, %v1534
        %v1539 = vmul.f32 %v1517, %v1535
        %v1540 = vmul.f32 %v1519, %v1536
        %v1541 = vmul.f32 %v1521, %v1537
        %v1542 = vpack.c.bf16 %v1538, %v1538
        %v1543 = vpack.c.bf16 %v1539, %v1539
        %v1544 = vpack.c.bf16 %v1540, %v1540
        %v1545 = vpack.c.bf16 %v1541, %v1541
        %v1547 = vsel %vm1313, %v1542, 0
        %vm1549 = vcmask 1043456
        %v1551 = vsel %vm1549, %v1303, 0
        %1553 = vmatprep.subr.bf16.mxu0 0
        %1554 = vmatpush1.bf16.msra.mxu0 %v1551
        %1555 = vmatprep.subr.bf16.mxu0 0
        %1556 = vmatpush1.bf16.msra.mxu0 0
        %1557 = vmatprep.subr.bf16.mxu0 0
        %1558 = vmatpush1.bf16.msra.mxu0 0
        %1559 = vmatprep.subr.bf16.mxu0 0
        %1560 = vmatpush1.bf16.msra.mxu0 0
        %1561 = vmatprep.subr.bf16.mxu0 0
        %1562 = vmatpush1.bf16.msra.mxu0 0
        %1563 = vmatprep.subr.bf16.mxu0 0
        %1564 = vmatpush1.bf16.msra.mxu0 0
        %1565 = vmatprep.subr.bf16.mxu0 0
        %1566 = vmatpush1.bf16.msra.mxu0 0
        %1567 = vmatprep.subr.bf16.mxu0 0
        %1568 = vmatpush1.bf16.msra.mxu0 0
        %1569 = vmatprep.subr.bf16.mxu0 0
        %1570 = vmatpush1.bf16.msra.mxu0 0
        %1571 = vmatprep.subr.bf16.mxu0 0
        %1572 = vmatpush1.bf16.msra.mxu0 0
        %1573 = vmatprep.subr.bf16.mxu0 0
        %1574 = vmatpush1.bf16.msra.mxu0 0
        %1575 = vmatprep.subr.bf16.mxu0 0
        %1576 = vmatpush1.bf16.msra.mxu0 0
        %1577 = vmatprep.subr.bf16.mxu0 0
        %1578 = vmatpush1.bf16.msra.mxu0 0
        %1579 = vmatprep.subr.bf16.mxu0 0
        %1580 = vmatpush1.bf16.msra.mxu0 0
        %1581 = vmatprep.subr.bf16.mxu0 0
        %1582 = vmatpush1.bf16.msra.mxu0 0
        %1583 = vmatprep.subr.bf16.mxu0 0
        %1584 = vmatpush1.bf16.msra.mxu0 0
        %1585 = vmatprep.mubr.bf16.mxu0 0
        %1586 = vmatmul.mubr.bf16.gmra.mrb[0].mxu0 %v1547
        %v1587 = vpop.f32.mrb[0].mxu0
        %v1588 = vadd.f32 0.0, %v1587
        %v1589 = vpop.f32.mrb[0].mxu0
        %v1590 = vpop.f32.mrb[0].mxu0
        %v1591 = vpop.f32.mrb[0].mxu0
        %1592 = vdwg.mxu0
        %v1594 = vsel %vm1313, %v1543, 0
        %v1597 = vsel %vm1549, %v1304, 0
        %1599 = vmatprep.subr.bf16.mxu0 0
        %1600 = vmatpush1.bf16.msra.mxu0 %v1597
        %1601 = vmatprep.subr.bf16.mxu0 0
        %1602 = vmatpush1.bf16.msra.mxu0 0
        %1603 = vmatprep.subr.bf16.mxu0 0
        %1604 = vmatpush1.bf16.msra.mxu0 0
        %1605 = vmatprep.subr.bf16.mxu0 0
        %1606 = vmatpush1.bf16.msra.mxu0 0
        %1607 = vmatprep.subr.bf16.mxu0 0
        %1608 = vmatpush1.bf16.msra.mxu0 0
        %1609 = vmatprep.subr.bf16.mxu0 0
        %1610 = vmatpush1.bf16.msra.mxu0 0
        %1611 = vmatprep.subr.bf16.mxu0 0
        %1612 = vmatpush1.bf16.msra.mxu0 0
        %1613 = vmatprep.subr.bf16.mxu0 0
        %1614 = vmatpush1.bf16.msra.mxu0 0
        %1615 = vmatprep.subr.bf16.mxu0 0
        %1616 = vmatpush1.bf16.msra.mxu0 0
        %1617 = vmatprep.subr.bf16.mxu0 0
        %1618 = vmatpush1.bf16.msra.mxu0 0
        %1619 = vmatprep.subr.bf16.mxu0 0
        %1620 = vmatpush1.bf16.msra.mxu0 0
        %1621 = vmatprep.subr.bf16.mxu0 0
        %1622 = vmatpush1.bf16.msra.mxu0 0
        %1623 = vmatprep.subr.bf16.mxu0 0
        %1624 = vmatpush1.bf16.msra.mxu0 0
        %1625 = vmatprep.subr.bf16.mxu0 0
        %1626 = vmatpush1.bf16.msra.mxu0 0
        %1627 = vmatprep.subr.bf16.mxu0 0
        %1628 = vmatpush1.bf16.msra.mxu0 0
        %1629 = vmatprep.subr.bf16.mxu0 0
        %1630 = vmatpush1.bf16.msra.mxu0 0
        %1631 = vmatprep.mubr.bf16.mxu0 0
        %1632 = vmatmul.mubr.bf16.gmra.mrb[0].mxu0 %v1594
        %v1633 = vpop.f32.mrb[0].mxu0
        %v1634 = vadd.f32 0.0, %v1633
        %v1635 = vpop.f32.mrb[0].mxu0
        %v1636 = vpop.f32.mrb[0].mxu0
        %v1637 = vpop.f32.mrb[0].mxu0
        %1638 = vdwg.mxu0
        %v1640 = vsel %vm1313, %v1544, 0
        %v1643 = vsel %vm1549, %v1305, 0
        %1645 = vmatprep.subr.bf16.mxu0 0
        %1646 = vmatpush1.bf16.msra.mxu0 %v1643
        %1647 = vmatprep.subr.bf16.mxu0 0
        %1648 = vmatpush1.bf16.msra.mxu0 0
        %1649 = vmatprep.subr.bf16.mxu0 0
        %1650 = vmatpush1.bf16.msra.mxu0 0
        %1651 = vmatprep.subr.bf16.mxu0 0
        %1652 = vmatpush1.bf16.msra.mxu0 0
        %1653 = vmatprep.subr.bf16.mxu0 0
        %1654 = vmatpush1.bf16.msra.mxu0 0
        %1655 = vmatprep.subr.bf16.mxu0 0
        %1656 = vmatpush1.bf16.msra.mxu0 0
        %1657 = vmatprep.subr.bf16.mxu0 0
        %1658 = vmatpush1.bf16.msra.mxu0 0
        %1659 = vmatprep.subr.bf16.mxu0 0
        %1660 = vmatpush1.bf16.msra.mxu0 0
        %1661 = vmatprep.subr.bf16.mxu0 0
        %1662 = vmatpush1.bf16.msra.mxu0 0
        %1663 = vmatprep.subr.bf16.mxu0 0
        %1664 = vmatpush1.bf16.msra.mxu0 0
        %1665 = vmatprep.subr.bf16.mxu0 0
        %1666 = vmatpush1.bf16.msra.mxu0 0
        %1667 = vmatprep.subr.bf16.mxu0 0
        %1668 = vmatpush1.bf16.msra.mxu0 0
        %1669 = vmatprep.subr.bf16.mxu0 0
        %1670 = vmatpush1.bf16.msra.mxu0 0
        %1671 = vmatprep.subr.bf16.mxu0 0
        %1672 = vmatpush1.bf16.msra.mxu0 0
        %1673 = vmatprep.subr.bf16.mxu0 0
        %1674 = vmatpush1.bf16.msra.mxu0 0
        %1675 = vmatprep.subr.bf16.mxu0 0
        %1676 = vmatpush1.bf16.msra.mxu0 0
        %1677 = vmatprep.mubr.bf16.mxu0 0
        %1678 = vmatmul.mubr.bf16.gmra.mrb[0].mxu0 %v1640
        %v1679 = vpop.f32.mrb[0].mxu0
        %v1680 = vadd.f32 0.0, %v1679
        %v1681 = vpop.f32.mrb[0].mxu0
        %v1682 = vpop.f32.mrb[0].mxu0
        %v1683 = vpop.f32.mrb[0].mxu0
        %1684 = vdwg.mxu0
        %v1686 = vsel %vm1313, %v1545, 0
        %v1689 = vsel %vm1549, %v1306, 0
        %1691 = vmatprep.subr.bf16.mxu0 0
        %1692 = vmatpush1.bf16.msra.mxu0 %v1689
        %1693 = vmatprep.subr.bf16.mxu0 0
        %1694 = vmatpush1.bf16.msra.mxu0 0
        %1695 = vmatprep.subr.bf16.mxu0 0
        %1696 = vmatpush1.bf16.msra.mxu0 0
        %1697 = vmatprep.subr.bf16.mxu0 0
        %1698 = vmatpush1.bf16.msra.mxu0 0
        %1699 = vmatprep.subr.bf16.mxu0 0
        %1700 = vmatpush1.bf16.msra.mxu0 0
        %1701 = vmatprep.subr.bf16.mxu0 0
        %1702 = vmatpush1.bf16.msra.mxu0 0
        %1703 = vmatprep.subr.bf16.mxu0 0
        %1704 = vmatpush1.bf16.msra.mxu0 0
        %1705 = vmatprep.subr.bf16.mxu0 0
        %1706 = vmatpush1.bf16.msra.mxu0 0
        %1707 = vmatprep.subr.bf16.mxu0 0
        %1708 = vmatpush1.bf16.msra.mxu0 0
        %1709 = vmatprep.subr.bf16.mxu0 0
        %1710 = vmatpush1.bf16.msra.mxu0 0
        %1711 = vmatprep.subr.bf16.mxu0 0
        %1712 = vmatpush1.bf16.msra.mxu0 0
        %1713 = vmatprep.subr.bf16.mxu0 0
        %1714 = vmatpush1.bf16.msra.mxu0 0
        %1715 = vmatprep.subr.bf16.mxu0 0
        %1716 = vmatpush1.bf16.msra.mxu0 0
        %1717 = vmatprep.subr.bf16.mxu0 0
        %1718 = vmatpush1.bf16.msra.mxu0 0
        %1719 = vmatprep.subr.bf16.mxu0 0
        %1720 = vmatpush1.bf16.msra.mxu0 0
        %1721 = vmatprep.subr.bf16.mxu0 0
        %1722 = vmatpush1.bf16.msra.mxu0 0
        %1723 = vmatprep.mubr.bf16.mxu0 0
        %1724 = vmatmul.mubr.bf16.gmra.mrb[0].mxu0 %v1686
        %v1725 = vpop.f32.mrb[0].mxu0
        %v1726 = vadd.f32 0.0, %v1725
        %v1727 = vpop.f32.mrb[0].mxu0
        %v1728 = vpop.f32.mrb[0].mxu0
        %v1729 = vpop.f32.mrb[0].mxu0
        %1730 = vdwg.mxu0
        %v1731 = vcombine.low %v1588, %v1680
        %v1732 = vcombine.high %v1588, %v1680
        %v1734 = vunpack.c.l.s4 1983009808
        %v1735 = vunpack.c.0.s8 %v1734
        %v1736 = vlaneseq
        %v1737 = vshrl.u32 %v1736, 7
        %v1738 = vsub.s32 %v1735, %v1737
        %v1739 = vrot.slane %v1731, %v1738
        %v1741 = vunpack.c.l.s4 1983009808
        %v1742 = vunpack.c.0.s8 %v1741
        %v1743 = vlaneseq
        %v1744 = vshrl.u32 %v1743, 7
        %v1745 = vsub.s32 %v1742, %v1744
        %v1746 = vrot.slane %v1732, %v1745
        %v1747 = vcombine.low %v1634, %v1726
        %v1748 = vcombine.high %v1634, %v1726
        %v1750 = vunpack.c.l.s4 1983009808
        %v1751 = vunpack.c.0.s8 %v1750
        %v1752 = vlaneseq
        %v1753 = vshrl.u32 %v1752, 7
        %v1754 = vsub.s32 %v1751, %v1753
        %v1755 = vrot.slane %v1747, %v1754
        %v1757 = vunpack.c.l.s4 1983009808
        %v1758 = vunpack.c.0.s8 %v1757
        %v1759 = vlaneseq
        %v1760 = vshrl.u32 %v1759, 7
        %v1761 = vsub.s32 %v1758, %v1760
        %v1762 = vrot.slane %v1748, %v1761
        %v1763 = vcombine.low %v1739, %v1755
        %v1764 = vcombine.high %v1739, %v1755
        %v1766 = vunpack.c.l.s4 1934713408
        %v1767 = vunpack.c.0.s8 %v1766
        %v1768 = vlaneseq
        %v1769 = vshrl.u32 %v1768, 7
        %v1770 = vsub.s32 %v1767, %v1769
        %v1771 = vrot.slane %v1763, %v1770
        %v1773 = vunpack.c.l.s4 1934713408
        %v1774 = vunpack.c.0.s8 %v1773
        %v1775 = vlaneseq
        %v1776 = vshrl.u32 %v1775, 7
        %v1777 = vsub.s32 %v1774, %v1776
        %v1778 = vrot.slane %v1764, %v1777
        %v1779 = vcombine.low %v1746, %v1762
        %v1780 = vcombine.high %v1746, %v1762
        %v1782 = vunpack.c.l.s4 1934713408
        %v1783 = vunpack.c.0.s8 %v1782
        %v1784 = vlaneseq
        %v1785 = vshrl.u32 %v1784, 7
        %v1786 = vsub.s32 %v1783, %v1785
        %v1787 = vrot.slane %v1779, %v1786
        %v1789 = vunpack.c.l.s4 1934713408
        %v1790 = vunpack.c.0.s8 %v1789
        %v1791 = vlaneseq
        %v1792 = vshrl.u32 %v1791, 7
        %v1793 = vsub.s32 %v1790, %v1792
        %v1794 = vrot.slane %v1780, %v1793
        %v1795 = vcombine.high %v1771, 0.0
        %v1796 = vcombine.high %v1778, 0.0
        %v1797 = vcombine.high %v1787, 0.0
        %v1798 = vcombine.high %v1794, 0.0
        %v1799 = vcombine.low %v1771, %v1778
        %v1801 = vunpack.c.l.s4 1983009808
        %v1802 = vunpack.c.0.s8 %v1801
        %v1803 = vlaneseq
        %v1804 = vshrl.u32 %v1803, 7
        %v1805 = vsub.s32 %v1802, %v1804
        %v1806 = vrot.slane %v1799, %v1805
        %v1807 = vcombine.low %v1795, %v1796
        %v1809 = vunpack.c.l.s4 1983009808
        %v1810 = vunpack.c.0.s8 %v1809
        %v1811 = vlaneseq
        %v1812 = vshrl.u32 %v1811, 7
        %v1813 = vsub.s32 %v1810, %v1812
        %v1814 = vrot.slane %v1807, %v1813
        %v1815 = vcombine.low %v1787, %v1794
        %v1817 = vunpack.c.l.s4 1983009808
        %v1818 = vunpack.c.0.s8 %v1817
        %v1819 = vlaneseq
        %v1820 = vshrl.u32 %v1819, 7
        %v1821 = vsub.s32 %v1818, %v1820
        %v1822 = vrot.slane %v1815, %v1821
        %v1823 = vcombine.low %v1797, %v1798
        %v1825 = vunpack.c.l.s4 1983009808
        %v1826 = vunpack.c.0.s8 %v1825
        %v1827 = vlaneseq
        %v1828 = vshrl.u32 %v1827, 7
        %v1829 = vsub.s32 %v1826, %v1828
        %v1830 = vrot.slane %v1823, %v1829
        %v1831 = vcombine.low %v1806, %v1814
        %v1832 = vcombine.high %v1806, %v1814
        %v1834 = vunpack.c.l.s4 1934713408
        %v1835 = vunpack.c.0.s8 %v1834
        %v1836 = vlaneseq
        %v1837 = vshrl.u32 %v1836, 7
        %v1838 = vsub.s32 %v1835, %v1837
        %v1839 = vrot.slane %v1831, %v1838
        %v1841 = vunpack.c.l.s4 1934713408
        %v1842 = vunpack.c.0.s8 %v1841
        %v1843 = vlaneseq
        %v1844 = vshrl.u32 %v1843, 7
        %v1845 = vsub.s32 %v1842, %v1844
        %v1846 = vrot.slane %v1832, %v1845
        %v1847 = vcombine.low %v1822, %v1830
        %v1848 = vcombine.high %v1822, %v1830
        %v1850 = vunpack.c.l.s4 1934713408
        %v1851 = vunpack.c.0.s8 %v1850
        %v1852 = vlaneseq
        %v1853 = vshrl.u32 %v1852, 7
        %v1854 = vsub.s32 %v1851, %v1853
        %v1855 = vrot.slane %v1847, %v1854
        %v1857 = vunpack.c.l.s4 1934713408
        %v1858 = vunpack.c.0.s8 %v1857
        %v1859 = vlaneseq
        %v1860 = vshrl.u32 %v1859, 7
        %v1861 = vsub.s32 %v1858, %v1860
        %v1862 = vrot.slane %v1848, %v1861
        %v1863 = vcombine.low %v1839, %v1855
        %v1864 = vcombine.high %v1839, %v1855
        %v1865 = vcombine.low %v1846, %v1862
        %v1866 = vcombine.high %v1846, %v1862
        %1868 = vrot.lane.b32.xlu0 %v1864, 8
        %v1869 = vpop.permute.xlu0 %1868
        %1872 = vrot.lane.b32.xlu0 %v1865, 16
        %v1873 = vpop.permute.xlu0 %1872
        %1876 = vrot.lane.b32.xlu0 %v1866, 24
        %v1877 = vpop.permute.xlu0 %1876
        %v1879 = vsel %vm1313, %v1863, %v1869
        %vm1880 = vcmask 130048
        %v1881 = vsel %vm1880, %v1879, %v1873
        %vm1882 = vcmask 195584
        %v1883 = vsel %vm1882, %v1881, %v1877
        %v1884 = vpack.c.bf16 %v1883, %v1883
        %v1885 = vld [vmem:[%s9] sm:$0xf]
        %v1886 = vld [vmem:[%s9 + $0x4] sm:$0xf]
        %v1887 = vld [vmem:[%s9 + $0x8] sm:$0xf]
        %v1888 = vld [vmem:[%s9 + $0xc] sm:$0xf]
        %v1889 = vld [vmem:[%s10] sm:$0x1]
        %v1891 = vlaneseq
        %v1892 = vshrl.u32 %v1891, 7
        %v1893 = vsub.s32 0, %v1892
        %v1894 = vrot.slane %v1889, %v1893
        %v1900 = vunpack.c.l.b16 %v1885
        %v1901 = vunpack.c.l.b16 %v1886
        %v1902 = vunpack.c.l.b16 %v1887
        %v1903 = vunpack.c.l.b16 %v1888
        %v1904 = vpack.c.b16 %v1901, %v1900
        %v1905 = vpack.c.b16 %v1903, %v1902
        %v1909 = vsel %vm683, %v1884, 0
        %1911 = vmatprep.subr.bf16.mxu0 0
        %1912 = vmatpush1.bf16.msra.mxu0 %v1904
        %1913 = vmatprep.subr.bf16.mxu0 0
        %1914 = vmatpush1.bf16.msra.mxu0 %v1905
        %1915 = vmatprep.subr.bf16.mxu0 0
        %1916 = vmatpush1.bf16.msra.mxu0 0
        %1917 = vmatprep.subr.bf16.mxu0 0
        %1918 = vmatpush1.bf16.msra.mxu0 0
        %1919 = vmatprep.subr.bf16.mxu0 0
        %1920 = vmatpush1.bf16.msra.mxu0 0
        %1921 = vmatprep.subr.bf16.mxu0 0
        %1922 = vmatpush1.bf16.msra.mxu0 0
        %1923 = vmatprep.subr.bf16.mxu0 0
        %1924 = vmatpush1.bf16.msra.mxu0 0
        %1925 = vmatprep.subr.bf16.mxu0 0
        %1926 = vmatpush1.bf16.msra.mxu0 0
        %1927 = vmatprep.subr.bf16.mxu0 0
        %1928 = vmatpush1.bf16.msra.mxu0 0
        %1929 = vmatprep.subr.bf16.mxu0 0
        %1930 = vmatpush1.bf16.msra.mxu0 0
        %1931 = vmatprep.subr.bf16.mxu0 0
        %1932 = vmatpush1.bf16.msra.mxu0 0
        %1933 = vmatprep.subr.bf16.mxu0 0
        %1934 = vmatpush1.bf16.msra.mxu0 0
        %1935 = vmatprep.subr.bf16.mxu0 0
        %1936 = vmatpush1.bf16.msra.mxu0 0
        %1937 = vmatprep.subr.bf16.mxu0 0
        %1938 = vmatpush1.bf16.msra.mxu0 0
        %1939 = vmatprep.subr.bf16.mxu0 0
        %1940 = vmatpush1.bf16.msra.mxu0 0
        %1941 = vmatprep.subr.bf16.mxu0 0
        %1942 = vmatpush1.bf16.msra.mxu0 0
        %1943 = vmatprep.mubr.bf16.mxu0 0
        %1944 = vmatmul.mubr.bf16.gmra.mrb[0].mxu0 %v1909
        %v1945 = vpop.f32.mrb[0].mxu0
        %v1946 = vadd.f32 %v1894, %v1945
        %v1947 = vpop.f32.mrb[0].mxu0
        %v1948 = vpop.f32.mrb[0].mxu0
        %v1949 = vpop.f32.mrb[0].mxu0
        %1950 = vdwg.mxu0
        %v1951 = vadd.f32 %v655, %v1946
        %v1952 = vld [vmem:[%s11] sm:$0x1]
        %v1953 = vld [vmem:[%s12] sm:$0x1]
        %v1954 = vsel %vm683, %v1951, 0.0
        %1955 = vadd.xlane.f32.xlu0 %v1954
        %v1956 = vpop.xlane.xlu0 %1955
        %v1957 = vrcp.pop 32.0
        %v1958 = vmul.f32 %v1956, %v1957
        %v1959 = vsub.f32 %v1951, %v1958
        %v1960 = vmul.f32 %v1959, %v1959
        %v1961 = vsel %vm683, %v1960, 0.0
        %1962 = vadd.xlane.f32.xlu0 %v1961
        %v1963 = vpop.xlane.xlu0 %1962
        %v1964 = vmul.f32 %v1963, %v1957
        %v1965 = vadd.f32 %v1964, 1e-12
        %v1966 = vrsqrt.pop %v1965
        %v1967 = vmul.f32 %v1959, %v1966
        %v1969 = vlaneseq
        %v1970 = vshrl.u32 %v1969, 7
        %v1971 = vsub.s32 0, %v1970
        %v1972 = vrot.slane %v1952, %v1971
        %v1974 = vmul.f32 %v1967, %v1972
        %v1976 = vlaneseq
        %v1977 = vshrl.u32 %v1976, 7
        %v1978 = vsub.s32 0, %v1977
        %v1979 = vrot.slane %v1953, %v1978
        %v1981 = vadd.f32 %v1974, %v1979
        %v1982 = vpack.c.bf16 %v1981, %v1981
        %v1983 = vld [vmem:[%s13] sm:$0xf]
        %v1984 = vld [vmem:[%s13 + $0x4] sm:$0xf]
        %v1985 = vld [vmem:[%s13 + $0x8] sm:$0xf]
        %v1986 = vld [vmem:[%s13 + $0xc] sm:$0xf]
        %v1987 = vld [vmem:[%s14] sm:$0x1]
        %v1989 = vlaneseq
        %v1990 = vshrl.u32 %v1989, 7
        %v1991 = vsub.s32 0, %v1990
        %v1992 = vrot.slane %v1987, %v1991
        %v1998 = vunpack.c.l.b16 %v1983
        %v1999 = vunpack.c.l.b16 %v1984
        %v2000 = vunpack.c.l.b16 %v1985
        %v2001 = vunpack.c.l.b16 %v1986
        %v2002 = vpack.c.b16 %v1999, %v1998
        %v2003 = vpack.c.b16 %v2001, %v2000
        %v2007 = vsel %vm683, %v1982, 0
        %2009 = vmatprep.subr.bf16.mxu0 0
        %2010 = vmatpush1.bf16.msra.mxu0 %v2002
        %2011 = vmatprep.subr.bf16.mxu0 0
        %2012 = vmatpush1.bf16.msra.mxu0 %v2003
        %2013 = vmatprep.subr.bf16.mxu0 0
        %2014 = vmatpush1.bf16.msra.mxu0 0
        %2015 = vmatprep.subr.bf16.mxu0 0
        %2016 = vmatpush1.bf16.msra.mxu0 0
        %2017 = vmatprep.subr.bf16.mxu0 0
        %2018 = vmatpush1.bf16.msra.mxu0 0
        %2019 = vmatprep.subr.bf16.mxu0 0
        %2020 = vmatpush1.bf16.msra.mxu0 0
        %2021 = vmatprep.subr.bf16.mxu0 0
        %2022 = vmatpush1.bf16.msra.mxu0 0
        %2023 = vmatprep.subr.bf16.mxu0 0
        %2024 = vmatpush1.bf16.msra.mxu0 0
        %2025 = vmatprep.subr.bf16.mxu0 0
        %2026 = vmatpush1.bf16.msra.mxu0 0
        %2027 = vmatprep.subr.bf16.mxu0 0
        %2028 = vmatpush1.bf16.msra.mxu0 0
        %2029 = vmatprep.subr.bf16.mxu0 0
        %2030 = vmatpush1.bf16.msra.mxu0 0
        %2031 = vmatprep.subr.bf16.mxu0 0
        %2032 = vmatpush1.bf16.msra.mxu0 0
        %2033 = vmatprep.subr.bf16.mxu0 0
        %2034 = vmatpush1.bf16.msra.mxu0 0
        %2035 = vmatprep.subr.bf16.mxu0 0
        %2036 = vmatpush1.bf16.msra.mxu0 0
        %2037 = vmatprep.subr.bf16.mxu0 0
        %2038 = vmatpush1.bf16.msra.mxu0 0
        %2039 = vmatprep.subr.bf16.mxu0 0
        %2040 = vmatpush1.bf16.msra.mxu0 0
        %2041 = vmatprep.mubr.bf16.mxu0 0
        %2042 = vmatmul.mubr.bf16.gmra.mrb[0].mxu0 %v2007
        %v2043 = vpop.f32.mrb[0].mxu0
        %v2044 = vadd.f32 %v1992, %v2043
        %v2045 = vpop.f32.mrb[0].mxu0
        %v2046 = vpop.f32.mrb[0].mxu0
        %v2047 = vpop.f32.mrb[0].mxu0
        %2048 = vdwg.mxu0
        %v2049 = vmul.f32 %v2044, 0.5
        %v2050 = vmul.f32 %v2044, 0.044715
        %v2051 = vmul.f32 %v2050, %v2044
        %v2052 = vmul.f32 %v2051, %v2044
        %v2053 = vadd.f32 %v2044, %v2052
        %v2054 = vmul.f32 %v2053, 0.7978846
        %v2055 = vtanh.pop %v2054
        %v2056 = vadd.f32 %v2055, 1.0
        %v2057 = vmul.f32 %v2049, %v2056
        %v2058 = vpack.c.bf16 %v2057, %v2057
        %v2059 = vld [vmem:[%s15] sm:$0xf]
        %v2060 = vld [vmem:[%s15 + $0x4] sm:$0xf]
        %v2061 = vld [vmem:[%s15 + $0x8] sm:$0xf]
        %v2062 = vld [vmem:[%s15 + $0xc] sm:$0xf]
        %v2063 = vld [vmem:[%s15 + $0x10] sm:$0xf]
        %v2064 = vld [vmem:[%s15 + $0x14] sm:$0xf]
        %v2065 = vld [vmem:[%s15 + $0x18] sm:$0xf]
        %v2066 = vld [vmem:[%s15 + $0x1c] sm:$0xf]
        %v2067 = vld [vmem:[%s16] sm:$0x1]
        %v2069 = vlaneseq
        %v2070 = vshrl.u32 %v2069, 7
        %v2071 = vsub.s32 0, %v2070
        %v2072 = vrot.slane %v2067, %v2071
        %v2082 = vunpack.c.l.b16 %v2059
        %v2083 = vunpack.c.l.b16 %v2060
        %v2084 = vunpack.c.l.b16 %v2061
        %v2085 = vunpack.c.l.b16 %v2062
        %v2086 = vunpack.c.l.b16 %v2063
        %v2087 = vunpack.c.l.b16 %v2064
        %v2088 = vunpack.c.l.b16 %v2065
        %v2089 = vunpack.c.l.b16 %v2066
        %v2090 = vpack.c.b16 %v2083, %v2082
        %v2091 = vpack.c.b16 %v2085, %v2084
        %v2092 = vpack.c.b16 %v2087, %v2086
        %v2093 = vpack.c.b16 %v2089, %v2088
        %vm2098 = vcmask 523264
        %v2100 = vsel %vm2098, %v2058, 0
        %2102 = vmatprep.subr.bf16.mxu0 0
        %2103 = vmatpush1.bf16.msra.mxu0 %v2090
        %2104 = vmatprep.subr.bf16.mxu0 0
        %2105 = vmatpush1.bf16.msra.mxu0 %v2091
        %2106 = vmatprep.subr.bf16.mxu0 0
        %2107 = vmatpush1.bf16.msra.mxu0 %v2092
        %2108 = vmatprep.subr.bf16.mxu0 0
        %2109 = vmatpush1.bf16.msra.mxu0 %v2093
        %2110 = vmatprep.subr.bf16.mxu0 0
        %2111 = vmatpush1.bf16.msra.mxu0 0
        %2112 = vmatprep.subr.bf16.mxu0 0
        %2113 = vmatpush1.bf16.msra.mxu0 0
        %2114 = vmatprep.subr.bf16.mxu0 0
        %2115 = vmatpush1.bf16.msra.mxu0 0
        %2116 = vmatprep.subr.bf16.mxu0 0
        %2117 = vmatpush1.bf16.msra.mxu0 0
        %2118 = vmatprep.subr.bf16.mxu0 0
        %2119 = vmatpush1.bf16.msra.mxu0 0
        %2120 = vmatprep.subr.bf16.mxu0 0
        %2121 = vmatpush1.bf16.msra.mxu0 0
        %2122 = vmatprep.subr.bf16.mxu0 0
        %2123 = vmatpush1.bf16.msra.mxu0 0
        %2124 = vmatprep.subr.bf16.mxu0 0
        %2125 = vmatpush1.bf16.msra.mxu0 0
        %2126 = vmatprep.subr.bf16.mxu0 0
        %2127 = vmatpush1.bf16.msra.mxu0 0
        %2128 = vmatprep.subr.bf16.mxu0 0
        %2129 = vmatpush1.bf16.msra.mxu0 0
        %2130 = vmatprep.subr.bf16.mxu0 0
        %2131 = vmatpush1.bf16.msra.mxu0 0
        %2132 = vmatprep.subr.bf16.mxu0 0
        %2133 = vmatpush1.bf16.msra.mxu0 0
        %2134 = vmatprep.mubr.bf16.mxu0 0
        %2135 = vmatmul.mubr.bf16.gmra.mrb[0].mxu0 %v2100
        %v2136 = vpop.f32.mrb[0].mxu0
        %v2137 = vadd.f32 %v2072, %v2136
        %v2138 = vpop.f32.mrb[0].mxu0
        %v2139 = vpop.f32.mrb[0].mxu0
        %v2140 = vpop.f32.mrb[0].mxu0
        %2141 = vdwg.mxu0
        %v2142 = vadd.f32 %v1981, %v2137
        %v2143 = vld [vmem:[%s17] sm:$0x1]
        %v2144 = vld [vmem:[%s18] sm:$0x1]
        %v2145 = vsel %vm683, %v2142, 0.0
        %2146 = vadd.xlane.f32.xlu0 %v2145
        %v2147 = vpop.xlane.xlu0 %2146
        %v2148 = vmul.f32 %v2147, %v1957
        %v2149 = vsub.f32 %v2142, %v2148
        %v2150 = vmul.f32 %v2149, %v2149
        %v2151 = vsel %vm683, %v2150, 0.0
        %2152 = vadd.xlane.f32.xlu0 %v2151
        %v2153 = vpop.xlane.xlu0 %2152
        %v2154 = vmul.f32 %v2153, %v1957
        %v2155 = vadd.f32 %v2154, 1e-12
        %v2156 = vrsqrt.pop %v2155
        %v2157 = vmul.f32 %v2149, %v2156
        %v2159 = vlaneseq
        %v2160 = vshrl.u32 %v2159, 7
        %v2161 = vsub.s32 0, %v2160
        %v2162 = vrot.slane %v2143, %v2161
        %v2164 = vmul.f32 %v2157, %v2162
        %v2166 = vlaneseq
        %v2167 = vshrl.u32 %v2166, 7
        %v2168 = vsub.s32 0, %v2167
        %v2169 = vrot.slane %v2144, %v2168
        %v2171 = vadd.f32 %v2164, %v2169
        %2172 = vst.msk [vmem:[%s639] sm:$0xff] %vm683, %v2171
        %s2173 = sand.u32 %s471, 1
        %s2174 = scalar_lea.sflag [#allocation3], %s2173
        %s2175 = sand.u32 %s471, 1
        %s2176 = smul.addr %s2175, 8
        %s2177 = scalar_lea.vmem [#allocation2], %s2176
        // Predicated region
        $region97: #{_lambda_.11} parent=95 // pred_check
          %p2178 = pneg %p481
        $region98: #{_lambda_.11} parent=95 // pred_check_branch
          %2180 = sbr.rel (%p2178) target = $region100
        $region99: #{_lambda_.11} parent=95 // pred_region
          %s2182 = ssub.s32 128, 128
          %2183 = vsyncadd %s2174, %s2182
          %s2184 = sadd.s32 %s38, %s37
          %s2185 = smul.addr %s2184, 128
          %s2186 = scalar_lea.hbm %s19, %s2185
          %s2188 = sshll.u32 %s2177, 4
          %s2189 = int_to_ptr.vmem [resolvable:$true] %s2188
          %2191 = dma.vmem_to_hbm [thread:$0]  %s2189, 128, %s2186, %s2174
        $region100: #{_lambda_.11} parent=95 // pred_fallthru
          _
      $region96: #{_lambda_.11} parent=5 // pred_fallthru
        _
      %p2192 = scmp.le.s32.totalorder 2, %s28
      // Predicated region
      $region101: #{_lambda_.11} parent=5 // pred_check
        %p2193 = pneg %p2192
      $region102: #{_lambda_.11} parent=5 // pred_check_branch
        %2195 = sbr.rel (%p2193) target = $region104
      $region103: #{_lambda_.11} parent=5 // pred_region
        %s2196 = ssub.s32 %s28, 2
        // Predicated region
        $region105: #{_lambda_.11} parent=103 // pred_check
          %p2197 = pneg %p487
        $region106: #{_lambda_.11} parent=103 // pred_check_branch
          %2199 = sbr.rel (%p2197) target = $region108
        $region107: #{_lambda_.11} parent=103 // pred_region
          %s2200 = sand.u32 %s472, 1
          %s2201 = scalar_lea.sflag [#allocation3], %s2200
          %s2202 = sand.u32 %s472, 1
          %s2203 = smul.addr %s2202, 8
          %s2204 = scalar_lea.vmem [#allocation2], %s2203
          %2205 = dma.done %s2201, 128
        $region108: #{_lambda_.11} parent=103 // pred_fallthru
          _
      $region104: #{_lambda_.11} parent=5 // pred_fallthru
        _
    $region6: #{_lambda_.11} parent=1 // loop_footer
      %s32 = sadd.s32 1, %s28
    $region7: #{_lambda_.11} parent=1 // loop_footer_branch
      %27 = sbr.rel target = $region3
    $region8: #{_lambda_.11} parent=1 // loop_exit
      _
    %2206 = vsyncpa [#allocation3], 1
    %s2207 = scalar_lea.sflag [#allocation3], 1
    %2208 = vsyncpa %s2207, 1

</llo_original>
